<compile_context>
chip_gen: v5e
topology: v5e:2x2
jax: 0.10.0
libtpu: 0.0.40
codegen_flags: <defaults>
</compile_context>

<pallas_src>
import numpy as np

import jax
import jax.numpy as jnp
from jax.experimental import pallas as pl
from jax.experimental.pallas import tpu as pltpu

LEAKY_SLOPE = 0.01   # F.leaky_relu default
BN_EPS = 1e-5        # nn.BatchNorm2d default


# ---------------------------------------------------------------------------
# Parameter construction (deterministic; eval-mode BN folded into the weights)
# ---------------------------------------------------------------------------
def _conv_bn_folded(key, cin, cout, ksize):
    """Conv2d(bias=False)+BatchNorm2d folded to a (cout, K) weight slab and a bias."""
    kw_, kg, kb = jax.random.split(key, 3)
    wconv = jax.random.normal(kw_, (cout, cin, ksize, ksize), jnp.float32)
    wconv = wconv / np.sqrt(cin * ksize * ksize)
    gamma = 1.0 + 0.1 * jax.random.normal(kg, (cout,), jnp.float32)
    beta = 0.1 * jax.random.normal(kb, (cout,), jnp.float32)
    running_mean = jnp.zeros((cout,), jnp.float32)
    running_var = jnp.ones((cout,), jnp.float32)
    scale = gamma / jnp.sqrt(running_var + BN_EPS)
    bias = beta - running_mean * scale
    wf = wconv * scale[:, None, None, None]
    if ksize == 3:
        # (cout,cin,kh,kw) -> (cout,kh,kw,cin) -> (cout, 9*cin).
        # Column order is tap-major / cin-minor, matching the in-kernel tap concat.
        slab = jnp.transpose(wf, (0, 2, 3, 1)).reshape(cout, 9 * cin)
    else:
        slab = wf.reshape(cout, cin)                         # 1x1 shortcut conv
    return {"w": slab, "b": bias}


_CONV_LAYOUT = [
    # (name, cin, cout, ksize)
    ("stem",   1, 16, 3),
    ("l1b1c1", 16, 16, 3), ("l1b1c2", 16, 16, 3),
    ("l1b2c1", 16, 16, 3), ("l1b2c2", 16, 16, 3),
    ("l2b1c1", 16, 32, 3), ("l2b1c2", 32, 32, 3), ("l2b1sc", 16, 32, 1),
    ("l2b2c1", 32, 32, 3), ("l2b2c2", 32, 32, 3),
    ("l3b1c1", 32, 64, 3), ("l3b1c2", 64, 64, 3), ("l3b1sc", 32, 64, 1),
    ("l3b2c1", 64, 64, 3), ("l3b2c2", 64, 64, 3),
]

_PACK_ORDER = [name for (name, _, _, _) in _CONV_LAYOUT] + ["fc"]


def init_params(key, num_classes=15):
    keys = jax.random.split(key, len(_CONV_LAYOUT) + 1)
    params = {}
    for (name, cin, cout, ks), k in zip(_CONV_LAYOUT, keys[:-1]):
        params[name] = _conv_bn_folded(k, cin, cout, ks)
    kfw, kfb = jax.random.split(keys[-1])
    bound = 1.0 / np.sqrt(64)
    params["fc"] = {
        "w": jax.random.uniform(kfw, (num_classes, 64), jnp.float32, -bound, bound),
        "b": jax.random.uniform(kfb, (num_classes,), jnp.float32, -bound, bound),
    }
    return params


# ---------------------------------------------------------------------------
# Host-side packing: one bf16 weight slab, one f32 bias slab
# ---------------------------------------------------------------------------
def _select_T(h, w):
    """(h*w, (h/2)*(w/2)) 0/1 matrix implementing stride-2 spatial subsampling."""
    ho, wo = h // 2, w // 2
    m = np.zeros((h * w, ho * wo), np.float32)
    for io in range(ho):
        for jo in range(wo):
            m[(2 * io) * w + (2 * jo), io * wo + jo] = 1.0
    return jnp.asarray(m)


def _pack_model(params, h, w):
    entries = [(name, params[name]["w"]) for name in _PACK_ORDER]
    entries.append(("sel2", _select_T(h, w)))
    entries.append(("sel3", _select_T(h // 2, w // 2)))
    width = max(int(a.shape[1]) for _, a in entries)

    wmeta, rows, r = {}, [], 0
    for name, a in entries:
        rr, cc = int(a.shape[0]), int(a.shape[1])
        pad_r = (-rr) % 8
        rows.append(jnp.pad(a, ((0, pad_r), (0, width - cc))))
        wmeta[name] = (r, rr, cc)
        r += rr + pad_r
    wpack = jnp.concatenate(rows, axis=0).astype(jnp.bfloat16)

    brows = max(int(params[name]["b"].shape[0]) for name in _PACK_ORDER)
    brows = ((brows + 7) // 8) * 8
    bmeta, cols = {}, []
    for idx, name in enumerate(_PACK_ORDER):
        b = params[name]["b"]
        cout = int(b.shape[0])
        cols.append(jnp.pad(b, (0, brows - cout)).reshape(brows, 1))
        bmeta[name] = (idx, cout)
    bpack = jnp.concatenate(cols, axis=1).astype(jnp.float32)
    return wpack, bpack, wmeta, bmeta


# ---------------------------------------------------------------------------
# The fused Pallas kernel (one image per grid step)
# ---------------------------------------------------------------------------
def _make_kernel(h, w, wmeta, bmeta):
    h2, w2, h3, w3 = h // 2, w // 2, h // 4, w // 4
    mg3 = h3 * w3

    def kernel(x_ref, wp_ref, bp_ref, out_ref):
        def W(name):
            r0, rr, cc = wmeta[name]
            return wp_ref[r0:r0 + rr, 0:cc]                   # bf16 (rr, cc)

        def B(name):
            col, cout = bmeta[name]
            return bp_ref[0:cout, col:col + 1]                 # f32 (cout, 1)

        def leaky(v):
            return jnp.where(v > 0, v, LEAKY_SLOPE * v)

        def tap_masks(hh, ww):
            lg = int(np.log2(ww))
            l = jax.lax.broadcasted_iota(jnp.int32, (1, hh * ww), 1)
            i, j = l >> lg, l & (ww - 1)
            ms = []
            for dh in (-1, 0, 1):
                for dw in (-1, 0, 1):
                    ms.append((i + dh >= 0) & (i + dh < hh) &
                              (j + dw >= 0) & (j + dw < ww))
            return ms

        def lane_shift(xb, s, mg):
            """result[:, l] = xb[:, (l + s) % mg]; wrapped lanes are masked later."""
            s = s % mg
            if s == 0:
                return xb
            return jnp.concatenate([xb[:, s:], xb[:, :s]], axis=1)

        def conv3x3(x, name, masks, hh, ww):
            """3x3 / pad=1 / stride=1 conv as ONE big-K bf16 MXU matmul (tap-concat)."""
            mg = hh * ww
            xb = x.astype(jnp.bfloat16)
            slabs, k = [], 0
            for dh in (-1, 0, 1):
                for dw in (-1, 0, 1):
                    t = lane_shift(xb, dh * ww + dw, mg)
                    slabs.append(jnp.where(masks[k], t, jnp.zeros_like(t)))
                    k += 1
            xcat = jnp.concatenate(slabs, axis=0)              # (9*cin, mg) bf16
            return jnp.dot(W(name), xcat, preferred_element_type=jnp.float32)

        def basic_block(x, c1, c2, masks, hh, ww):
            o = leaky(conv3x3(x, c1, masks, hh, ww) + B(c1))
            o = conv3x3(o, c2, masks, hh, ww) + B(c2)
            return leaky(o + x)                                # identity shortcut

        def down_block(x, c1, c2, sc, sel, masks_in, masks_out, hh, ww):
            sel_t = W(sel)                                     # (mg_in, mg_out) bf16 0/1
            full = conv3x3(x, c1, masks_in, hh, ww)            # stride-1 conv @ full res
            o = jnp.dot(full.astype(jnp.bfloat16), sel_t,      # stride-2 subsample
                        preferred_element_type=jnp.float32)
            o = leaky(o + B(c1))
            o = conv3x3(o, c2, masks_out, hh // 2, ww // 2) + B(c2)
            x_ds = jnp.dot(x.astype(jnp.bfloat16), sel_t,      # 1x1 stride-2 shortcut
                           preferred_element_type=jnp.float32)
            s = jnp.dot(W(sc), x_ds.astype(jnp.bfloat16),
                        preferred_element_type=jnp.float32) + B(sc)
            return leaky(o + s)

        m1, m2, m3 = tap_masks(h, w), tap_masks(h2, w2), tap_masks(h3, w3)

        x = x_ref[0].astype(jnp.float32)                       # (1, h*w) channels-first
        a = leaky(conv3x3(x, "stem", m1, h, w) + B("stem"))    # (16, h*w)
        a = basic_block(a, "l1b1c1", "l1b1c2", m1, h, w)
        a = basic_block(a, "l1b2c1", "l1b2c2", m1, h, w)
        a = down_block(a, "l2b1c1", "l2b1c2", "l2b1sc", "sel2", m1, m2, h, w)
        a = basic_block(a, "l2b2c1", "l2b2c2", m2, h2, w2)
        a = down_block(a, "l3b1c1", "l3b1c2", "l3b1sc", "sel3", m2, m3, h2, w2)
        a = basic_block(a, "l3b2c1", "l3b2c2", m3, h3, w3)     # (64, h3*w3)

        pooled = jnp.sum(a, axis=1, keepdims=True) * (1.0 / mg3)   # adaptive avg-pool
        # TODO(synk): Dropout(p=0.2) and BN batch-statistics are train-time only;
        # this kernel implements eval/inference (dropout = identity, BN folded).
        logits = jnp.dot(W("fc"), pooled.astype(jnp.bfloat16),
                         preferred_element_type=jnp.float32) + B("fc")   # (nc, 1)
        out_ref[0] = logits

    return kernel


def _flops_per_image(h, w, num_classes):
    h2, w2, h3, w3 = h // 2, w // 2, h // 4, w // 4
    m1, m2, m3 = h * w, h2 * w2, h3 * w3
    macs = m1 * 9 * 16                                          # stem
    macs += 4 * m1 * 144 * 16                                   # layer1
    macs += m1 * 144 * 32 + m1 * m2 * 32 + m2 * 288 * 32        # layer2 block1
    macs += m1 * m2 * 16 + m2 * 16 * 32                         # layer2 shortcut
    macs += 2 * m2 * 288 * 32                                   # layer2 block2
    macs += m2 * 288 * 64 + m2 * m3 * 64 + m3 * 576 * 64        # layer3 block1
    macs += m2 * m3 * 32 + m3 * 32 * 64                         # layer3 shortcut
    macs += 2 * m3 * 576 * 64                                   # layer3 block2
    macs += 64 * num_classes                                    # fc
    return 2 * macs


# ---------------------------------------------------------------------------
# Forward pass: one fused pallas_call, grid over the batch
# ---------------------------------------------------------------------------
def forward(x_nchw, params):
    n, cin, h, w = x_nchw.shape
    assert cin == 1, "conv1 expects a single input channel"
    assert h == w and h >= 8 and (h & (h - 1)) == 0, "power-of-two spatial size expected"
    num_classes = params["fc"]["w"].shape[0]

    wpack, bpack, wmeta, bmeta = _pack_model(params, h, w)
    x_cf = x_nchw.reshape(n, 1, h * w).astype(jnp.float32)      # per-image (1, H*W) rows

    kernel = _make_kernel(h, w, wmeta, bmeta)
    flops = n * _flops_per_image(h, w, num_classes)
    bytes_accessed = int(x_cf.size * 4 + wpack.size * 2 + bpack.size * 4
                         + n * num_classes * 4)

    out = pl.pallas_call(
        kernel,
        out_shape=jax.ShapeDtypeStruct((n, num_classes, 1), jnp.float32),
        grid=(n,),
        in_specs=[
            pl.BlockSpec((1, 1, h * w), lambda i: (i, 0, 0)),
            pl.BlockSpec(wpack.shape, lambda i: (0, 0)),        # grid-invariant params
            pl.BlockSpec(bpack.shape, lambda i: (0, 0)),
        ],
        out_specs=pl.BlockSpec((1, num_classes, 1), lambda i: (i, 0, 0)),
        compiler_params=pltpu.CompilerParams(
            dimension_semantics=("parallel",),                  # v7x: 2 TensorCores
            vmem_limit_bytes=32 * 1024 * 1024),
        cost_estimate=pl.CostEstimate(flops=flops, transcendentals=0,
                                      bytes_accessed=bytes_accessed),
    )(x_cf, wpack, bpack)
    return out.reshape(n, num_classes)


# ---------------------------------------------------------------------------
# Pure-JAX (f32, XLA) reference using the same folded parameters
# ---------------------------------------------------------------------------
def reference_forward(x_nchw, params):
    def conv_bn(x, name, stride, ksize):
        slab, b = params[name]["w"], params[name]["b"]
        cout = slab.shape[0]
        if ksize == 3:
            cin = slab.shape[1] // 9
            wt = jnp.transpose(slab.reshape(cout, 3, 3, cin), (0, 3, 1, 2))
            pad = 1
        else:
            cin = slab.shape[1]
            wt = slab.reshape(cout, cin, 1, 1)
            pad = 0
        y = jax.lax.conv_general_dilated(
            x, wt, (stride, stride), [(pad, pad), (pad, pad)],
            dimension_numbers=("NCHW", "OIHW", "NCHW"))
        return y + b.reshape(1, cout, 1, 1)

    def lk(v):
        return jnp.where(v > 0, v, LEAKY_SLOPE * v)

    def block(o, c1, c2, sc=None, stride=1):
        y = lk(conv_bn(o, c1, stride, 3))
        y = conv_bn(y, c2, 1, 3)
        s = o if sc is None else conv_bn(o, sc, stride, 1)
        return lk(y + s)

    o = lk(conv_bn(x_nchw, "stem", 1, 3))
    o = block(o, "l1b1c1", "l1b1c2")
    o = block(o, "l1b2c1", "l1b2c2")
    o = block(o, "l2b1c1", "l2b1c2", "l2b1sc", 2)
    o = block(o, "l2b2c1", "l2b2c2")
    o = block(o, "l3b1c1", "l3b1c2", "l3b1sc", 2)
    o = block(o, "l3b2c1", "l3b2c2")
    feat = jnp.mean(o, axis=(2, 3))
    return feat @ params["fc"]["w"].T + params["fc"]["b"][None, :]


if __name__ == "__main__":
    key = jax.random.PRNGKey(0)
    kparam, kx = jax.random.split(key)
    params = init_params(kparam, num_classes=15)

    # conv1 expects 1 input channel (grayscale); spatial = 16x16, batch = 2.
    x = jax.random.normal(kx, (2, 1, 16, 16), jnp.float32)

    logits = jax.jit(forward)(x, params)
    jax.block_until_ready(logits)
    assert logits.shape == (2, 15), logits.shape
    assert bool(jnp.all(jnp.isfinite(logits)))

    ref = jax.jit(reference_forward)(x, params)
    jax.block_until_ready(ref)
    # bf16 MXU operands -> loose tolerance vs. the f32 reference.
    np.testing.assert_allclose(np.asarray(logits), np.asarray(ref), rtol=0.1, atol=0.1)

    print("KERNEL_OK")
</pallas_src>

<mosaic_0001>
module attributes {stable_mosaic.version = 11 : i64} {
  func.func @kernel(%arg0: i32, %arg1: memref<1x1x256xf32, #tpu.memory_space<vmem>>, %arg2: memref<896x576xbf16, #tpu.memory_space<vmem>>, %arg3: memref<64x16xf32, #tpu.memory_space<vmem>>, %arg4: memref<1x15x1xf32, #tpu.memory_space<vmem>>) attributes {dimension_semantics = [#tpu.dimension_semantics<parallel>], iteration_bounds = array<i64: 2>, scalar_prefetch = 0 : i64, scratch_operands = 0 : i64, tpu.core_type = #tpu.core_type<tc>, window_params = [{transform_indices = @transform_0, window_bounds = array<i64: 1, 1, 256>}, {pipeline_mode = #tpu.pipeline_mode<synchronous>, transform_indices = @transform_1, window_bounds = array<i64: 896, 576>}, {pipeline_mode = #tpu.pipeline_mode<synchronous>, transform_indices = @transform_2, window_bounds = array<i64: 64, 16>}, {transform_indices = @transform_3, window_bounds = array<i64: 1, 15, 1>}]} {
    %0 = tpu.iota {dimensions = array<i32: 1>} : vector<1x256xi32>
    %c4_i32 = arith.constant 4 : i32
    %1 = vector.broadcast %c4_i32 : i32 to vector<1x256xi32>
    %2 = arith.shrsi %0, %1 : vector<1x256xi32>
    %c15_i32 = arith.constant 15 : i32
    %3 = vector.broadcast %c15_i32 : i32 to vector<1x256xi32>
    %4 = arith.andi %0, %3 : vector<1x256xi32>
    %c-1_i32 = arith.constant -1 : i32
    %5 = vector.broadcast %c-1_i32 : i32 to vector<1x256xi32>
    %6 = arith.addi %2, %5 : vector<1x256xi32>
    %c0_i32 = arith.constant 0 : i32
    %7 = vector.broadcast %c0_i32 : i32 to vector<1x256xi32>
    %8 = arith.cmpi sge, %6, %7 : vector<1x256xi32>
    %c-1_i32_0 = arith.constant -1 : i32
    %9 = vector.broadcast %c-1_i32_0 : i32 to vector<1x256xi32>
    %10 = arith.addi %2, %9 : vector<1x256xi32>
    %c16_i32 = arith.constant 16 : i32
    %11 = vector.broadcast %c16_i32 : i32 to vector<1x256xi32>
    %12 = arith.cmpi slt, %10, %11 : vector<1x256xi32>
    %13 = arith.andi %8, %12 : vector<1x256xi1>
    %c-1_i32_1 = arith.constant -1 : i32
    %14 = vector.broadcast %c-1_i32_1 : i32 to vector<1x256xi32>
    %15 = arith.addi %4, %14 : vector<1x256xi32>
    %c0_i32_2 = arith.constant 0 : i32
    %16 = vector.broadcast %c0_i32_2 : i32 to vector<1x256xi32>
    %17 = arith.cmpi sge, %15, %16 : vector<1x256xi32>
    %18 = arith.andi %13, %17 : vector<1x256xi1>
    %c-1_i32_3 = arith.constant -1 : i32
    %19 = vector.broadcast %c-1_i32_3 : i32 to vector<1x256xi32>
    %20 = arith.addi %4, %19 : vector<1x256xi32>
    %c16_i32_4 = arith.constant 16 : i32
    %21 = vector.broadcast %c16_i32_4 : i32 to vector<1x256xi32>
    %22 = arith.cmpi slt, %20, %21 : vector<1x256xi32>
    %23 = arith.andi %18, %22 : vector<1x256xi1>
    %c-1_i32_5 = arith.constant -1 : i32
    %24 = vector.broadcast %c-1_i32_5 : i32 to vector<1x256xi32>
    %25 = arith.addi %2, %24 : vector<1x256xi32>
    %c0_i32_6 = arith.constant 0 : i32
    %26 = vector.broadcast %c0_i32_6 : i32 to vector<1x256xi32>
    %27 = arith.cmpi sge, %25, %26 : vector<1x256xi32>
    %c-1_i32_7 = arith.constant -1 : i32
    %28 = vector.broadcast %c-1_i32_7 : i32 to vector<1x256xi32>
    %29 = arith.addi %2, %28 : vector<1x256xi32>
    %c16_i32_8 = arith.constant 16 : i32
    %30 = vector.broadcast %c16_i32_8 : i32 to vector<1x256xi32>
    %31 = arith.cmpi slt, %29, %30 : vector<1x256xi32>
    %32 = arith.andi %27, %31 : vector<1x256xi1>
    %c0_i32_9 = arith.constant 0 : i32
    %33 = vector.broadcast %c0_i32_9 : i32 to vector<1x256xi32>
    %34 = arith.addi %4, %33 : vector<1x256xi32>
    %c0_i32_10 = arith.constant 0 : i32
    %35 = vector.broadcast %c0_i32_10 : i32 to vector<1x256xi32>
    %36 = arith.cmpi sge, %34, %35 : vector<1x256xi32>
    %37 = arith.andi %32, %36 : vector<1x256xi1>
    %c0_i32_11 = arith.constant 0 : i32
    %38 = vector.broadcast %c0_i32_11 : i32 to vector<1x256xi32>
    %39 = arith.addi %4, %38 : vector<1x256xi32>
    %c16_i32_12 = arith.constant 16 : i32
    %40 = vector.broadcast %c16_i32_12 : i32 to vector<1x256xi32>
    %41 = arith.cmpi slt, %39, %40 : vector<1x256xi32>
    %42 = arith.andi %37, %41 : vector<1x256xi1>
    %c-1_i32_13 = arith.constant -1 : i32
    %43 = vector.broadcast %c-1_i32_13 : i32 to vector<1x256xi32>
    %44 = arith.addi %2, %43 : vector<1x256xi32>
    %c0_i32_14 = arith.constant 0 : i32
    %45 = vector.broadcast %c0_i32_14 : i32 to vector<1x256xi32>
    %46 = arith.cmpi sge, %44, %45 : vector<1x256xi32>
    %c-1_i32_15 = arith.constant -1 : i32
    %47 = vector.broadcast %c-1_i32_15 : i32 to vector<1x256xi32>
    %48 = arith.addi %2, %47 : vector<1x256xi32>
    %c16_i32_16 = arith.constant 16 : i32
    %49 = vector.broadcast %c16_i32_16 : i32 to vector<1x256xi32>
    %50 = arith.cmpi slt, %48, %49 : vector<1x256xi32>
    %51 = arith.andi %46, %50 : vector<1x256xi1>
    %c1_i32 = arith.constant 1 : i32
    %52 = vector.broadcast %c1_i32 : i32 to vector<1x256xi32>
    %53 = arith.addi %4, %52 : vector<1x256xi32>
    %c0_i32_17 = arith.constant 0 : i32
    %54 = vector.broadcast %c0_i32_17 : i32 to vector<1x256xi32>
    %55 = arith.cmpi sge, %53, %54 : vector<1x256xi32>
    %56 = arith.andi %51, %55 : vector<1x256xi1>
    %c1_i32_18 = arith.constant 1 : i32
    %57 = vector.broadcast %c1_i32_18 : i32 to vector<1x256xi32>
    %58 = arith.addi %4, %57 : vector<1x256xi32>
    %c16_i32_19 = arith.constant 16 : i32
    %59 = vector.broadcast %c16_i32_19 : i32 to vector<1x256xi32>
    %60 = arith.cmpi slt, %58, %59 : vector<1x256xi32>
    %61 = arith.andi %56, %60 : vector<1x256xi1>
    %c0_i32_20 = arith.constant 0 : i32
    %62 = vector.broadcast %c0_i32_20 : i32 to vector<1x256xi32>
    %63 = arith.addi %2, %62 : vector<1x256xi32>
    %c0_i32_21 = arith.constant 0 : i32
    %64 = vector.broadcast %c0_i32_21 : i32 to vector<1x256xi32>
    %65 = arith.cmpi sge, %63, %64 : vector<1x256xi32>
    %c0_i32_22 = arith.constant 0 : i32
    %66 = vector.broadcast %c0_i32_22 : i32 to vector<1x256xi32>
    %67 = arith.addi %2, %66 : vector<1x256xi32>
    %c16_i32_23 = arith.constant 16 : i32
    %68 = vector.broadcast %c16_i32_23 : i32 to vector<1x256xi32>
    %69 = arith.cmpi slt, %67, %68 : vector<1x256xi32>
    %70 = arith.andi %65, %69 : vector<1x256xi1>
    %c-1_i32_24 = arith.constant -1 : i32
    %71 = vector.broadcast %c-1_i32_24 : i32 to vector<1x256xi32>
    %72 = arith.addi %4, %71 : vector<1x256xi32>
    %c0_i32_25 = arith.constant 0 : i32
    %73 = vector.broadcast %c0_i32_25 : i32 to vector<1x256xi32>
    %74 = arith.cmpi sge, %72, %73 : vector<1x256xi32>
    %75 = arith.andi %70, %74 : vector<1x256xi1>
    %c-1_i32_26 = arith.constant -1 : i32
    %76 = vector.broadcast %c-1_i32_26 : i32 to vector<1x256xi32>
    %77 = arith.addi %4, %76 : vector<1x256xi32>
    %c16_i32_27 = arith.constant 16 : i32
    %78 = vector.broadcast %c16_i32_27 : i32 to vector<1x256xi32>
    %79 = arith.cmpi slt, %77, %78 : vector<1x256xi32>
    %80 = arith.andi %75, %79 : vector<1x256xi1>
    %c0_i32_28 = arith.constant 0 : i32
    %81 = vector.broadcast %c0_i32_28 : i32 to vector<1x256xi32>
    %82 = arith.addi %2, %81 : vector<1x256xi32>
    %c0_i32_29 = arith.constant 0 : i32
    %83 = vector.broadcast %c0_i32_29 : i32 to vector<1x256xi32>
    %84 = arith.cmpi sge, %82, %83 : vector<1x256xi32>
    %c0_i32_30 = arith.constant 0 : i32
    %85 = vector.broadcast %c0_i32_30 : i32 to vector<1x256xi32>
    %86 = arith.addi %2, %85 : vector<1x256xi32>
    %c16_i32_31 = arith.constant 16 : i32
    %87 = vector.broadcast %c16_i32_31 : i32 to vector<1x256xi32>
    %88 = arith.cmpi slt, %86, %87 : vector<1x256xi32>
    %89 = arith.andi %84, %88 : vector<1x256xi1>
    %c0_i32_32 = arith.constant 0 : i32
    %90 = vector.broadcast %c0_i32_32 : i32 to vector<1x256xi32>
    %91 = arith.addi %4, %90 : vector<1x256xi32>
    %c0_i32_33 = arith.constant 0 : i32
    %92 = vector.broadcast %c0_i32_33 : i32 to vector<1x256xi32>
    %93 = arith.cmpi sge, %91, %92 : vector<1x256xi32>
    %94 = arith.andi %89, %93 : vector<1x256xi1>
    %c0_i32_34 = arith.constant 0 : i32
    %95 = vector.broadcast %c0_i32_34 : i32 to vector<1x256xi32>
    %96 = arith.addi %4, %95 : vector<1x256xi32>
    %c16_i32_35 = arith.constant 16 : i32
    %97 = vector.broadcast %c16_i32_35 : i32 to vector<1x256xi32>
    %98 = arith.cmpi slt, %96, %97 : vector<1x256xi32>
    %99 = arith.andi %94, %98 : vector<1x256xi1>
    %c0_i32_36 = arith.constant 0 : i32
    %100 = vector.broadcast %c0_i32_36 : i32 to vector<1x256xi32>
    %101 = arith.addi %2, %100 : vector<1x256xi32>
    %c0_i32_37 = arith.constant 0 : i32
    %102 = vector.broadcast %c0_i32_37 : i32 to vector<1x256xi32>
    %103 = arith.cmpi sge, %101, %102 : vector<1x256xi32>
    %c0_i32_38 = arith.constant 0 : i32
    %104 = vector.broadcast %c0_i32_38 : i32 to vector<1x256xi32>
    %105 = arith.addi %2, %104 : vector<1x256xi32>
    %c16_i32_39 = arith.constant 16 : i32
    %106 = vector.broadcast %c16_i32_39 : i32 to vector<1x256xi32>
    %107 = arith.cmpi slt, %105, %106 : vector<1x256xi32>
    %108 = arith.andi %103, %107 : vector<1x256xi1>
    %c1_i32_40 = arith.constant 1 : i32
    %109 = vector.broadcast %c1_i32_40 : i32 to vector<1x256xi32>
    %110 = arith.addi %4, %109 : vector<1x256xi32>
    %c0_i32_41 = arith.constant 0 : i32
    %111 = vector.broadcast %c0_i32_41 : i32 to vector<1x256xi32>
    %112 = arith.cmpi sge, %110, %111 : vector<1x256xi32>
    %113 = arith.andi %108, %112 : vector<1x256xi1>
    %c1_i32_42 = arith.constant 1 : i32
    %114 = vector.broadcast %c1_i32_42 : i32 to vector<1x256xi32>
    %115 = arith.addi %4, %114 : vector<1x256xi32>
    %c16_i32_43 = arith.constant 16 : i32
    %116 = vector.broadcast %c16_i32_43 : i32 to vector<1x256xi32>
    %117 = arith.cmpi slt, %115, %116 : vector<1x256xi32>
    %118 = arith.andi %113, %117 : vector<1x256xi1>
    %c1_i32_44 = arith.constant 1 : i32
    %119 = vector.broadcast %c1_i32_44 : i32 to vector<1x256xi32>
    %120 = arith.addi %2, %119 : vector<1x256xi32>
    %c0_i32_45 = arith.constant 0 : i32
    %121 = vector.broadcast %c0_i32_45 : i32 to vector<1x256xi32>
    %122 = arith.cmpi sge, %120, %121 : vector<1x256xi32>
    %c1_i32_46 = arith.constant 1 : i32
    %123 = vector.broadcast %c1_i32_46 : i32 to vector<1x256xi32>
    %124 = arith.addi %2, %123 : vector<1x256xi32>
    %c16_i32_47 = arith.constant 16 : i32
    %125 = vector.broadcast %c16_i32_47 : i32 to vector<1x256xi32>
    %126 = arith.cmpi slt, %124, %125 : vector<1x256xi32>
    %127 = arith.andi %122, %126 : vector<1x256xi1>
    %c-1_i32_48 = arith.constant -1 : i32
    %128 = vector.broadcast %c-1_i32_48 : i32 to vector<1x256xi32>
    %129 = arith.addi %4, %128 : vector<1x256xi32>
    %c0_i32_49 = arith.constant 0 : i32
    %130 = vector.broadcast %c0_i32_49 : i32 to vector<1x256xi32>
    %131 = arith.cmpi sge, %129, %130 : vector<1x256xi32>
    %132 = arith.andi %127, %131 : vector<1x256xi1>
    %c-1_i32_50 = arith.constant -1 : i32
    %133 = vector.broadcast %c-1_i32_50 : i32 to vector<1x256xi32>
    %134 = arith.addi %4, %133 : vector<1x256xi32>
    %c16_i32_51 = arith.constant 16 : i32
    %135 = vector.broadcast %c16_i32_51 : i32 to vector<1x256xi32>
    %136 = arith.cmpi slt, %134, %135 : vector<1x256xi32>
    %137 = arith.andi %132, %136 : vector<1x256xi1>
    %c1_i32_52 = arith.constant 1 : i32
    %138 = vector.broadcast %c1_i32_52 : i32 to vector<1x256xi32>
    %139 = arith.addi %2, %138 : vector<1x256xi32>
    %c0_i32_53 = arith.constant 0 : i32
    %140 = vector.broadcast %c0_i32_53 : i32 to vector<1x256xi32>
    %141 = arith.cmpi sge, %139, %140 : vector<1x256xi32>
    %c1_i32_54 = arith.constant 1 : i32
    %142 = vector.broadcast %c1_i32_54 : i32 to vector<1x256xi32>
    %143 = arith.addi %2, %142 : vector<1x256xi32>
    %c16_i32_55 = arith.constant 16 : i32
    %144 = vector.broadcast %c16_i32_55 : i32 to vector<1x256xi32>
    %145 = arith.cmpi slt, %143, %144 : vector<1x256xi32>
    %146 = arith.andi %141, %145 : vector<1x256xi1>
    %c0_i32_56 = arith.constant 0 : i32
    %147 = vector.broadcast %c0_i32_56 : i32 to vector<1x256xi32>
    %148 = arith.addi %4, %147 : vector<1x256xi32>
    %c0_i32_57 = arith.constant 0 : i32
    %149 = vector.broadcast %c0_i32_57 : i32 to vector<1x256xi32>
    %150 = arith.cmpi sge, %148, %149 : vector<1x256xi32>
    %151 = arith.andi %146, %150 : vector<1x256xi1>
    %c0_i32_58 = arith.constant 0 : i32
    %152 = vector.broadcast %c0_i32_58 : i32 to vector<1x256xi32>
    %153 = arith.addi %4, %152 : vector<1x256xi32>
    %c16_i32_59 = arith.constant 16 : i32
    %154 = vector.broadcast %c16_i32_59 : i32 to vector<1x256xi32>
    %155 = arith.cmpi slt, %153, %154 : vector<1x256xi32>
    %156 = arith.andi %151, %155 : vector<1x256xi1>
    %c1_i32_60 = arith.constant 1 : i32
    %157 = vector.broadcast %c1_i32_60 : i32 to vector<1x256xi32>
    %158 = arith.addi %2, %157 : vector<1x256xi32>
    %c0_i32_61 = arith.constant 0 : i32
    %159 = vector.broadcast %c0_i32_61 : i32 to vector<1x256xi32>
    %160 = arith.cmpi sge, %158, %159 : vector<1x256xi32>
    %c1_i32_62 = arith.constant 1 : i32
    %161 = vector.broadcast %c1_i32_62 : i32 to vector<1x256xi32>
    %162 = arith.addi %2, %161 : vector<1x256xi32>
    %c16_i32_63 = arith.constant 16 : i32
    %163 = vector.broadcast %c16_i32_63 : i32 to vector<1x256xi32>
    %164 = arith.cmpi slt, %162, %163 : vector<1x256xi32>
    %165 = arith.andi %160, %164 : vector<1x256xi1>
    %c1_i32_64 = arith.constant 1 : i32
    %166 = vector.broadcast %c1_i32_64 : i32 to vector<1x256xi32>
    %167 = arith.addi %4, %166 : vector<1x256xi32>
    %c0_i32_65 = arith.constant 0 : i32
    %168 = vector.broadcast %c0_i32_65 : i32 to vector<1x256xi32>
    %169 = arith.cmpi sge, %167, %168 : vector<1x256xi32>
    %170 = arith.andi %165, %169 : vector<1x256xi1>
    %c1_i32_66 = arith.constant 1 : i32
    %171 = vector.broadcast %c1_i32_66 : i32 to vector<1x256xi32>
    %172 = arith.addi %4, %171 : vector<1x256xi32>
    %c16_i32_67 = arith.constant 16 : i32
    %173 = vector.broadcast %c16_i32_67 : i32 to vector<1x256xi32>
    %174 = arith.cmpi slt, %172, %173 : vector<1x256xi32>
    %175 = arith.andi %170, %174 : vector<1x256xi1>
    %176 = tpu.iota {dimensions = array<i32: 1>} : vector<1x64xi32>
    %c3_i32 = arith.constant 3 : i32
    %177 = vector.broadcast %c3_i32 : i32 to vector<1x64xi32>
    %178 = arith.shrsi %176, %177 : vector<1x64xi32>
    %c7_i32 = arith.constant 7 : i32
    %179 = vector.broadcast %c7_i32 : i32 to vector<1x64xi32>
    %180 = arith.andi %176, %179 : vector<1x64xi32>
    %c-1_i32_68 = arith.constant -1 : i32
    %181 = vector.broadcast %c-1_i32_68 : i32 to vector<1x64xi32>
    %182 = arith.addi %178, %181 : vector<1x64xi32>
    %c0_i32_69 = arith.constant 0 : i32
    %183 = vector.broadcast %c0_i32_69 : i32 to vector<1x64xi32>
    %184 = arith.cmpi sge, %182, %183 : vector<1x64xi32>
    %c-1_i32_70 = arith.constant -1 : i32
    %185 = vector.broadcast %c-1_i32_70 : i32 to vector<1x64xi32>
    %186 = arith.addi %178, %185 : vector<1x64xi32>
    %c8_i32 = arith.constant 8 : i32
    %187 = vector.broadcast %c8_i32 : i32 to vector<1x64xi32>
    %188 = arith.cmpi slt, %186, %187 : vector<1x64xi32>
    %189 = arith.andi %184, %188 : vector<1x64xi1>
    %c-1_i32_71 = arith.constant -1 : i32
    %190 = vector.broadcast %c-1_i32_71 : i32 to vector<1x64xi32>
    %191 = arith.addi %180, %190 : vector<1x64xi32>
    %c0_i32_72 = arith.constant 0 : i32
    %192 = vector.broadcast %c0_i32_72 : i32 to vector<1x64xi32>
    %193 = arith.cmpi sge, %191, %192 : vector<1x64xi32>
    %194 = arith.andi %189, %193 : vector<1x64xi1>
    %c-1_i32_73 = arith.constant -1 : i32
    %195 = vector.broadcast %c-1_i32_73 : i32 to vector<1x64xi32>
    %196 = arith.addi %180, %195 : vector<1x64xi32>
    %c8_i32_74 = arith.constant 8 : i32
    %197 = vector.broadcast %c8_i32_74 : i32 to vector<1x64xi32>
    %198 = arith.cmpi slt, %196, %197 : vector<1x64xi32>
    %199 = arith.andi %194, %198 : vector<1x64xi1>
    %c-1_i32_75 = arith.constant -1 : i32
    %200 = vector.broadcast %c-1_i32_75 : i32 to vector<1x64xi32>
    %201 = arith.addi %178, %200 : vector<1x64xi32>
    %c0_i32_76 = arith.constant 0 : i32
    %202 = vector.broadcast %c0_i32_76 : i32 to vector<1x64xi32>
    %203 = arith.cmpi sge, %201, %202 : vector<1x64xi32>
    %c-1_i32_77 = arith.constant -1 : i32
    %204 = vector.broadcast %c-1_i32_77 : i32 to vector<1x64xi32>
    %205 = arith.addi %178, %204 : vector<1x64xi32>
    %c8_i32_78 = arith.constant 8 : i32
    %206 = vector.broadcast %c8_i32_78 : i32 to vector<1x64xi32>
    %207 = arith.cmpi slt, %205, %206 : vector<1x64xi32>
    %208 = arith.andi %203, %207 : vector<1x64xi1>
    %c0_i32_79 = arith.constant 0 : i32
    %209 = vector.broadcast %c0_i32_79 : i32 to vector<1x64xi32>
    %210 = arith.addi %180, %209 : vector<1x64xi32>
    %c0_i32_80 = arith.constant 0 : i32
    %211 = vector.broadcast %c0_i32_80 : i32 to vector<1x64xi32>
    %212 = arith.cmpi sge, %210, %211 : vector<1x64xi32>
    %213 = arith.andi %208, %212 : vector<1x64xi1>
    %c0_i32_81 = arith.constant 0 : i32
    %214 = vector.broadcast %c0_i32_81 : i32 to vector<1x64xi32>
    %215 = arith.addi %180, %214 : vector<1x64xi32>
    %c8_i32_82 = arith.constant 8 : i32
    %216 = vector.broadcast %c8_i32_82 : i32 to vector<1x64xi32>
    %217 = arith.cmpi slt, %215, %216 : vector<1x64xi32>
    %218 = arith.andi %213, %217 : vector<1x64xi1>
    %c-1_i32_83 = arith.constant -1 : i32
    %219 = vector.broadcast %c-1_i32_83 : i32 to vector<1x64xi32>
    %220 = arith.addi %178, %219 : vector<1x64xi32>
    %c0_i32_84 = arith.constant 0 : i32
    %221 = vector.broadcast %c0_i32_84 : i32 to vector<1x64xi32>
    %222 = arith.cmpi sge, %220, %221 : vector<1x64xi32>
    %c-1_i32_85 = arith.constant -1 : i32
    %223 = vector.broadcast %c-1_i32_85 : i32 to vector<1x64xi32>
    %224 = arith.addi %178, %223 : vector<1x64xi32>
    %c8_i32_86 = arith.constant 8 : i32
    %225 = vector.broadcast %c8_i32_86 : i32 to vector<1x64xi32>
    %226 = arith.cmpi slt, %224, %225 : vector<1x64xi32>
    %227 = arith.andi %222, %226 : vector<1x64xi1>
    %c1_i32_87 = arith.constant 1 : i32
    %228 = vector.broadcast %c1_i32_87 : i32 to vector<1x64xi32>
    %229 = arith.addi %180, %228 : vector<1x64xi32>
    %c0_i32_88 = arith.constant 0 : i32
    %230 = vector.broadcast %c0_i32_88 : i32 to vector<1x64xi32>
    %231 = arith.cmpi sge, %229, %230 : vector<1x64xi32>
    %232 = arith.andi %227, %231 : vector<1x64xi1>
    %c1_i32_89 = arith.constant 1 : i32
    %233 = vector.broadcast %c1_i32_89 : i32 to vector<1x64xi32>
    %234 = arith.addi %180, %233 : vector<1x64xi32>
    %c8_i32_90 = arith.constant 8 : i32
    %235 = vector.broadcast %c8_i32_90 : i32 to vector<1x64xi32>
    %236 = arith.cmpi slt, %234, %235 : vector<1x64xi32>
    %237 = arith.andi %232, %236 : vector<1x64xi1>
    %c0_i32_91 = arith.constant 0 : i32
    %238 = vector.broadcast %c0_i32_91 : i32 to vector<1x64xi32>
    %239 = arith.addi %178, %238 : vector<1x64xi32>
    %c0_i32_92 = arith.constant 0 : i32
    %240 = vector.broadcast %c0_i32_92 : i32 to vector<1x64xi32>
    %241 = arith.cmpi sge, %239, %240 : vector<1x64xi32>
    %c0_i32_93 = arith.constant 0 : i32
    %242 = vector.broadcast %c0_i32_93 : i32 to vector<1x64xi32>
    %243 = arith.addi %178, %242 : vector<1x64xi32>
    %c8_i32_94 = arith.constant 8 : i32
    %244 = vector.broadcast %c8_i32_94 : i32 to vector<1x64xi32>
    %245 = arith.cmpi slt, %243, %244 : vector<1x64xi32>
    %246 = arith.andi %241, %245 : vector<1x64xi1>
    %c-1_i32_95 = arith.constant -1 : i32
    %247 = vector.broadcast %c-1_i32_95 : i32 to vector<1x64xi32>
    %248 = arith.addi %180, %247 : vector<1x64xi32>
    %c0_i32_96 = arith.constant 0 : i32
    %249 = vector.broadcast %c0_i32_96 : i32 to vector<1x64xi32>
    %250 = arith.cmpi sge, %248, %249 : vector<1x64xi32>
    %251 = arith.andi %246, %250 : vector<1x64xi1>
    %c-1_i32_97 = arith.constant -1 : i32
    %252 = vector.broadcast %c-1_i32_97 : i32 to vector<1x64xi32>
    %253 = arith.addi %180, %252 : vector<1x64xi32>
    %c8_i32_98 = arith.constant 8 : i32
    %254 = vector.broadcast %c8_i32_98 : i32 to vector<1x64xi32>
    %255 = arith.cmpi slt, %253, %254 : vector<1x64xi32>
    %256 = arith.andi %251, %255 : vector<1x64xi1>
    %c0_i32_99 = arith.constant 0 : i32
    %257 = vector.broadcast %c0_i32_99 : i32 to vector<1x64xi32>
    %258 = arith.addi %178, %257 : vector<1x64xi32>
    %c0_i32_100 = arith.constant 0 : i32
    %259 = vector.broadcast %c0_i32_100 : i32 to vector<1x64xi32>
    %260 = arith.cmpi sge, %258, %259 : vector<1x64xi32>
    %c0_i32_101 = arith.constant 0 : i32
    %261 = vector.broadcast %c0_i32_101 : i32 to vector<1x64xi32>
    %262 = arith.addi %178, %261 : vector<1x64xi32>
    %c8_i32_102 = arith.constant 8 : i32
    %263 = vector.broadcast %c8_i32_102 : i32 to vector<1x64xi32>
    %264 = arith.cmpi slt, %262, %263 : vector<1x64xi32>
    %265 = arith.andi %260, %264 : vector<1x64xi1>
    %c0_i32_103 = arith.constant 0 : i32
    %266 = vector.broadcast %c0_i32_103 : i32 to vector<1x64xi32>
    %267 = arith.addi %180, %266 : vector<1x64xi32>
    %c0_i32_104 = arith.constant 0 : i32
    %268 = vector.broadcast %c0_i32_104 : i32 to vector<1x64xi32>
    %269 = arith.cmpi sge, %267, %268 : vector<1x64xi32>
    %270 = arith.andi %265, %269 : vector<1x64xi1>
    %c0_i32_105 = arith.constant 0 : i32
    %271 = vector.broadcast %c0_i32_105 : i32 to vector<1x64xi32>
    %272 = arith.addi %180, %271 : vector<1x64xi32>
    %c8_i32_106 = arith.constant 8 : i32
    %273 = vector.broadcast %c8_i32_106 : i32 to vector<1x64xi32>
    %274 = arith.cmpi slt, %272, %273 : vector<1x64xi32>
    %275 = arith.andi %270, %274 : vector<1x64xi1>
    %c0_i32_107 = arith.constant 0 : i32
    %276 = vector.broadcast %c0_i32_107 : i32 to vector<1x64xi32>
    %277 = arith.addi %178, %276 : vector<1x64xi32>
    %c0_i32_108 = arith.constant 0 : i32
    %278 = vector.broadcast %c0_i32_108 : i32 to vector<1x64xi32>
    %279 = arith.cmpi sge, %277, %278 : vector<1x64xi32>
    %c0_i32_109 = arith.constant 0 : i32
    %280 = vector.broadcast %c0_i32_109 : i32 to vector<1x64xi32>
    %281 = arith.addi %178, %280 : vector<1x64xi32>
    %c8_i32_110 = arith.constant 8 : i32
    %282 = vector.broadcast %c8_i32_110 : i32 to vector<1x64xi32>
    %283 = arith.cmpi slt, %281, %282 : vector<1x64xi32>
    %284 = arith.andi %279, %283 : vector<1x64xi1>
    %c1_i32_111 = arith.constant 1 : i32
    %285 = vector.broadcast %c1_i32_111 : i32 to vector<1x64xi32>
    %286 = arith.addi %180, %285 : vector<1x64xi32>
    %c0_i32_112 = arith.constant 0 : i32
    %287 = vector.broadcast %c0_i32_112 : i32 to vector<1x64xi32>
    %288 = arith.cmpi sge, %286, %287 : vector<1x64xi32>
    %289 = arith.andi %284, %288 : vector<1x64xi1>
    %c1_i32_113 = arith.constant 1 : i32
    %290 = vector.broadcast %c1_i32_113 : i32 to vector<1x64xi32>
    %291 = arith.addi %180, %290 : vector<1x64xi32>
    %c8_i32_114 = arith.constant 8 : i32
    %292 = vector.broadcast %c8_i32_114 : i32 to vector<1x64xi32>
    %293 = arith.cmpi slt, %291, %292 : vector<1x64xi32>
    %294 = arith.andi %289, %293 : vector<1x64xi1>
    %c1_i32_115 = arith.constant 1 : i32
    %295 = vector.broadcast %c1_i32_115 : i32 to vector<1x64xi32>
    %296 = arith.addi %178, %295 : vector<1x64xi32>
    %c0_i32_116 = arith.constant 0 : i32
    %297 = vector.broadcast %c0_i32_116 : i32 to vector<1x64xi32>
    %298 = arith.cmpi sge, %296, %297 : vector<1x64xi32>
    %c1_i32_117 = arith.constant 1 : i32
    %299 = vector.broadcast %c1_i32_117 : i32 to vector<1x64xi32>
    %300 = arith.addi %178, %299 : vector<1x64xi32>
    %c8_i32_118 = arith.constant 8 : i32
    %301 = vector.broadcast %c8_i32_118 : i32 to vector<1x64xi32>
    %302 = arith.cmpi slt, %300, %301 : vector<1x64xi32>
    %303 = arith.andi %298, %302 : vector<1x64xi1>
    %c-1_i32_119 = arith.constant -1 : i32
    %304 = vector.broadcast %c-1_i32_119 : i32 to vector<1x64xi32>
    %305 = arith.addi %180, %304 : vector<1x64xi32>
    %c0_i32_120 = arith.constant 0 : i32
    %306 = vector.broadcast %c0_i32_120 : i32 to vector<1x64xi32>
    %307 = arith.cmpi sge, %305, %306 : vector<1x64xi32>
    %308 = arith.andi %303, %307 : vector<1x64xi1>
    %c-1_i32_121 = arith.constant -1 : i32
    %309 = vector.broadcast %c-1_i32_121 : i32 to vector<1x64xi32>
    %310 = arith.addi %180, %309 : vector<1x64xi32>
    %c8_i32_122 = arith.constant 8 : i32
    %311 = vector.broadcast %c8_i32_122 : i32 to vector<1x64xi32>
    %312 = arith.cmpi slt, %310, %311 : vector<1x64xi32>
    %313 = arith.andi %308, %312 : vector<1x64xi1>
    %c1_i32_123 = arith.constant 1 : i32
    %314 = vector.broadcast %c1_i32_123 : i32 to vector<1x64xi32>
    %315 = arith.addi %178, %314 : vector<1x64xi32>
    %c0_i32_124 = arith.constant 0 : i32
    %316 = vector.broadcast %c0_i32_124 : i32 to vector<1x64xi32>
    %317 = arith.cmpi sge, %315, %316 : vector<1x64xi32>
    %c1_i32_125 = arith.constant 1 : i32
    %318 = vector.broadcast %c1_i32_125 : i32 to vector<1x64xi32>
    %319 = arith.addi %178, %318 : vector<1x64xi32>
    %c8_i32_126 = arith.constant 8 : i32
    %320 = vector.broadcast %c8_i32_126 : i32 to vector<1x64xi32>
    %321 = arith.cmpi slt, %319, %320 : vector<1x64xi32>
    %322 = arith.andi %317, %321 : vector<1x64xi1>
    %c0_i32_127 = arith.constant 0 : i32
    %323 = vector.broadcast %c0_i32_127 : i32 to vector<1x64xi32>
    %324 = arith.addi %180, %323 : vector<1x64xi32>
    %c0_i32_128 = arith.constant 0 : i32
    %325 = vector.broadcast %c0_i32_128 : i32 to vector<1x64xi32>
    %326 = arith.cmpi sge, %324, %325 : vector<1x64xi32>
    %327 = arith.andi %322, %326 : vector<1x64xi1>
    %c0_i32_129 = arith.constant 0 : i32
    %328 = vector.broadcast %c0_i32_129 : i32 to vector<1x64xi32>
    %329 = arith.addi %180, %328 : vector<1x64xi32>
    %c8_i32_130 = arith.constant 8 : i32
    %330 = vector.broadcast %c8_i32_130 : i32 to vector<1x64xi32>
    %331 = arith.cmpi slt, %329, %330 : vector<1x64xi32>
    %332 = arith.andi %327, %331 : vector<1x64xi1>
    %c1_i32_131 = arith.constant 1 : i32
    %333 = vector.broadcast %c1_i32_131 : i32 to vector<1x64xi32>
    %334 = arith.addi %178, %333 : vector<1x64xi32>
    %c0_i32_132 = arith.constant 0 : i32
    %335 = vector.broadcast %c0_i32_132 : i32 to vector<1x64xi32>
    %336 = arith.cmpi sge, %334, %335 : vector<1x64xi32>
    %c1_i32_133 = arith.constant 1 : i32
    %337 = vector.broadcast %c1_i32_133 : i32 to vector<1x64xi32>
    %338 = arith.addi %178, %337 : vector<1x64xi32>
    %c8_i32_134 = arith.constant 8 : i32
    %339 = vector.broadcast %c8_i32_134 : i32 to vector<1x64xi32>
    %340 = arith.cmpi slt, %338, %339 : vector<1x64xi32>
    %341 = arith.andi %336, %340 : vector<1x64xi1>
    %c1_i32_135 = arith.constant 1 : i32
    %342 = vector.broadcast %c1_i32_135 : i32 to vector<1x64xi32>
    %343 = arith.addi %180, %342 : vector<1x64xi32>
    %c0_i32_136 = arith.constant 0 : i32
    %344 = vector.broadcast %c0_i32_136 : i32 to vector<1x64xi32>
    %345 = arith.cmpi sge, %343, %344 : vector<1x64xi32>
    %346 = arith.andi %341, %345 : vector<1x64xi1>
    %c1_i32_137 = arith.constant 1 : i32
    %347 = vector.broadcast %c1_i32_137 : i32 to vector<1x64xi32>
    %348 = arith.addi %180, %347 : vector<1x64xi32>
    %c8_i32_138 = arith.constant 8 : i32
    %349 = vector.broadcast %c8_i32_138 : i32 to vector<1x64xi32>
    %350 = arith.cmpi slt, %348, %349 : vector<1x64xi32>
    %351 = arith.andi %346, %350 : vector<1x64xi1>
    %352 = tpu.iota {dimensions = array<i32: 1>} : vector<1x16xi32>
    %c2_i32 = arith.constant 2 : i32
    %353 = vector.broadcast %c2_i32 : i32 to vector<1x16xi32>
    %354 = arith.shrsi %352, %353 : vector<1x16xi32>
    %c3_i32_139 = arith.constant 3 : i32
    %355 = vector.broadcast %c3_i32_139 : i32 to vector<1x16xi32>
    %356 = arith.andi %352, %355 : vector<1x16xi32>
    %c-1_i32_140 = arith.constant -1 : i32
    %357 = vector.broadcast %c-1_i32_140 : i32 to vector<1x16xi32>
    %358 = arith.addi %354, %357 : vector<1x16xi32>
    %c0_i32_141 = arith.constant 0 : i32
    %359 = vector.broadcast %c0_i32_141 : i32 to vector<1x16xi32>
    %360 = arith.cmpi sge, %358, %359 : vector<1x16xi32>
    %c-1_i32_142 = arith.constant -1 : i32
    %361 = vector.broadcast %c-1_i32_142 : i32 to vector<1x16xi32>
    %362 = arith.addi %354, %361 : vector<1x16xi32>
    %c4_i32_143 = arith.constant 4 : i32
    %363 = vector.broadcast %c4_i32_143 : i32 to vector<1x16xi32>
    %364 = arith.cmpi slt, %362, %363 : vector<1x16xi32>
    %365 = arith.andi %360, %364 : vector<1x16xi1>
    %c-1_i32_144 = arith.constant -1 : i32
    %366 = vector.broadcast %c-1_i32_144 : i32 to vector<1x16xi32>
    %367 = arith.addi %356, %366 : vector<1x16xi32>
    %c0_i32_145 = arith.constant 0 : i32
    %368 = vector.broadcast %c0_i32_145 : i32 to vector<1x16xi32>
    %369 = arith.cmpi sge, %367, %368 : vector<1x16xi32>
    %370 = arith.andi %365, %369 : vector<1x16xi1>
    %c-1_i32_146 = arith.constant -1 : i32
    %371 = vector.broadcast %c-1_i32_146 : i32 to vector<1x16xi32>
    %372 = arith.addi %356, %371 : vector<1x16xi32>
    %c4_i32_147 = arith.constant 4 : i32
    %373 = vector.broadcast %c4_i32_147 : i32 to vector<1x16xi32>
    %374 = arith.cmpi slt, %372, %373 : vector<1x16xi32>
    %375 = arith.andi %370, %374 : vector<1x16xi1>
    %c-1_i32_148 = arith.constant -1 : i32
    %376 = vector.broadcast %c-1_i32_148 : i32 to vector<1x16xi32>
    %377 = arith.addi %354, %376 : vector<1x16xi32>
    %c0_i32_149 = arith.constant 0 : i32
    %378 = vector.broadcast %c0_i32_149 : i32 to vector<1x16xi32>
    %379 = arith.cmpi sge, %377, %378 : vector<1x16xi32>
    %c-1_i32_150 = arith.constant -1 : i32
    %380 = vector.broadcast %c-1_i32_150 : i32 to vector<1x16xi32>
    %381 = arith.addi %354, %380 : vector<1x16xi32>
    %c4_i32_151 = arith.constant 4 : i32
    %382 = vector.broadcast %c4_i32_151 : i32 to vector<1x16xi32>
    %383 = arith.cmpi slt, %381, %382 : vector<1x16xi32>
    %384 = arith.andi %379, %383 : vector<1x16xi1>
    %c0_i32_152 = arith.constant 0 : i32
    %385 = vector.broadcast %c0_i32_152 : i32 to vector<1x16xi32>
    %386 = arith.addi %356, %385 : vector<1x16xi32>
    %c0_i32_153 = arith.constant 0 : i32
    %387 = vector.broadcast %c0_i32_153 : i32 to vector<1x16xi32>
    %388 = arith.cmpi sge, %386, %387 : vector<1x16xi32>
    %389 = arith.andi %384, %388 : vector<1x16xi1>
    %c0_i32_154 = arith.constant 0 : i32
    %390 = vector.broadcast %c0_i32_154 : i32 to vector<1x16xi32>
    %391 = arith.addi %356, %390 : vector<1x16xi32>
    %c4_i32_155 = arith.constant 4 : i32
    %392 = vector.broadcast %c4_i32_155 : i32 to vector<1x16xi32>
    %393 = arith.cmpi slt, %391, %392 : vector<1x16xi32>
    %394 = arith.andi %389, %393 : vector<1x16xi1>
    %c-1_i32_156 = arith.constant -1 : i32
    %395 = vector.broadcast %c-1_i32_156 : i32 to vector<1x16xi32>
    %396 = arith.addi %354, %395 : vector<1x16xi32>
    %c0_i32_157 = arith.constant 0 : i32
    %397 = vector.broadcast %c0_i32_157 : i32 to vector<1x16xi32>
    %398 = arith.cmpi sge, %396, %397 : vector<1x16xi32>
    %c-1_i32_158 = arith.constant -1 : i32
    %399 = vector.broadcast %c-1_i32_158 : i32 to vector<1x16xi32>
    %400 = arith.addi %354, %399 : vector<1x16xi32>
    %c4_i32_159 = arith.constant 4 : i32
    %401 = vector.broadcast %c4_i32_159 : i32 to vector<1x16xi32>
    %402 = arith.cmpi slt, %400, %401 : vector<1x16xi32>
    %403 = arith.andi %398, %402 : vector<1x16xi1>
    %c1_i32_160 = arith.constant 1 : i32
    %404 = vector.broadcast %c1_i32_160 : i32 to vector<1x16xi32>
    %405 = arith.addi %356, %404 : vector<1x16xi32>
    %c0_i32_161 = arith.constant 0 : i32
    %406 = vector.broadcast %c0_i32_161 : i32 to vector<1x16xi32>
    %407 = arith.cmpi sge, %405, %406 : vector<1x16xi32>
    %408 = arith.andi %403, %407 : vector<1x16xi1>
    %c1_i32_162 = arith.constant 1 : i32
    %409 = vector.broadcast %c1_i32_162 : i32 to vector<1x16xi32>
    %410 = arith.addi %356, %409 : vector<1x16xi32>
    %c4_i32_163 = arith.constant 4 : i32
    %411 = vector.broadcast %c4_i32_163 : i32 to vector<1x16xi32>
    %412 = arith.cmpi slt, %410, %411 : vector<1x16xi32>
    %413 = arith.andi %408, %412 : vector<1x16xi1>
    %c0_i32_164 = arith.constant 0 : i32
    %414 = vector.broadcast %c0_i32_164 : i32 to vector<1x16xi32>
    %415 = arith.addi %354, %414 : vector<1x16xi32>
    %c0_i32_165 = arith.constant 0 : i32
    %416 = vector.broadcast %c0_i32_165 : i32 to vector<1x16xi32>
    %417 = arith.cmpi sge, %415, %416 : vector<1x16xi32>
    %c0_i32_166 = arith.constant 0 : i32
    %418 = vector.broadcast %c0_i32_166 : i32 to vector<1x16xi32>
    %419 = arith.addi %354, %418 : vector<1x16xi32>
    %c4_i32_167 = arith.constant 4 : i32
    %420 = vector.broadcast %c4_i32_167 : i32 to vector<1x16xi32>
    %421 = arith.cmpi slt, %419, %420 : vector<1x16xi32>
    %422 = arith.andi %417, %421 : vector<1x16xi1>
    %c-1_i32_168 = arith.constant -1 : i32
    %423 = vector.broadcast %c-1_i32_168 : i32 to vector<1x16xi32>
    %424 = arith.addi %356, %423 : vector<1x16xi32>
    %c0_i32_169 = arith.constant 0 : i32
    %425 = vector.broadcast %c0_i32_169 : i32 to vector<1x16xi32>
    %426 = arith.cmpi sge, %424, %425 : vector<1x16xi32>
    %427 = arith.andi %422, %426 : vector<1x16xi1>
    %c-1_i32_170 = arith.constant -1 : i32
    %428 = vector.broadcast %c-1_i32_170 : i32 to vector<1x16xi32>
    %429 = arith.addi %356, %428 : vector<1x16xi32>
    %c4_i32_171 = arith.constant 4 : i32
    %430 = vector.broadcast %c4_i32_171 : i32 to vector<1x16xi32>
    %431 = arith.cmpi slt, %429, %430 : vector<1x16xi32>
    %432 = arith.andi %427, %431 : vector<1x16xi1>
    %c0_i32_172 = arith.constant 0 : i32
    %433 = vector.broadcast %c0_i32_172 : i32 to vector<1x16xi32>
    %434 = arith.addi %354, %433 : vector<1x16xi32>
    %c0_i32_173 = arith.constant 0 : i32
    %435 = vector.broadcast %c0_i32_173 : i32 to vector<1x16xi32>
    %436 = arith.cmpi sge, %434, %435 : vector<1x16xi32>
    %c0_i32_174 = arith.constant 0 : i32
    %437 = vector.broadcast %c0_i32_174 : i32 to vector<1x16xi32>
    %438 = arith.addi %354, %437 : vector<1x16xi32>
    %c4_i32_175 = arith.constant 4 : i32
    %439 = vector.broadcast %c4_i32_175 : i32 to vector<1x16xi32>
    %440 = arith.cmpi slt, %438, %439 : vector<1x16xi32>
    %441 = arith.andi %436, %440 : vector<1x16xi1>
    %c0_i32_176 = arith.constant 0 : i32
    %442 = vector.broadcast %c0_i32_176 : i32 to vector<1x16xi32>
    %443 = arith.addi %356, %442 : vector<1x16xi32>
    %c0_i32_177 = arith.constant 0 : i32
    %444 = vector.broadcast %c0_i32_177 : i32 to vector<1x16xi32>
    %445 = arith.cmpi sge, %443, %444 : vector<1x16xi32>
    %446 = arith.andi %441, %445 : vector<1x16xi1>
    %c0_i32_178 = arith.constant 0 : i32
    %447 = vector.broadcast %c0_i32_178 : i32 to vector<1x16xi32>
    %448 = arith.addi %356, %447 : vector<1x16xi32>
    %c4_i32_179 = arith.constant 4 : i32
    %449 = vector.broadcast %c4_i32_179 : i32 to vector<1x16xi32>
    %450 = arith.cmpi slt, %448, %449 : vector<1x16xi32>
    %451 = arith.andi %446, %450 : vector<1x16xi1>
    %c0_i32_180 = arith.constant 0 : i32
    %452 = vector.broadcast %c0_i32_180 : i32 to vector<1x16xi32>
    %453 = arith.addi %354, %452 : vector<1x16xi32>
    %c0_i32_181 = arith.constant 0 : i32
    %454 = vector.broadcast %c0_i32_181 : i32 to vector<1x16xi32>
    %455 = arith.cmpi sge, %453, %454 : vector<1x16xi32>
    %c0_i32_182 = arith.constant 0 : i32
    %456 = vector.broadcast %c0_i32_182 : i32 to vector<1x16xi32>
    %457 = arith.addi %354, %456 : vector<1x16xi32>
    %c4_i32_183 = arith.constant 4 : i32
    %458 = vector.broadcast %c4_i32_183 : i32 to vector<1x16xi32>
    %459 = arith.cmpi slt, %457, %458 : vector<1x16xi32>
    %460 = arith.andi %455, %459 : vector<1x16xi1>
    %c1_i32_184 = arith.constant 1 : i32
    %461 = vector.broadcast %c1_i32_184 : i32 to vector<1x16xi32>
    %462 = arith.addi %356, %461 : vector<1x16xi32>
    %c0_i32_185 = arith.constant 0 : i32
    %463 = vector.broadcast %c0_i32_185 : i32 to vector<1x16xi32>
    %464 = arith.cmpi sge, %462, %463 : vector<1x16xi32>
    %465 = arith.andi %460, %464 : vector<1x16xi1>
    %c1_i32_186 = arith.constant 1 : i32
    %466 = vector.broadcast %c1_i32_186 : i32 to vector<1x16xi32>
    %467 = arith.addi %356, %466 : vector<1x16xi32>
    %c4_i32_187 = arith.constant 4 : i32
    %468 = vector.broadcast %c4_i32_187 : i32 to vector<1x16xi32>
    %469 = arith.cmpi slt, %467, %468 : vector<1x16xi32>
    %470 = arith.andi %465, %469 : vector<1x16xi1>
    %c1_i32_188 = arith.constant 1 : i32
    %471 = vector.broadcast %c1_i32_188 : i32 to vector<1x16xi32>
    %472 = arith.addi %354, %471 : vector<1x16xi32>
    %c0_i32_189 = arith.constant 0 : i32
    %473 = vector.broadcast %c0_i32_189 : i32 to vector<1x16xi32>
    %474 = arith.cmpi sge, %472, %473 : vector<1x16xi32>
    %c1_i32_190 = arith.constant 1 : i32
    %475 = vector.broadcast %c1_i32_190 : i32 to vector<1x16xi32>
    %476 = arith.addi %354, %475 : vector<1x16xi32>
    %c4_i32_191 = arith.constant 4 : i32
    %477 = vector.broadcast %c4_i32_191 : i32 to vector<1x16xi32>
    %478 = arith.cmpi slt, %476, %477 : vector<1x16xi32>
    %479 = arith.andi %474, %478 : vector<1x16xi1>
    %c-1_i32_192 = arith.constant -1 : i32
    %480 = vector.broadcast %c-1_i32_192 : i32 to vector<1x16xi32>
    %481 = arith.addi %356, %480 : vector<1x16xi32>
    %c0_i32_193 = arith.constant 0 : i32
    %482 = vector.broadcast %c0_i32_193 : i32 to vector<1x16xi32>
    %483 = arith.cmpi sge, %481, %482 : vector<1x16xi32>
    %484 = arith.andi %479, %483 : vector<1x16xi1>
    %c-1_i32_194 = arith.constant -1 : i32
    %485 = vector.broadcast %c-1_i32_194 : i32 to vector<1x16xi32>
    %486 = arith.addi %356, %485 : vector<1x16xi32>
    %c4_i32_195 = arith.constant 4 : i32
    %487 = vector.broadcast %c4_i32_195 : i32 to vector<1x16xi32>
    %488 = arith.cmpi slt, %486, %487 : vector<1x16xi32>
    %489 = arith.andi %484, %488 : vector<1x16xi1>
    %c1_i32_196 = arith.constant 1 : i32
    %490 = vector.broadcast %c1_i32_196 : i32 to vector<1x16xi32>
    %491 = arith.addi %354, %490 : vector<1x16xi32>
    %c0_i32_197 = arith.constant 0 : i32
    %492 = vector.broadcast %c0_i32_197 : i32 to vector<1x16xi32>
    %493 = arith.cmpi sge, %491, %492 : vector<1x16xi32>
    %c1_i32_198 = arith.constant 1 : i32
    %494 = vector.broadcast %c1_i32_198 : i32 to vector<1x16xi32>
    %495 = arith.addi %354, %494 : vector<1x16xi32>
    %c4_i32_199 = arith.constant 4 : i32
    %496 = vector.broadcast %c4_i32_199 : i32 to vector<1x16xi32>
    %497 = arith.cmpi slt, %495, %496 : vector<1x16xi32>
    %498 = arith.andi %493, %497 : vector<1x16xi1>
    %c0_i32_200 = arith.constant 0 : i32
    %499 = vector.broadcast %c0_i32_200 : i32 to vector<1x16xi32>
    %500 = arith.addi %356, %499 : vector<1x16xi32>
    %c0_i32_201 = arith.constant 0 : i32
    %501 = vector.broadcast %c0_i32_201 : i32 to vector<1x16xi32>
    %502 = arith.cmpi sge, %500, %501 : vector<1x16xi32>
    %503 = arith.andi %498, %502 : vector<1x16xi1>
    %c0_i32_202 = arith.constant 0 : i32
    %504 = vector.broadcast %c0_i32_202 : i32 to vector<1x16xi32>
    %505 = arith.addi %356, %504 : vector<1x16xi32>
    %c4_i32_203 = arith.constant 4 : i32
    %506 = vector.broadcast %c4_i32_203 : i32 to vector<1x16xi32>
    %507 = arith.cmpi slt, %505, %506 : vector<1x16xi32>
    %508 = arith.andi %503, %507 : vector<1x16xi1>
    %c1_i32_204 = arith.constant 1 : i32
    %509 = vector.broadcast %c1_i32_204 : i32 to vector<1x16xi32>
    %510 = arith.addi %354, %509 : vector<1x16xi32>
    %c0_i32_205 = arith.constant 0 : i32
    %511 = vector.broadcast %c0_i32_205 : i32 to vector<1x16xi32>
    %512 = arith.cmpi sge, %510, %511 : vector<1x16xi32>
    %c1_i32_206 = arith.constant 1 : i32
    %513 = vector.broadcast %c1_i32_206 : i32 to vector<1x16xi32>
    %514 = arith.addi %354, %513 : vector<1x16xi32>
    %c4_i32_207 = arith.constant 4 : i32
    %515 = vector.broadcast %c4_i32_207 : i32 to vector<1x16xi32>
    %516 = arith.cmpi slt, %514, %515 : vector<1x16xi32>
    %517 = arith.andi %512, %516 : vector<1x16xi1>
    %c1_i32_208 = arith.constant 1 : i32
    %518 = vector.broadcast %c1_i32_208 : i32 to vector<1x16xi32>
    %519 = arith.addi %356, %518 : vector<1x16xi32>
    %c0_i32_209 = arith.constant 0 : i32
    %520 = vector.broadcast %c0_i32_209 : i32 to vector<1x16xi32>
    %521 = arith.cmpi sge, %519, %520 : vector<1x16xi32>
    %522 = arith.andi %517, %521 : vector<1x16xi1>
    %c1_i32_210 = arith.constant 1 : i32
    %523 = vector.broadcast %c1_i32_210 : i32 to vector<1x16xi32>
    %524 = arith.addi %356, %523 : vector<1x16xi32>
    %c4_i32_211 = arith.constant 4 : i32
    %525 = vector.broadcast %c4_i32_211 : i32 to vector<1x16xi32>
    %526 = arith.cmpi slt, %524, %525 : vector<1x16xi32>
    %527 = arith.andi %522, %526 : vector<1x16xi1>
    %c0 = arith.constant 0 : index
    %c0_212 = arith.constant 0 : index
    %c0_213 = arith.constant 0 : index
    %528 = vector.load %arg1[%c0, %c0_212, %c0_213] : memref<1x1x256xf32, #tpu.memory_space<vmem>>, vector<1x1x256xf32>
    %529 = vector.shape_cast %528 : vector<1x1x256xf32> to vector<1x256xf32>
    %530 = arith.truncf %529 : vector<1x256xf32> to vector<1x256xbf16>
    %531 = vector.extract_strided_slice %530 {offsets = [0, 239], sizes = [1, 17], strides = [1, 1]} : vector<1x256xbf16> to vector<1x17xbf16>
    %532 = vector.extract_strided_slice %530 {offsets = [0, 0], sizes = [1, 239], strides = [1, 1]} : vector<1x256xbf16> to vector<1x239xbf16>
    %533 = tpu.concatenate %531, %532 in 1 : vector<1x17xbf16>, vector<1x239xbf16> -> vector<1x256xbf16>
    %cst = arith.constant 0.000000e+00 : bf16
    %534 = vector.broadcast %cst : bf16 to vector<1x256xbf16>
    %535 = arith.select %23, %533, %534 : vector<1x256xi1>, vector<1x256xbf16>
    %536 = vector.extract_strided_slice %530 {offsets = [0, 240], sizes = [1, 16], strides = [1, 1]} : vector<1x256xbf16> to vector<1x16xbf16>
    %537 = vector.extract_strided_slice %530 {offsets = [0, 0], sizes = [1, 240], strides = [1, 1]} : vector<1x256xbf16> to vector<1x240xbf16>
    %538 = tpu.concatenate %536, %537 in 1 : vector<1x16xbf16>, vector<1x240xbf16> -> vector<1x256xbf16>
    %cst_214 = arith.constant 0.000000e+00 : bf16
    %539 = vector.broadcast %cst_214 : bf16 to vector<1x256xbf16>
    %540 = arith.select %42, %538, %539 : vector<1x256xi1>, vector<1x256xbf16>
    %541 = vector.extract_strided_slice %530 {offsets = [0, 241], sizes = [1, 15], strides = [1, 1]} : vector<1x256xbf16> to vector<1x15xbf16>
    %542 = vector.extract_strided_slice %530 {offsets = [0, 0], sizes = [1, 241], strides = [1, 1]} : vector<1x256xbf16> to vector<1x241xbf16>
    %543 = tpu.concatenate %541, %542 in 1 : vector<1x15xbf16>, vector<1x241xbf16> -> vector<1x256xbf16>
    %cst_215 = arith.constant 0.000000e+00 : bf16
    %544 = vector.broadcast %cst_215 : bf16 to vector<1x256xbf16>
    %545 = arith.select %61, %543, %544 : vector<1x256xi1>, vector<1x256xbf16>
    %546 = vector.extract_strided_slice %530 {offsets = [0, 255], sizes = [1, 1], strides = [1, 1]} : vector<1x256xbf16> to vector<1x1xbf16>
    %547 = vector.extract_strided_slice %530 {offsets = [0, 0], sizes = [1, 255], strides = [1, 1]} : vector<1x256xbf16> to vector<1x255xbf16>
    %548 = tpu.concatenate %546, %547 in 1 : vector<1x1xbf16>, vector<1x255xbf16> -> vector<1x256xbf16>
    %cst_216 = arith.constant 0.000000e+00 : bf16
    %549 = vector.broadcast %cst_216 : bf16 to vector<1x256xbf16>
    %550 = arith.select %80, %548, %549 : vector<1x256xi1>, vector<1x256xbf16>
    %cst_217 = arith.constant 0.000000e+00 : bf16
    %551 = vector.broadcast %cst_217 : bf16 to vector<1x256xbf16>
    %552 = arith.select %99, %530, %551 : vector<1x256xi1>, vector<1x256xbf16>
    %553 = vector.extract_strided_slice %530 {offsets = [0, 1], sizes = [1, 255], strides = [1, 1]} : vector<1x256xbf16> to vector<1x255xbf16>
    %554 = vector.extract_strided_slice %530 {offsets = [0, 0], sizes = [1, 1], strides = [1, 1]} : vector<1x256xbf16> to vector<1x1xbf16>
    %555 = tpu.concatenate %553, %554 in 1 : vector<1x255xbf16>, vector<1x1xbf16> -> vector<1x256xbf16>
    %cst_218 = arith.constant 0.000000e+00 : bf16
    %556 = vector.broadcast %cst_218 : bf16 to vector<1x256xbf16>
    %557 = arith.select %118, %555, %556 : vector<1x256xi1>, vector<1x256xbf16>
    %558 = vector.extract_strided_slice %530 {offsets = [0, 15], sizes = [1, 241], strides = [1, 1]} : vector<1x256xbf16> to vector<1x241xbf16>
    %559 = vector.extract_strided_slice %530 {offsets = [0, 0], sizes = [1, 15], strides = [1, 1]} : vector<1x256xbf16> to vector<1x15xbf16>
    %560 = tpu.concatenate %558, %559 in 1 : vector<1x241xbf16>, vector<1x15xbf16> -> vector<1x256xbf16>
    %cst_219 = arith.constant 0.000000e+00 : bf16
    %561 = vector.broadcast %cst_219 : bf16 to vector<1x256xbf16>
    %562 = arith.select %137, %560, %561 : vector<1x256xi1>, vector<1x256xbf16>
    %563 = vector.extract_strided_slice %530 {offsets = [0, 16], sizes = [1, 240], strides = [1, 1]} : vector<1x256xbf16> to vector<1x240xbf16>
    %564 = vector.extract_strided_slice %530 {offsets = [0, 0], sizes = [1, 16], strides = [1, 1]} : vector<1x256xbf16> to vector<1x16xbf16>
    %565 = tpu.concatenate %563, %564 in 1 : vector<1x240xbf16>, vector<1x16xbf16> -> vector<1x256xbf16>
    %cst_220 = arith.constant 0.000000e+00 : bf16
    %566 = vector.broadcast %cst_220 : bf16 to vector<1x256xbf16>
    %567 = arith.select %156, %565, %566 : vector<1x256xi1>, vector<1x256xbf16>
    %568 = vector.extract_strided_slice %530 {offsets = [0, 17], sizes = [1, 239], strides = [1, 1]} : vector<1x256xbf16> to vector<1x239xbf16>
    %569 = vector.extract_strided_slice %530 {offsets = [0, 0], sizes = [1, 17], strides = [1, 1]} : vector<1x256xbf16> to vector<1x17xbf16>
    %570 = tpu.concatenate %568, %569 in 1 : vector<1x239xbf16>, vector<1x17xbf16> -> vector<1x256xbf16>
    %cst_221 = arith.constant 0.000000e+00 : bf16
    %571 = vector.broadcast %cst_221 : bf16 to vector<1x256xbf16>
    %572 = arith.select %175, %570, %571 : vector<1x256xi1>, vector<1x256xbf16>
    %573 = tpu.concatenate %535, %540, %545, %550, %552, %557, %562, %567, %572 in 0 : vector<1x256xbf16>, vector<1x256xbf16>, vector<1x256xbf16>, vector<1x256xbf16>, vector<1x256xbf16>, vector<1x256xbf16>, vector<1x256xbf16>, vector<1x256xbf16>, vector<1x256xbf16> -> vector<9x256xbf16>
    %c0_222 = arith.constant 0 : index
    %c0_223 = arith.constant 0 : index
    %574 = vector.load %arg2[%c0_222, %c0_223] : memref<896x576xbf16, #tpu.memory_space<vmem>>, vector<16x9xbf16>
    %cst_224 = arith.constant dense<0.000000e+00> : vector<16x256xf32>
    %575 = tpu.matmul %574, %573, %cst_224 {dimension_numbers = #tpu.dot_dimension_numbers<[1], [0], [0], [1], [0, 0, 1, 1], [], []>} : vector<16x9xbf16>, vector<9x256xbf16>, vector<16x256xf32> -> vector<16x256xf32>
    %c0_225 = arith.constant 0 : index
    %c0_226 = arith.constant 0 : index
    %576 = vector.load %arg3[%c0_225, %c0_226] : memref<64x16xf32, #tpu.memory_space<vmem>>, vector<16x1xf32>
    %577 = vector.broadcast %576 : vector<16x1xf32> to vector<16x256xf32>
    %578 = arith.addf %575, %577 : vector<16x256xf32>
    %cst_227 = arith.constant 0.000000e+00 : f32
    %579 = vector.broadcast %cst_227 : f32 to vector<16x256xf32>
    %580 = arith.cmpf ogt, %578, %579 : vector<16x256xf32>
    %cst_228 = arith.constant 0.00999999977 : f32
    %581 = vector.broadcast %cst_228 : f32 to vector<16x256xf32>
    %582 = arith.mulf %581, %578 : vector<16x256xf32>
    %583 = arith.select %580, %578, %582 : vector<16x256xi1>, vector<16x256xf32>
    %584 = arith.truncf %583 : vector<16x256xf32> to vector<16x256xbf16>
    %585 = vector.extract_strided_slice %584 {offsets = [0, 239], sizes = [16, 17], strides = [1, 1]} : vector<16x256xbf16> to vector<16x17xbf16>
    %586 = vector.extract_strided_slice %584 {offsets = [0, 0], sizes = [16, 239], strides = [1, 1]} : vector<16x256xbf16> to vector<16x239xbf16>
    %587 = tpu.concatenate %585, %586 in 1 : vector<16x17xbf16>, vector<16x239xbf16> -> vector<16x256xbf16>
    %cst_229 = arith.constant 0.000000e+00 : bf16
    %588 = vector.broadcast %cst_229 : bf16 to vector<16x256xbf16>
    %589 = vector.shape_cast %23 : vector<1x256xi1> to vector<1x256xi1>
    %590 = vector.broadcast %589 : vector<1x256xi1> to vector<16x256xi1>
    %591 = arith.select %590, %587, %588 : vector<16x256xi1>, vector<16x256xbf16>
    %592 = vector.extract_strided_slice %584 {offsets = [0, 240], sizes = [16, 16], strides = [1, 1]} : vector<16x256xbf16> to vector<16x16xbf16>
    %593 = vector.extract_strided_slice %584 {offsets = [0, 0], sizes = [16, 240], strides = [1, 1]} : vector<16x256xbf16> to vector<16x240xbf16>
    %594 = tpu.concatenate %592, %593 in 1 : vector<16x16xbf16>, vector<16x240xbf16> -> vector<16x256xbf16>
    %cst_230 = arith.constant 0.000000e+00 : bf16
    %595 = vector.broadcast %cst_230 : bf16 to vector<16x256xbf16>
    %596 = vector.shape_cast %42 : vector<1x256xi1> to vector<1x256xi1>
    %597 = vector.broadcast %596 : vector<1x256xi1> to vector<16x256xi1>
    %598 = arith.select %597, %594, %595 : vector<16x256xi1>, vector<16x256xbf16>
    %599 = vector.extract_strided_slice %584 {offsets = [0, 241], sizes = [16, 15], strides = [1, 1]} : vector<16x256xbf16> to vector<16x15xbf16>
    %600 = vector.extract_strided_slice %584 {offsets = [0, 0], sizes = [16, 241], strides = [1, 1]} : vector<16x256xbf16> to vector<16x241xbf16>
    %601 = tpu.concatenate %599, %600 in 1 : vector<16x15xbf16>, vector<16x241xbf16> -> vector<16x256xbf16>
    %cst_231 = arith.constant 0.000000e+00 : bf16
    %602 = vector.broadcast %cst_231 : bf16 to vector<16x256xbf16>
    %603 = vector.shape_cast %61 : vector<1x256xi1> to vector<1x256xi1>
    %604 = vector.broadcast %603 : vector<1x256xi1> to vector<16x256xi1>
    %605 = arith.select %604, %601, %602 : vector<16x256xi1>, vector<16x256xbf16>
    %606 = vector.extract_strided_slice %584 {offsets = [0, 255], sizes = [16, 1], strides = [1, 1]} : vector<16x256xbf16> to vector<16x1xbf16>
    %607 = vector.extract_strided_slice %584 {offsets = [0, 0], sizes = [16, 255], strides = [1, 1]} : vector<16x256xbf16> to vector<16x255xbf16>
    %608 = tpu.concatenate %606, %607 in 1 : vector<16x1xbf16>, vector<16x255xbf16> -> vector<16x256xbf16>
    %cst_232 = arith.constant 0.000000e+00 : bf16
    %609 = vector.broadcast %cst_232 : bf16 to vector<16x256xbf16>
    %610 = vector.shape_cast %80 : vector<1x256xi1> to vector<1x256xi1>
    %611 = vector.broadcast %610 : vector<1x256xi1> to vector<16x256xi1>
    %612 = arith.select %611, %608, %609 : vector<16x256xi1>, vector<16x256xbf16>
    %cst_233 = arith.constant 0.000000e+00 : bf16
    %613 = vector.broadcast %cst_233 : bf16 to vector<16x256xbf16>
    %614 = vector.shape_cast %99 : vector<1x256xi1> to vector<1x256xi1>
    %615 = vector.broadcast %614 : vector<1x256xi1> to vector<16x256xi1>
    %616 = arith.select %615, %584, %613 : vector<16x256xi1>, vector<16x256xbf16>
    %617 = vector.extract_strided_slice %584 {offsets = [0, 1], sizes = [16, 255], strides = [1, 1]} : vector<16x256xbf16> to vector<16x255xbf16>
    %618 = vector.extract_strided_slice %584 {offsets = [0, 0], sizes = [16, 1], strides = [1, 1]} : vector<16x256xbf16> to vector<16x1xbf16>
    %619 = tpu.concatenate %617, %618 in 1 : vector<16x255xbf16>, vector<16x1xbf16> -> vector<16x256xbf16>
    %cst_234 = arith.constant 0.000000e+00 : bf16
    %620 = vector.broadcast %cst_234 : bf16 to vector<16x256xbf16>
    %621 = vector.shape_cast %118 : vector<1x256xi1> to vector<1x256xi1>
    %622 = vector.broadcast %621 : vector<1x256xi1> to vector<16x256xi1>
    %623 = arith.select %622, %619, %620 : vector<16x256xi1>, vector<16x256xbf16>
    %624 = vector.extract_strided_slice %584 {offsets = [0, 15], sizes = [16, 241], strides = [1, 1]} : vector<16x256xbf16> to vector<16x241xbf16>
    %625 = vector.extract_strided_slice %584 {offsets = [0, 0], sizes = [16, 15], strides = [1, 1]} : vector<16x256xbf16> to vector<16x15xbf16>
    %626 = tpu.concatenate %624, %625 in 1 : vector<16x241xbf16>, vector<16x15xbf16> -> vector<16x256xbf16>
    %cst_235 = arith.constant 0.000000e+00 : bf16
    %627 = vector.broadcast %cst_235 : bf16 to vector<16x256xbf16>
    %628 = vector.shape_cast %137 : vector<1x256xi1> to vector<1x256xi1>
    %629 = vector.broadcast %628 : vector<1x256xi1> to vector<16x256xi1>
    %630 = arith.select %629, %626, %627 : vector<16x256xi1>, vector<16x256xbf16>
    %631 = vector.extract_strided_slice %584 {offsets = [0, 16], sizes = [16, 240], strides = [1, 1]} : vector<16x256xbf16> to vector<16x240xbf16>
    %632 = vector.extract_strided_slice %584 {offsets = [0, 0], sizes = [16, 16], strides = [1, 1]} : vector<16x256xbf16> to vector<16x16xbf16>
    %633 = tpu.concatenate %631, %632 in 1 : vector<16x240xbf16>, vector<16x16xbf16> -> vector<16x256xbf16>
    %cst_236 = arith.constant 0.000000e+00 : bf16
    %634 = vector.broadcast %cst_236 : bf16 to vector<16x256xbf16>
    %635 = vector.shape_cast %156 : vector<1x256xi1> to vector<1x256xi1>
    %636 = vector.broadcast %635 : vector<1x256xi1> to vector<16x256xi1>
    %637 = arith.select %636, %633, %634 : vector<16x256xi1>, vector<16x256xbf16>
    %638 = vector.extract_strided_slice %584 {offsets = [0, 17], sizes = [16, 239], strides = [1, 1]} : vector<16x256xbf16> to vector<16x239xbf16>
    %639 = vector.extract_strided_slice %584 {offsets = [0, 0], sizes = [16, 17], strides = [1, 1]} : vector<16x256xbf16> to vector<16x17xbf16>
    %640 = tpu.concatenate %638, %639 in 1 : vector<16x239xbf16>, vector<16x17xbf16> -> vector<16x256xbf16>
    %cst_237 = arith.constant 0.000000e+00 : bf16
    %641 = vector.broadcast %cst_237 : bf16 to vector<16x256xbf16>
    %642 = vector.shape_cast %175 : vector<1x256xi1> to vector<1x256xi1>
    %643 = vector.broadcast %642 : vector<1x256xi1> to vector<16x256xi1>
    %644 = arith.select %643, %640, %641 : vector<16x256xi1>, vector<16x256xbf16>
    %645 = tpu.concatenate %591, %598, %605, %612, %616, %623, %630, %637, %644 in 0 : vector<16x256xbf16>, vector<16x256xbf16>, vector<16x256xbf16>, vector<16x256xbf16>, vector<16x256xbf16>, vector<16x256xbf16>, vector<16x256xbf16>, vector<16x256xbf16>, vector<16x256xbf16> -> vector<144x256xbf16>
    %c16 = arith.constant 16 : index
    %c0_238 = arith.constant 0 : index
    %646 = vector.load %arg2[%c16, %c0_238] : memref<896x576xbf16, #tpu.memory_space<vmem>>, vector<16x144xbf16>
    %cst_239 = arith.constant dense<0.000000e+00> : vector<16x256xf32>
    %647 = tpu.matmul %646, %645, %cst_239 {dimension_numbers = #tpu.dot_dimension_numbers<[1], [0], [0], [1], [0, 0, 1, 1], [], []>} : vector<16x144xbf16>, vector<144x256xbf16>, vector<16x256xf32> -> vector<16x256xf32>
    %c0_240 = arith.constant 0 : index
    %c1 = arith.constant 1 : index
    %648 = vector.load %arg3[%c0_240, %c1] : memref<64x16xf32, #tpu.memory_space<vmem>>, vector<16x1xf32>
    %649 = vector.broadcast %648 : vector<16x1xf32> to vector<16x256xf32>
    %650 = arith.addf %647, %649 : vector<16x256xf32>
    %cst_241 = arith.constant 0.000000e+00 : f32
    %651 = vector.broadcast %cst_241 : f32 to vector<16x256xf32>
    %652 = arith.cmpf ogt, %650, %651 : vector<16x256xf32>
    %cst_242 = arith.constant 0.00999999977 : f32
    %653 = vector.broadcast %cst_242 : f32 to vector<16x256xf32>
    %654 = arith.mulf %653, %650 : vector<16x256xf32>
    %655 = arith.select %652, %650, %654 : vector<16x256xi1>, vector<16x256xf32>
    %656 = arith.truncf %655 : vector<16x256xf32> to vector<16x256xbf16>
    %657 = vector.extract_strided_slice %656 {offsets = [0, 239], sizes = [16, 17], strides = [1, 1]} : vector<16x256xbf16> to vector<16x17xbf16>
    %658 = vector.extract_strided_slice %656 {offsets = [0, 0], sizes = [16, 239], strides = [1, 1]} : vector<16x256xbf16> to vector<16x239xbf16>
    %659 = tpu.concatenate %657, %658 in 1 : vector<16x17xbf16>, vector<16x239xbf16> -> vector<16x256xbf16>
    %cst_243 = arith.constant 0.000000e+00 : bf16
    %660 = vector.broadcast %cst_243 : bf16 to vector<16x256xbf16>
    %661 = vector.shape_cast %23 : vector<1x256xi1> to vector<1x256xi1>
    %662 = vector.broadcast %661 : vector<1x256xi1> to vector<16x256xi1>
    %663 = arith.select %662, %659, %660 : vector<16x256xi1>, vector<16x256xbf16>
    %664 = vector.extract_strided_slice %656 {offsets = [0, 240], sizes = [16, 16], strides = [1, 1]} : vector<16x256xbf16> to vector<16x16xbf16>
    %665 = vector.extract_strided_slice %656 {offsets = [0, 0], sizes = [16, 240], strides = [1, 1]} : vector<16x256xbf16> to vector<16x240xbf16>
    %666 = tpu.concatenate %664, %665 in 1 : vector<16x16xbf16>, vector<16x240xbf16> -> vector<16x256xbf16>
    %cst_244 = arith.constant 0.000000e+00 : bf16
    %667 = vector.broadcast %cst_244 : bf16 to vector<16x256xbf16>
    %668 = vector.shape_cast %42 : vector<1x256xi1> to vector<1x256xi1>
    %669 = vector.broadcast %668 : vector<1x256xi1> to vector<16x256xi1>
    %670 = arith.select %669, %666, %667 : vector<16x256xi1>, vector<16x256xbf16>
    %671 = vector.extract_strided_slice %656 {offsets = [0, 241], sizes = [16, 15], strides = [1, 1]} : vector<16x256xbf16> to vector<16x15xbf16>
    %672 = vector.extract_strided_slice %656 {offsets = [0, 0], sizes = [16, 241], strides = [1, 1]} : vector<16x256xbf16> to vector<16x241xbf16>
    %673 = tpu.concatenate %671, %672 in 1 : vector<16x15xbf16>, vector<16x241xbf16> -> vector<16x256xbf16>
    %cst_245 = arith.constant 0.000000e+00 : bf16
    %674 = vector.broadcast %cst_245 : bf16 to vector<16x256xbf16>
    %675 = vector.shape_cast %61 : vector<1x256xi1> to vector<1x256xi1>
    %676 = vector.broadcast %675 : vector<1x256xi1> to vector<16x256xi1>
    %677 = arith.select %676, %673, %674 : vector<16x256xi1>, vector<16x256xbf16>
    %678 = vector.extract_strided_slice %656 {offsets = [0, 255], sizes = [16, 1], strides = [1, 1]} : vector<16x256xbf16> to vector<16x1xbf16>
    %679 = vector.extract_strided_slice %656 {offsets = [0, 0], sizes = [16, 255], strides = [1, 1]} : vector<16x256xbf16> to vector<16x255xbf16>
    %680 = tpu.concatenate %678, %679 in 1 : vector<16x1xbf16>, vector<16x255xbf16> -> vector<16x256xbf16>
    %cst_246 = arith.constant 0.000000e+00 : bf16
    %681 = vector.broadcast %cst_246 : bf16 to vector<16x256xbf16>
    %682 = vector.shape_cast %80 : vector<1x256xi1> to vector<1x256xi1>
    %683 = vector.broadcast %682 : vector<1x256xi1> to vector<16x256xi1>
    %684 = arith.select %683, %680, %681 : vector<16x256xi1>, vector<16x256xbf16>
    %cst_247 = arith.constant 0.000000e+00 : bf16
    %685 = vector.broadcast %cst_247 : bf16 to vector<16x256xbf16>
    %686 = vector.shape_cast %99 : vector<1x256xi1> to vector<1x256xi1>
    %687 = vector.broadcast %686 : vector<1x256xi1> to vector<16x256xi1>
    %688 = arith.select %687, %656, %685 : vector<16x256xi1>, vector<16x256xbf16>
    %689 = vector.extract_strided_slice %656 {offsets = [0, 1], sizes = [16, 255], strides = [1, 1]} : vector<16x256xbf16> to vector<16x255xbf16>
    %690 = vector.extract_strided_slice %656 {offsets = [0, 0], sizes = [16, 1], strides = [1, 1]} : vector<16x256xbf16> to vector<16x1xbf16>
    %691 = tpu.concatenate %689, %690 in 1 : vector<16x255xbf16>, vector<16x1xbf16> -> vector<16x256xbf16>
    %cst_248 = arith.constant 0.000000e+00 : bf16
    %692 = vector.broadcast %cst_248 : bf16 to vector<16x256xbf16>
    %693 = vector.shape_cast %118 : vector<1x256xi1> to vector<1x256xi1>
    %694 = vector.broadcast %693 : vector<1x256xi1> to vector<16x256xi1>
    %695 = arith.select %694, %691, %692 : vector<16x256xi1>, vector<16x256xbf16>
    %696 = vector.extract_strided_slice %656 {offsets = [0, 15], sizes = [16, 241], strides = [1, 1]} : vector<16x256xbf16> to vector<16x241xbf16>
    %697 = vector.extract_strided_slice %656 {offsets = [0, 0], sizes = [16, 15], strides = [1, 1]} : vector<16x256xbf16> to vector<16x15xbf16>
    %698 = tpu.concatenate %696, %697 in 1 : vector<16x241xbf16>, vector<16x15xbf16> -> vector<16x256xbf16>
    %cst_249 = arith.constant 0.000000e+00 : bf16
    %699 = vector.broadcast %cst_249 : bf16 to vector<16x256xbf16>
    %700 = vector.shape_cast %137 : vector<1x256xi1> to vector<1x256xi1>
    %701 = vector.broadcast %700 : vector<1x256xi1> to vector<16x256xi1>
    %702 = arith.select %701, %698, %699 : vector<16x256xi1>, vector<16x256xbf16>
    %703 = vector.extract_strided_slice %656 {offsets = [0, 16], sizes = [16, 240], strides = [1, 1]} : vector<16x256xbf16> to vector<16x240xbf16>
    %704 = vector.extract_strided_slice %656 {offsets = [0, 0], sizes = [16, 16], strides = [1, 1]} : vector<16x256xbf16> to vector<16x16xbf16>
    %705 = tpu.concatenate %703, %704 in 1 : vector<16x240xbf16>, vector<16x16xbf16> -> vector<16x256xbf16>
    %cst_250 = arith.constant 0.000000e+00 : bf16
    %706 = vector.broadcast %cst_250 : bf16 to vector<16x256xbf16>
    %707 = vector.shape_cast %156 : vector<1x256xi1> to vector<1x256xi1>
    %708 = vector.broadcast %707 : vector<1x256xi1> to vector<16x256xi1>
    %709 = arith.select %708, %705, %706 : vector<16x256xi1>, vector<16x256xbf16>
    %710 = vector.extract_strided_slice %656 {offsets = [0, 17], sizes = [16, 239], strides = [1, 1]} : vector<16x256xbf16> to vector<16x239xbf16>
    %711 = vector.extract_strided_slice %656 {offsets = [0, 0], sizes = [16, 17], strides = [1, 1]} : vector<16x256xbf16> to vector<16x17xbf16>
    %712 = tpu.concatenate %710, %711 in 1 : vector<16x239xbf16>, vector<16x17xbf16> -> vector<16x256xbf16>
    %cst_251 = arith.constant 0.000000e+00 : bf16
    %713 = vector.broadcast %cst_251 : bf16 to vector<16x256xbf16>
    %714 = vector.shape_cast %175 : vector<1x256xi1> to vector<1x256xi1>
    %715 = vector.broadcast %714 : vector<1x256xi1> to vector<16x256xi1>
    %716 = arith.select %715, %712, %713 : vector<16x256xi1>, vector<16x256xbf16>
    %717 = tpu.concatenate %663, %670, %677, %684, %688, %695, %702, %709, %716 in 0 : vector<16x256xbf16>, vector<16x256xbf16>, vector<16x256xbf16>, vector<16x256xbf16>, vector<16x256xbf16>, vector<16x256xbf16>, vector<16x256xbf16>, vector<16x256xbf16>, vector<16x256xbf16> -> vector<144x256xbf16>
    %c32 = arith.constant 32 : index
    %c0_252 = arith.constant 0 : index
    %718 = vector.load %arg2[%c32, %c0_252] : memref<896x576xbf16, #tpu.memory_space<vmem>>, vector<16x144xbf16>
    %cst_253 = arith.constant dense<0.000000e+00> : vector<16x256xf32>
    %719 = tpu.matmul %718, %717, %cst_253 {dimension_numbers = #tpu.dot_dimension_numbers<[1], [0], [0], [1], [0, 0, 1, 1], [], []>} : vector<16x144xbf16>, vector<144x256xbf16>, vector<16x256xf32> -> vector<16x256xf32>
    %c0_254 = arith.constant 0 : index
    %c2 = arith.constant 2 : index
    %720 = vector.load %arg3[%c0_254, %c2] : memref<64x16xf32, #tpu.memory_space<vmem>>, vector<16x1xf32>
    %721 = vector.broadcast %720 : vector<16x1xf32> to vector<16x256xf32>
    %722 = arith.addf %719, %721 : vector<16x256xf32>
    %723 = arith.addf %722, %583 : vector<16x256xf32>
    %cst_255 = arith.constant 0.000000e+00 : f32
    %724 = vector.broadcast %cst_255 : f32 to vector<16x256xf32>
    %725 = arith.cmpf ogt, %723, %724 : vector<16x256xf32>
    %cst_256 = arith.constant 0.00999999977 : f32
    %726 = vector.broadcast %cst_256 : f32 to vector<16x256xf32>
    %727 = arith.mulf %726, %723 : vector<16x256xf32>
    %728 = arith.select %725, %723, %727 : vector<16x256xi1>, vector<16x256xf32>
    %729 = arith.truncf %728 : vector<16x256xf32> to vector<16x256xbf16>
    %730 = vector.extract_strided_slice %729 {offsets = [0, 239], sizes = [16, 17], strides = [1, 1]} : vector<16x256xbf16> to vector<16x17xbf16>
    %731 = vector.extract_strided_slice %729 {offsets = [0, 0], sizes = [16, 239], strides = [1, 1]} : vector<16x256xbf16> to vector<16x239xbf16>
    %732 = tpu.concatenate %730, %731 in 1 : vector<16x17xbf16>, vector<16x239xbf16> -> vector<16x256xbf16>
    %cst_257 = arith.constant 0.000000e+00 : bf16
    %733 = vector.broadcast %cst_257 : bf16 to vector<16x256xbf16>
    %734 = vector.shape_cast %23 : vector<1x256xi1> to vector<1x256xi1>
    %735 = vector.broadcast %734 : vector<1x256xi1> to vector<16x256xi1>
    %736 = arith.select %735, %732, %733 : vector<16x256xi1>, vector<16x256xbf16>
    %737 = vector.extract_strided_slice %729 {offsets = [0, 240], sizes = [16, 16], strides = [1, 1]} : vector<16x256xbf16> to vector<16x16xbf16>
    %738 = vector.extract_strided_slice %729 {offsets = [0, 0], sizes = [16, 240], strides = [1, 1]} : vector<16x256xbf16> to vector<16x240xbf16>
    %739 = tpu.concatenate %737, %738 in 1 : vector<16x16xbf16>, vector<16x240xbf16> -> vector<16x256xbf16>
    %cst_258 = arith.constant 0.000000e+00 : bf16
    %740 = vector.broadcast %cst_258 : bf16 to vector<16x256xbf16>
    %741 = vector.shape_cast %42 : vector<1x256xi1> to vector<1x256xi1>
    %742 = vector.broadcast %741 : vector<1x256xi1> to vector<16x256xi1>
    %743 = arith.select %742, %739, %740 : vector<16x256xi1>, vector<16x256xbf16>
    %744 = vector.extract_strided_slice %729 {offsets = [0, 241], sizes = [16, 15], strides = [1, 1]} : vector<16x256xbf16> to vector<16x15xbf16>
    %745 = vector.extract_strided_slice %729 {offsets = [0, 0], sizes = [16, 241], strides = [1, 1]} : vector<16x256xbf16> to vector<16x241xbf16>
    %746 = tpu.concatenate %744, %745 in 1 : vector<16x15xbf16>, vector<16x241xbf16> -> vector<16x256xbf16>
    %cst_259 = arith.constant 0.000000e+00 : bf16
    %747 = vector.broadcast %cst_259 : bf16 to vector<16x256xbf16>
    %748 = vector.shape_cast %61 : vector<1x256xi1> to vector<1x256xi1>
    %749 = vector.broadcast %748 : vector<1x256xi1> to vector<16x256xi1>
    %750 = arith.select %749, %746, %747 : vector<16x256xi1>, vector<16x256xbf16>
    %751 = vector.extract_strided_slice %729 {offsets = [0, 255], sizes = [16, 1], strides = [1, 1]} : vector<16x256xbf16> to vector<16x1xbf16>
    %752 = vector.extract_strided_slice %729 {offsets = [0, 0], sizes = [16, 255], strides = [1, 1]} : vector<16x256xbf16> to vector<16x255xbf16>
    %753 = tpu.concatenate %751, %752 in 1 : vector<16x1xbf16>, vector<16x255xbf16> -> vector<16x256xbf16>
    %cst_260 = arith.constant 0.000000e+00 : bf16
    %754 = vector.broadcast %cst_260 : bf16 to vector<16x256xbf16>
    %755 = vector.shape_cast %80 : vector<1x256xi1> to vector<1x256xi1>
    %756 = vector.broadcast %755 : vector<1x256xi1> to vector<16x256xi1>
    %757 = arith.select %756, %753, %754 : vector<16x256xi1>, vector<16x256xbf16>
    %cst_261 = arith.constant 0.000000e+00 : bf16
    %758 = vector.broadcast %cst_261 : bf16 to vector<16x256xbf16>
    %759 = vector.shape_cast %99 : vector<1x256xi1> to vector<1x256xi1>
    %760 = vector.broadcast %759 : vector<1x256xi1> to vector<16x256xi1>
    %761 = arith.select %760, %729, %758 : vector<16x256xi1>, vector<16x256xbf16>
    %762 = vector.extract_strided_slice %729 {offsets = [0, 1], sizes = [16, 255], strides = [1, 1]} : vector<16x256xbf16> to vector<16x255xbf16>
    %763 = vector.extract_strided_slice %729 {offsets = [0, 0], sizes = [16, 1], strides = [1, 1]} : vector<16x256xbf16> to vector<16x1xbf16>
    %764 = tpu.concatenate %762, %763 in 1 : vector<16x255xbf16>, vector<16x1xbf16> -> vector<16x256xbf16>
    %cst_262 = arith.constant 0.000000e+00 : bf16
    %765 = vector.broadcast %cst_262 : bf16 to vector<16x256xbf16>
    %766 = vector.shape_cast %118 : vector<1x256xi1> to vector<1x256xi1>
    %767 = vector.broadcast %766 : vector<1x256xi1> to vector<16x256xi1>
    %768 = arith.select %767, %764, %765 : vector<16x256xi1>, vector<16x256xbf16>
    %769 = vector.extract_strided_slice %729 {offsets = [0, 15], sizes = [16, 241], strides = [1, 1]} : vector<16x256xbf16> to vector<16x241xbf16>
    %770 = vector.extract_strided_slice %729 {offsets = [0, 0], sizes = [16, 15], strides = [1, 1]} : vector<16x256xbf16> to vector<16x15xbf16>
    %771 = tpu.concatenate %769, %770 in 1 : vector<16x241xbf16>, vector<16x15xbf16> -> vector<16x256xbf16>
    %cst_263 = arith.constant 0.000000e+00 : bf16
    %772 = vector.broadcast %cst_263 : bf16 to vector<16x256xbf16>
    %773 = vector.shape_cast %137 : vector<1x256xi1> to vector<1x256xi1>
    %774 = vector.broadcast %773 : vector<1x256xi1> to vector<16x256xi1>
    %775 = arith.select %774, %771, %772 : vector<16x256xi1>, vector<16x256xbf16>
    %776 = vector.extract_strided_slice %729 {offsets = [0, 16], sizes = [16, 240], strides = [1, 1]} : vector<16x256xbf16> to vector<16x240xbf16>
    %777 = vector.extract_strided_slice %729 {offsets = [0, 0], sizes = [16, 16], strides = [1, 1]} : vector<16x256xbf16> to vector<16x16xbf16>
    %778 = tpu.concatenate %776, %777 in 1 : vector<16x240xbf16>, vector<16x16xbf16> -> vector<16x256xbf16>
    %cst_264 = arith.constant 0.000000e+00 : bf16
    %779 = vector.broadcast %cst_264 : bf16 to vector<16x256xbf16>
    %780 = vector.shape_cast %156 : vector<1x256xi1> to vector<1x256xi1>
    %781 = vector.broadcast %780 : vector<1x256xi1> to vector<16x256xi1>
    %782 = arith.select %781, %778, %779 : vector<16x256xi1>, vector<16x256xbf16>
    %783 = vector.extract_strided_slice %729 {offsets = [0, 17], sizes = [16, 239], strides = [1, 1]} : vector<16x256xbf16> to vector<16x239xbf16>
    %784 = vector.extract_strided_slice %729 {offsets = [0, 0], sizes = [16, 17], strides = [1, 1]} : vector<16x256xbf16> to vector<16x17xbf16>
    %785 = tpu.concatenate %783, %784 in 1 : vector<16x239xbf16>, vector<16x17xbf16> -> vector<16x256xbf16>
    %cst_265 = arith.constant 0.000000e+00 : bf16
    %786 = vector.broadcast %cst_265 : bf16 to vector<16x256xbf16>
    %787 = vector.shape_cast %175 : vector<1x256xi1> to vector<1x256xi1>
    %788 = vector.broadcast %787 : vector<1x256xi1> to vector<16x256xi1>
    %789 = arith.select %788, %785, %786 : vector<16x256xi1>, vector<16x256xbf16>
    %790 = tpu.concatenate %736, %743, %750, %757, %761, %768, %775, %782, %789 in 0 : vector<16x256xbf16>, vector<16x256xbf16>, vector<16x256xbf16>, vector<16x256xbf16>, vector<16x256xbf16>, vector<16x256xbf16>, vector<16x256xbf16>, vector<16x256xbf16>, vector<16x256xbf16> -> vector<144x256xbf16>
    %c48 = arith.constant 48 : index
    %c0_266 = arith.constant 0 : index
    %791 = vector.load %arg2[%c48, %c0_266] : memref<896x576xbf16, #tpu.memory_space<vmem>>, vector<16x144xbf16>
    %cst_267 = arith.constant dense<0.000000e+00> : vector<16x256xf32>
    %792 = tpu.matmul %791, %790, %cst_267 {dimension_numbers = #tpu.dot_dimension_numbers<[1], [0], [0], [1], [0, 0, 1, 1], [], []>} : vector<16x144xbf16>, vector<144x256xbf16>, vector<16x256xf32> -> vector<16x256xf32>
    %c0_268 = arith.constant 0 : index
    %c3 = arith.constant 3 : index
    %793 = vector.load %arg3[%c0_268, %c3] : memref<64x16xf32, #tpu.memory_space<vmem>>, vector<16x1xf32>
    %794 = vector.broadcast %793 : vector<16x1xf32> to vector<16x256xf32>
    %795 = arith.addf %792, %794 : vector<16x256xf32>
    %cst_269 = arith.constant 0.000000e+00 : f32
    %796 = vector.broadcast %cst_269 : f32 to vector<16x256xf32>
    %797 = arith.cmpf ogt, %795, %796 : vector<16x256xf32>
    %cst_270 = arith.constant 0.00999999977 : f32
    %798 = vector.broadcast %cst_270 : f32 to vector<16x256xf32>
    %799 = arith.mulf %798, %795 : vector<16x256xf32>
    %800 = arith.select %797, %795, %799 : vector<16x256xi1>, vector<16x256xf32>
    %801 = arith.truncf %800 : vector<16x256xf32> to vector<16x256xbf16>
    %802 = vector.extract_strided_slice %801 {offsets = [0, 239], sizes = [16, 17], strides = [1, 1]} : vector<16x256xbf16> to vector<16x17xbf16>
    %803 = vector.extract_strided_slice %801 {offsets = [0, 0], sizes = [16, 239], strides = [1, 1]} : vector<16x256xbf16> to vector<16x239xbf16>
    %804 = tpu.concatenate %802, %803 in 1 : vector<16x17xbf16>, vector<16x239xbf16> -> vector<16x256xbf16>
    %cst_271 = arith.constant 0.000000e+00 : bf16
    %805 = vector.broadcast %cst_271 : bf16 to vector<16x256xbf16>
    %806 = vector.shape_cast %23 : vector<1x256xi1> to vector<1x256xi1>
    %807 = vector.broadcast %806 : vector<1x256xi1> to vector<16x256xi1>
    %808 = arith.select %807, %804, %805 : vector<16x256xi1>, vector<16x256xbf16>
    %809 = vector.extract_strided_slice %801 {offsets = [0, 240], sizes = [16, 16], strides = [1, 1]} : vector<16x256xbf16> to vector<16x16xbf16>
    %810 = vector.extract_strided_slice %801 {offsets = [0, 0], sizes = [16, 240], strides = [1, 1]} : vector<16x256xbf16> to vector<16x240xbf16>
    %811 = tpu.concatenate %809, %810 in 1 : vector<16x16xbf16>, vector<16x240xbf16> -> vector<16x256xbf16>
    %cst_272 = arith.constant 0.000000e+00 : bf16
    %812 = vector.broadcast %cst_272 : bf16 to vector<16x256xbf16>
    %813 = vector.shape_cast %42 : vector<1x256xi1> to vector<1x256xi1>
    %814 = vector.broadcast %813 : vector<1x256xi1> to vector<16x256xi1>
    %815 = arith.select %814, %811, %812 : vector<16x256xi1>, vector<16x256xbf16>
    %816 = vector.extract_strided_slice %801 {offsets = [0, 241], sizes = [16, 15], strides = [1, 1]} : vector<16x256xbf16> to vector<16x15xbf16>
    %817 = vector.extract_strided_slice %801 {offsets = [0, 0], sizes = [16, 241], strides = [1, 1]} : vector<16x256xbf16> to vector<16x241xbf16>
    %818 = tpu.concatenate %816, %817 in 1 : vector<16x15xbf16>, vector<16x241xbf16> -> vector<16x256xbf16>
    %cst_273 = arith.constant 0.000000e+00 : bf16
    %819 = vector.broadcast %cst_273 : bf16 to vector<16x256xbf16>
    %820 = vector.shape_cast %61 : vector<1x256xi1> to vector<1x256xi1>
    %821 = vector.broadcast %820 : vector<1x256xi1> to vector<16x256xi1>
    %822 = arith.select %821, %818, %819 : vector<16x256xi1>, vector<16x256xbf16>
    %823 = vector.extract_strided_slice %801 {offsets = [0, 255], sizes = [16, 1], strides = [1, 1]} : vector<16x256xbf16> to vector<16x1xbf16>
    %824 = vector.extract_strided_slice %801 {offsets = [0, 0], sizes = [16, 255], strides = [1, 1]} : vector<16x256xbf16> to vector<16x255xbf16>
    %825 = tpu.concatenate %823, %824 in 1 : vector<16x1xbf16>, vector<16x255xbf16> -> vector<16x256xbf16>
    %cst_274 = arith.constant 0.000000e+00 : bf16
    %826 = vector.broadcast %cst_274 : bf16 to vector<16x256xbf16>
    %827 = vector.shape_cast %80 : vector<1x256xi1> to vector<1x256xi1>
    %828 = vector.broadcast %827 : vector<1x256xi1> to vector<16x256xi1>
    %829 = arith.select %828, %825, %826 : vector<16x256xi1>, vector<16x256xbf16>
    %cst_275 = arith.constant 0.000000e+00 : bf16
    %830 = vector.broadcast %cst_275 : bf16 to vector<16x256xbf16>
    %831 = vector.shape_cast %99 : vector<1x256xi1> to vector<1x256xi1>
    %832 = vector.broadcast %831 : vector<1x256xi1> to vector<16x256xi1>
    %833 = arith.select %832, %801, %830 : vector<16x256xi1>, vector<16x256xbf16>
    %834 = vector.extract_strided_slice %801 {offsets = [0, 1], sizes = [16, 255], strides = [1, 1]} : vector<16x256xbf16> to vector<16x255xbf16>
    %835 = vector.extract_strided_slice %801 {offsets = [0, 0], sizes = [16, 1], strides = [1, 1]} : vector<16x256xbf16> to vector<16x1xbf16>
    %836 = tpu.concatenate %834, %835 in 1 : vector<16x255xbf16>, vector<16x1xbf16> -> vector<16x256xbf16>
    %cst_276 = arith.constant 0.000000e+00 : bf16
    %837 = vector.broadcast %cst_276 : bf16 to vector<16x256xbf16>
    %838 = vector.shape_cast %118 : vector<1x256xi1> to vector<1x256xi1>
    %839 = vector.broadcast %838 : vector<1x256xi1> to vector<16x256xi1>
    %840 = arith.select %839, %836, %837 : vector<16x256xi1>, vector<16x256xbf16>
    %841 = vector.extract_strided_slice %801 {offsets = [0, 15], sizes = [16, 241], strides = [1, 1]} : vector<16x256xbf16> to vector<16x241xbf16>
    %842 = vector.extract_strided_slice %801 {offsets = [0, 0], sizes = [16, 15], strides = [1, 1]} : vector<16x256xbf16> to vector<16x15xbf16>
    %843 = tpu.concatenate %841, %842 in 1 : vector<16x241xbf16>, vector<16x15xbf16> -> vector<16x256xbf16>
    %cst_277 = arith.constant 0.000000e+00 : bf16
    %844 = vector.broadcast %cst_277 : bf16 to vector<16x256xbf16>
    %845 = vector.shape_cast %137 : vector<1x256xi1> to vector<1x256xi1>
    %846 = vector.broadcast %845 : vector<1x256xi1> to vector<16x256xi1>
    %847 = arith.select %846, %843, %844 : vector<16x256xi1>, vector<16x256xbf16>
    %848 = vector.extract_strided_slice %801 {offsets = [0, 16], sizes = [16, 240], strides = [1, 1]} : vector<16x256xbf16> to vector<16x240xbf16>
    %849 = vector.extract_strided_slice %801 {offsets = [0, 0], sizes = [16, 16], strides = [1, 1]} : vector<16x256xbf16> to vector<16x16xbf16>
    %850 = tpu.concatenate %848, %849 in 1 : vector<16x240xbf16>, vector<16x16xbf16> -> vector<16x256xbf16>
    %cst_278 = arith.constant 0.000000e+00 : bf16
    %851 = vector.broadcast %cst_278 : bf16 to vector<16x256xbf16>
    %852 = vector.shape_cast %156 : vector<1x256xi1> to vector<1x256xi1>
    %853 = vector.broadcast %852 : vector<1x256xi1> to vector<16x256xi1>
    %854 = arith.select %853, %850, %851 : vector<16x256xi1>, vector<16x256xbf16>
    %855 = vector.extract_strided_slice %801 {offsets = [0, 17], sizes = [16, 239], strides = [1, 1]} : vector<16x256xbf16> to vector<16x239xbf16>
    %856 = vector.extract_strided_slice %801 {offsets = [0, 0], sizes = [16, 17], strides = [1, 1]} : vector<16x256xbf16> to vector<16x17xbf16>
    %857 = tpu.concatenate %855, %856 in 1 : vector<16x239xbf16>, vector<16x17xbf16> -> vector<16x256xbf16>
    %cst_279 = arith.constant 0.000000e+00 : bf16
    %858 = vector.broadcast %cst_279 : bf16 to vector<16x256xbf16>
    %859 = vector.shape_cast %175 : vector<1x256xi1> to vector<1x256xi1>
    %860 = vector.broadcast %859 : vector<1x256xi1> to vector<16x256xi1>
    %861 = arith.select %860, %857, %858 : vector<16x256xi1>, vector<16x256xbf16>
    %862 = tpu.concatenate %808, %815, %822, %829, %833, %840, %847, %854, %861 in 0 : vector<16x256xbf16>, vector<16x256xbf16>, vector<16x256xbf16>, vector<16x256xbf16>, vector<16x256xbf16>, vector<16x256xbf16>, vector<16x256xbf16>, vector<16x256xbf16>, vector<16x256xbf16> -> vector<144x256xbf16>
    %c64 = arith.constant 64 : index
    %c0_280 = arith.constant 0 : index
    %863 = vector.load %arg2[%c64, %c0_280] : memref<896x576xbf16, #tpu.memory_space<vmem>>, vector<16x144xbf16>
    %cst_281 = arith.constant dense<0.000000e+00> : vector<16x256xf32>
    %864 = tpu.matmul %863, %862, %cst_281 {dimension_numbers = #tpu.dot_dimension_numbers<[1], [0], [0], [1], [0, 0, 1, 1], [], []>} : vector<16x144xbf16>, vector<144x256xbf16>, vector<16x256xf32> -> vector<16x256xf32>
    %c0_282 = arith.constant 0 : index
    %c4 = arith.constant 4 : index
    %865 = vector.load %arg3[%c0_282, %c4] : memref<64x16xf32, #tpu.memory_space<vmem>>, vector<16x1xf32>
    %866 = vector.broadcast %865 : vector<16x1xf32> to vector<16x256xf32>
    %867 = arith.addf %864, %866 : vector<16x256xf32>
    %868 = arith.addf %867, %728 : vector<16x256xf32>
    %cst_283 = arith.constant 0.000000e+00 : f32
    %869 = vector.broadcast %cst_283 : f32 to vector<16x256xf32>
    %870 = arith.cmpf ogt, %868, %869 : vector<16x256xf32>
    %cst_284 = arith.constant 0.00999999977 : f32
    %871 = vector.broadcast %cst_284 : f32 to vector<16x256xf32>
    %872 = arith.mulf %871, %868 : vector<16x256xf32>
    %873 = arith.select %870, %868, %872 : vector<16x256xi1>, vector<16x256xf32>
    %c576 = arith.constant 576 : index
    %c0_285 = arith.constant 0 : index
    %874 = vector.load %arg2[%c576, %c0_285] : memref<896x576xbf16, #tpu.memory_space<vmem>>, vector<256x64xbf16>
    %875 = arith.truncf %873 : vector<16x256xf32> to vector<16x256xbf16>
    %876 = vector.extract_strided_slice %875 {offsets = [0, 239], sizes = [16, 17], strides = [1, 1]} : vector<16x256xbf16> to vector<16x17xbf16>
    %877 = vector.extract_strided_slice %875 {offsets = [0, 0], sizes = [16, 239], strides = [1, 1]} : vector<16x256xbf16> to vector<16x239xbf16>
    %878 = tpu.concatenate %876, %877 in 1 : vector<16x17xbf16>, vector<16x239xbf16> -> vector<16x256xbf16>
    %cst_286 = arith.constant 0.000000e+00 : bf16
    %879 = vector.broadcast %cst_286 : bf16 to vector<16x256xbf16>
    %880 = vector.shape_cast %23 : vector<1x256xi1> to vector<1x256xi1>
    %881 = vector.broadcast %880 : vector<1x256xi1> to vector<16x256xi1>
    %882 = arith.select %881, %878, %879 : vector<16x256xi1>, vector<16x256xbf16>
    %883 = vector.extract_strided_slice %875 {offsets = [0, 240], sizes = [16, 16], strides = [1, 1]} : vector<16x256xbf16> to vector<16x16xbf16>
    %884 = vector.extract_strided_slice %875 {offsets = [0, 0], sizes = [16, 240], strides = [1, 1]} : vector<16x256xbf16> to vector<16x240xbf16>
    %885 = tpu.concatenate %883, %884 in 1 : vector<16x16xbf16>, vector<16x240xbf16> -> vector<16x256xbf16>
    %cst_287 = arith.constant 0.000000e+00 : bf16
    %886 = vector.broadcast %cst_287 : bf16 to vector<16x256xbf16>
    %887 = vector.shape_cast %42 : vector<1x256xi1> to vector<1x256xi1>
    %888 = vector.broadcast %887 : vector<1x256xi1> to vector<16x256xi1>
    %889 = arith.select %888, %885, %886 : vector<16x256xi1>, vector<16x256xbf16>
    %890 = vector.extract_strided_slice %875 {offsets = [0, 241], sizes = [16, 15], strides = [1, 1]} : vector<16x256xbf16> to vector<16x15xbf16>
    %891 = vector.extract_strided_slice %875 {offsets = [0, 0], sizes = [16, 241], strides = [1, 1]} : vector<16x256xbf16> to vector<16x241xbf16>
    %892 = tpu.concatenate %890, %891 in 1 : vector<16x15xbf16>, vector<16x241xbf16> -> vector<16x256xbf16>
    %cst_288 = arith.constant 0.000000e+00 : bf16
    %893 = vector.broadcast %cst_288 : bf16 to vector<16x256xbf16>
    %894 = vector.shape_cast %61 : vector<1x256xi1> to vector<1x256xi1>
    %895 = vector.broadcast %894 : vector<1x256xi1> to vector<16x256xi1>
    %896 = arith.select %895, %892, %893 : vector<16x256xi1>, vector<16x256xbf16>
    %897 = vector.extract_strided_slice %875 {offsets = [0, 255], sizes = [16, 1], strides = [1, 1]} : vector<16x256xbf16> to vector<16x1xbf16>
    %898 = vector.extract_strided_slice %875 {offsets = [0, 0], sizes = [16, 255], strides = [1, 1]} : vector<16x256xbf16> to vector<16x255xbf16>
    %899 = tpu.concatenate %897, %898 in 1 : vector<16x1xbf16>, vector<16x255xbf16> -> vector<16x256xbf16>
    %cst_289 = arith.constant 0.000000e+00 : bf16
    %900 = vector.broadcast %cst_289 : bf16 to vector<16x256xbf16>
    %901 = vector.shape_cast %80 : vector<1x256xi1> to vector<1x256xi1>
    %902 = vector.broadcast %901 : vector<1x256xi1> to vector<16x256xi1>
    %903 = arith.select %902, %899, %900 : vector<16x256xi1>, vector<16x256xbf16>
    %cst_290 = arith.constant 0.000000e+00 : bf16
    %904 = vector.broadcast %cst_290 : bf16 to vector<16x256xbf16>
    %905 = vector.shape_cast %99 : vector<1x256xi1> to vector<1x256xi1>
    %906 = vector.broadcast %905 : vector<1x256xi1> to vector<16x256xi1>
    %907 = arith.select %906, %875, %904 : vector<16x256xi1>, vector<16x256xbf16>
    %908 = vector.extract_strided_slice %875 {offsets = [0, 1], sizes = [16, 255], strides = [1, 1]} : vector<16x256xbf16> to vector<16x255xbf16>
    %909 = vector.extract_strided_slice %875 {offsets = [0, 0], sizes = [16, 1], strides = [1, 1]} : vector<16x256xbf16> to vector<16x1xbf16>
    %910 = tpu.concatenate %908, %909 in 1 : vector<16x255xbf16>, vector<16x1xbf16> -> vector<16x256xbf16>
    %cst_291 = arith.constant 0.000000e+00 : bf16
    %911 = vector.broadcast %cst_291 : bf16 to vector<16x256xbf16>
    %912 = vector.shape_cast %118 : vector<1x256xi1> to vector<1x256xi1>
    %913 = vector.broadcast %912 : vector<1x256xi1> to vector<16x256xi1>
    %914 = arith.select %913, %910, %911 : vector<16x256xi1>, vector<16x256xbf16>
    %915 = vector.extract_strided_slice %875 {offsets = [0, 15], sizes = [16, 241], strides = [1, 1]} : vector<16x256xbf16> to vector<16x241xbf16>
    %916 = vector.extract_strided_slice %875 {offsets = [0, 0], sizes = [16, 15], strides = [1, 1]} : vector<16x256xbf16> to vector<16x15xbf16>
    %917 = tpu.concatenate %915, %916 in 1 : vector<16x241xbf16>, vector<16x15xbf16> -> vector<16x256xbf16>
    %cst_292 = arith.constant 0.000000e+00 : bf16
    %918 = vector.broadcast %cst_292 : bf16 to vector<16x256xbf16>
    %919 = vector.shape_cast %137 : vector<1x256xi1> to vector<1x256xi1>
    %920 = vector.broadcast %919 : vector<1x256xi1> to vector<16x256xi1>
    %921 = arith.select %920, %917, %918 : vector<16x256xi1>, vector<16x256xbf16>
    %922 = vector.extract_strided_slice %875 {offsets = [0, 16], sizes = [16, 240], strides = [1, 1]} : vector<16x256xbf16> to vector<16x240xbf16>
    %923 = vector.extract_strided_slice %875 {offsets = [0, 0], sizes = [16, 16], strides = [1, 1]} : vector<16x256xbf16> to vector<16x16xbf16>
    %924 = tpu.concatenate %922, %923 in 1 : vector<16x240xbf16>, vector<16x16xbf16> -> vector<16x256xbf16>
    %cst_293 = arith.constant 0.000000e+00 : bf16
    %925 = vector.broadcast %cst_293 : bf16 to vector<16x256xbf16>
    %926 = vector.shape_cast %156 : vector<1x256xi1> to vector<1x256xi1>
    %927 = vector.broadcast %926 : vector<1x256xi1> to vector<16x256xi1>
    %928 = arith.select %927, %924, %925 : vector<16x256xi1>, vector<16x256xbf16>
    %929 = vector.extract_strided_slice %875 {offsets = [0, 17], sizes = [16, 239], strides = [1, 1]} : vector<16x256xbf16> to vector<16x239xbf16>
    %930 = vector.extract_strided_slice %875 {offsets = [0, 0], sizes = [16, 17], strides = [1, 1]} : vector<16x256xbf16> to vector<16x17xbf16>
    %931 = tpu.concatenate %929, %930 in 1 : vector<16x239xbf16>, vector<16x17xbf16> -> vector<16x256xbf16>
    %cst_294 = arith.constant 0.000000e+00 : bf16
    %932 = vector.broadcast %cst_294 : bf16 to vector<16x256xbf16>
    %933 = vector.shape_cast %175 : vector<1x256xi1> to vector<1x256xi1>
    %934 = vector.broadcast %933 : vector<1x256xi1> to vector<16x256xi1>
    %935 = arith.select %934, %931, %932 : vector<16x256xi1>, vector<16x256xbf16>
    %936 = tpu.concatenate %882, %889, %896, %903, %907, %914, %921, %928, %935 in 0 : vector<16x256xbf16>, vector<16x256xbf16>, vector<16x256xbf16>, vector<16x256xbf16>, vector<16x256xbf16>, vector<16x256xbf16>, vector<16x256xbf16>, vector<16x256xbf16>, vector<16x256xbf16> -> vector<144x256xbf16>
    %c80 = arith.constant 80 : index
    %c0_295 = arith.constant 0 : index
    %937 = vector.load %arg2[%c80, %c0_295] : memref<896x576xbf16, #tpu.memory_space<vmem>>, vector<32x144xbf16>
    %cst_296 = arith.constant dense<0.000000e+00> : vector<32x256xf32>
    %938 = tpu.matmul %937, %936, %cst_296 {dimension_numbers = #tpu.dot_dimension_numbers<[1], [0], [0], [1], [0, 0, 1, 1], [], []>} : vector<32x144xbf16>, vector<144x256xbf16>, vector<32x256xf32> -> vector<32x256xf32>
    %939 = arith.truncf %938 : vector<32x256xf32> to vector<32x256xbf16>
    %cst_297 = arith.constant dense<0.000000e+00> : vector<32x64xf32>
    %940 = tpu.matmul %939, %874, %cst_297 {dimension_numbers = #tpu.dot_dimension_numbers<[1], [0], [0], [1], [0, 0, 1, 1], [], []>} : vector<32x256xbf16>, vector<256x64xbf16>, vector<32x64xf32> -> vector<32x64xf32>
    %c0_298 = arith.constant 0 : index
    %c5 = arith.constant 5 : index
    %941 = vector.load %arg3[%c0_298, %c5] : memref<64x16xf32, #tpu.memory_space<vmem>>, vector<32x1xf32>
    %942 = vector.broadcast %941 : vector<32x1xf32> to vector<32x64xf32>
    %943 = arith.addf %940, %942 : vector<32x64xf32>
    %cst_299 = arith.constant 0.000000e+00 : f32
    %944 = vector.broadcast %cst_299 : f32 to vector<32x64xf32>
    %945 = arith.cmpf ogt, %943, %944 : vector<32x64xf32>
    %cst_300 = arith.constant 0.00999999977 : f32
    %946 = vector.broadcast %cst_300 : f32 to vector<32x64xf32>
    %947 = arith.mulf %946, %943 : vector<32x64xf32>
    %948 = arith.select %945, %943, %947 : vector<32x64xi1>, vector<32x64xf32>
    %949 = arith.truncf %948 : vector<32x64xf32> to vector<32x64xbf16>
    %950 = vector.extract_strided_slice %949 {offsets = [0, 55], sizes = [32, 9], strides = [1, 1]} : vector<32x64xbf16> to vector<32x9xbf16>
    %951 = vector.extract_strided_slice %949 {offsets = [0, 0], sizes = [32, 55], strides = [1, 1]} : vector<32x64xbf16> to vector<32x55xbf16>
    %952 = tpu.concatenate %950, %951 in 1 : vector<32x9xbf16>, vector<32x55xbf16> -> vector<32x64xbf16>
    %cst_301 = arith.constant 0.000000e+00 : bf16
    %953 = vector.broadcast %cst_301 : bf16 to vector<32x64xbf16>
    %954 = vector.shape_cast %199 : vector<1x64xi1> to vector<1x64xi1>
    %955 = vector.broadcast %954 : vector<1x64xi1> to vector<32x64xi1>
    %956 = arith.select %955, %952, %953 : vector<32x64xi1>, vector<32x64xbf16>
    %957 = vector.extract_strided_slice %949 {offsets = [0, 56], sizes = [32, 8], strides = [1, 1]} : vector<32x64xbf16> to vector<32x8xbf16>
    %958 = vector.extract_strided_slice %949 {offsets = [0, 0], sizes = [32, 56], strides = [1, 1]} : vector<32x64xbf16> to vector<32x56xbf16>
    %959 = tpu.concatenate %957, %958 in 1 : vector<32x8xbf16>, vector<32x56xbf16> -> vector<32x64xbf16>
    %cst_302 = arith.constant 0.000000e+00 : bf16
    %960 = vector.broadcast %cst_302 : bf16 to vector<32x64xbf16>
    %961 = vector.shape_cast %218 : vector<1x64xi1> to vector<1x64xi1>
    %962 = vector.broadcast %961 : vector<1x64xi1> to vector<32x64xi1>
    %963 = arith.select %962, %959, %960 : vector<32x64xi1>, vector<32x64xbf16>
    %964 = vector.extract_strided_slice %949 {offsets = [0, 57], sizes = [32, 7], strides = [1, 1]} : vector<32x64xbf16> to vector<32x7xbf16>
    %965 = vector.extract_strided_slice %949 {offsets = [0, 0], sizes = [32, 57], strides = [1, 1]} : vector<32x64xbf16> to vector<32x57xbf16>
    %966 = tpu.concatenate %964, %965 in 1 : vector<32x7xbf16>, vector<32x57xbf16> -> vector<32x64xbf16>
    %cst_303 = arith.constant 0.000000e+00 : bf16
    %967 = vector.broadcast %cst_303 : bf16 to vector<32x64xbf16>
    %968 = vector.shape_cast %237 : vector<1x64xi1> to vector<1x64xi1>
    %969 = vector.broadcast %968 : vector<1x64xi1> to vector<32x64xi1>
    %970 = arith.select %969, %966, %967 : vector<32x64xi1>, vector<32x64xbf16>
    %971 = vector.extract_strided_slice %949 {offsets = [0, 63], sizes = [32, 1], strides = [1, 1]} : vector<32x64xbf16> to vector<32x1xbf16>
    %972 = vector.extract_strided_slice %949 {offsets = [0, 0], sizes = [32, 63], strides = [1, 1]} : vector<32x64xbf16> to vector<32x63xbf16>
    %973 = tpu.concatenate %971, %972 in 1 : vector<32x1xbf16>, vector<32x63xbf16> -> vector<32x64xbf16>
    %cst_304 = arith.constant 0.000000e+00 : bf16
    %974 = vector.broadcast %cst_304 : bf16 to vector<32x64xbf16>
    %975 = vector.shape_cast %256 : vector<1x64xi1> to vector<1x64xi1>
    %976 = vector.broadcast %975 : vector<1x64xi1> to vector<32x64xi1>
    %977 = arith.select %976, %973, %974 : vector<32x64xi1>, vector<32x64xbf16>
    %cst_305 = arith.constant 0.000000e+00 : bf16
    %978 = vector.broadcast %cst_305 : bf16 to vector<32x64xbf16>
    %979 = vector.shape_cast %275 : vector<1x64xi1> to vector<1x64xi1>
    %980 = vector.broadcast %979 : vector<1x64xi1> to vector<32x64xi1>
    %981 = arith.select %980, %949, %978 : vector<32x64xi1>, vector<32x64xbf16>
    %982 = vector.extract_strided_slice %949 {offsets = [0, 1], sizes = [32, 63], strides = [1, 1]} : vector<32x64xbf16> to vector<32x63xbf16>
    %983 = vector.extract_strided_slice %949 {offsets = [0, 0], sizes = [32, 1], strides = [1, 1]} : vector<32x64xbf16> to vector<32x1xbf16>
    %984 = tpu.concatenate %982, %983 in 1 : vector<32x63xbf16>, vector<32x1xbf16> -> vector<32x64xbf16>
    %cst_306 = arith.constant 0.000000e+00 : bf16
    %985 = vector.broadcast %cst_306 : bf16 to vector<32x64xbf16>
    %986 = vector.shape_cast %294 : vector<1x64xi1> to vector<1x64xi1>
    %987 = vector.broadcast %986 : vector<1x64xi1> to vector<32x64xi1>
    %988 = arith.select %987, %984, %985 : vector<32x64xi1>, vector<32x64xbf16>
    %989 = vector.extract_strided_slice %949 {offsets = [0, 7], sizes = [32, 57], strides = [1, 1]} : vector<32x64xbf16> to vector<32x57xbf16>
    %990 = vector.extract_strided_slice %949 {offsets = [0, 0], sizes = [32, 7], strides = [1, 1]} : vector<32x64xbf16> to vector<32x7xbf16>
    %991 = tpu.concatenate %989, %990 in 1 : vector<32x57xbf16>, vector<32x7xbf16> -> vector<32x64xbf16>
    %cst_307 = arith.constant 0.000000e+00 : bf16
    %992 = vector.broadcast %cst_307 : bf16 to vector<32x64xbf16>
    %993 = vector.shape_cast %313 : vector<1x64xi1> to vector<1x64xi1>
    %994 = vector.broadcast %993 : vector<1x64xi1> to vector<32x64xi1>
    %995 = arith.select %994, %991, %992 : vector<32x64xi1>, vector<32x64xbf16>
    %996 = vector.extract_strided_slice %949 {offsets = [0, 8], sizes = [32, 56], strides = [1, 1]} : vector<32x64xbf16> to vector<32x56xbf16>
    %997 = vector.extract_strided_slice %949 {offsets = [0, 0], sizes = [32, 8], strides = [1, 1]} : vector<32x64xbf16> to vector<32x8xbf16>
    %998 = tpu.concatenate %996, %997 in 1 : vector<32x56xbf16>, vector<32x8xbf16> -> vector<32x64xbf16>
    %cst_308 = arith.constant 0.000000e+00 : bf16
    %999 = vector.broadcast %cst_308 : bf16 to vector<32x64xbf16>
    %1000 = vector.shape_cast %332 : vector<1x64xi1> to vector<1x64xi1>
    %1001 = vector.broadcast %1000 : vector<1x64xi1> to vector<32x64xi1>
    %1002 = arith.select %1001, %998, %999 : vector<32x64xi1>, vector<32x64xbf16>
    %1003 = vector.extract_strided_slice %949 {offsets = [0, 9], sizes = [32, 55], strides = [1, 1]} : vector<32x64xbf16> to vector<32x55xbf16>
    %1004 = vector.extract_strided_slice %949 {offsets = [0, 0], sizes = [32, 9], strides = [1, 1]} : vector<32x64xbf16> to vector<32x9xbf16>
    %1005 = tpu.concatenate %1003, %1004 in 1 : vector<32x55xbf16>, vector<32x9xbf16> -> vector<32x64xbf16>
    %cst_309 = arith.constant 0.000000e+00 : bf16
    %1006 = vector.broadcast %cst_309 : bf16 to vector<32x64xbf16>
    %1007 = vector.shape_cast %351 : vector<1x64xi1> to vector<1x64xi1>
    %1008 = vector.broadcast %1007 : vector<1x64xi1> to vector<32x64xi1>
    %1009 = arith.select %1008, %1005, %1006 : vector<32x64xi1>, vector<32x64xbf16>
    %1010 = tpu.concatenate %956, %963, %970, %977, %981, %988, %995, %1002, %1009 in 0 : vector<32x64xbf16>, vector<32x64xbf16>, vector<32x64xbf16>, vector<32x64xbf16>, vector<32x64xbf16>, vector<32x64xbf16>, vector<32x64xbf16>, vector<32x64xbf16>, vector<32x64xbf16> -> vector<288x64xbf16>
    %c112 = arith.constant 112 : index
    %c0_310 = arith.constant 0 : index
    %1011 = vector.load %arg2[%c112, %c0_310] : memref<896x576xbf16, #tpu.memory_space<vmem>>, vector<32x288xbf16>
    %cst_311 = arith.constant dense<0.000000e+00> : vector<32x64xf32>
    %1012 = tpu.matmul %1011, %1010, %cst_311 {dimension_numbers = #tpu.dot_dimension_numbers<[1], [0], [0], [1], [0, 0, 1, 1], [], []>} : vector<32x288xbf16>, vector<288x64xbf16>, vector<32x64xf32> -> vector<32x64xf32>
    %c0_312 = arith.constant 0 : index
    %c6 = arith.constant 6 : index
    %1013 = vector.load %arg3[%c0_312, %c6] : memref<64x16xf32, #tpu.memory_space<vmem>>, vector<32x1xf32>
    %1014 = vector.broadcast %1013 : vector<32x1xf32> to vector<32x64xf32>
    %1015 = arith.addf %1012, %1014 : vector<32x64xf32>
    %1016 = arith.truncf %873 : vector<16x256xf32> to vector<16x256xbf16>
    %cst_313 = arith.constant dense<0.000000e+00> : vector<16x64xf32>
    %1017 = tpu.matmul %1016, %874, %cst_313 {dimension_numbers = #tpu.dot_dimension_numbers<[1], [0], [0], [1], [0, 0, 1, 1], [], []>} : vector<16x256xbf16>, vector<256x64xbf16>, vector<16x64xf32> -> vector<16x64xf32>
    %c144 = arith.constant 144 : index
    %c0_314 = arith.constant 0 : index
    %1018 = vector.load %arg2[%c144, %c0_314] : memref<896x576xbf16, #tpu.memory_space<vmem>>, vector<32x16xbf16>
    %1019 = arith.truncf %1017 : vector<16x64xf32> to vector<16x64xbf16>
    %cst_315 = arith.constant dense<0.000000e+00> : vector<32x64xf32>
    %1020 = tpu.matmul %1018, %1019, %cst_315 {dimension_numbers = #tpu.dot_dimension_numbers<[1], [0], [0], [1], [0, 0, 1, 1], [], []>} : vector<32x16xbf16>, vector<16x64xbf16>, vector<32x64xf32> -> vector<32x64xf32>
    %c0_316 = arith.constant 0 : index
    %c7 = arith.constant 7 : index
    %1021 = vector.load %arg3[%c0_316, %c7] : memref<64x16xf32, #tpu.memory_space<vmem>>, vector<32x1xf32>
    %1022 = vector.broadcast %1021 : vector<32x1xf32> to vector<32x64xf32>
    %1023 = arith.addf %1020, %1022 : vector<32x64xf32>
    %1024 = arith.addf %1015, %1023 : vector<32x64xf32>
    %cst_317 = arith.constant 0.000000e+00 : f32
    %1025 = vector.broadcast %cst_317 : f32 to vector<32x64xf32>
    %1026 = arith.cmpf ogt, %1024, %1025 : vector<32x64xf32>
    %cst_318 = arith.constant 0.00999999977 : f32
    %1027 = vector.broadcast %cst_318 : f32 to vector<32x64xf32>
    %1028 = arith.mulf %1027, %1024 : vector<32x64xf32>
    %1029 = arith.select %1026, %1024, %1028 : vector<32x64xi1>, vector<32x64xf32>
    %1030 = arith.truncf %1029 : vector<32x64xf32> to vector<32x64xbf16>
    %1031 = vector.extract_strided_slice %1030 {offsets = [0, 55], sizes = [32, 9], strides = [1, 1]} : vector<32x64xbf16> to vector<32x9xbf16>
    %1032 = vector.extract_strided_slice %1030 {offsets = [0, 0], sizes = [32, 55], strides = [1, 1]} : vector<32x64xbf16> to vector<32x55xbf16>
    %1033 = tpu.concatenate %1031, %1032 in 1 : vector<32x9xbf16>, vector<32x55xbf16> -> vector<32x64xbf16>
    %cst_319 = arith.constant 0.000000e+00 : bf16
    %1034 = vector.broadcast %cst_319 : bf16 to vector<32x64xbf16>
    %1035 = vector.shape_cast %199 : vector<1x64xi1> to vector<1x64xi1>
    %1036 = vector.broadcast %1035 : vector<1x64xi1> to vector<32x64xi1>
    %1037 = arith.select %1036, %1033, %1034 : vector<32x64xi1>, vector<32x64xbf16>
    %1038 = vector.extract_strided_slice %1030 {offsets = [0, 56], sizes = [32, 8], strides = [1, 1]} : vector<32x64xbf16> to vector<32x8xbf16>
    %1039 = vector.extract_strided_slice %1030 {offsets = [0, 0], sizes = [32, 56], strides = [1, 1]} : vector<32x64xbf16> to vector<32x56xbf16>
    %1040 = tpu.concatenate %1038, %1039 in 1 : vector<32x8xbf16>, vector<32x56xbf16> -> vector<32x64xbf16>
    %cst_320 = arith.constant 0.000000e+00 : bf16
    %1041 = vector.broadcast %cst_320 : bf16 to vector<32x64xbf16>
    %1042 = vector.shape_cast %218 : vector<1x64xi1> to vector<1x64xi1>
    %1043 = vector.broadcast %1042 : vector<1x64xi1> to vector<32x64xi1>
    %1044 = arith.select %1043, %1040, %1041 : vector<32x64xi1>, vector<32x64xbf16>
    %1045 = vector.extract_strided_slice %1030 {offsets = [0, 57], sizes = [32, 7], strides = [1, 1]} : vector<32x64xbf16> to vector<32x7xbf16>
    %1046 = vector.extract_strided_slice %1030 {offsets = [0, 0], sizes = [32, 57], strides = [1, 1]} : vector<32x64xbf16> to vector<32x57xbf16>
    %1047 = tpu.concatenate %1045, %1046 in 1 : vector<32x7xbf16>, vector<32x57xbf16> -> vector<32x64xbf16>
    %cst_321 = arith.constant 0.000000e+00 : bf16
    %1048 = vector.broadcast %cst_321 : bf16 to vector<32x64xbf16>
    %1049 = vector.shape_cast %237 : vector<1x64xi1> to vector<1x64xi1>
    %1050 = vector.broadcast %1049 : vector<1x64xi1> to vector<32x64xi1>
    %1051 = arith.select %1050, %1047, %1048 : vector<32x64xi1>, vector<32x64xbf16>
    %1052 = vector.extract_strided_slice %1030 {offsets = [0, 63], sizes = [32, 1], strides = [1, 1]} : vector<32x64xbf16> to vector<32x1xbf16>
    %1053 = vector.extract_strided_slice %1030 {offsets = [0, 0], sizes = [32, 63], strides = [1, 1]} : vector<32x64xbf16> to vector<32x63xbf16>
    %1054 = tpu.concatenate %1052, %1053 in 1 : vector<32x1xbf16>, vector<32x63xbf16> -> vector<32x64xbf16>
    %cst_322 = arith.constant 0.000000e+00 : bf16
    %1055 = vector.broadcast %cst_322 : bf16 to vector<32x64xbf16>
    %1056 = vector.shape_cast %256 : vector<1x64xi1> to vector<1x64xi1>
    %1057 = vector.broadcast %1056 : vector<1x64xi1> to vector<32x64xi1>
    %1058 = arith.select %1057, %1054, %1055 : vector<32x64xi1>, vector<32x64xbf16>
    %cst_323 = arith.constant 0.000000e+00 : bf16
    %1059 = vector.broadcast %cst_323 : bf16 to vector<32x64xbf16>
    %1060 = vector.shape_cast %275 : vector<1x64xi1> to vector<1x64xi1>
    %1061 = vector.broadcast %1060 : vector<1x64xi1> to vector<32x64xi1>
    %1062 = arith.select %1061, %1030, %1059 : vector<32x64xi1>, vector<32x64xbf16>
    %1063 = vector.extract_strided_slice %1030 {offsets = [0, 1], sizes = [32, 63], strides = [1, 1]} : vector<32x64xbf16> to vector<32x63xbf16>
    %1064 = vector.extract_strided_slice %1030 {offsets = [0, 0], sizes = [32, 1], strides = [1, 1]} : vector<32x64xbf16> to vector<32x1xbf16>
    %1065 = tpu.concatenate %1063, %1064 in 1 : vector<32x63xbf16>, vector<32x1xbf16> -> vector<32x64xbf16>
    %cst_324 = arith.constant 0.000000e+00 : bf16
    %1066 = vector.broadcast %cst_324 : bf16 to vector<32x64xbf16>
    %1067 = vector.shape_cast %294 : vector<1x64xi1> to vector<1x64xi1>
    %1068 = vector.broadcast %1067 : vector<1x64xi1> to vector<32x64xi1>
    %1069 = arith.select %1068, %1065, %1066 : vector<32x64xi1>, vector<32x64xbf16>
    %1070 = vector.extract_strided_slice %1030 {offsets = [0, 7], sizes = [32, 57], strides = [1, 1]} : vector<32x64xbf16> to vector<32x57xbf16>
    %1071 = vector.extract_strided_slice %1030 {offsets = [0, 0], sizes = [32, 7], strides = [1, 1]} : vector<32x64xbf16> to vector<32x7xbf16>
    %1072 = tpu.concatenate %1070, %1071 in 1 : vector<32x57xbf16>, vector<32x7xbf16> -> vector<32x64xbf16>
    %cst_325 = arith.constant 0.000000e+00 : bf16
    %1073 = vector.broadcast %cst_325 : bf16 to vector<32x64xbf16>
    %1074 = vector.shape_cast %313 : vector<1x64xi1> to vector<1x64xi1>
    %1075 = vector.broadcast %1074 : vector<1x64xi1> to vector<32x64xi1>
    %1076 = arith.select %1075, %1072, %1073 : vector<32x64xi1>, vector<32x64xbf16>
    %1077 = vector.extract_strided_slice %1030 {offsets = [0, 8], sizes = [32, 56], strides = [1, 1]} : vector<32x64xbf16> to vector<32x56xbf16>
    %1078 = vector.extract_strided_slice %1030 {offsets = [0, 0], sizes = [32, 8], strides = [1, 1]} : vector<32x64xbf16> to vector<32x8xbf16>
    %1079 = tpu.concatenate %1077, %1078 in 1 : vector<32x56xbf16>, vector<32x8xbf16> -> vector<32x64xbf16>
    %cst_326 = arith.constant 0.000000e+00 : bf16
    %1080 = vector.broadcast %cst_326 : bf16 to vector<32x64xbf16>
    %1081 = vector.shape_cast %332 : vector<1x64xi1> to vector<1x64xi1>
    %1082 = vector.broadcast %1081 : vector<1x64xi1> to vector<32x64xi1>
    %1083 = arith.select %1082, %1079, %1080 : vector<32x64xi1>, vector<32x64xbf16>
    %1084 = vector.extract_strided_slice %1030 {offsets = [0, 9], sizes = [32, 55], strides = [1, 1]} : vector<32x64xbf16> to vector<32x55xbf16>
    %1085 = vector.extract_strided_slice %1030 {offsets = [0, 0], sizes = [32, 9], strides = [1, 1]} : vector<32x64xbf16> to vector<32x9xbf16>
    %1086 = tpu.concatenate %1084, %1085 in 1 : vector<32x55xbf16>, vector<32x9xbf16> -> vector<32x64xbf16>
    %cst_327 = arith.constant 0.000000e+00 : bf16
    %1087 = vector.broadcast %cst_327 : bf16 to vector<32x64xbf16>
    %1088 = vector.shape_cast %351 : vector<1x64xi1> to vector<1x64xi1>
    %1089 = vector.broadcast %1088 : vector<1x64xi1> to vector<32x64xi1>
    %1090 = arith.select %1089, %1086, %1087 : vector<32x64xi1>, vector<32x64xbf16>
    %1091 = tpu.concatenate %1037, %1044, %1051, %1058, %1062, %1069, %1076, %1083, %1090 in 0 : vector<32x64xbf16>, vector<32x64xbf16>, vector<32x64xbf16>, vector<32x64xbf16>, vector<32x64xbf16>, vector<32x64xbf16>, vector<32x64xbf16>, vector<32x64xbf16>, vector<32x64xbf16> -> vector<288x64xbf16>
    %c176 = arith.constant 176 : index
    %c0_328 = arith.constant 0 : index
    %1092 = vector.load %arg2[%c176, %c0_328] : memref<896x576xbf16, #tpu.memory_space<vmem>>, vector<32x288xbf16>
    %cst_329 = arith.constant dense<0.000000e+00> : vector<32x64xf32>
    %1093 = tpu.matmul %1092, %1091, %cst_329 {dimension_numbers = #tpu.dot_dimension_numbers<[1], [0], [0], [1], [0, 0, 1, 1], [], []>} : vector<32x288xbf16>, vector<288x64xbf16>, vector<32x64xf32> -> vector<32x64xf32>
    %c0_330 = arith.constant 0 : index
    %c8 = arith.constant 8 : index
    %1094 = vector.load %arg3[%c0_330, %c8] : memref<64x16xf32, #tpu.memory_space<vmem>>, vector<32x1xf32>
    %1095 = vector.broadcast %1094 : vector<32x1xf32> to vector<32x64xf32>
    %1096 = arith.addf %1093, %1095 : vector<32x64xf32>
    %cst_331 = arith.constant 0.000000e+00 : f32
    %1097 = vector.broadcast %cst_331 : f32 to vector<32x64xf32>
    %1098 = arith.cmpf ogt, %1096, %1097 : vector<32x64xf32>
    %cst_332 = arith.constant 0.00999999977 : f32
    %1099 = vector.broadcast %cst_332 : f32 to vector<32x64xf32>
    %1100 = arith.mulf %1099, %1096 : vector<32x64xf32>
    %1101 = arith.select %1098, %1096, %1100 : vector<32x64xi1>, vector<32x64xf32>
    %1102 = arith.truncf %1101 : vector<32x64xf32> to vector<32x64xbf16>
    %1103 = vector.extract_strided_slice %1102 {offsets = [0, 55], sizes = [32, 9], strides = [1, 1]} : vector<32x64xbf16> to vector<32x9xbf16>
    %1104 = vector.extract_strided_slice %1102 {offsets = [0, 0], sizes = [32, 55], strides = [1, 1]} : vector<32x64xbf16> to vector<32x55xbf16>
    %1105 = tpu.concatenate %1103, %1104 in 1 : vector<32x9xbf16>, vector<32x55xbf16> -> vector<32x64xbf16>
    %cst_333 = arith.constant 0.000000e+00 : bf16
    %1106 = vector.broadcast %cst_333 : bf16 to vector<32x64xbf16>
    %1107 = vector.shape_cast %199 : vector<1x64xi1> to vector<1x64xi1>
    %1108 = vector.broadcast %1107 : vector<1x64xi1> to vector<32x64xi1>
    %1109 = arith.select %1108, %1105, %1106 : vector<32x64xi1>, vector<32x64xbf16>
    %1110 = vector.extract_strided_slice %1102 {offsets = [0, 56], sizes = [32, 8], strides = [1, 1]} : vector<32x64xbf16> to vector<32x8xbf16>
    %1111 = vector.extract_strided_slice %1102 {offsets = [0, 0], sizes = [32, 56], strides = [1, 1]} : vector<32x64xbf16> to vector<32x56xbf16>
    %1112 = tpu.concatenate %1110, %1111 in 1 : vector<32x8xbf16>, vector<32x56xbf16> -> vector<32x64xbf16>
    %cst_334 = arith.constant 0.000000e+00 : bf16
    %1113 = vector.broadcast %cst_334 : bf16 to vector<32x64xbf16>
    %1114 = vector.shape_cast %218 : vector<1x64xi1> to vector<1x64xi1>
    %1115 = vector.broadcast %1114 : vector<1x64xi1> to vector<32x64xi1>
    %1116 = arith.select %1115, %1112, %1113 : vector<32x64xi1>, vector<32x64xbf16>
    %1117 = vector.extract_strided_slice %1102 {offsets = [0, 57], sizes = [32, 7], strides = [1, 1]} : vector<32x64xbf16> to vector<32x7xbf16>
    %1118 = vector.extract_strided_slice %1102 {offsets = [0, 0], sizes = [32, 57], strides = [1, 1]} : vector<32x64xbf16> to vector<32x57xbf16>
    %1119 = tpu.concatenate %1117, %1118 in 1 : vector<32x7xbf16>, vector<32x57xbf16> -> vector<32x64xbf16>
    %cst_335 = arith.constant 0.000000e+00 : bf16
    %1120 = vector.broadcast %cst_335 : bf16 to vector<32x64xbf16>
    %1121 = vector.shape_cast %237 : vector<1x64xi1> to vector<1x64xi1>
    %1122 = vector.broadcast %1121 : vector<1x64xi1> to vector<32x64xi1>
    %1123 = arith.select %1122, %1119, %1120 : vector<32x64xi1>, vector<32x64xbf16>
    %1124 = vector.extract_strided_slice %1102 {offsets = [0, 63], sizes = [32, 1], strides = [1, 1]} : vector<32x64xbf16> to vector<32x1xbf16>
    %1125 = vector.extract_strided_slice %1102 {offsets = [0, 0], sizes = [32, 63], strides = [1, 1]} : vector<32x64xbf16> to vector<32x63xbf16>
    %1126 = tpu.concatenate %1124, %1125 in 1 : vector<32x1xbf16>, vector<32x63xbf16> -> vector<32x64xbf16>
    %cst_336 = arith.constant 0.000000e+00 : bf16
    %1127 = vector.broadcast %cst_336 : bf16 to vector<32x64xbf16>
    %1128 = vector.shape_cast %256 : vector<1x64xi1> to vector<1x64xi1>
    %1129 = vector.broadcast %1128 : vector<1x64xi1> to vector<32x64xi1>
    %1130 = arith.select %1129, %1126, %1127 : vector<32x64xi1>, vector<32x64xbf16>
    %cst_337 = arith.constant 0.000000e+00 : bf16
    %1131 = vector.broadcast %cst_337 : bf16 to vector<32x64xbf16>
    %1132 = vector.shape_cast %275 : vector<1x64xi1> to vector<1x64xi1>
    %1133 = vector.broadcast %1132 : vector<1x64xi1> to vector<32x64xi1>
    %1134 = arith.select %1133, %1102, %1131 : vector<32x64xi1>, vector<32x64xbf16>
    %1135 = vector.extract_strided_slice %1102 {offsets = [0, 1], sizes = [32, 63], strides = [1, 1]} : vector<32x64xbf16> to vector<32x63xbf16>
    %1136 = vector.extract_strided_slice %1102 {offsets = [0, 0], sizes = [32, 1], strides = [1, 1]} : vector<32x64xbf16> to vector<32x1xbf16>
    %1137 = tpu.concatenate %1135, %1136 in 1 : vector<32x63xbf16>, vector<32x1xbf16> -> vector<32x64xbf16>
    %cst_338 = arith.constant 0.000000e+00 : bf16
    %1138 = vector.broadcast %cst_338 : bf16 to vector<32x64xbf16>
    %1139 = vector.shape_cast %294 : vector<1x64xi1> to vector<1x64xi1>
    %1140 = vector.broadcast %1139 : vector<1x64xi1> to vector<32x64xi1>
    %1141 = arith.select %1140, %1137, %1138 : vector<32x64xi1>, vector<32x64xbf16>
    %1142 = vector.extract_strided_slice %1102 {offsets = [0, 7], sizes = [32, 57], strides = [1, 1]} : vector<32x64xbf16> to vector<32x57xbf16>
    %1143 = vector.extract_strided_slice %1102 {offsets = [0, 0], sizes = [32, 7], strides = [1, 1]} : vector<32x64xbf16> to vector<32x7xbf16>
    %1144 = tpu.concatenate %1142, %1143 in 1 : vector<32x57xbf16>, vector<32x7xbf16> -> vector<32x64xbf16>
    %cst_339 = arith.constant 0.000000e+00 : bf16
    %1145 = vector.broadcast %cst_339 : bf16 to vector<32x64xbf16>
    %1146 = vector.shape_cast %313 : vector<1x64xi1> to vector<1x64xi1>
    %1147 = vector.broadcast %1146 : vector<1x64xi1> to vector<32x64xi1>
    %1148 = arith.select %1147, %1144, %1145 : vector<32x64xi1>, vector<32x64xbf16>
    %1149 = vector.extract_strided_slice %1102 {offsets = [0, 8], sizes = [32, 56], strides = [1, 1]} : vector<32x64xbf16> to vector<32x56xbf16>
    %1150 = vector.extract_strided_slice %1102 {offsets = [0, 0], sizes = [32, 8], strides = [1, 1]} : vector<32x64xbf16> to vector<32x8xbf16>
    %1151 = tpu.concatenate %1149, %1150 in 1 : vector<32x56xbf16>, vector<32x8xbf16> -> vector<32x64xbf16>
    %cst_340 = arith.constant 0.000000e+00 : bf16
    %1152 = vector.broadcast %cst_340 : bf16 to vector<32x64xbf16>
    %1153 = vector.shape_cast %332 : vector<1x64xi1> to vector<1x64xi1>
    %1154 = vector.broadcast %1153 : vector<1x64xi1> to vector<32x64xi1>
    %1155 = arith.select %1154, %1151, %1152 : vector<32x64xi1>, vector<32x64xbf16>
    %1156 = vector.extract_strided_slice %1102 {offsets = [0, 9], sizes = [32, 55], strides = [1, 1]} : vector<32x64xbf16> to vector<32x55xbf16>
    %1157 = vector.extract_strided_slice %1102 {offsets = [0, 0], sizes = [32, 9], strides = [1, 1]} : vector<32x64xbf16> to vector<32x9xbf16>
    %1158 = tpu.concatenate %1156, %1157 in 1 : vector<32x55xbf16>, vector<32x9xbf16> -> vector<32x64xbf16>
    %cst_341 = arith.constant 0.000000e+00 : bf16
    %1159 = vector.broadcast %cst_341 : bf16 to vector<32x64xbf16>
    %1160 = vector.shape_cast %351 : vector<1x64xi1> to vector<1x64xi1>
    %1161 = vector.broadcast %1160 : vector<1x64xi1> to vector<32x64xi1>
    %1162 = arith.select %1161, %1158, %1159 : vector<32x64xi1>, vector<32x64xbf16>
    %1163 = tpu.concatenate %1109, %1116, %1123, %1130, %1134, %1141, %1148, %1155, %1162 in 0 : vector<32x64xbf16>, vector<32x64xbf16>, vector<32x64xbf16>, vector<32x64xbf16>, vector<32x64xbf16>, vector<32x64xbf16>, vector<32x64xbf16>, vector<32x64xbf16>, vector<32x64xbf16> -> vector<288x64xbf16>
    %c208 = arith.constant 208 : index
    %c0_342 = arith.constant 0 : index
    %1164 = vector.load %arg2[%c208, %c0_342] : memref<896x576xbf16, #tpu.memory_space<vmem>>, vector<32x288xbf16>
    %cst_343 = arith.constant dense<0.000000e+00> : vector<32x64xf32>
    %1165 = tpu.matmul %1164, %1163, %cst_343 {dimension_numbers = #tpu.dot_dimension_numbers<[1], [0], [0], [1], [0, 0, 1, 1], [], []>} : vector<32x288xbf16>, vector<288x64xbf16>, vector<32x64xf32> -> vector<32x64xf32>
    %c0_344 = arith.constant 0 : index
    %c9 = arith.constant 9 : index
    %1166 = vector.load %arg3[%c0_344, %c9] : memref<64x16xf32, #tpu.memory_space<vmem>>, vector<32x1xf32>
    %1167 = vector.broadcast %1166 : vector<32x1xf32> to vector<32x64xf32>
    %1168 = arith.addf %1165, %1167 : vector<32x64xf32>
    %1169 = arith.addf %1168, %1029 : vector<32x64xf32>
    %cst_345 = arith.constant 0.000000e+00 : f32
    %1170 = vector.broadcast %cst_345 : f32 to vector<32x64xf32>
    %1171 = arith.cmpf ogt, %1169, %1170 : vector<32x64xf32>
    %cst_346 = arith.constant 0.00999999977 : f32
    %1172 = vector.broadcast %cst_346 : f32 to vector<32x64xf32>
    %1173 = arith.mulf %1172, %1169 : vector<32x64xf32>
    %1174 = arith.select %1171, %1169, %1173 : vector<32x64xi1>, vector<32x64xf32>
    %c832 = arith.constant 832 : index
    %c0_347 = arith.constant 0 : index
    %1175 = vector.load %arg2[%c832, %c0_347] : memref<896x576xbf16, #tpu.memory_space<vmem>>, vector<64x16xbf16>
    %1176 = arith.truncf %1174 : vector<32x64xf32> to vector<32x64xbf16>
    %1177 = vector.extract_strided_slice %1176 {offsets = [0, 55], sizes = [32, 9], strides = [1, 1]} : vector<32x64xbf16> to vector<32x9xbf16>
    %1178 = vector.extract_strided_slice %1176 {offsets = [0, 0], sizes = [32, 55], strides = [1, 1]} : vector<32x64xbf16> to vector<32x55xbf16>
    %1179 = tpu.concatenate %1177, %1178 in 1 : vector<32x9xbf16>, vector<32x55xbf16> -> vector<32x64xbf16>
    %cst_348 = arith.constant 0.000000e+00 : bf16
    %1180 = vector.broadcast %cst_348 : bf16 to vector<32x64xbf16>
    %1181 = vector.shape_cast %199 : vector<1x64xi1> to vector<1x64xi1>
    %1182 = vector.broadcast %1181 : vector<1x64xi1> to vector<32x64xi1>
    %1183 = arith.select %1182, %1179, %1180 : vector<32x64xi1>, vector<32x64xbf16>
    %1184 = vector.extract_strided_slice %1176 {offsets = [0, 56], sizes = [32, 8], strides = [1, 1]} : vector<32x64xbf16> to vector<32x8xbf16>
    %1185 = vector.extract_strided_slice %1176 {offsets = [0, 0], sizes = [32, 56], strides = [1, 1]} : vector<32x64xbf16> to vector<32x56xbf16>
    %1186 = tpu.concatenate %1184, %1185 in 1 : vector<32x8xbf16>, vector<32x56xbf16> -> vector<32x64xbf16>
    %cst_349 = arith.constant 0.000000e+00 : bf16
    %1187 = vector.broadcast %cst_349 : bf16 to vector<32x64xbf16>
    %1188 = vector.shape_cast %218 : vector<1x64xi1> to vector<1x64xi1>
    %1189 = vector.broadcast %1188 : vector<1x64xi1> to vector<32x64xi1>
    %1190 = arith.select %1189, %1186, %1187 : vector<32x64xi1>, vector<32x64xbf16>
    %1191 = vector.extract_strided_slice %1176 {offsets = [0, 57], sizes = [32, 7], strides = [1, 1]} : vector<32x64xbf16> to vector<32x7xbf16>
    %1192 = vector.extract_strided_slice %1176 {offsets = [0, 0], sizes = [32, 57], strides = [1, 1]} : vector<32x64xbf16> to vector<32x57xbf16>
    %1193 = tpu.concatenate %1191, %1192 in 1 : vector<32x7xbf16>, vector<32x57xbf16> -> vector<32x64xbf16>
    %cst_350 = arith.constant 0.000000e+00 : bf16
    %1194 = vector.broadcast %cst_350 : bf16 to vector<32x64xbf16>
    %1195 = vector.shape_cast %237 : vector<1x64xi1> to vector<1x64xi1>
    %1196 = vector.broadcast %1195 : vector<1x64xi1> to vector<32x64xi1>
    %1197 = arith.select %1196, %1193, %1194 : vector<32x64xi1>, vector<32x64xbf16>
    %1198 = vector.extract_strided_slice %1176 {offsets = [0, 63], sizes = [32, 1], strides = [1, 1]} : vector<32x64xbf16> to vector<32x1xbf16>
    %1199 = vector.extract_strided_slice %1176 {offsets = [0, 0], sizes = [32, 63], strides = [1, 1]} : vector<32x64xbf16> to vector<32x63xbf16>
    %1200 = tpu.concatenate %1198, %1199 in 1 : vector<32x1xbf16>, vector<32x63xbf16> -> vector<32x64xbf16>
    %cst_351 = arith.constant 0.000000e+00 : bf16
    %1201 = vector.broadcast %cst_351 : bf16 to vector<32x64xbf16>
    %1202 = vector.shape_cast %256 : vector<1x64xi1> to vector<1x64xi1>
    %1203 = vector.broadcast %1202 : vector<1x64xi1> to vector<32x64xi1>
    %1204 = arith.select %1203, %1200, %1201 : vector<32x64xi1>, vector<32x64xbf16>
    %cst_352 = arith.constant 0.000000e+00 : bf16
    %1205 = vector.broadcast %cst_352 : bf16 to vector<32x64xbf16>
    %1206 = vector.shape_cast %275 : vector<1x64xi1> to vector<1x64xi1>
    %1207 = vector.broadcast %1206 : vector<1x64xi1> to vector<32x64xi1>
    %1208 = arith.select %1207, %1176, %1205 : vector<32x64xi1>, vector<32x64xbf16>
    %1209 = vector.extract_strided_slice %1176 {offsets = [0, 1], sizes = [32, 63], strides = [1, 1]} : vector<32x64xbf16> to vector<32x63xbf16>
    %1210 = vector.extract_strided_slice %1176 {offsets = [0, 0], sizes = [32, 1], strides = [1, 1]} : vector<32x64xbf16> to vector<32x1xbf16>
    %1211 = tpu.concatenate %1209, %1210 in 1 : vector<32x63xbf16>, vector<32x1xbf16> -> vector<32x64xbf16>
    %cst_353 = arith.constant 0.000000e+00 : bf16
    %1212 = vector.broadcast %cst_353 : bf16 to vector<32x64xbf16>
    %1213 = vector.shape_cast %294 : vector<1x64xi1> to vector<1x64xi1>
    %1214 = vector.broadcast %1213 : vector<1x64xi1> to vector<32x64xi1>
    %1215 = arith.select %1214, %1211, %1212 : vector<32x64xi1>, vector<32x64xbf16>
    %1216 = vector.extract_strided_slice %1176 {offsets = [0, 7], sizes = [32, 57], strides = [1, 1]} : vector<32x64xbf16> to vector<32x57xbf16>
    %1217 = vector.extract_strided_slice %1176 {offsets = [0, 0], sizes = [32, 7], strides = [1, 1]} : vector<32x64xbf16> to vector<32x7xbf16>
    %1218 = tpu.concatenate %1216, %1217 in 1 : vector<32x57xbf16>, vector<32x7xbf16> -> vector<32x64xbf16>
    %cst_354 = arith.constant 0.000000e+00 : bf16
    %1219 = vector.broadcast %cst_354 : bf16 to vector<32x64xbf16>
    %1220 = vector.shape_cast %313 : vector<1x64xi1> to vector<1x64xi1>
    %1221 = vector.broadcast %1220 : vector<1x64xi1> to vector<32x64xi1>
    %1222 = arith.select %1221, %1218, %1219 : vector<32x64xi1>, vector<32x64xbf16>
    %1223 = vector.extract_strided_slice %1176 {offsets = [0, 8], sizes = [32, 56], strides = [1, 1]} : vector<32x64xbf16> to vector<32x56xbf16>
    %1224 = vector.extract_strided_slice %1176 {offsets = [0, 0], sizes = [32, 8], strides = [1, 1]} : vector<32x64xbf16> to vector<32x8xbf16>
    %1225 = tpu.concatenate %1223, %1224 in 1 : vector<32x56xbf16>, vector<32x8xbf16> -> vector<32x64xbf16>
    %cst_355 = arith.constant 0.000000e+00 : bf16
    %1226 = vector.broadcast %cst_355 : bf16 to vector<32x64xbf16>
    %1227 = vector.shape_cast %332 : vector<1x64xi1> to vector<1x64xi1>
    %1228 = vector.broadcast %1227 : vector<1x64xi1> to vector<32x64xi1>
    %1229 = arith.select %1228, %1225, %1226 : vector<32x64xi1>, vector<32x64xbf16>
    %1230 = vector.extract_strided_slice %1176 {offsets = [0, 9], sizes = [32, 55], strides = [1, 1]} : vector<32x64xbf16> to vector<32x55xbf16>
    %1231 = vector.extract_strided_slice %1176 {offsets = [0, 0], sizes = [32, 9], strides = [1, 1]} : vector<32x64xbf16> to vector<32x9xbf16>
    %1232 = tpu.concatenate %1230, %1231 in 1 : vector<32x55xbf16>, vector<32x9xbf16> -> vector<32x64xbf16>
    %cst_356 = arith.constant 0.000000e+00 : bf16
    %1233 = vector.broadcast %cst_356 : bf16 to vector<32x64xbf16>
    %1234 = vector.shape_cast %351 : vector<1x64xi1> to vector<1x64xi1>
    %1235 = vector.broadcast %1234 : vector<1x64xi1> to vector<32x64xi1>
    %1236 = arith.select %1235, %1232, %1233 : vector<32x64xi1>, vector<32x64xbf16>
    %1237 = tpu.concatenate %1183, %1190, %1197, %1204, %1208, %1215, %1222, %1229, %1236 in 0 : vector<32x64xbf16>, vector<32x64xbf16>, vector<32x64xbf16>, vector<32x64xbf16>, vector<32x64xbf16>, vector<32x64xbf16>, vector<32x64xbf16>, vector<32x64xbf16>, vector<32x64xbf16> -> vector<288x64xbf16>
    %c240 = arith.constant 240 : index
    %c0_357 = arith.constant 0 : index
    %1238 = vector.load %arg2[%c240, %c0_357] : memref<896x576xbf16, #tpu.memory_space<vmem>>, vector<64x288xbf16>
    %cst_358 = arith.constant dense<0.000000e+00> : vector<64x64xf32>
    %1239 = tpu.matmul %1238, %1237, %cst_358 {dimension_numbers = #tpu.dot_dimension_numbers<[1], [0], [0], [1], [0, 0, 1, 1], [], []>} : vector<64x288xbf16>, vector<288x64xbf16>, vector<64x64xf32> -> vector<64x64xf32>
    %1240 = arith.truncf %1239 : vector<64x64xf32> to vector<64x64xbf16>
    %cst_359 = arith.constant dense<0.000000e+00> : vector<64x16xf32>
    %1241 = tpu.matmul %1240, %1175, %cst_359 {dimension_numbers = #tpu.dot_dimension_numbers<[1], [0], [0], [1], [0, 0, 1, 1], [], []>} : vector<64x64xbf16>, vector<64x16xbf16>, vector<64x16xf32> -> vector<64x16xf32>
    %c0_360 = arith.constant 0 : index
    %c10 = arith.constant 10 : index
    %1242 = vector.load %arg3[%c0_360, %c10] : memref<64x16xf32, #tpu.memory_space<vmem>>, vector<64x1xf32>
    %1243 = vector.broadcast %1242 : vector<64x1xf32> to vector<64x16xf32>
    %1244 = arith.addf %1241, %1243 : vector<64x16xf32>
    %cst_361 = arith.constant 0.000000e+00 : f32
    %1245 = vector.broadcast %cst_361 : f32 to vector<64x16xf32>
    %1246 = arith.cmpf ogt, %1244, %1245 : vector<64x16xf32>
    %cst_362 = arith.constant 0.00999999977 : f32
    %1247 = vector.broadcast %cst_362 : f32 to vector<64x16xf32>
    %1248 = arith.mulf %1247, %1244 : vector<64x16xf32>
    %1249 = arith.select %1246, %1244, %1248 : vector<64x16xi1>, vector<64x16xf32>
    %1250 = arith.truncf %1249 : vector<64x16xf32> to vector<64x16xbf16>
    %1251 = vector.extract_strided_slice %1250 {offsets = [0, 11], sizes = [64, 5], strides = [1, 1]} : vector<64x16xbf16> to vector<64x5xbf16>
    %1252 = vector.extract_strided_slice %1250 {offsets = [0, 0], sizes = [64, 11], strides = [1, 1]} : vector<64x16xbf16> to vector<64x11xbf16>
    %1253 = tpu.concatenate %1251, %1252 in 1 : vector<64x5xbf16>, vector<64x11xbf16> -> vector<64x16xbf16>
    %cst_363 = arith.constant 0.000000e+00 : bf16
    %1254 = vector.broadcast %cst_363 : bf16 to vector<64x16xbf16>
    %1255 = vector.shape_cast %375 : vector<1x16xi1> to vector<1x16xi1>
    %1256 = vector.broadcast %1255 : vector<1x16xi1> to vector<64x16xi1>
    %1257 = arith.select %1256, %1253, %1254 : vector<64x16xi1>, vector<64x16xbf16>
    %1258 = vector.extract_strided_slice %1250 {offsets = [0, 12], sizes = [64, 4], strides = [1, 1]} : vector<64x16xbf16> to vector<64x4xbf16>
    %1259 = vector.extract_strided_slice %1250 {offsets = [0, 0], sizes = [64, 12], strides = [1, 1]} : vector<64x16xbf16> to vector<64x12xbf16>
    %1260 = tpu.concatenate %1258, %1259 in 1 : vector<64x4xbf16>, vector<64x12xbf16> -> vector<64x16xbf16>
    %cst_364 = arith.constant 0.000000e+00 : bf16
    %1261 = vector.broadcast %cst_364 : bf16 to vector<64x16xbf16>
    %1262 = vector.shape_cast %394 : vector<1x16xi1> to vector<1x16xi1>
    %1263 = vector.broadcast %1262 : vector<1x16xi1> to vector<64x16xi1>
    %1264 = arith.select %1263, %1260, %1261 : vector<64x16xi1>, vector<64x16xbf16>
    %1265 = vector.extract_strided_slice %1250 {offsets = [0, 13], sizes = [64, 3], strides = [1, 1]} : vector<64x16xbf16> to vector<64x3xbf16>
    %1266 = vector.extract_strided_slice %1250 {offsets = [0, 0], sizes = [64, 13], strides = [1, 1]} : vector<64x16xbf16> to vector<64x13xbf16>
    %1267 = tpu.concatenate %1265, %1266 in 1 : vector<64x3xbf16>, vector<64x13xbf16> -> vector<64x16xbf16>
    %cst_365 = arith.constant 0.000000e+00 : bf16
    %1268 = vector.broadcast %cst_365 : bf16 to vector<64x16xbf16>
    %1269 = vector.shape_cast %413 : vector<1x16xi1> to vector<1x16xi1>
    %1270 = vector.broadcast %1269 : vector<1x16xi1> to vector<64x16xi1>
    %1271 = arith.select %1270, %1267, %1268 : vector<64x16xi1>, vector<64x16xbf16>
    %1272 = vector.extract_strided_slice %1250 {offsets = [0, 15], sizes = [64, 1], strides = [1, 1]} : vector<64x16xbf16> to vector<64x1xbf16>
    %1273 = vector.extract_strided_slice %1250 {offsets = [0, 0], sizes = [64, 15], strides = [1, 1]} : vector<64x16xbf16> to vector<64x15xbf16>
    %1274 = tpu.concatenate %1272, %1273 in 1 : vector<64x1xbf16>, vector<64x15xbf16> -> vector<64x16xbf16>
    %cst_366 = arith.constant 0.000000e+00 : bf16
    %1275 = vector.broadcast %cst_366 : bf16 to vector<64x16xbf16>
    %1276 = vector.shape_cast %432 : vector<1x16xi1> to vector<1x16xi1>
    %1277 = vector.broadcast %1276 : vector<1x16xi1> to vector<64x16xi1>
    %1278 = arith.select %1277, %1274, %1275 : vector<64x16xi1>, vector<64x16xbf16>
    %cst_367 = arith.constant 0.000000e+00 : bf16
    %1279 = vector.broadcast %cst_367 : bf16 to vector<64x16xbf16>
    %1280 = vector.shape_cast %451 : vector<1x16xi1> to vector<1x16xi1>
    %1281 = vector.broadcast %1280 : vector<1x16xi1> to vector<64x16xi1>
    %1282 = arith.select %1281, %1250, %1279 : vector<64x16xi1>, vector<64x16xbf16>
    %1283 = vector.extract_strided_slice %1250 {offsets = [0, 1], sizes = [64, 15], strides = [1, 1]} : vector<64x16xbf16> to vector<64x15xbf16>
    %1284 = vector.extract_strided_slice %1250 {offsets = [0, 0], sizes = [64, 1], strides = [1, 1]} : vector<64x16xbf16> to vector<64x1xbf16>
    %1285 = tpu.concatenate %1283, %1284 in 1 : vector<64x15xbf16>, vector<64x1xbf16> -> vector<64x16xbf16>
    %cst_368 = arith.constant 0.000000e+00 : bf16
    %1286 = vector.broadcast %cst_368 : bf16 to vector<64x16xbf16>
    %1287 = vector.shape_cast %470 : vector<1x16xi1> to vector<1x16xi1>
    %1288 = vector.broadcast %1287 : vector<1x16xi1> to vector<64x16xi1>
    %1289 = arith.select %1288, %1285, %1286 : vector<64x16xi1>, vector<64x16xbf16>
    %1290 = vector.extract_strided_slice %1250 {offsets = [0, 3], sizes = [64, 13], strides = [1, 1]} : vector<64x16xbf16> to vector<64x13xbf16>
    %1291 = vector.extract_strided_slice %1250 {offsets = [0, 0], sizes = [64, 3], strides = [1, 1]} : vector<64x16xbf16> to vector<64x3xbf16>
    %1292 = tpu.concatenate %1290, %1291 in 1 : vector<64x13xbf16>, vector<64x3xbf16> -> vector<64x16xbf16>
    %cst_369 = arith.constant 0.000000e+00 : bf16
    %1293 = vector.broadcast %cst_369 : bf16 to vector<64x16xbf16>
    %1294 = vector.shape_cast %489 : vector<1x16xi1> to vector<1x16xi1>
    %1295 = vector.broadcast %1294 : vector<1x16xi1> to vector<64x16xi1>
    %1296 = arith.select %1295, %1292, %1293 : vector<64x16xi1>, vector<64x16xbf16>
    %1297 = vector.extract_strided_slice %1250 {offsets = [0, 4], sizes = [64, 12], strides = [1, 1]} : vector<64x16xbf16> to vector<64x12xbf16>
    %1298 = vector.extract_strided_slice %1250 {offsets = [0, 0], sizes = [64, 4], strides = [1, 1]} : vector<64x16xbf16> to vector<64x4xbf16>
    %1299 = tpu.concatenate %1297, %1298 in 1 : vector<64x12xbf16>, vector<64x4xbf16> -> vector<64x16xbf16>
    %cst_370 = arith.constant 0.000000e+00 : bf16
    %1300 = vector.broadcast %cst_370 : bf16 to vector<64x16xbf16>
    %1301 = vector.shape_cast %508 : vector<1x16xi1> to vector<1x16xi1>
    %1302 = vector.broadcast %1301 : vector<1x16xi1> to vector<64x16xi1>
    %1303 = arith.select %1302, %1299, %1300 : vector<64x16xi1>, vector<64x16xbf16>
    %1304 = vector.extract_strided_slice %1250 {offsets = [0, 5], sizes = [64, 11], strides = [1, 1]} : vector<64x16xbf16> to vector<64x11xbf16>
    %1305 = vector.extract_strided_slice %1250 {offsets = [0, 0], sizes = [64, 5], strides = [1, 1]} : vector<64x16xbf16> to vector<64x5xbf16>
    %1306 = tpu.concatenate %1304, %1305 in 1 : vector<64x11xbf16>, vector<64x5xbf16> -> vector<64x16xbf16>
    %cst_371 = arith.constant 0.000000e+00 : bf16
    %1307 = vector.broadcast %cst_371 : bf16 to vector<64x16xbf16>
    %1308 = vector.shape_cast %527 : vector<1x16xi1> to vector<1x16xi1>
    %1309 = vector.broadcast %1308 : vector<1x16xi1> to vector<64x16xi1>
    %1310 = arith.select %1309, %1306, %1307 : vector<64x16xi1>, vector<64x16xbf16>
    %1311 = tpu.concatenate %1257, %1264, %1271, %1278, %1282, %1289, %1296, %1303, %1310 in 0 : vector<64x16xbf16>, vector<64x16xbf16>, vector<64x16xbf16>, vector<64x16xbf16>, vector<64x16xbf16>, vector<64x16xbf16>, vector<64x16xbf16>, vector<64x16xbf16>, vector<64x16xbf16> -> vector<576x16xbf16>
    %c304 = arith.constant 304 : index
    %c0_372 = arith.constant 0 : index
    %1312 = vector.load %arg2[%c304, %c0_372] : memref<896x576xbf16, #tpu.memory_space<vmem>>, vector<64x576xbf16>
    %cst_373 = arith.constant dense<0.000000e+00> : vector<64x16xf32>
    %1313 = tpu.matmul %1312, %1311, %cst_373 {dimension_numbers = #tpu.dot_dimension_numbers<[1], [0], [0], [1], [0, 0, 1, 1], [], []>} : vector<64x576xbf16>, vector<576x16xbf16>, vector<64x16xf32> -> vector<64x16xf32>
    %c0_374 = arith.constant 0 : index
    %c11 = arith.constant 11 : index
    %1314 = vector.load %arg3[%c0_374, %c11] : memref<64x16xf32, #tpu.memory_space<vmem>>, vector<64x1xf32>
    %1315 = vector.broadcast %1314 : vector<64x1xf32> to vector<64x16xf32>
    %1316 = arith.addf %1313, %1315 : vector<64x16xf32>
    %1317 = arith.truncf %1174 : vector<32x64xf32> to vector<32x64xbf16>
    %cst_375 = arith.constant dense<0.000000e+00> : vector<32x16xf32>
    %1318 = tpu.matmul %1317, %1175, %cst_375 {dimension_numbers = #tpu.dot_dimension_numbers<[1], [0], [0], [1], [0, 0, 1, 1], [], []>} : vector<32x64xbf16>, vector<64x16xbf16>, vector<32x16xf32> -> vector<32x16xf32>
    %c368 = arith.constant 368 : index
    %c0_376 = arith.constant 0 : index
    %1319 = vector.load %arg2[%c368, %c0_376] : memref<896x576xbf16, #tpu.memory_space<vmem>>, vector<64x32xbf16>
    %1320 = arith.truncf %1318 : vector<32x16xf32> to vector<32x16xbf16>
    %cst_377 = arith.constant dense<0.000000e+00> : vector<64x16xf32>
    %1321 = tpu.matmul %1319, %1320, %cst_377 {dimension_numbers = #tpu.dot_dimension_numbers<[1], [0], [0], [1], [0, 0, 1, 1], [], []>} : vector<64x32xbf16>, vector<32x16xbf16>, vector<64x16xf32> -> vector<64x16xf32>
    %c0_378 = arith.constant 0 : index
    %c12 = arith.constant 12 : index
    %1322 = vector.load %arg3[%c0_378, %c12] : memref<64x16xf32, #tpu.memory_space<vmem>>, vector<64x1xf32>
    %1323 = vector.broadcast %1322 : vector<64x1xf32> to vector<64x16xf32>
    %1324 = arith.addf %1321, %1323 : vector<64x16xf32>
    %1325 = arith.addf %1316, %1324 : vector<64x16xf32>
    %cst_379 = arith.constant 0.000000e+00 : f32
    %1326 = vector.broadcast %cst_379 : f32 to vector<64x16xf32>
    %1327 = arith.cmpf ogt, %1325, %1326 : vector<64x16xf32>
    %cst_380 = arith.constant 0.00999999977 : f32
    %1328 = vector.broadcast %cst_380 : f32 to vector<64x16xf32>
    %1329 = arith.mulf %1328, %1325 : vector<64x16xf32>
    %1330 = arith.select %1327, %1325, %1329 : vector<64x16xi1>, vector<64x16xf32>
    %1331 = arith.truncf %1330 : vector<64x16xf32> to vector<64x16xbf16>
    %1332 = vector.extract_strided_slice %1331 {offsets = [0, 11], sizes = [64, 5], strides = [1, 1]} : vector<64x16xbf16> to vector<64x5xbf16>
    %1333 = vector.extract_strided_slice %1331 {offsets = [0, 0], sizes = [64, 11], strides = [1, 1]} : vector<64x16xbf16> to vector<64x11xbf16>
    %1334 = tpu.concatenate %1332, %1333 in 1 : vector<64x5xbf16>, vector<64x11xbf16> -> vector<64x16xbf16>
    %cst_381 = arith.constant 0.000000e+00 : bf16
    %1335 = vector.broadcast %cst_381 : bf16 to vector<64x16xbf16>
    %1336 = vector.shape_cast %375 : vector<1x16xi1> to vector<1x16xi1>
    %1337 = vector.broadcast %1336 : vector<1x16xi1> to vector<64x16xi1>
    %1338 = arith.select %1337, %1334, %1335 : vector<64x16xi1>, vector<64x16xbf16>
    %1339 = vector.extract_strided_slice %1331 {offsets = [0, 12], sizes = [64, 4], strides = [1, 1]} : vector<64x16xbf16> to vector<64x4xbf16>
    %1340 = vector.extract_strided_slice %1331 {offsets = [0, 0], sizes = [64, 12], strides = [1, 1]} : vector<64x16xbf16> to vector<64x12xbf16>
    %1341 = tpu.concatenate %1339, %1340 in 1 : vector<64x4xbf16>, vector<64x12xbf16> -> vector<64x16xbf16>
    %cst_382 = arith.constant 0.000000e+00 : bf16
    %1342 = vector.broadcast %cst_382 : bf16 to vector<64x16xbf16>
    %1343 = vector.shape_cast %394 : vector<1x16xi1> to vector<1x16xi1>
    %1344 = vector.broadcast %1343 : vector<1x16xi1> to vector<64x16xi1>
    %1345 = arith.select %1344, %1341, %1342 : vector<64x16xi1>, vector<64x16xbf16>
    %1346 = vector.extract_strided_slice %1331 {offsets = [0, 13], sizes = [64, 3], strides = [1, 1]} : vector<64x16xbf16> to vector<64x3xbf16>
    %1347 = vector.extract_strided_slice %1331 {offsets = [0, 0], sizes = [64, 13], strides = [1, 1]} : vector<64x16xbf16> to vector<64x13xbf16>
    %1348 = tpu.concatenate %1346, %1347 in 1 : vector<64x3xbf16>, vector<64x13xbf16> -> vector<64x16xbf16>
    %cst_383 = arith.constant 0.000000e+00 : bf16
    %1349 = vector.broadcast %cst_383 : bf16 to vector<64x16xbf16>
    %1350 = vector.shape_cast %413 : vector<1x16xi1> to vector<1x16xi1>
    %1351 = vector.broadcast %1350 : vector<1x16xi1> to vector<64x16xi1>
    %1352 = arith.select %1351, %1348, %1349 : vector<64x16xi1>, vector<64x16xbf16>
    %1353 = vector.extract_strided_slice %1331 {offsets = [0, 15], sizes = [64, 1], strides = [1, 1]} : vector<64x16xbf16> to vector<64x1xbf16>
    %1354 = vector.extract_strided_slice %1331 {offsets = [0, 0], sizes = [64, 15], strides = [1, 1]} : vector<64x16xbf16> to vector<64x15xbf16>
    %1355 = tpu.concatenate %1353, %1354 in 1 : vector<64x1xbf16>, vector<64x15xbf16> -> vector<64x16xbf16>
    %cst_384 = arith.constant 0.000000e+00 : bf16
    %1356 = vector.broadcast %cst_384 : bf16 to vector<64x16xbf16>
    %1357 = vector.shape_cast %432 : vector<1x16xi1> to vector<1x16xi1>
    %1358 = vector.broadcast %1357 : vector<1x16xi1> to vector<64x16xi1>
    %1359 = arith.select %1358, %1355, %1356 : vector<64x16xi1>, vector<64x16xbf16>
    %cst_385 = arith.constant 0.000000e+00 : bf16
    %1360 = vector.broadcast %cst_385 : bf16 to vector<64x16xbf16>
    %1361 = vector.shape_cast %451 : vector<1x16xi1> to vector<1x16xi1>
    %1362 = vector.broadcast %1361 : vector<1x16xi1> to vector<64x16xi1>
    %1363 = arith.select %1362, %1331, %1360 : vector<64x16xi1>, vector<64x16xbf16>
    %1364 = vector.extract_strided_slice %1331 {offsets = [0, 1], sizes = [64, 15], strides = [1, 1]} : vector<64x16xbf16> to vector<64x15xbf16>
    %1365 = vector.extract_strided_slice %1331 {offsets = [0, 0], sizes = [64, 1], strides = [1, 1]} : vector<64x16xbf16> to vector<64x1xbf16>
    %1366 = tpu.concatenate %1364, %1365 in 1 : vector<64x15xbf16>, vector<64x1xbf16> -> vector<64x16xbf16>
    %cst_386 = arith.constant 0.000000e+00 : bf16
    %1367 = vector.broadcast %cst_386 : bf16 to vector<64x16xbf16>
    %1368 = vector.shape_cast %470 : vector<1x16xi1> to vector<1x16xi1>
    %1369 = vector.broadcast %1368 : vector<1x16xi1> to vector<64x16xi1>
    %1370 = arith.select %1369, %1366, %1367 : vector<64x16xi1>, vector<64x16xbf16>
    %1371 = vector.extract_strided_slice %1331 {offsets = [0, 3], sizes = [64, 13], strides = [1, 1]} : vector<64x16xbf16> to vector<64x13xbf16>
    %1372 = vector.extract_strided_slice %1331 {offsets = [0, 0], sizes = [64, 3], strides = [1, 1]} : vector<64x16xbf16> to vector<64x3xbf16>
    %1373 = tpu.concatenate %1371, %1372 in 1 : vector<64x13xbf16>, vector<64x3xbf16> -> vector<64x16xbf16>
    %cst_387 = arith.constant 0.000000e+00 : bf16
    %1374 = vector.broadcast %cst_387 : bf16 to vector<64x16xbf16>
    %1375 = vector.shape_cast %489 : vector<1x16xi1> to vector<1x16xi1>
    %1376 = vector.broadcast %1375 : vector<1x16xi1> to vector<64x16xi1>
    %1377 = arith.select %1376, %1373, %1374 : vector<64x16xi1>, vector<64x16xbf16>
    %1378 = vector.extract_strided_slice %1331 {offsets = [0, 4], sizes = [64, 12], strides = [1, 1]} : vector<64x16xbf16> to vector<64x12xbf16>
    %1379 = vector.extract_strided_slice %1331 {offsets = [0, 0], sizes = [64, 4], strides = [1, 1]} : vector<64x16xbf16> to vector<64x4xbf16>
    %1380 = tpu.concatenate %1378, %1379 in 1 : vector<64x12xbf16>, vector<64x4xbf16> -> vector<64x16xbf16>
    %cst_388 = arith.constant 0.000000e+00 : bf16
    %1381 = vector.broadcast %cst_388 : bf16 to vector<64x16xbf16>
    %1382 = vector.shape_cast %508 : vector<1x16xi1> to vector<1x16xi1>
    %1383 = vector.broadcast %1382 : vector<1x16xi1> to vector<64x16xi1>
    %1384 = arith.select %1383, %1380, %1381 : vector<64x16xi1>, vector<64x16xbf16>
    %1385 = vector.extract_strided_slice %1331 {offsets = [0, 5], sizes = [64, 11], strides = [1, 1]} : vector<64x16xbf16> to vector<64x11xbf16>
    %1386 = vector.extract_strided_slice %1331 {offsets = [0, 0], sizes = [64, 5], strides = [1, 1]} : vector<64x16xbf16> to vector<64x5xbf16>
    %1387 = tpu.concatenate %1385, %1386 in 1 : vector<64x11xbf16>, vector<64x5xbf16> -> vector<64x16xbf16>
    %cst_389 = arith.constant 0.000000e+00 : bf16
    %1388 = vector.broadcast %cst_389 : bf16 to vector<64x16xbf16>
    %1389 = vector.shape_cast %527 : vector<1x16xi1> to vector<1x16xi1>
    %1390 = vector.broadcast %1389 : vector<1x16xi1> to vector<64x16xi1>
    %1391 = arith.select %1390, %1387, %1388 : vector<64x16xi1>, vector<64x16xbf16>
    %1392 = tpu.concatenate %1338, %1345, %1352, %1359, %1363, %1370, %1377, %1384, %1391 in 0 : vector<64x16xbf16>, vector<64x16xbf16>, vector<64x16xbf16>, vector<64x16xbf16>, vector<64x16xbf16>, vector<64x16xbf16>, vector<64x16xbf16>, vector<64x16xbf16>, vector<64x16xbf16> -> vector<576x16xbf16>
    %c432 = arith.constant 432 : index
    %c0_390 = arith.constant 0 : index
    %1393 = vector.load %arg2[%c432, %c0_390] : memref<896x576xbf16, #tpu.memory_space<vmem>>, vector<64x576xbf16>
    %cst_391 = arith.constant dense<0.000000e+00> : vector<64x16xf32>
    %1394 = tpu.matmul %1393, %1392, %cst_391 {dimension_numbers = #tpu.dot_dimension_numbers<[1], [0], [0], [1], [0, 0, 1, 1], [], []>} : vector<64x576xbf16>, vector<576x16xbf16>, vector<64x16xf32> -> vector<64x16xf32>
    %c0_392 = arith.constant 0 : index
    %c13 = arith.constant 13 : index
    %1395 = vector.load %arg3[%c0_392, %c13] : memref<64x16xf32, #tpu.memory_space<vmem>>, vector<64x1xf32>
    %1396 = vector.broadcast %1395 : vector<64x1xf32> to vector<64x16xf32>
    %1397 = arith.addf %1394, %1396 : vector<64x16xf32>
    %cst_393 = arith.constant 0.000000e+00 : f32
    %1398 = vector.broadcast %cst_393 : f32 to vector<64x16xf32>
    %1399 = arith.cmpf ogt, %1397, %1398 : vector<64x16xf32>
    %cst_394 = arith.constant 0.00999999977 : f32
    %1400 = vector.broadcast %cst_394 : f32 to vector<64x16xf32>
    %1401 = arith.mulf %1400, %1397 : vector<64x16xf32>
    %1402 = arith.select %1399, %1397, %1401 : vector<64x16xi1>, vector<64x16xf32>
    %1403 = arith.truncf %1402 : vector<64x16xf32> to vector<64x16xbf16>
    %1404 = vector.extract_strided_slice %1403 {offsets = [0, 11], sizes = [64, 5], strides = [1, 1]} : vector<64x16xbf16> to vector<64x5xbf16>
    %1405 = vector.extract_strided_slice %1403 {offsets = [0, 0], sizes = [64, 11], strides = [1, 1]} : vector<64x16xbf16> to vector<64x11xbf16>
    %1406 = tpu.concatenate %1404, %1405 in 1 : vector<64x5xbf16>, vector<64x11xbf16> -> vector<64x16xbf16>
    %cst_395 = arith.constant 0.000000e+00 : bf16
    %1407 = vector.broadcast %cst_395 : bf16 to vector<64x16xbf16>
    %1408 = vector.shape_cast %375 : vector<1x16xi1> to vector<1x16xi1>
    %1409 = vector.broadcast %1408 : vector<1x16xi1> to vector<64x16xi1>
    %1410 = arith.select %1409, %1406, %1407 : vector<64x16xi1>, vector<64x16xbf16>
    %1411 = vector.extract_strided_slice %1403 {offsets = [0, 12], sizes = [64, 4], strides = [1, 1]} : vector<64x16xbf16> to vector<64x4xbf16>
    %1412 = vector.extract_strided_slice %1403 {offsets = [0, 0], sizes = [64, 12], strides = [1, 1]} : vector<64x16xbf16> to vector<64x12xbf16>
    %1413 = tpu.concatenate %1411, %1412 in 1 : vector<64x4xbf16>, vector<64x12xbf16> -> vector<64x16xbf16>
    %cst_396 = arith.constant 0.000000e+00 : bf16
    %1414 = vector.broadcast %cst_396 : bf16 to vector<64x16xbf16>
    %1415 = vector.shape_cast %394 : vector<1x16xi1> to vector<1x16xi1>
    %1416 = vector.broadcast %1415 : vector<1x16xi1> to vector<64x16xi1>
    %1417 = arith.select %1416, %1413, %1414 : vector<64x16xi1>, vector<64x16xbf16>
    %1418 = vector.extract_strided_slice %1403 {offsets = [0, 13], sizes = [64, 3], strides = [1, 1]} : vector<64x16xbf16> to vector<64x3xbf16>
    %1419 = vector.extract_strided_slice %1403 {offsets = [0, 0], sizes = [64, 13], strides = [1, 1]} : vector<64x16xbf16> to vector<64x13xbf16>
    %1420 = tpu.concatenate %1418, %1419 in 1 : vector<64x3xbf16>, vector<64x13xbf16> -> vector<64x16xbf16>
    %cst_397 = arith.constant 0.000000e+00 : bf16
    %1421 = vector.broadcast %cst_397 : bf16 to vector<64x16xbf16>
    %1422 = vector.shape_cast %413 : vector<1x16xi1> to vector<1x16xi1>
    %1423 = vector.broadcast %1422 : vector<1x16xi1> to vector<64x16xi1>
    %1424 = arith.select %1423, %1420, %1421 : vector<64x16xi1>, vector<64x16xbf16>
    %1425 = vector.extract_strided_slice %1403 {offsets = [0, 15], sizes = [64, 1], strides = [1, 1]} : vector<64x16xbf16> to vector<64x1xbf16>
    %1426 = vector.extract_strided_slice %1403 {offsets = [0, 0], sizes = [64, 15], strides = [1, 1]} : vector<64x16xbf16> to vector<64x15xbf16>
    %1427 = tpu.concatenate %1425, %1426 in 1 : vector<64x1xbf16>, vector<64x15xbf16> -> vector<64x16xbf16>
    %cst_398 = arith.constant 0.000000e+00 : bf16
    %1428 = vector.broadcast %cst_398 : bf16 to vector<64x16xbf16>
    %1429 = vector.shape_cast %432 : vector<1x16xi1> to vector<1x16xi1>
    %1430 = vector.broadcast %1429 : vector<1x16xi1> to vector<64x16xi1>
    %1431 = arith.select %1430, %1427, %1428 : vector<64x16xi1>, vector<64x16xbf16>
    %cst_399 = arith.constant 0.000000e+00 : bf16
    %1432 = vector.broadcast %cst_399 : bf16 to vector<64x16xbf16>
    %1433 = vector.shape_cast %451 : vector<1x16xi1> to vector<1x16xi1>
    %1434 = vector.broadcast %1433 : vector<1x16xi1> to vector<64x16xi1>
    %1435 = arith.select %1434, %1403, %1432 : vector<64x16xi1>, vector<64x16xbf16>
    %1436 = vector.extract_strided_slice %1403 {offsets = [0, 1], sizes = [64, 15], strides = [1, 1]} : vector<64x16xbf16> to vector<64x15xbf16>
    %1437 = vector.extract_strided_slice %1403 {offsets = [0, 0], sizes = [64, 1], strides = [1, 1]} : vector<64x16xbf16> to vector<64x1xbf16>
    %1438 = tpu.concatenate %1436, %1437 in 1 : vector<64x15xbf16>, vector<64x1xbf16> -> vector<64x16xbf16>
    %cst_400 = arith.constant 0.000000e+00 : bf16
    %1439 = vector.broadcast %cst_400 : bf16 to vector<64x16xbf16>
    %1440 = vector.shape_cast %470 : vector<1x16xi1> to vector<1x16xi1>
    %1441 = vector.broadcast %1440 : vector<1x16xi1> to vector<64x16xi1>
    %1442 = arith.select %1441, %1438, %1439 : vector<64x16xi1>, vector<64x16xbf16>
    %1443 = vector.extract_strided_slice %1403 {offsets = [0, 3], sizes = [64, 13], strides = [1, 1]} : vector<64x16xbf16> to vector<64x13xbf16>
    %1444 = vector.extract_strided_slice %1403 {offsets = [0, 0], sizes = [64, 3], strides = [1, 1]} : vector<64x16xbf16> to vector<64x3xbf16>
    %1445 = tpu.concatenate %1443, %1444 in 1 : vector<64x13xbf16>, vector<64x3xbf16> -> vector<64x16xbf16>
    %cst_401 = arith.constant 0.000000e+00 : bf16
    %1446 = vector.broadcast %cst_401 : bf16 to vector<64x16xbf16>
    %1447 = vector.shape_cast %489 : vector<1x16xi1> to vector<1x16xi1>
    %1448 = vector.broadcast %1447 : vector<1x16xi1> to vector<64x16xi1>
    %1449 = arith.select %1448, %1445, %1446 : vector<64x16xi1>, vector<64x16xbf16>
    %1450 = vector.extract_strided_slice %1403 {offsets = [0, 4], sizes = [64, 12], strides = [1, 1]} : vector<64x16xbf16> to vector<64x12xbf16>
    %1451 = vector.extract_strided_slice %1403 {offsets = [0, 0], sizes = [64, 4], strides = [1, 1]} : vector<64x16xbf16> to vector<64x4xbf16>
    %1452 = tpu.concatenate %1450, %1451 in 1 : vector<64x12xbf16>, vector<64x4xbf16> -> vector<64x16xbf16>
    %cst_402 = arith.constant 0.000000e+00 : bf16
    %1453 = vector.broadcast %cst_402 : bf16 to vector<64x16xbf16>
    %1454 = vector.shape_cast %508 : vector<1x16xi1> to vector<1x16xi1>
    %1455 = vector.broadcast %1454 : vector<1x16xi1> to vector<64x16xi1>
    %1456 = arith.select %1455, %1452, %1453 : vector<64x16xi1>, vector<64x16xbf16>
    %1457 = vector.extract_strided_slice %1403 {offsets = [0, 5], sizes = [64, 11], strides = [1, 1]} : vector<64x16xbf16> to vector<64x11xbf16>
    %1458 = vector.extract_strided_slice %1403 {offsets = [0, 0], sizes = [64, 5], strides = [1, 1]} : vector<64x16xbf16> to vector<64x5xbf16>
    %1459 = tpu.concatenate %1457, %1458 in 1 : vector<64x11xbf16>, vector<64x5xbf16> -> vector<64x16xbf16>
    %cst_403 = arith.constant 0.000000e+00 : bf16
    %1460 = vector.broadcast %cst_403 : bf16 to vector<64x16xbf16>
    %1461 = vector.shape_cast %527 : vector<1x16xi1> to vector<1x16xi1>
    %1462 = vector.broadcast %1461 : vector<1x16xi1> to vector<64x16xi1>
    %1463 = arith.select %1462, %1459, %1460 : vector<64x16xi1>, vector<64x16xbf16>
    %1464 = tpu.concatenate %1410, %1417, %1424, %1431, %1435, %1442, %1449, %1456, %1463 in 0 : vector<64x16xbf16>, vector<64x16xbf16>, vector<64x16xbf16>, vector<64x16xbf16>, vector<64x16xbf16>, vector<64x16xbf16>, vector<64x16xbf16>, vector<64x16xbf16>, vector<64x16xbf16> -> vector<576x16xbf16>
    %c496 = arith.constant 496 : index
    %c0_404 = arith.constant 0 : index
    %1465 = vector.load %arg2[%c496, %c0_404] : memref<896x576xbf16, #tpu.memory_space<vmem>>, vector<64x576xbf16>
    %cst_405 = arith.constant dense<0.000000e+00> : vector<64x16xf32>
    %1466 = tpu.matmul %1465, %1464, %cst_405 {dimension_numbers = #tpu.dot_dimension_numbers<[1], [0], [0], [1], [0, 0, 1, 1], [], []>} : vector<64x576xbf16>, vector<576x16xbf16>, vector<64x16xf32> -> vector<64x16xf32>
    %c0_406 = arith.constant 0 : index
    %c14 = arith.constant 14 : index
    %1467 = vector.load %arg3[%c0_406, %c14] : memref<64x16xf32, #tpu.memory_space<vmem>>, vector<64x1xf32>
    %1468 = vector.broadcast %1467 : vector<64x1xf32> to vector<64x16xf32>
    %1469 = arith.addf %1466, %1468 : vector<64x16xf32>
    %1470 = arith.addf %1469, %1330 : vector<64x16xf32>
    %cst_407 = arith.constant 0.000000e+00 : f32
    %1471 = vector.broadcast %cst_407 : f32 to vector<64x16xf32>
    %1472 = arith.cmpf ogt, %1470, %1471 : vector<64x16xf32>
    %cst_408 = arith.constant 0.00999999977 : f32
    %1473 = vector.broadcast %cst_408 : f32 to vector<64x16xf32>
    %1474 = arith.mulf %1473, %1470 : vector<64x16xf32>
    %1475 = arith.select %1472, %1470, %1474 : vector<64x16xi1>, vector<64x16xf32>
    %cst_409 = arith.constant dense<0.000000e+00> : vector<64xf32>
    %1476 = vector.multi_reduction <add>, %1475, %cst_409 [1] : vector<64x16xf32> to vector<64xf32>
    %1477 = vector.shape_cast %1476 : vector<64xf32> to vector<64x1xf32>
    %cst_410 = arith.constant 6.250000e-02 : f32
    %1478 = vector.broadcast %cst_410 : f32 to vector<64x1xf32>
    %1479 = arith.mulf %1477, %1478 : vector<64x1xf32>
    %c560 = arith.constant 560 : index
    %c0_411 = arith.constant 0 : index
    %1480 = vector.load %arg2[%c560, %c0_411] : memref<896x576xbf16, #tpu.memory_space<vmem>>, vector<15x64xbf16>
    %1481 = arith.truncf %1479 : vector<64x1xf32> to vector<64x1xbf16>
    %cst_412 = arith.constant dense<0.000000e+00> : vector<15x1xf32>
    %1482 = tpu.matmul %1480, %1481, %cst_412 {dimension_numbers = #tpu.dot_dimension_numbers<[1], [0], [0], [1], [0, 0, 1, 1], [], []>} : vector<15x64xbf16>, vector<64x1xbf16>, vector<15x1xf32> -> vector<15x1xf32>
    %c0_413 = arith.constant 0 : index
    %c15 = arith.constant 15 : index
    %1483 = vector.load %arg3[%c0_413, %c15] : memref<64x16xf32, #tpu.memory_space<vmem>>, vector<15x1xf32>
    %1484 = arith.addf %1482, %1483 : vector<15x1xf32>
    %c0_414 = arith.constant 0 : index
    %c0_415 = arith.constant 0 : index
    %c0_416 = arith.constant 0 : index
    %1485 = vector.load %arg4[%c0_414, %c0_415, %c0_416] : memref<1x15x1xf32, #tpu.memory_space<vmem>>, vector<1x15x1xf32>
    %1486 = vector.shape_cast %1485 : vector<1x15x1xf32> to vector<15x1xf32>
    %1487 = vector.shape_cast %1484 : vector<15x1xf32> to vector<1x15x1xf32>
    tpu.vector_store %arg4[%c0_414, %c0_415, %c0_416], %1487 {strides = array<i32>} : memref<1x15x1xf32, #tpu.memory_space<vmem>>, vector<1x15x1xf32>,
    return
  }
  func.func @transform_0(%arg0: i32) -> (i32, i32, i32) {
    %c0_i32 = arith.constant 0 : i32
    %c0_i32_0 = arith.constant 0 : i32
    %c0_i32_1 = arith.constant 0 : i32
    return %arg0, %c0_i32, %c0_i32_0 : i32, i32, i32
  }
  func.func @transform_1(%arg0: i32) -> (i32, i32) {
    %c0_i32 = arith.constant 0 : i32
    %c0_i32_0 = arith.constant 0 : i32
    %c0_i32_1 = arith.constant 0 : i32
    return %c0_i32, %c0_i32_0 : i32, i32
  }
  func.func @transform_2(%arg0: i32) -> (i32, i32) {
    %c0_i32 = arith.constant 0 : i32
    %c0_i32_0 = arith.constant 0 : i32
    %c0_i32_1 = arith.constant 0 : i32
    return %c0_i32, %c0_i32_0 : i32, i32
  }
  func.func @transform_3(%arg0: i32) -> (i32, i32, i32) {
    %c0_i32 = arith.constant 0 : i32
    %c0_i32_0 = arith.constant 0 : i32
    %c0_i32_1 = arith.constant 0 : i32
    return %arg0, %c0_i32, %c0_i32_0 : i32, i32, i32
  }
}

</mosaic_0001>

<llo_original>
// kernel: forward.1
$region0: #{forward.1}
  #allocation0 [shape = 'u32[]', space=smem, size = 0x4, offset = 0x4, fixed_abs, tag = 'smem constant byte address 0x4 - core index']
  #allocation1 [shape = 'u32[72,128]{1,0:T(1,128)}', space=vmem, size = 0x9000, scoped, tag = 'internal scratch']
  %s0 = inlined_call_operand.vmem [shape: f32[2,1,256], index: 0, kind: input, shape index: {}]
  %s1 = inlined_call_operand.vmem [shape: bf16[896,576], index: 1, kind: input, shape index: {}]
  %s2 = inlined_call_operand.vmem [shape: f32[64,16], index: 2, kind: input, shape index: {}]
  %s3 = inlined_call_operand.vmem [shape: f32[2,15,1], index: 3, kind: output, shape index: {}]
  %s4 = sld [smem:[#allocation0]]
  $region45: #{forward.1} parent=0
    _
  %s6 = ssub.s32 1, %s4
  %s7 = scalar_select 0, %s6, %s4
  loop: start=0, step=1, limit=4
  $region2: #{forward.1} parent=0 // loop_pre_header
    _
  $region3: #{forward.1} parent=0 // loop_header
    %s9 = sphi 0, %s13
    %p10 = scmp.ge.s32.totalorder %s9, 4
    %s19 = sphi 0, %s21
    %s22 = sphi 0, %s19
    %s23 = sphi 0, %s22
    %s39 = sphi 0, %s23
    %s43 = sphi 0, %s43
    %s45 = sphi 0, %s43
    %s46 = sphi 0, %s45
    %s60 = sphi 0, %s46
    %s64 = sphi 0, %s64
    %s66 = sphi 0, %s64
    %s67 = sphi 0, %s66
    %s81 = sphi 0, %s67
    %s87 = sphi 0, %s89
    %s90 = sphi 0, %s87
    %s91 = sphi 0, %s90
    %s107 = sphi 0, %s91
  $region4: #{forward.1} parent=0 // loop_header_branch
    %12 = sbr.rel (%p10) target = $region8
  $region5: #{forward.1} parent=0 // loop_body
    %s14 = ssub.s32 %s9, 1
    %s15 = ssub.s32 %s9, 2
    %s16 = sadd.s32 %s9, 1
    %s17 = ssub.s32 %s9, %s16
    %p18 = scmp.eq.s32.totalorder %s17, 0
    %s20 = sadd.s32 %s19, 1
    %s21 = scalar_select %p18, %s19, %s20
    %p24 = pneg %p18
    %p25 = scmp.eq.s32.totalorder %s9, 1
    %p26 = por %p24, %p25
    %p27 = scmp.ne.s32.totalorder %s19, %s22
    %p28 = scmp.eq.s32.totalorder %s9, 0
    %p29 = por %p27, %p28
    %p30 = scmp.ne.s32.totalorder %s19, %s22
    %p31 = scmp.eq.s32.totalorder %s14, 1
    %p32 = por %p30, %p31
    %p33 = scmp.ne.s32.totalorder %s22, %s23
    %p34 = scmp.eq.s32.totalorder %s14, 0
    %p35 = por %p33, %p34
    %p36 = scmp.ne.s32.totalorder %s22, %s23
    %p37 = scmp.eq.s32.totalorder %s15, 1
    %p38 = por %p36, %p37
    %p40 = scmp.ne.s32.totalorder %s23, %s39
    %p41 = scmp.eq.s32.totalorder %s15, 0
    %p42 = por %p40, %p41
    %s44 = sadd.s32 %s43, 1
    %p47 = scmp.eq.s32.totalorder %s9, 1
    %p48 = scmp.ne.s32.totalorder %s43, %s45
    %p49 = scmp.eq.s32.totalorder %s9, 0
    %p50 = por %p48, %p49
    %p51 = scmp.ne.s32.totalorder %s43, %s45
    %p52 = scmp.eq.s32.totalorder %s14, 1
    %p53 = por %p51, %p52
    %p54 = scmp.ne.s32.totalorder %s45, %s46
    %p55 = scmp.eq.s32.totalorder %s14, 0
    %p56 = por %p54, %p55
    %p57 = scmp.ne.s32.totalorder %s45, %s46
    %p58 = scmp.eq.s32.totalorder %s15, 1
    %p59 = por %p57, %p58
    %p61 = scmp.ne.s32.totalorder %s46, %s60
    %p62 = scmp.eq.s32.totalorder %s15, 0
    %p63 = por %p61, %p62
    %s65 = sadd.s32 %s64, 1
    %p68 = scmp.eq.s32.totalorder %s9, 1
    %p69 = scmp.ne.s32.totalorder %s64, %s66
    %p70 = scmp.eq.s32.totalorder %s9, 0
    %p71 = por %p69, %p70
    %p72 = scmp.ne.s32.totalorder %s64, %s66
    %p73 = scmp.eq.s32.totalorder %s14, 1
    %p74 = por %p72, %p73
    %p75 = scmp.ne.s32.totalorder %s66, %s67
    %p76 = scmp.eq.s32.totalorder %s14, 0
    %p77 = por %p75, %p76
    %p78 = scmp.ne.s32.totalorder %s66, %s67
    %p79 = scmp.eq.s32.totalorder %s15, 1
    %p80 = por %p78, %p79
    %p82 = scmp.ne.s32.totalorder %s67, %s81
    %p83 = scmp.eq.s32.totalorder %s15, 0
    %p84 = por %p82, %p83
    %s85 = ssub.s32 %s9, %s16
    %p86 = scmp.eq.s32.totalorder %s85, 0
    %s88 = sadd.s32 %s87, 1
    %s89 = scalar_select %p86, %s87, %s88
    %p92 = pneg %p86
    %p93 = scmp.eq.s32.totalorder %s9, 1
    %p94 = por %p92, %p93
    %p95 = scmp.ne.s32.totalorder %s87, %s90
    %p96 = scmp.eq.s32.totalorder %s9, 0
    %p97 = por %p95, %p96
    %p98 = scmp.ne.s32.totalorder %s87, %s90
    %p99 = scmp.eq.s32.totalorder %s14, 1
    %p100 = por %p98, %p99
    %p101 = scmp.ne.s32.totalorder %s90, %s91
    %p102 = scmp.eq.s32.totalorder %s14, 0
    %p103 = por %p101, %p102
    %p104 = scmp.ne.s32.totalorder %s90, %s91
    %p105 = scmp.eq.s32.totalorder %s15, 1
    %p106 = por %p104, %p105
    %p108 = scmp.ne.s32.totalorder %s91, %s107
    %p109 = scmp.eq.s32.totalorder %s15, 0
    %p110 = por %p108, %p109
    %p111 = scmp.le.s32.totalorder 1, %s9
    %p112 = scmp.lt.s32.totalorder %s9, 3
    %p113 = pnand %p111, %p112
    %p114 = pneg %p113
    // Predicated region
    $region9: #{forward.1} parent=5 // pred_check
      _
    $region10: #{forward.1} parent=5 // pred_check_branch
      %116 = sbr.rel (%p113) target = $region12
    $region11: #{forward.1} parent=5 // pred_region
      %s117 = ssub.s32 %s9, 1
      // Predicated region
      $region13: #{forward.1} parent=11 // pred_check
        %p118 = pneg %p56
      $region14: #{forward.1} parent=11 // pred_check_branch
        %120 = sbr.rel (%p118) target = $region16
      $region15: #{forward.1} parent=11 // pred_region
        _
      $region16: #{forward.1} parent=11 // pred_fallthru
        _
      // Predicated region
      $region17: #{forward.1} parent=11 // pred_check
        %p121 = pneg %p77
      $region18: #{forward.1} parent=11 // pred_check_branch
        %123 = sbr.rel (%p121) target = $region20
      $region19: #{forward.1} parent=11 // pred_region
        _
      $region20: #{forward.1} parent=11 // pred_fallthru
        _
    $region12: #{forward.1} parent=5 // pred_fallthru
      _
    %p124 = scmp.lt.s32.totalorder %s9, 2
    // Predicated region
    $region21: #{forward.1} parent=5 // pred_check
      %p125 = pneg %p124
    $region22: #{forward.1} parent=5 // pred_check_branch
      %127 = sbr.rel (%p125) target = $region24
    $region23: #{forward.1} parent=5 // pred_region
      // Predicated region
      $region25: #{forward.1} parent=23 // pred_check
        %p128 = pneg %p29
      $region26: #{forward.1} parent=23 // pred_check_branch
        %130 = sbr.rel (%p128) target = $region28
      $region27: #{forward.1} parent=23 // pred_region
        %p131 = scmp.lt.s32.totalorder %s9, 1
        %s132 = scalar_select %p131, %s9, 1
        %s133 = smul.addr %s132, 2
        %s134 = scalar_lea.vmem %s0, %s133
      $region28: #{forward.1} parent=23 // pred_fallthru
        _
    $region24: #{forward.1} parent=5 // pred_fallthru
      _
    %p135 = scmp.le.s32.totalorder 1, %s9
    %p136 = scmp.lt.s32.totalorder %s9, 3
    %p137 = pnand %p135, %p136
    %p138 = pneg %p137
    // Predicated region
    $region29: #{forward.1} parent=5 // pred_check
      _
    $region30: #{forward.1} parent=5 // pred_check_branch
      %140 = sbr.rel (%p137) target = $region32
    $region31: #{forward.1} parent=5 // pred_region
      %s141 = ssub.s32 %s9, 1
      %p142 = scmp.lt.s32.totalorder %s14, 1
      %s143 = scalar_select %p142, %s14, 1
      %s144 = smul.addr %s143, 2
      %s145 = scalar_lea.vmem %s0, %s144
      %p146 = pneg %p35
      %p147 = pneg %p32
      %p148 = pneg %p56
      %p149 = pneg %p53
      %p150 = pneg %p77
      %p151 = pneg %p74
      %p152 = pneg %p103
      %p153 = pneg %p100
      %p154 = scmp.lt.s32.totalorder %s14, 1
      %s155 = scalar_select %p154, %s14, 1
      %s156 = smul.addr %s155, 2
      %s157 = smul.addr %s156, 8
      %s158 = scalar_lea.vmem %s3, %s157
      %p159 = scmp.lt.s32.totalorder %s14, 1
      %s160 = scalar_select %p159, %s14, 1
      %s161 = smul.addr %s160, 2
      %s162 = scalar_lea.vmem %s0, %s161
      %p163 = scmp.lt.s32.totalorder %s14, 1
      %s164 = scalar_select %p163, %s14, 1
      %s165 = smul.addr %s164, 2
      %s166 = smul.addr %s165, 8
      %s167 = scalar_lea.vmem %s3, %s166
      %v171 = vlaneseq
      %v172 = vand.u32 %v171, 127
      %v173 = vadd.s32 %v172, 128
      %v174 = vshra.s32 %v172, 4
      %v175 = vshra.s32 %v173, 4
      %v176 = vand.u32 %v172, 15
      %v177 = vand.u32 %v173, 15
      %v178 = vadd.s32 %v174, 4294967295
      %v179 = vadd.s32 %v175, 4294967295
      %vm180 = vcmp.ge.s32.totalorder %v178, 0
      %vm181 = vcmp.ge.s32.totalorder %v179, 0
      %vm182 = vcmp.lt.s32.totalorder %v178, 16
      %vm183 = vcmp.lt.s32.totalorder %v179, 16
      %vm184 = vmand %vm180, %vm182
      %vm185 = vmand %vm181, %vm183
      %v186 = vadd.s32 %v176, 4294967295
      %v187 = vadd.s32 %v177, 4294967295
      %vm188 = vcmp.ge.s32.totalorder %v186, 0
      %vm189 = vcmp.ge.s32.totalorder %v187, 0
      %vm190 = vmand %vm184, %vm188
      %vm191 = vmand %vm185, %vm189
      %vm192 = vcmp.lt.s32.totalorder %v186, 16
      %vm193 = vcmp.lt.s32.totalorder %v187, 16
      %vm194 = vmand %vm190, %vm192
      %vm195 = vmand %vm191, %vm193
      %vm196 = vcmp.ge.s32.totalorder %v176, 0
      %vm197 = vcmp.ge.s32.totalorder %v177, 0
      %vm198 = vmand %vm184, %vm196
      %vm199 = vmand %vm185, %vm197
      %vm200 = vcmp.lt.s32.totalorder %v176, 16
      %vm201 = vcmp.lt.s32.totalorder %v177, 16
      %vm202 = vmand %vm198, %vm200
      %vm203 = vmand %vm199, %vm201
      %v204 = vadd.s32 %v176, 1
      %v205 = vadd.s32 %v177, 1
      %vm206 = vcmp.ge.s32.totalorder %v204, 0
      %vm207 = vcmp.ge.s32.totalorder %v205, 0
      %vm208 = vmand %vm184, %vm206
      %vm209 = vmand %vm185, %vm207
      %vm210 = vcmp.lt.s32.totalorder %v204, 16
      %vm211 = vcmp.lt.s32.totalorder %v205, 16
      %vm212 = vmand %vm208, %vm210
      %vm213 = vmand %vm209, %vm211
      %vm214 = vcmp.ge.s32.totalorder %v174, 0
      %vm215 = vcmp.ge.s32.totalorder %v175, 0
      %vm216 = vcmp.lt.s32.totalorder %v174, 16
      %vm217 = vcmp.lt.s32.totalorder %v175, 16
      %vm218 = vmand %vm214, %vm216
      %vm219 = vmand %vm215, %vm217
      %vm220 = vmand %vm218, %vm188
      %vm221 = vmand %vm219, %vm189
      %vm222 = vmand %vm220, %vm192
      %vm223 = vmand %vm221, %vm193
      %vm224 = vmand %vm218, %vm196
      %vm225 = vmand %vm219, %vm197
      %vm226 = vmand %vm224, %vm200
      %vm227 = vmand %vm225, %vm201
      %vm228 = vmand %vm218, %vm206
      %vm229 = vmand %vm219, %vm207
      %vm230 = vmand %vm228, %vm210
      %vm231 = vmand %vm229, %vm211
      %v232 = vadd.s32 %v174, 1
      %v233 = vadd.s32 %v175, 1
      %vm234 = vcmp.ge.s32.totalorder %v232, 0
      %vm235 = vcmp.ge.s32.totalorder %v233, 0
      %vm236 = vcmp.lt.s32.totalorder %v232, 16
      %vm237 = vcmp.lt.s32.totalorder %v233, 16
      %vm238 = vmand %vm234, %vm236
      %vm239 = vmand %vm235, %vm237
      %vm240 = vmand %vm238, %vm188
      %vm241 = vmand %vm239, %vm189
      %vm242 = vmand %vm240, %vm192
      %vm243 = vmand %vm241, %vm193
      %vm244 = vmand %vm238, %vm196
      %vm245 = vmand %vm239, %vm197
      %vm246 = vmand %vm244, %vm200
      %vm247 = vmand %vm245, %vm201
      %vm248 = vmand %vm238, %vm206
      %vm249 = vmand %vm239, %vm207
      %vm250 = vmand %vm248, %vm210
      %vm251 = vmand %vm249, %vm211
      %v252 = vshra.s32 %v172, 3
      %v253 = vand.u32 %v172, 7
      %v254 = vadd.s32 %v252, 4294967295
      %vm255 = vcmp.ge.s32.totalorder %v254, 0
      %vm256 = vcmp.lt.s32.totalorder %v254, 8
      %vm257 = vmand %vm255, %vm256
      %v258 = vadd.s32 %v253, 4294967295
      %vm259 = vcmp.ge.s32.totalorder %v258, 0
      %vm260 = vmand %vm257, %vm259
      %vm261 = vcmp.lt.s32.totalorder %v258, 8
      %vm262 = vmand %vm260, %vm261
      %vm263 = vcmp.ge.s32.totalorder %v253, 0
      %vm264 = vmand %vm257, %vm263
      %vm265 = vcmp.lt.s32.totalorder %v253, 8
      %vm266 = vmand %vm264, %vm265
      %v267 = vadd.s32 %v253, 1
      %vm268 = vcmp.ge.s32.totalorder %v267, 0
      %vm269 = vmand %vm257, %vm268
      %vm270 = vcmp.lt.s32.totalorder %v267, 8
      %vm271 = vmand %vm269, %vm270
      %vm272 = vcmp.ge.s32.totalorder %v252, 0
      %vm273 = vcmp.lt.s32.totalorder %v252, 8
      %vm274 = vmand %vm272, %vm273
      %vm275 = vmand %vm274, %vm259
      %vm276 = vmand %vm275, %vm261
      %vm277 = vmand %vm274, %vm263
      %vm278 = vmand %vm277, %vm265
      %vm279 = vmand %vm274, %vm268
      %vm280 = vmand %vm279, %vm270
      %v281 = vadd.s32 %v252, 1
      %vm282 = vcmp.ge.s32.totalorder %v281, 0
      %vm283 = vcmp.lt.s32.totalorder %v281, 8
      %vm284 = vmand %vm282, %vm283
      %vm285 = vmand %vm284, %vm259
      %vm286 = vmand %vm285, %vm261
      %vm287 = vmand %vm284, %vm263
      %vm288 = vmand %vm287, %vm265
      %vm289 = vmand %vm284, %vm268
      %vm290 = vmand %vm289, %vm270
      %v291 = vshra.s32 %v172, 2
      %v292 = vand.u32 %v172, 3
      %v293 = vadd.s32 %v291, 4294967295
      %vm294 = vcmp.ge.s32.totalorder %v293, 0
      %vm295 = vcmp.lt.s32.totalorder %v293, 4
      %vm296 = vmand %vm294, %vm295
      %v297 = vadd.s32 %v292, 4294967295
      %vm298 = vcmp.ge.s32.totalorder %v297, 0
      %vm299 = vmand %vm296, %vm298
      %vm300 = vcmp.lt.s32.totalorder %v297, 4
      %vm301 = vmand %vm299, %vm300
      %vm302 = vcmp.ge.s32.totalorder %v292, 0
      %vm303 = vmand %vm296, %vm302
      %vm304 = vcmp.lt.s32.totalorder %v292, 4
      %vm305 = vmand %vm303, %vm304
      %v306 = vadd.s32 %v292, 1
      %vm307 = vcmp.ge.s32.totalorder %v306, 0
      %vm308 = vmand %vm296, %vm307
      %vm309 = vcmp.lt.s32.totalorder %v306, 4
      %vm310 = vmand %vm308, %vm309
      %vm311 = vcmp.ge.s32.totalorder %v291, 0
      %vm312 = vcmp.lt.s32.totalorder %v291, 4
      %vm313 = vmand %vm311, %vm312
      %vm314 = vmand %vm313, %vm298
      %vm315 = vmand %vm314, %vm300
      %vm316 = vmand %vm313, %vm302
      %vm317 = vmand %vm316, %vm304
      %vm318 = vmand %vm313, %vm307
      %vm319 = vmand %vm318, %vm309
      %v320 = vadd.s32 %v291, 1
      %vm321 = vcmp.ge.s32.totalorder %v320, 0
      %vm322 = vcmp.lt.s32.totalorder %v320, 4
      %vm323 = vmand %vm321, %vm322
      %vm324 = vmand %vm323, %vm298
      %vm325 = vmand %vm324, %vm300
      %vm326 = vmand %vm323, %vm302
      %vm327 = vmand %vm326, %vm304
      %vm328 = vmand %vm323, %vm307
      %vm329 = vmand %vm328, %vm309
      %v330 = vld [vmem:[%s162] sm:$0x3]
      %v332 = vperm.slane %v330, 0
      %v333 = vperm.slane %v330, 1
      %v336 = vpack.c.bf16 %v333, %v332
      %v338 = vunpack.c.h.b16 %v336
      %v339 = vpack.c.b16 %v338, %v338
      %340 = vrot.lane.b32.xlu0 %v339, 17
      %v341 = vpop.permute.xlu0 %340
      %v342 = vunpack.c.l.b16 %v336
      %v343 = vpack.c.b16 %v342, %v342
      %344 = vrot.lane.b32.xlu0 %v343, 17
      %v345 = vpop.permute.xlu0 %344
      %vm346 = vcmask 138240
      %v347 = vsel %vm346, %v345, %v341
      %vm349 = vcmask 138240
      %v352 = vsel %vm349, %v341, %v345
      %vm354 = vmpackc.low %vm195, %vm194
      %v355 = vsel %vm354, 65537, 0
      %v356 = vperm.slane %v355, 0
      %v357 = vperm.slane %v355, 4
      %v358 = vunpack.c.l.b16 %v356
      %v359 = vunpack.c.h.b16 %v356
      %v360 = vunpack.c.l.b16 0
      %v361 = vunpack.c.h.b16 0
      %vm362 = vcmp.ne.s32.totalorder %v358, %v360
      %vm363 = vcmp.ne.s32.totalorder %v359, %v361
      %vm364 = vmpackc.low %vm363, %vm362
      %v365 = vunpack.c.l.b16 %v357
      %v366 = vunpack.c.h.b16 %v357
      %v367 = vunpack.c.l.b16 0
      %v368 = vunpack.c.h.b16 0
      %vm369 = vcmp.ne.s32.totalorder %v365, %v367
      %vm370 = vcmp.ne.s32.totalorder %v366, %v368
      %vm371 = vmpackc.low %vm370, %vm369
      %v372 = vsel %vm364, %v352, 0
      %v373 = vsel %vm371, %v347, 0
      %374 = vrot.lane.b32.xlu0 %v339, 16
      %v375 = vpop.permute.xlu0 %374
      %376 = vrot.lane.b32.xlu0 %v343, 16
      %v377 = vpop.permute.xlu0 %376
      %vm378 = vcmask 130048
      %v379 = vsel %vm378, %v377, %v375
      %vm381 = vcmask 130048
      %v384 = vsel %vm381, %v375, %v377
      %vm386 = vmpackc.low %vm203, %vm202
      %v387 = vsel %vm386, 65537, 0
      %v388 = vperm.slane %v387, 0
      %v389 = vperm.slane %v387, 4
      %v390 = vunpack.c.l.b16 %v388
      %v391 = vunpack.c.h.b16 %v388
      %v392 = vunpack.c.l.b16 0
      %v393 = vunpack.c.h.b16 0
      %vm394 = vcmp.ne.s32.totalorder %v390, %v392
      %vm395 = vcmp.ne.s32.totalorder %v391, %v393
      %vm396 = vmpackc.low %vm395, %vm394
      %v397 = vunpack.c.l.b16 %v389
      %v398 = vunpack.c.h.b16 %v389
      %v399 = vunpack.c.l.b16 0
      %v400 = vunpack.c.h.b16 0
      %vm401 = vcmp.ne.s32.totalorder %v397, %v399
      %vm402 = vcmp.ne.s32.totalorder %v398, %v400
      %vm403 = vmpackc.low %vm402, %vm401
      %v404 = vsel %vm396, %v384, 0
      %v405 = vsel %vm403, %v379, 0
      %406 = vrot.lane.b32.xlu0 %v339, 15
      %v407 = vpop.permute.xlu0 %406
      %408 = vrot.lane.b32.xlu0 %v343, 15
      %v409 = vpop.permute.xlu0 %408
      %vm410 = vcmask 121856
      %v411 = vsel %vm410, %v409, %v407
      %vm413 = vcmask 121856
      %v416 = vsel %vm413, %v407, %v409
      %vm418 = vmpackc.low %vm213, %vm212
      %v419 = vsel %vm418, 65537, 0
      %v420 = vperm.slane %v419, 0
      %v421 = vperm.slane %v419, 4
      %v422 = vunpack.c.l.b16 %v420
      %v423 = vunpack.c.h.b16 %v420
      %v424 = vunpack.c.l.b16 0
      %v425 = vunpack.c.h.b16 0
      %vm426 = vcmp.ne.s32.totalorder %v422, %v424
      %vm427 = vcmp.ne.s32.totalorder %v423, %v425
      %vm428 = vmpackc.low %vm427, %vm426
      %v429 = vunpack.c.l.b16 %v421
      %v430 = vunpack.c.h.b16 %v421
      %v431 = vunpack.c.l.b16 0
      %v432 = vunpack.c.h.b16 0
      %vm433 = vcmp.ne.s32.totalorder %v429, %v431
      %vm434 = vcmp.ne.s32.totalorder %v430, %v432
      %vm435 = vmpackc.low %vm434, %vm433
      %v436 = vsel %vm428, %v416, 0
      %v437 = vsel %vm435, %v411, 0
      %438 = vrot.lane.b32.xlu0 %v339, 1
      %v439 = vpop.permute.xlu0 %438
      %440 = vrot.lane.b32.xlu0 %v343, 1
      %v441 = vpop.permute.xlu0 %440
      %vm442 = vcmask 7168
      %v443 = vsel %vm442, %v441, %v439
      %vm445 = vcmask 7168
      %v448 = vsel %vm445, %v439, %v441
      %vm450 = vmpackc.low %vm223, %vm222
      %v451 = vsel %vm450, 65537, 0
      %v452 = vperm.slane %v451, 0
      %v453 = vperm.slane %v451, 4
      %v454 = vunpack.c.l.b16 %v452
      %v455 = vunpack.c.h.b16 %v452
      %v456 = vunpack.c.l.b16 0
      %v457 = vunpack.c.h.b16 0
      %vm458 = vcmp.ne.s32.totalorder %v454, %v456
      %vm459 = vcmp.ne.s32.totalorder %v455, %v457
      %vm460 = vmpackc.low %vm459, %vm458
      %v461 = vunpack.c.l.b16 %v453
      %v462 = vunpack.c.h.b16 %v453
      %v463 = vunpack.c.l.b16 0
      %v464 = vunpack.c.h.b16 0
      %vm465 = vcmp.ne.s32.totalorder %v461, %v463
      %vm466 = vcmp.ne.s32.totalorder %v462, %v464
      %vm467 = vmpackc.low %vm466, %vm465
      %v468 = vsel %vm460, %v448, 0
      %v469 = vsel %vm467, %v443, 0
      %vm470 = vmpackc.low %vm227, %vm226
      %v471 = vsel %vm470, %v336, 0
      %472 = vrot.lane.b32.xlu0 %v343, 127
      %v473 = vpop.permute.xlu0 %472
      %474 = vrot.lane.b32.xlu0 %v339, 127
      %v475 = vpop.permute.xlu0 %474
      %vm476 = vcmask 1039360
      %v477 = vsel %vm476, %v473, %v475
      %vm479 = vcmask 1039360
      %v482 = vsel %vm479, %v475, %v473
      %vm484 = vmpackc.low %vm231, %vm230
      %v485 = vsel %vm484, 65537, 0
      %v486 = vperm.slane %v485, 0
      %v487 = vperm.slane %v485, 4
      %v488 = vunpack.c.l.b16 %v486
      %v489 = vunpack.c.h.b16 %v486
      %v490 = vunpack.c.l.b16 0
      %v491 = vunpack.c.h.b16 0
      %vm492 = vcmp.ne.s32.totalorder %v488, %v490
      %vm493 = vcmp.ne.s32.totalorder %v489, %v491
      %vm494 = vmpackc.low %vm493, %vm492
      %v495 = vunpack.c.l.b16 %v487
      %v496 = vunpack.c.h.b16 %v487
      %v497 = vunpack.c.l.b16 0
      %v498 = vunpack.c.h.b16 0
      %vm499 = vcmp.ne.s32.totalorder %v495, %v497
      %vm500 = vcmp.ne.s32.totalorder %v496, %v498
      %vm501 = vmpackc.low %vm500, %vm499
      %v502 = vsel %vm494, %v477, 0
      %v503 = vsel %vm501, %v482, 0
      %504 = vrot.lane.b32.xlu0 %v343, 113
      %v505 = vpop.permute.xlu0 %504
      %506 = vrot.lane.b32.xlu0 %v339, 113
      %v507 = vpop.permute.xlu0 %506
      %vm508 = vcmask 924672
      %v509 = vsel %vm508, %v505, %v507
      %vm511 = vcmask 924672
      %v514 = vsel %vm511, %v507, %v505
      %vm516 = vmpackc.low %vm243, %vm242
      %v517 = vsel %vm516, 65537, 0
      %v518 = vperm.slane %v517, 0
      %v519 = vperm.slane %v517, 4
      %v520 = vunpack.c.l.b16 %v518
      %v521 = vunpack.c.h.b16 %v518
      %v522 = vunpack.c.l.b16 0
      %v523 = vunpack.c.h.b16 0
      %vm524 = vcmp.ne.s32.totalorder %v520, %v522
      %vm525 = vcmp.ne.s32.totalorder %v521, %v523
      %vm526 = vmpackc.low %vm525, %vm524
      %v527 = vunpack.c.l.b16 %v519
      %v528 = vunpack.c.h.b16 %v519
      %v529 = vunpack.c.l.b16 0
      %v530 = vunpack.c.h.b16 0
      %vm531 = vcmp.ne.s32.totalorder %v527, %v529
      %vm532 = vcmp.ne.s32.totalorder %v528, %v530
      %vm533 = vmpackc.low %vm532, %vm531
      %v534 = vsel %vm526, %v509, 0
      %v535 = vsel %vm533, %v514, 0
      %536 = vrot.lane.b32.xlu0 %v343, 112
      %v537 = vpop.permute.xlu0 %536
      %538 = vrot.lane.b32.xlu0 %v339, 112
      %v539 = vpop.permute.xlu0 %538
      %vm540 = vcmask 916480
      %v541 = vsel %vm540, %v537, %v539
      %vm543 = vcmask 916480
      %v546 = vsel %vm543, %v539, %v537
      %vm548 = vmpackc.low %vm247, %vm246
      %v549 = vsel %vm548, 65537, 0
      %v550 = vperm.slane %v549, 0
      %v551 = vperm.slane %v549, 4
      %v552 = vunpack.c.l.b16 %v550
      %v553 = vunpack.c.h.b16 %v550
      %v554 = vunpack.c.l.b16 0
      %v555 = vunpack.c.h.b16 0
      %vm556 = vcmp.ne.s32.totalorder %v552, %v554
      %vm557 = vcmp.ne.s32.totalorder %v553, %v555
      %vm558 = vmpackc.low %vm557, %vm556
      %v559 = vunpack.c.l.b16 %v551
      %v560 = vunpack.c.h.b16 %v551
      %v561 = vunpack.c.l.b16 0
      %v562 = vunpack.c.h.b16 0
      %vm563 = vcmp.ne.s32.totalorder %v559, %v561
      %vm564 = vcmp.ne.s32.totalorder %v560, %v562
      %vm565 = vmpackc.low %vm564, %vm563
      %v566 = vsel %vm558, %v541, 0
      %v567 = vsel %vm565, %v546, 0
      %568 = vrot.lane.b32.xlu0 %v343, 111
      %v569 = vpop.permute.xlu0 %568
      %570 = vrot.lane.b32.xlu0 %v339, 111
      %v571 = vpop.permute.xlu0 %570
      %vm572 = vcmask 908288
      %v573 = vsel %vm572, %v569, %v571
      %vm575 = vcmask 908288
      %v578 = vsel %vm575, %v571, %v569
      %vm580 = vmpackc.low %vm251, %vm250
      %v581 = vsel %vm580, 65537, 0
      %v582 = vperm.slane %v581, 0
      %v583 = vperm.slane %v581, 4
      %v584 = vunpack.c.l.b16 %v582
      %v585 = vunpack.c.h.b16 %v582
      %v586 = vunpack.c.l.b16 0
      %v587 = vunpack.c.h.b16 0
      %vm588 = vcmp.ne.s32.totalorder %v584, %v586
      %vm589 = vcmp.ne.s32.totalorder %v585, %v587
      %vm590 = vmpackc.low %vm589, %vm588
      %v591 = vunpack.c.l.b16 %v583
      %v592 = vunpack.c.h.b16 %v583
      %v593 = vunpack.c.l.b16 0
      %v594 = vunpack.c.h.b16 0
      %vm595 = vcmp.ne.s32.totalorder %v591, %v593
      %vm596 = vcmp.ne.s32.totalorder %v592, %v594
      %vm597 = vmpackc.low %vm596, %vm595
      %v598 = vsel %vm590, %v573, 0
      %v599 = vsel %vm597, %v578, 0
      %v601 = vshll.u32 %v404, 16
      %v604 = vshll.u32 %v405, 16
      %v610 = vrot.slane %v436, 7
      %v611 = vrot.slane %v437, 7
      %v613 = vshll.u32 %v468, 16
      %v615 = vrot.slane %v613, 7
      %v617 = vshll.u32 %v469, 16
      %v619 = vrot.slane %v617, 7
      %v623 = vunpack.c.l.b16 %v471
      %v624 = vunpack.c.h.b16 %v471
      %v625 = vpack.c.b16 %v623, %v623
      %v626 = vpack.c.b16 %v624, %v624
      %v627 = vrot.slane %v625, 6
      %v628 = vrot.slane %v626, 6
      %v630 = vshll.u32 %v502, 16
      %v632 = vrot.slane %v630, 6
      %v634 = vshll.u32 %v503, 16
      %v636 = vrot.slane %v634, 6
      %v641 = vrot.slane %v534, 5
      %v642 = vrot.slane %v535, 5
      %v644 = vshll.u32 %v566, 16
      %v646 = vrot.slane %v644, 5
      %v648 = vshll.u32 %v567, 16
      %v650 = vrot.slane %v648, 5
      %v655 = vrot.slane %v598, 4
      %v656 = vrot.slane %v599, 4
      %vm657 = vcmask 1040384
      %vm658 = vsmask.f32 256
      %vm659 = vmand %vm657, %vm658
      %v660 = vsel %vm659, %v372, %v601
      %v661 = vsel %vm659, %v373, %v604
      %vm662 = vcmask 1040384
      %v665 = vsel %vm662, %v660, %v610
      %v669 = vsel %vm662, %v661, %v611
      %vm671 = vcmask 1041408
      %vm672 = vsmask.f32 1280
      %vm673 = vmand %vm671, %vm672
      %v674 = vsel %vm673, %v665, %v615
      %v675 = vsel %vm673, %v669, %v619
      %vm676 = vcmask 1041408
      %v679 = vsel %vm676, %v674, %v627
      %v683 = vsel %vm676, %v675, %v628
      %vm685 = vcmask 1042432
      %vm686 = vsmask.f32 2304
      %vm687 = vmand %vm685, %vm686
      %v688 = vsel %vm687, %v679, %v632
      %v689 = vsel %vm687, %v683, %v636
      %vm690 = vcmask 1042432
      %v693 = vsel %vm690, %v688, %v641
      %v697 = vsel %vm690, %v689, %v642
      %vm699 = vcmask 1043456
      %vm700 = vsmask.f32 3328
      %vm701 = vmand %vm699, %vm700
      %v702 = vsel %vm701, %v693, %v646
      %v703 = vsel %vm701, %v697, %v650
      %vm704 = vcmask 1043456
      %v707 = vsel %vm704, %v702, %v655
      %v710 = vsel %vm704, %v703, %v656
      %v711 = vld [vmem:[%s1] sm:$0xf]
      %v712 = vld [vmem:[%s1 + $0x14] sm:$0xf]
      %v713 = vld [vmem:[%s2] sm:$0xff]
      %v714 = vld [vmem:[%s2 + $0x8] sm:$0xff]
      %716 = vset.pattern.permute.xlu0 0
      %717 = vperm.xlu0 %716, %v713
      %v718 = vpop.permute.xlu0 %717
      %721 = vset.pattern.permute.xlu0 0
      %722 = vperm.xlu0 %721, %v714
      %v723 = vpop.permute.xlu0 %722
      %v727 = vunpack.c.l.b16 %v711
      %v728 = vunpack.c.l.b16 %v712
      %v729 = vpack.c.b16 %v728, %v727
      %vm730 = vcmask 72704
      %v732 = vsel %vm730, %v729, 0
      %vm734 = vcmask 1044480
      %v735 = vsel %vm704, 4294967295, 65535
      %v736 = vsel %vm734, %v735, 0
      %v737 = vand.u32 %v707, %v736
      %v739 = vand.u32 %v710, %v736
      %741 = vmatpush.bf16.msra.mxu0 0
      %742 = vmatpush.bf16.msra.mxu0 0
      %743 = vmatpush.bf16.msra.mxu0 0
      %744 = vmatpush.bf16.msra.mxu0 0
      %745 = vmatpush.bf16.msra.mxu0 0
      %746 = vmatpush.bf16.msra.mxu0 0
      %747 = vmatpush.bf16.msra.mxu0 0
      %748 = vmatpush.bf16.msra.mxu0 %v737
      %749 = vmatmul.bf16.gmra.mxu0 %v732
      %v750 = vpop.f32.mrf.mxu0
      %v751 = vadd.f32 %v718, %v750
      %v752 = vpop.f32.mrf.mxu0
      %v753 = vadd.f32 %v723, %v752
      %754 = vdwg.mxu0
      %755 = vmatpush.bf16.msra.mxu0 0
      %756 = vmatpush.bf16.msra.mxu0 0
      %757 = vmatpush.bf16.msra.mxu0 0
      %758 = vmatpush.bf16.msra.mxu0 0
      %759 = vmatpush.bf16.msra.mxu0 0
      %760 = vmatpush.bf16.msra.mxu0 0
      %761 = vmatpush.bf16.msra.mxu0 0
      %762 = vmatpush.bf16.msra.mxu0 %v739
      %763 = vmatmul.bf16.gmra.mxu0 %v732
      %v764 = vpop.f32.mrf.mxu0
      %v765 = vadd.f32 %v718, %v764
      %v766 = vpop.f32.mrf.mxu0
      %v767 = vadd.f32 %v723, %v766
      %768 = vdwg.mxu0
      %vm769 = vcmp.gt.f32.partialorder %v751, 0.0
      %vm770 = vcmp.gt.f32.partialorder %v765, 0.0
      %vm771 = vcmp.gt.f32.partialorder %v753, 0.0
      %vm772 = vcmp.gt.f32.partialorder %v767, 0.0
      %v773 = vmul.f32 %v751, 0.01
      %v774 = vmul.f32 %v765, 0.01
      %v775 = vmul.f32 %v753, 0.01
      %v776 = vmul.f32 %v767, 0.01
      %v777 = vsel %vm769, %v751, %v773
      %v778 = vsel %vm770, %v765, %v774
      %v779 = vsel %vm771, %v753, %v775
      %v780 = vsel %vm772, %v767, %v776
      %v781 = vpack.c.bf16 %v778, %v777
      %v782 = vpack.c.bf16 %v780, %v779
      %v785 = vunpack.c.h.b16 %v781
      %v786 = vunpack.c.h.b16 %v782
      %v787 = vpack.c.b16 %v786, %v785
      %788 = vrot.lane.b32.xlu0 %v787, 17
      %v789 = vpop.permute.xlu0 %788
      %v790 = vunpack.c.l.b16 %v781
      %v791 = vunpack.c.l.b16 %v782
      %v792 = vpack.c.b16 %v791, %v790
      %793 = vrot.lane.b32.xlu0 %v792, 17
      %v794 = vpop.permute.xlu0 %793
      %v795 = vsel %vm346, %v794, %v789
      %v799 = vsel %vm349, %v789, %v794
      %v801 = vsel %vm194, 1, 0
      %v802 = vsel %vm195, 1, 0
      %vm803 = vcmp.eq.s32.totalorder %v801, 1
      %vm804 = vcmp.eq.s32.totalorder %v802, 1
      %vm805 = vmpackc.low %vm804, %vm803
      %v806 = vsel %vm805, 65537, 0
      %v807 = vperm.slane %v806, 0
      %v808 = vperm.slane %v806, 4
      %v809 = vunpack.c.l.b16 %v807
      %v810 = vunpack.c.h.b16 %v807
      %v811 = vunpack.c.l.b16 0
      %v812 = vunpack.c.h.b16 0
      %vm813 = vcmp.ne.s32.totalorder %v809, %v811
      %vm814 = vcmp.ne.s32.totalorder %v810, %v812
      %vm815 = vmpackc.low %vm814, %vm813
      %v816 = vunpack.c.l.b16 %v808
      %v817 = vunpack.c.h.b16 %v808
      %v818 = vunpack.c.l.b16 0
      %v819 = vunpack.c.h.b16 0
      %vm820 = vcmp.ne.s32.totalorder %v816, %v818
      %vm821 = vcmp.ne.s32.totalorder %v817, %v819
      %vm822 = vmpackc.low %vm821, %vm820
      %v823 = vsel %vm815, %v799, 0
      %v824 = vsel %vm822, %v795, 0
      %825 = vrot.lane.b32.xlu0 %v787, 16
      %v826 = vpop.permute.xlu0 %825
      %827 = vrot.lane.b32.xlu0 %v792, 16
      %v828 = vpop.permute.xlu0 %827
      %v829 = vsel %vm378, %v828, %v826
      %v833 = vsel %vm381, %v826, %v828
      %v835 = vsel %vm202, 1, 0
      %v836 = vsel %vm203, 1, 0
      %vm837 = vcmp.eq.s32.totalorder %v835, 1
      %vm838 = vcmp.eq.s32.totalorder %v836, 1
      %vm839 = vmpackc.low %vm838, %vm837
      %v840 = vsel %vm839, 65537, 0
      %v841 = vperm.slane %v840, 0
      %v842 = vperm.slane %v840, 4
      %v843 = vunpack.c.l.b16 %v841
      %v844 = vunpack.c.h.b16 %v841
      %v845 = vunpack.c.l.b16 0
      %v846 = vunpack.c.h.b16 0
      %vm847 = vcmp.ne.s32.totalorder %v843, %v845
      %vm848 = vcmp.ne.s32.totalorder %v844, %v846
      %vm849 = vmpackc.low %vm848, %vm847
      %v850 = vunpack.c.l.b16 %v842
      %v851 = vunpack.c.h.b16 %v842
      %v852 = vunpack.c.l.b16 0
      %v853 = vunpack.c.h.b16 0
      %vm854 = vcmp.ne.s32.totalorder %v850, %v852
      %vm855 = vcmp.ne.s32.totalorder %v851, %v853
      %vm856 = vmpackc.low %vm855, %vm854
      %v857 = vsel %vm849, %v833, 0
      %v858 = vsel %vm856, %v829, 0
      %859 = vrot.lane.b32.xlu0 %v787, 15
      %v860 = vpop.permute.xlu0 %859
      %861 = vrot.lane.b32.xlu0 %v792, 15
      %v862 = vpop.permute.xlu0 %861
      %v863 = vsel %vm410, %v862, %v860
      %v867 = vsel %vm413, %v860, %v862
      %v869 = vsel %vm212, 1, 0
      %v870 = vsel %vm213, 1, 0
      %vm871 = vcmp.eq.s32.totalorder %v869, 1
      %vm872 = vcmp.eq.s32.totalorder %v870, 1
      %vm873 = vmpackc.low %vm872, %vm871
      %v874 = vsel %vm873, 65537, 0
      %v875 = vperm.slane %v874, 0
      %v876 = vperm.slane %v874, 4
      %v877 = vunpack.c.l.b16 %v875
      %v878 = vunpack.c.h.b16 %v875
      %v879 = vunpack.c.l.b16 0
      %v880 = vunpack.c.h.b16 0
      %vm881 = vcmp.ne.s32.totalorder %v877, %v879
      %vm882 = vcmp.ne.s32.totalorder %v878, %v880
      %vm883 = vmpackc.low %vm882, %vm881
      %v884 = vunpack.c.l.b16 %v876
      %v885 = vunpack.c.h.b16 %v876
      %v886 = vunpack.c.l.b16 0
      %v887 = vunpack.c.h.b16 0
      %vm888 = vcmp.ne.s32.totalorder %v884, %v886
      %vm889 = vcmp.ne.s32.totalorder %v885, %v887
      %vm890 = vmpackc.low %vm889, %vm888
      %v891 = vsel %vm883, %v867, 0
      %v892 = vsel %vm890, %v863, 0
      %893 = vrot.lane.b32.xlu0 %v787, 1
      %v894 = vpop.permute.xlu0 %893
      %895 = vrot.lane.b32.xlu0 %v792, 1
      %v896 = vpop.permute.xlu0 %895
      %v897 = vsel %vm442, %v896, %v894
      %v901 = vsel %vm445, %v894, %v896
      %v903 = vsel %vm222, 1, 0
      %v904 = vsel %vm223, 1, 0
      %vm905 = vcmp.eq.s32.totalorder %v903, 1
      %vm906 = vcmp.eq.s32.totalorder %v904, 1
      %vm907 = vmpackc.low %vm906, %vm905
      %v908 = vsel %vm907, 65537, 0
      %v909 = vperm.slane %v908, 0
      %v910 = vperm.slane %v908, 4
      %v911 = vunpack.c.l.b16 %v909
      %v912 = vunpack.c.h.b16 %v909
      %v913 = vunpack.c.l.b16 0
      %v914 = vunpack.c.h.b16 0
      %vm915 = vcmp.ne.s32.totalorder %v911, %v913
      %vm916 = vcmp.ne.s32.totalorder %v912, %v914
      %vm917 = vmpackc.low %vm916, %vm915
      %v918 = vunpack.c.l.b16 %v910
      %v919 = vunpack.c.h.b16 %v910
      %v920 = vunpack.c.l.b16 0
      %v921 = vunpack.c.h.b16 0
      %vm922 = vcmp.ne.s32.totalorder %v918, %v920
      %vm923 = vcmp.ne.s32.totalorder %v919, %v921
      %vm924 = vmpackc.low %vm923, %vm922
      %v925 = vsel %vm917, %v901, 0
      %v926 = vsel %vm924, %v897, 0
      %v927 = vsel %vm226, 1, 0
      %v928 = vsel %vm227, 1, 0
      %vm929 = vcmp.eq.s32.totalorder %v927, 1
      %vm930 = vcmp.eq.s32.totalorder %v928, 1
      %vm931 = vmpackc.low %vm930, %vm929
      %v932 = vsel %vm931, %v781, 0
      %v933 = vsel %vm931, %v782, 0
      %934 = vrot.lane.b32.xlu0 %v792, 127
      %v935 = vpop.permute.xlu0 %934
      %936 = vrot.lane.b32.xlu0 %v787, 127
      %v937 = vpop.permute.xlu0 %936
      %v938 = vsel %vm476, %v935, %v937
      %v942 = vsel %vm479, %v937, %v935
      %v944 = vsel %vm230, 1, 0
      %v945 = vsel %vm231, 1, 0
      %vm946 = vcmp.eq.s32.totalorder %v944, 1
      %vm947 = vcmp.eq.s32.totalorder %v945, 1
      %vm948 = vmpackc.low %vm947, %vm946
      %v949 = vsel %vm948, 65537, 0
      %v950 = vperm.slane %v949, 0
      %v951 = vperm.slane %v949, 4
      %v952 = vunpack.c.l.b16 %v950
      %v953 = vunpack.c.h.b16 %v950
      %v954 = vunpack.c.l.b16 0
      %v955 = vunpack.c.h.b16 0
      %vm956 = vcmp.ne.s32.totalorder %v952, %v954
      %vm957 = vcmp.ne.s32.totalorder %v953, %v955
      %vm958 = vmpackc.low %vm957, %vm956
      %v959 = vunpack.c.l.b16 %v951
      %v960 = vunpack.c.h.b16 %v951
      %v961 = vunpack.c.l.b16 0
      %v962 = vunpack.c.h.b16 0
      %vm963 = vcmp.ne.s32.totalorder %v959, %v961
      %vm964 = vcmp.ne.s32.totalorder %v960, %v962
      %vm965 = vmpackc.low %vm964, %vm963
      %v966 = vsel %vm958, %v938, 0
      %v967 = vsel %vm965, %v942, 0
      %968 = vrot.lane.b32.xlu0 %v792, 113
      %v969 = vpop.permute.xlu0 %968
      %970 = vrot.lane.b32.xlu0 %v787, 113
      %v971 = vpop.permute.xlu0 %970
      %v972 = vsel %vm508, %v969, %v971
      %v976 = vsel %vm511, %v971, %v969
      %v978 = vsel %vm242, 1, 0
      %v979 = vsel %vm243, 1, 0
      %vm980 = vcmp.eq.s32.totalorder %v978, 1
      %vm981 = vcmp.eq.s32.totalorder %v979, 1
      %vm982 = vmpackc.low %vm981, %vm980
      %v983 = vsel %vm982, 65537, 0
      %v984 = vperm.slane %v983, 0
      %v985 = vperm.slane %v983, 4
      %v986 = vunpack.c.l.b16 %v984
      %v987 = vunpack.c.h.b16 %v984
      %v988 = vunpack.c.l.b16 0
      %v989 = vunpack.c.h.b16 0
      %vm990 = vcmp.ne.s32.totalorder %v986, %v988
      %vm991 = vcmp.ne.s32.totalorder %v987, %v989
      %vm992 = vmpackc.low %vm991, %vm990
      %v993 = vunpack.c.l.b16 %v985
      %v994 = vunpack.c.h.b16 %v985
      %v995 = vunpack.c.l.b16 0
      %v996 = vunpack.c.h.b16 0
      %vm997 = vcmp.ne.s32.totalorder %v993, %v995
      %vm998 = vcmp.ne.s32.totalorder %v994, %v996
      %vm999 = vmpackc.low %vm998, %vm997
      %v1000 = vsel %vm992, %v972, 0
      %v1001 = vsel %vm999, %v976, 0
      %1002 = vrot.lane.b32.xlu0 %v792, 112
      %v1003 = vpop.permute.xlu0 %1002
      %1004 = vrot.lane.b32.xlu0 %v787, 112
      %v1005 = vpop.permute.xlu0 %1004
      %v1006 = vsel %vm540, %v1003, %v1005
      %v1010 = vsel %vm543, %v1005, %v1003
      %v1012 = vsel %vm246, 1, 0
      %v1013 = vsel %vm247, 1, 0
      %vm1014 = vcmp.eq.s32.totalorder %v1012, 1
      %vm1015 = vcmp.eq.s32.totalorder %v1013, 1
      %vm1016 = vmpackc.low %vm1015, %vm1014
      %v1017 = vsel %vm1016, 65537, 0
      %v1018 = vperm.slane %v1017, 0
      %v1019 = vperm.slane %v1017, 4
      %v1020 = vunpack.c.l.b16 %v1018
      %v1021 = vunpack.c.h.b16 %v1018
      %v1022 = vunpack.c.l.b16 0
      %v1023 = vunpack.c.h.b16 0
      %vm1024 = vcmp.ne.s32.totalorder %v1020, %v1022
      %vm1025 = vcmp.ne.s32.totalorder %v1021, %v1023
      %vm1026 = vmpackc.low %vm1025, %vm1024
      %v1027 = vunpack.c.l.b16 %v1019
      %v1028 = vunpack.c.h.b16 %v1019
      %v1029 = vunpack.c.l.b16 0
      %v1030 = vunpack.c.h.b16 0
      %vm1031 = vcmp.ne.s32.totalorder %v1027, %v1029
      %vm1032 = vcmp.ne.s32.totalorder %v1028, %v1030
      %vm1033 = vmpackc.low %vm1032, %vm1031
      %v1034 = vsel %vm1026, %v1006, 0
      %v1035 = vsel %vm1033, %v1010, 0
      %1036 = vrot.lane.b32.xlu0 %v792, 111
      %v1037 = vpop.permute.xlu0 %1036
      %1038 = vrot.lane.b32.xlu0 %v787, 111
      %v1039 = vpop.permute.xlu0 %1038
      %v1040 = vsel %vm572, %v1037, %v1039
      %v1044 = vsel %vm575, %v1039, %v1037
      %v1046 = vsel %vm250, 1, 0
      %v1047 = vsel %vm251, 1, 0
      %vm1048 = vcmp.eq.s32.totalorder %v1046, 1
      %vm1049 = vcmp.eq.s32.totalorder %v1047, 1
      %vm1050 = vmpackc.low %vm1049, %vm1048
      %v1051 = vsel %vm1050, 65537, 0
      %v1052 = vperm.slane %v1051, 0
      %v1053 = vperm.slane %v1051, 4
      %v1054 = vunpack.c.l.b16 %v1052
      %v1055 = vunpack.c.h.b16 %v1052
      %v1056 = vunpack.c.l.b16 0
      %v1057 = vunpack.c.h.b16 0
      %vm1058 = vcmp.ne.s32.totalorder %v1054, %v1056
      %vm1059 = vcmp.ne.s32.totalorder %v1055, %v1057
      %vm1060 = vmpackc.low %vm1059, %vm1058
      %v1061 = vunpack.c.l.b16 %v1053
      %v1062 = vunpack.c.h.b16 %v1053
      %v1063 = vunpack.c.l.b16 0
      %v1064 = vunpack.c.h.b16 0
      %vm1065 = vcmp.ne.s32.totalorder %v1061, %v1063
      %vm1066 = vcmp.ne.s32.totalorder %v1062, %v1064
      %vm1067 = vmpackc.low %vm1066, %vm1065
      %v1068 = vsel %vm1060, %v1040, 0
      %v1069 = vsel %vm1067, %v1044, 0
      %v1072 = vunpack.c.l.b16 %v932
      %v1073 = vunpack.c.h.b16 %v932
      %v1074 = vunpack.c.l.b16 %v933
      %v1075 = vunpack.c.h.b16 %v933
      %v1076 = vpack.c.b16 %v1074, %v1072
      %v1077 = vpack.c.b16 %v1075, %v1073
      %v1080 = vld [vmem:[%s1 + $0x28] sm:$0xff]
      %v1081 = vld [vmem:[%s1 + $0x3c] sm:$0xff]
      %1082 = vset.pattern.permute.xlu0 1
      %1083 = vperm.xlu0 %1082, %v713
      %v1084 = vpop.permute.xlu0 %1083
      %1086 = vset.pattern.permute.xlu0 1
      %1087 = vperm.xlu0 %1086, %v714
      %v1088 = vpop.permute.xlu0 %1087
      %v1092 = vunpack.c.l.b16 %v1080
      %v1093 = vunpack.c.h.b16 %v1080
      %v1094 = vunpack.c.l.b16 %v1081
      %v1095 = vunpack.c.h.b16 %v1081
      %v1096 = vpack.c.b16 %v1094, %v1092
      %v1097 = vpack.c.b16 %v1095, %v1093
      %v1100 = vsel %vm381, %v1097, 0
      %1102 = vmatpush.bf16.msra.mxu0 %v1034
      %1103 = vmatpush.bf16.msra.mxu0 %v1000
      %1104 = vmatpush.bf16.msra.mxu0 %v966
      %1105 = vmatpush.bf16.msra.mxu0 %v1076
      %1106 = vmatpush.bf16.msra.mxu0 %v925
      %1107 = vmatpush.bf16.msra.mxu0 %v891
      %1108 = vmatpush.bf16.msra.mxu0 %v857
      %1109 = vmatpush.bf16.msra.mxu0 %v823
      %1110 = vmatmul.bf16.gmra.mxu0 %v1096
      %v1111 = vpop.f32.mrf.mxu0
      %v1112 = vadd.f32 %v1084, %v1111
      %v1113 = vpop.f32.mrf.mxu0
      %v1114 = vadd.f32 %v1088, %v1113
      %1115 = vdwg.mxu0
      %1116 = vmatpush.bf16.msra.mxu0 0
      %1117 = vmatpush.bf16.msra.mxu0 0
      %1118 = vmatpush.bf16.msra.mxu0 0
      %1119 = vmatpush.bf16.msra.mxu0 0
      %1120 = vmatpush.bf16.msra.mxu0 0
      %1121 = vmatpush.bf16.msra.mxu0 0
      %1122 = vmatpush.bf16.msra.mxu0 0
      %1123 = vmatpush.bf16.msra.mxu0 %v1068
      %1124 = vmatmul.bf16.gmra.mxu0 %v1100
      %v1125 = vpop.f32.mrf.mxu0
      %v1126 = vadd.f32 %v1112, %v1125
      %v1127 = vpop.f32.mrf.mxu0
      %v1128 = vadd.f32 %v1114, %v1127
      %1129 = vdwg.mxu0
      %1130 = vmatpush.bf16.msra.mxu0 %v1035
      %1131 = vmatpush.bf16.msra.mxu0 %v1001
      %1132 = vmatpush.bf16.msra.mxu0 %v967
      %1133 = vmatpush.bf16.msra.mxu0 %v1077
      %1134 = vmatpush.bf16.msra.mxu0 %v926
      %1135 = vmatpush.bf16.msra.mxu0 %v892
      %1136 = vmatpush.bf16.msra.mxu0 %v858
      %1137 = vmatpush.bf16.msra.mxu0 %v824
      %1138 = vmatmul.bf16.gmra.mxu0 %v1096
      %v1139 = vpop.f32.mrf.mxu0
      %v1140 = vadd.f32 %v1084, %v1139
      %v1141 = vpop.f32.mrf.mxu0
      %v1142 = vadd.f32 %v1088, %v1141
      %1143 = vdwg.mxu0
      %1144 = vmatpush.bf16.msra.mxu0 0
      %1145 = vmatpush.bf16.msra.mxu0 0
      %1146 = vmatpush.bf16.msra.mxu0 0
      %1147 = vmatpush.bf16.msra.mxu0 0
      %1148 = vmatpush.bf16.msra.mxu0 0
      %1149 = vmatpush.bf16.msra.mxu0 0
      %1150 = vmatpush.bf16.msra.mxu0 0
      %1151 = vmatpush.bf16.msra.mxu0 %v1069
      %1152 = vmatmul.bf16.gmra.mxu0 %v1100
      %v1153 = vpop.f32.mrf.mxu0
      %v1154 = vadd.f32 %v1140, %v1153
      %v1155 = vpop.f32.mrf.mxu0
      %v1156 = vadd.f32 %v1142, %v1155
      %1157 = vdwg.mxu0
      %vm1158 = vcmp.gt.f32.partialorder %v1126, 0.0
      %vm1159 = vcmp.gt.f32.partialorder %v1154, 0.0
      %vm1160 = vcmp.gt.f32.partialorder %v1128, 0.0
      %vm1161 = vcmp.gt.f32.partialorder %v1156, 0.0
      %v1162 = vmul.f32 %v1126, 0.01
      %v1163 = vmul.f32 %v1154, 0.01
      %v1164 = vmul.f32 %v1128, 0.01
      %v1165 = vmul.f32 %v1156, 0.01
      %v1166 = vsel %vm1158, %v1126, %v1162
      %v1167 = vsel %vm1159, %v1154, %v1163
      %v1168 = vsel %vm1160, %v1128, %v1164
      %v1169 = vsel %vm1161, %v1156, %v1165
      %v1170 = vpack.c.bf16 %v1167, %v1166
      %v1171 = vpack.c.bf16 %v1169, %v1168
      %v1174 = vunpack.c.h.b16 %v1170
      %v1175 = vunpack.c.h.b16 %v1171
      %v1176 = vpack.c.b16 %v1175, %v1174
      %1177 = vrot.lane.b32.xlu0 %v1176, 17
      %v1178 = vpop.permute.xlu0 %1177
      %v1179 = vunpack.c.l.b16 %v1170
      %v1180 = vunpack.c.l.b16 %v1171
      %v1181 = vpack.c.b16 %v1180, %v1179
      %1182 = vrot.lane.b32.xlu0 %v1181, 17
      %v1183 = vpop.permute.xlu0 %1182
      %v1184 = vsel %vm346, %v1183, %v1178
      %v1188 = vsel %vm349, %v1178, %v1183
      %v1190 = vsel %vm815, %v1188, 0
      %v1191 = vsel %vm822, %v1184, 0
      %1192 = vrot.lane.b32.xlu0 %v1176, 16
      %v1193 = vpop.permute.xlu0 %1192
      %1194 = vrot.lane.b32.xlu0 %v1181, 16
      %v1195 = vpop.permute.xlu0 %1194
      %v1196 = vsel %vm378, %v1195, %v1193
      %v1200 = vsel %vm381, %v1193, %v1195
      %v1202 = vsel %vm849, %v1200, 0
      %v1203 = vsel %vm856, %v1196, 0
      %1204 = vrot.lane.b32.xlu0 %v1176, 15
      %v1205 = vpop.permute.xlu0 %1204
      %1206 = vrot.lane.b32.xlu0 %v1181, 15
      %v1207 = vpop.permute.xlu0 %1206
      %v1208 = vsel %vm410, %v1207, %v1205
      %v1212 = vsel %vm413, %v1205, %v1207
      %v1214 = vsel %vm883, %v1212, 0
      %v1215 = vsel %vm890, %v1208, 0
      %1216 = vrot.lane.b32.xlu0 %v1176, 1
      %v1217 = vpop.permute.xlu0 %1216
      %1218 = vrot.lane.b32.xlu0 %v1181, 1
      %v1219 = vpop.permute.xlu0 %1218
      %v1220 = vsel %vm442, %v1219, %v1217
      %v1224 = vsel %vm445, %v1217, %v1219
      %v1226 = vsel %vm917, %v1224, 0
      %v1227 = vsel %vm924, %v1220, 0
      %v1228 = vsel %vm931, %v1170, 0
      %v1229 = vsel %vm931, %v1171, 0
      %1230 = vrot.lane.b32.xlu0 %v1181, 127
      %v1231 = vpop.permute.xlu0 %1230
      %1232 = vrot.lane.b32.xlu0 %v1176, 127
      %v1233 = vpop.permute.xlu0 %1232
      %v1234 = vsel %vm476, %v1231, %v1233
      %v1238 = vsel %vm479, %v1233, %v1231
      %v1240 = vsel %vm958, %v1234, 0
      %v1241 = vsel %vm965, %v1238, 0
      %1242 = vrot.lane.b32.xlu0 %v1181, 113
      %v1243 = vpop.permute.xlu0 %1242
      %1244 = vrot.lane.b32.xlu0 %v1176, 113
      %v1245 = vpop.permute.xlu0 %1244
      %v1246 = vsel %vm508, %v1243, %v1245
      %v1250 = vsel %vm511, %v1245, %v1243
      %v1252 = vsel %vm992, %v1246, 0
      %v1253 = vsel %vm999, %v1250, 0
      %1254 = vrot.lane.b32.xlu0 %v1181, 112
      %v1255 = vpop.permute.xlu0 %1254
      %1256 = vrot.lane.b32.xlu0 %v1176, 112
      %v1257 = vpop.permute.xlu0 %1256
      %v1258 = vsel %vm540, %v1255, %v1257
      %v1262 = vsel %vm543, %v1257, %v1255
      %v1264 = vsel %vm1026, %v1258, 0
      %v1265 = vsel %vm1033, %v1262, 0
      %1266 = vrot.lane.b32.xlu0 %v1181, 111
      %v1267 = vpop.permute.xlu0 %1266
      %1268 = vrot.lane.b32.xlu0 %v1176, 111
      %v1269 = vpop.permute.xlu0 %1268
      %v1270 = vsel %vm572, %v1267, %v1269
      %v1274 = vsel %vm575, %v1269, %v1267
      %v1276 = vsel %vm1060, %v1270, 0
      %v1277 = vsel %vm1067, %v1274, 0
      %v1280 = vunpack.c.l.b16 %v1228
      %v1281 = vunpack.c.h.b16 %v1228
      %v1282 = vunpack.c.l.b16 %v1229
      %v1283 = vunpack.c.h.b16 %v1229
      %v1284 = vpack.c.b16 %v1282, %v1280
      %v1285 = vpack.c.b16 %v1283, %v1281
      %v1288 = vld [vmem:[%s1 + $0x50] sm:$0xff]
      %v1289 = vld [vmem:[%s1 + $0x64] sm:$0xff]
      %1290 = vset.pattern.permute.xlu0 2
      %1291 = vperm.xlu0 %1290, %v713
      %v1292 = vpop.permute.xlu0 %1291
      %1294 = vset.pattern.permute.xlu0 2
      %1295 = vperm.xlu0 %1294, %v714
      %v1296 = vpop.permute.xlu0 %1295
      %v1300 = vunpack.c.l.b16 %v1288
      %v1301 = vunpack.c.h.b16 %v1288
      %v1302 = vunpack.c.l.b16 %v1289
      %v1303 = vunpack.c.h.b16 %v1289
      %v1304 = vpack.c.b16 %v1302, %v1300
      %v1305 = vpack.c.b16 %v1303, %v1301
      %v1308 = vsel %vm381, %v1305, 0
      %1310 = vmatpush.bf16.msra.mxu0 %v1264
      %1311 = vmatpush.bf16.msra.mxu0 %v1252
      %1312 = vmatpush.bf16.msra.mxu0 %v1240
      %1313 = vmatpush.bf16.msra.mxu0 %v1284
      %1314 = vmatpush.bf16.msra.mxu0 %v1226
      %1315 = vmatpush.bf16.msra.mxu0 %v1214
      %1316 = vmatpush.bf16.msra.mxu0 %v1202
      %1317 = vmatpush.bf16.msra.mxu0 %v1190
      %1318 = vmatmul.bf16.gmra.mxu0 %v1304
      %v1319 = vpop.f32.mrf.mxu0
      %v1320 = vadd.f32 %v1292, %v1319
      %v1321 = vpop.f32.mrf.mxu0
      %v1322 = vadd.f32 %v1296, %v1321
      %1323 = vdwg.mxu0
      %1324 = vmatpush.bf16.msra.mxu0 0
      %1325 = vmatpush.bf16.msra.mxu0 0
      %1326 = vmatpush.bf16.msra.mxu0 0
      %1327 = vmatpush.bf16.msra.mxu0 0
      %1328 = vmatpush.bf16.msra.mxu0 0
      %1329 = vmatpush.bf16.msra.mxu0 0
      %1330 = vmatpush.bf16.msra.mxu0 0
      %1331 = vmatpush.bf16.msra.mxu0 %v1276
      %1332 = vmatmul.bf16.gmra.mxu0 %v1308
      %v1333 = vpop.f32.mrf.mxu0
      %v1334 = vadd.f32 %v1320, %v1333
      %v1335 = vpop.f32.mrf.mxu0
      %v1336 = vadd.f32 %v1322, %v1335
      %1337 = vdwg.mxu0
      %1338 = vmatpush.bf16.msra.mxu0 %v1265
      %1339 = vmatpush.bf16.msra.mxu0 %v1253
      %1340 = vmatpush.bf16.msra.mxu0 %v1241
      %1341 = vmatpush.bf16.msra.mxu0 %v1285
      %1342 = vmatpush.bf16.msra.mxu0 %v1227
      %1343 = vmatpush.bf16.msra.mxu0 %v1215
      %1344 = vmatpush.bf16.msra.mxu0 %v1203
      %1345 = vmatpush.bf16.msra.mxu0 %v1191
      %1346 = vmatmul.bf16.gmra.mxu0 %v1304
      %v1347 = vpop.f32.mrf.mxu0
      %v1348 = vadd.f32 %v1292, %v1347
      %v1349 = vpop.f32.mrf.mxu0
      %v1350 = vadd.f32 %v1296, %v1349
      %1351 = vdwg.mxu0
      %1352 = vmatpush.bf16.msra.mxu0 0
      %1353 = vmatpush.bf16.msra.mxu0 0
      %1354 = vmatpush.bf16.msra.mxu0 0
      %1355 = vmatpush.bf16.msra.mxu0 0
      %1356 = vmatpush.bf16.msra.mxu0 0
      %1357 = vmatpush.bf16.msra.mxu0 0
      %1358 = vmatpush.bf16.msra.mxu0 0
      %1359 = vmatpush.bf16.msra.mxu0 %v1277
      %1360 = vmatmul.bf16.gmra.mxu0 %v1308
      %v1361 = vpop.f32.mrf.mxu0
      %v1362 = vadd.f32 %v1348, %v1361
      %v1363 = vpop.f32.mrf.mxu0
      %v1364 = vadd.f32 %v1350, %v1363
      %1365 = vdwg.mxu0
      %v1366 = vadd.f32 %v1334, %v777
      %v1367 = vadd.f32 %v1362, %v778
      %v1368 = vadd.f32 %v1336, %v779
      %v1369 = vadd.f32 %v1364, %v780
      %vm1370 = vcmp.gt.f32.partialorder %v1366, 0.0
      %vm1371 = vcmp.gt.f32.partialorder %v1367, 0.0
      %vm1372 = vcmp.gt.f32.partialorder %v1368, 0.0
      %vm1373 = vcmp.gt.f32.partialorder %v1369, 0.0
      %v1374 = vmul.f32 %v1366, 0.01
      %v1375 = vmul.f32 %v1367, 0.01
      %v1376 = vmul.f32 %v1368, 0.01
      %v1377 = vmul.f32 %v1369, 0.01
      %v1378 = vsel %vm1370, %v1366, %v1374
      %v1379 = vsel %vm1371, %v1367, %v1375
      %v1380 = vsel %vm1372, %v1368, %v1376
      %v1381 = vsel %vm1373, %v1369, %v1377
      %v1382 = vpack.c.bf16 %v1379, %v1378
      %v1383 = vpack.c.bf16 %v1381, %v1380
      %v1386 = vunpack.c.h.b16 %v1382
      %v1387 = vunpack.c.h.b16 %v1383
      %v1388 = vpack.c.b16 %v1387, %v1386
      %1389 = vrot.lane.b32.xlu0 %v1388, 17
      %v1390 = vpop.permute.xlu0 %1389
      %v1391 = vunpack.c.l.b16 %v1382
      %v1392 = vunpack.c.l.b16 %v1383
      %v1393 = vpack.c.b16 %v1392, %v1391
      %1394 = vrot.lane.b32.xlu0 %v1393, 17
      %v1395 = vpop.permute.xlu0 %1394
      %v1396 = vsel %vm346, %v1395, %v1390
      %v1400 = vsel %vm349, %v1390, %v1395
      %v1402 = vsel %vm815, %v1400, 0
      %v1403 = vsel %vm822, %v1396, 0
      %1404 = vrot.lane.b32.xlu0 %v1388, 16
      %v1405 = vpop.permute.xlu0 %1404
      %1406 = vrot.lane.b32.xlu0 %v1393, 16
      %v1407 = vpop.permute.xlu0 %1406
      %v1408 = vsel %vm378, %v1407, %v1405
      %v1412 = vsel %vm381, %v1405, %v1407
      %v1414 = vsel %vm849, %v1412, 0
      %v1415 = vsel %vm856, %v1408, 0
      %1416 = vrot.lane.b32.xlu0 %v1388, 15
      %v1417 = vpop.permute.xlu0 %1416
      %1418 = vrot.lane.b32.xlu0 %v1393, 15
      %v1419 = vpop.permute.xlu0 %1418
      %v1420 = vsel %vm410, %v1419, %v1417
      %v1424 = vsel %vm413, %v1417, %v1419
      %v1426 = vsel %vm883, %v1424, 0
      %v1427 = vsel %vm890, %v1420, 0
      %1428 = vrot.lane.b32.xlu0 %v1388, 1
      %v1429 = vpop.permute.xlu0 %1428
      %1430 = vrot.lane.b32.xlu0 %v1393, 1
      %v1431 = vpop.permute.xlu0 %1430
      %v1432 = vsel %vm442, %v1431, %v1429
      %v1436 = vsel %vm445, %v1429, %v1431
      %v1438 = vsel %vm917, %v1436, 0
      %v1439 = vsel %vm924, %v1432, 0
      %v1440 = vsel %vm931, %v1382, 0
      %v1441 = vsel %vm931, %v1383, 0
      %1442 = vrot.lane.b32.xlu0 %v1393, 127
      %v1443 = vpop.permute.xlu0 %1442
      %1444 = vrot.lane.b32.xlu0 %v1388, 127
      %v1445 = vpop.permute.xlu0 %1444
      %v1446 = vsel %vm476, %v1443, %v1445
      %v1450 = vsel %vm479, %v1445, %v1443
      %v1452 = vsel %vm958, %v1446, 0
      %v1453 = vsel %vm965, %v1450, 0
      %1454 = vrot.lane.b32.xlu0 %v1393, 113
      %v1455 = vpop.permute.xlu0 %1454
      %1456 = vrot.lane.b32.xlu0 %v1388, 113
      %v1457 = vpop.permute.xlu0 %1456
      %v1458 = vsel %vm508, %v1455, %v1457
      %v1462 = vsel %vm511, %v1457, %v1455
      %v1464 = vsel %vm992, %v1458, 0
      %v1465 = vsel %vm999, %v1462, 0
      %1466 = vrot.lane.b32.xlu0 %v1393, 112
      %v1467 = vpop.permute.xlu0 %1466
      %1468 = vrot.lane.b32.xlu0 %v1388, 112
      %v1469 = vpop.permute.xlu0 %1468
      %v1470 = vsel %vm540, %v1467, %v1469
      %v1474 = vsel %vm543, %v1469, %v1467
      %v1476 = vsel %vm1026, %v1470, 0
      %v1477 = vsel %vm1033, %v1474, 0
      %1478 = vrot.lane.b32.xlu0 %v1393, 111
      %v1479 = vpop.permute.xlu0 %1478
      %1480 = vrot.lane.b32.xlu0 %v1388, 111
      %v1481 = vpop.permute.xlu0 %1480
      %v1482 = vsel %vm572, %v1479, %v1481
      %v1486 = vsel %vm575, %v1481, %v1479
      %v1488 = vsel %vm1060, %v1482, 0
      %v1489 = vsel %vm1067, %v1486, 0
      %v1492 = vunpack.c.l.b16 %v1440
      %v1493 = vunpack.c.h.b16 %v1440
      %v1494 = vunpack.c.l.b16 %v1441
      %v1495 = vunpack.c.h.b16 %v1441
      %v1496 = vpack.c.b16 %v1494, %v1492
      %v1497 = vpack.c.b16 %v1495, %v1493
      %v1500 = vld [vmem:[%s1 + $0x78] sm:$0xff]
      %v1501 = vld [vmem:[%s1 + $0x8c] sm:$0xff]
      %1502 = vset.pattern.permute.xlu0 3
      %1503 = vperm.xlu0 %1502, %v713
      %v1504 = vpop.permute.xlu0 %1503
      %1506 = vset.pattern.permute.xlu0 3
      %1507 = vperm.xlu0 %1506, %v714
      %v1508 = vpop.permute.xlu0 %1507
      %v1512 = vunpack.c.l.b16 %v1500
      %v1513 = vunpack.c.h.b16 %v1500
      %v1514 = vunpack.c.l.b16 %v1501
      %v1515 = vunpack.c.h.b16 %v1501
      %v1516 = vpack.c.b16 %v1514, %v1512
      %v1517 = vpack.c.b16 %v1515, %v1513
      %v1520 = vsel %vm381, %v1517, 0
      %1522 = vmatpush.bf16.msra.mxu0 %v1476
      %1523 = vmatpush.bf16.msra.mxu0 %v1464
      %1524 = vmatpush.bf16.msra.mxu0 %v1452
      %1525 = vmatpush.bf16.msra.mxu0 %v1496
      %1526 = vmatpush.bf16.msra.mxu0 %v1438
      %1527 = vmatpush.bf16.msra.mxu0 %v1426
      %1528 = vmatpush.bf16.msra.mxu0 %v1414
      %1529 = vmatpush.bf16.msra.mxu0 %v1402
      %1530 = vmatmul.bf16.gmra.mxu0 %v1516
      %v1531 = vpop.f32.mrf.mxu0
      %v1532 = vadd.f32 %v1504, %v1531
      %v1533 = vpop.f32.mrf.mxu0
      %v1534 = vadd.f32 %v1508, %v1533
      %1535 = vdwg.mxu0
      %1536 = vmatpush.bf16.msra.mxu0 0
      %1537 = vmatpush.bf16.msra.mxu0 0
      %1538 = vmatpush.bf16.msra.mxu0 0
      %1539 = vmatpush.bf16.msra.mxu0 0
      %1540 = vmatpush.bf16.msra.mxu0 0
      %1541 = vmatpush.bf16.msra.mxu0 0
      %1542 = vmatpush.bf16.msra.mxu0 0
      %1543 = vmatpush.bf16.msra.mxu0 %v1488
      %1544 = vmatmul.bf16.gmra.mxu0 %v1520
      %v1545 = vpop.f32.mrf.mxu0
      %v1546 = vadd.f32 %v1532, %v1545
      %v1547 = vpop.f32.mrf.mxu0
      %v1548 = vadd.f32 %v1534, %v1547
      %1549 = vdwg.mxu0
      %1550 = vmatpush.bf16.msra.mxu0 %v1477
      %1551 = vmatpush.bf16.msra.mxu0 %v1465
      %1552 = vmatpush.bf16.msra.mxu0 %v1453
      %1553 = vmatpush.bf16.msra.mxu0 %v1497
      %1554 = vmatpush.bf16.msra.mxu0 %v1439
      %1555 = vmatpush.bf16.msra.mxu0 %v1427
      %1556 = vmatpush.bf16.msra.mxu0 %v1415
      %1557 = vmatpush.bf16.msra.mxu0 %v1403
      %1558 = vmatmul.bf16.gmra.mxu0 %v1516
      %v1559 = vpop.f32.mrf.mxu0
      %v1560 = vadd.f32 %v1504, %v1559
      %v1561 = vpop.f32.mrf.mxu0
      %v1562 = vadd.f32 %v1508, %v1561
      %1563 = vdwg.mxu0
      %1564 = vmatpush.bf16.msra.mxu0 0
      %1565 = vmatpush.bf16.msra.mxu0 0
      %1566 = vmatpush.bf16.msra.mxu0 0
      %1567 = vmatpush.bf16.msra.mxu0 0
      %1568 = vmatpush.bf16.msra.mxu0 0
      %1569 = vmatpush.bf16.msra.mxu0 0
      %1570 = vmatpush.bf16.msra.mxu0 0
      %1571 = vmatpush.bf16.msra.mxu0 %v1489
      %1572 = vmatmul.bf16.gmra.mxu0 %v1520
      %v1573 = vpop.f32.mrf.mxu0
      %v1574 = vadd.f32 %v1560, %v1573
      %v1575 = vpop.f32.mrf.mxu0
      %v1576 = vadd.f32 %v1562, %v1575
      %1577 = vdwg.mxu0
      %vm1578 = vcmp.gt.f32.partialorder %v1546, 0.0
      %vm1579 = vcmp.gt.f32.partialorder %v1574, 0.0
      %vm1580 = vcmp.gt.f32.partialorder %v1548, 0.0
      %vm1581 = vcmp.gt.f32.partialorder %v1576, 0.0
      %v1582 = vmul.f32 %v1546, 0.01
      %v1583 = vmul.f32 %v1574, 0.01
      %v1584 = vmul.f32 %v1548, 0.01
      %v1585 = vmul.f32 %v1576, 0.01
      %v1586 = vsel %vm1578, %v1546, %v1582
      %v1587 = vsel %vm1579, %v1574, %v1583
      %v1588 = vsel %vm1580, %v1548, %v1584
      %v1589 = vsel %vm1581, %v1576, %v1585
      %v1590 = vpack.c.bf16 %v1587, %v1586
      %v1591 = vpack.c.bf16 %v1589, %v1588
      %v1594 = vunpack.c.h.b16 %v1590
      %v1595 = vunpack.c.h.b16 %v1591
      %v1596 = vpack.c.b16 %v1595, %v1594
      %1597 = vrot.lane.b32.xlu0 %v1596, 17
      %v1598 = vpop.permute.xlu0 %1597
      %v1599 = vunpack.c.l.b16 %v1590
      %v1600 = vunpack.c.l.b16 %v1591
      %v1601 = vpack.c.b16 %v1600, %v1599
      %1602 = vrot.lane.b32.xlu0 %v1601, 17
      %v1603 = vpop.permute.xlu0 %1602
      %v1604 = vsel %vm346, %v1603, %v1598
      %v1608 = vsel %vm349, %v1598, %v1603
      %v1610 = vsel %vm815, %v1608, 0
      %v1611 = vsel %vm822, %v1604, 0
      %1612 = vrot.lane.b32.xlu0 %v1596, 16
      %v1613 = vpop.permute.xlu0 %1612
      %1614 = vrot.lane.b32.xlu0 %v1601, 16
      %v1615 = vpop.permute.xlu0 %1614
      %v1616 = vsel %vm378, %v1615, %v1613
      %v1620 = vsel %vm381, %v1613, %v1615
      %v1622 = vsel %vm849, %v1620, 0
      %v1623 = vsel %vm856, %v1616, 0
      %1624 = vrot.lane.b32.xlu0 %v1596, 15
      %v1625 = vpop.permute.xlu0 %1624
      %1626 = vrot.lane.b32.xlu0 %v1601, 15
      %v1627 = vpop.permute.xlu0 %1626
      %v1628 = vsel %vm410, %v1627, %v1625
      %v1632 = vsel %vm413, %v1625, %v1627
      %v1634 = vsel %vm883, %v1632, 0
      %v1635 = vsel %vm890, %v1628, 0
      %1636 = vrot.lane.b32.xlu0 %v1596, 1
      %v1637 = vpop.permute.xlu0 %1636
      %1638 = vrot.lane.b32.xlu0 %v1601, 1
      %v1639 = vpop.permute.xlu0 %1638
      %v1640 = vsel %vm442, %v1639, %v1637
      %v1644 = vsel %vm445, %v1637, %v1639
      %v1646 = vsel %vm917, %v1644, 0
      %v1647 = vsel %vm924, %v1640, 0
      %v1648 = vsel %vm931, %v1590, 0
      %v1649 = vsel %vm931, %v1591, 0
      %1650 = vrot.lane.b32.xlu0 %v1601, 127
      %v1651 = vpop.permute.xlu0 %1650
      %1652 = vrot.lane.b32.xlu0 %v1596, 127
      %v1653 = vpop.permute.xlu0 %1652
      %v1654 = vsel %vm476, %v1651, %v1653
      %v1658 = vsel %vm479, %v1653, %v1651
      %v1660 = vsel %vm958, %v1654, 0
      %v1661 = vsel %vm965, %v1658, 0
      %1662 = vrot.lane.b32.xlu0 %v1601, 113
      %v1663 = vpop.permute.xlu0 %1662
      %1664 = vrot.lane.b32.xlu0 %v1596, 113
      %v1665 = vpop.permute.xlu0 %1664
      %v1666 = vsel %vm508, %v1663, %v1665
      %v1670 = vsel %vm511, %v1665, %v1663
      %v1672 = vsel %vm992, %v1666, 0
      %v1673 = vsel %vm999, %v1670, 0
      %1674 = vrot.lane.b32.xlu0 %v1601, 112
      %v1675 = vpop.permute.xlu0 %1674
      %1676 = vrot.lane.b32.xlu0 %v1596, 112
      %v1677 = vpop.permute.xlu0 %1676
      %v1678 = vsel %vm540, %v1675, %v1677
      %v1682 = vsel %vm543, %v1677, %v1675
      %v1684 = vsel %vm1026, %v1678, 0
      %v1685 = vsel %vm1033, %v1682, 0
      %1686 = vrot.lane.b32.xlu0 %v1601, 111
      %v1687 = vpop.permute.xlu0 %1686
      %1688 = vrot.lane.b32.xlu0 %v1596, 111
      %v1689 = vpop.permute.xlu0 %1688
      %v1690 = vsel %vm572, %v1687, %v1689
      %v1694 = vsel %vm575, %v1689, %v1687
      %v1696 = vsel %vm1060, %v1690, 0
      %v1697 = vsel %vm1067, %v1694, 0
      %v1700 = vunpack.c.l.b16 %v1648
      %v1701 = vunpack.c.h.b16 %v1648
      %v1702 = vunpack.c.l.b16 %v1649
      %v1703 = vunpack.c.h.b16 %v1649
      %v1704 = vpack.c.b16 %v1702, %v1700
      %v1705 = vpack.c.b16 %v1703, %v1701
      %v1708 = vld [vmem:[%s1 + $0xa0] sm:$0xff]
      %v1709 = vld [vmem:[%s1 + $0xb4] sm:$0xff]
      %1710 = vset.pattern.permute.xlu0 4
      %1711 = vperm.xlu0 %1710, %v713
      %v1712 = vpop.permute.xlu0 %1711
      %1714 = vset.pattern.permute.xlu0 4
      %1715 = vperm.xlu0 %1714, %v714
      %v1716 = vpop.permute.xlu0 %1715
      %v1720 = vunpack.c.l.b16 %v1708
      %v1721 = vunpack.c.h.b16 %v1708
      %v1722 = vunpack.c.l.b16 %v1709
      %v1723 = vunpack.c.h.b16 %v1709
      %v1724 = vpack.c.b16 %v1722, %v1720
      %v1725 = vpack.c.b16 %v1723, %v1721
      %v1728 = vsel %vm381, %v1725, 0
      %1730 = vmatpush.bf16.msra.mxu0 %v1684
      %1731 = vmatpush.bf16.msra.mxu0 %v1672
      %1732 = vmatpush.bf16.msra.mxu0 %v1660
      %1733 = vmatpush.bf16.msra.mxu0 %v1704
      %1734 = vmatpush.bf16.msra.mxu0 %v1646
      %1735 = vmatpush.bf16.msra.mxu0 %v1634
      %1736 = vmatpush.bf16.msra.mxu0 %v1622
      %1737 = vmatpush.bf16.msra.mxu0 %v1610
      %1738 = vmatmul.bf16.gmra.mxu0 %v1724
      %v1739 = vpop.f32.mrf.mxu0
      %v1740 = vadd.f32 %v1712, %v1739
      %v1741 = vpop.f32.mrf.mxu0
      %v1742 = vadd.f32 %v1716, %v1741
      %1743 = vdwg.mxu0
      %1744 = vmatpush.bf16.msra.mxu0 0
      %1745 = vmatpush.bf16.msra.mxu0 0
      %1746 = vmatpush.bf16.msra.mxu0 0
      %1747 = vmatpush.bf16.msra.mxu0 0
      %1748 = vmatpush.bf16.msra.mxu0 0
      %1749 = vmatpush.bf16.msra.mxu0 0
      %1750 = vmatpush.bf16.msra.mxu0 0
      %1751 = vmatpush.bf16.msra.mxu0 %v1696
      %1752 = vmatmul.bf16.gmra.mxu0 %v1728
      %v1753 = vpop.f32.mrf.mxu0
      %v1754 = vadd.f32 %v1740, %v1753
      %v1755 = vpop.f32.mrf.mxu0
      %v1756 = vadd.f32 %v1742, %v1755
      %1757 = vdwg.mxu0
      %1758 = vmatpush.bf16.msra.mxu0 %v1685
      %1759 = vmatpush.bf16.msra.mxu0 %v1673
      %1760 = vmatpush.bf16.msra.mxu0 %v1661
      %1761 = vmatpush.bf16.msra.mxu0 %v1705
      %1762 = vmatpush.bf16.msra.mxu0 %v1647
      %1763 = vmatpush.bf16.msra.mxu0 %v1635
      %1764 = vmatpush.bf16.msra.mxu0 %v1623
      %1765 = vmatpush.bf16.msra.mxu0 %v1611
      %1766 = vmatmul.bf16.gmra.mxu0 %v1724
      %v1767 = vpop.f32.mrf.mxu0
      %v1768 = vadd.f32 %v1712, %v1767
      %v1769 = vpop.f32.mrf.mxu0
      %v1770 = vadd.f32 %v1716, %v1769
      %1771 = vdwg.mxu0
      %1772 = vmatpush.bf16.msra.mxu0 0
      %1773 = vmatpush.bf16.msra.mxu0 0
      %1774 = vmatpush.bf16.msra.mxu0 0
      %1775 = vmatpush.bf16.msra.mxu0 0
      %1776 = vmatpush.bf16.msra.mxu0 0
      %1777 = vmatpush.bf16.msra.mxu0 0
      %1778 = vmatpush.bf16.msra.mxu0 0
      %1779 = vmatpush.bf16.msra.mxu0 %v1697
      %1780 = vmatmul.bf16.gmra.mxu0 %v1728
      %v1781 = vpop.f32.mrf.mxu0
      %v1782 = vadd.f32 %v1768, %v1781
      %v1783 = vpop.f32.mrf.mxu0
      %v1784 = vadd.f32 %v1770, %v1783
      %1785 = vdwg.mxu0
      %v1786 = vadd.f32 %v1754, %v1378
      %v1787 = vadd.f32 %v1782, %v1379
      %v1788 = vadd.f32 %v1756, %v1380
      %v1789 = vadd.f32 %v1784, %v1381
      %vm1790 = vcmp.gt.f32.partialorder %v1786, 0.0
      %vm1791 = vcmp.gt.f32.partialorder %v1787, 0.0
      %vm1792 = vcmp.gt.f32.partialorder %v1788, 0.0
      %vm1793 = vcmp.gt.f32.partialorder %v1789, 0.0
      %v1794 = vmul.f32 %v1786, 0.01
      %v1795 = vmul.f32 %v1787, 0.01
      %v1796 = vmul.f32 %v1788, 0.01
      %v1797 = vmul.f32 %v1789, 0.01
      %v1798 = vsel %vm1790, %v1786, %v1794
      %v1799 = vsel %vm1791, %v1787, %v1795
      %v1800 = vsel %vm1792, %v1788, %v1796
      %v1801 = vsel %vm1793, %v1789, %v1797
      %v1802 = vld [vmem:[%s1 + $0x5a0] sm:$0xf]
      %v1803 = vld [vmem:[%s1 + $0x5b4] sm:$0xf]
      %v1804 = vld [vmem:[%s1 + $0x5c8] sm:$0xf]
      %v1805 = vld [vmem:[%s1 + $0x5dc] sm:$0xf]
      %v1806 = vld [vmem:[%s1 + $0x5f0] sm:$0xf]
      %v1807 = vld [vmem:[%s1 + $0x604] sm:$0xf]
      %v1808 = vld [vmem:[%s1 + $0x618] sm:$0xf]
      %v1809 = vld [vmem:[%s1 + $0x62c] sm:$0xf]
      %v1810 = vld [vmem:[%s1 + $0x640] sm:$0xf]
      %v1811 = vld [vmem:[%s1 + $0x654] sm:$0xf]
      %v1812 = vld [vmem:[%s1 + $0x668] sm:$0xf]
      %v1813 = vld [vmem:[%s1 + $0x67c] sm:$0xf]
      %v1814 = vld [vmem:[%s1 + $0x690] sm:$0xf]
      %v1815 = vld [vmem:[%s1 + $0x6a4] sm:$0xf]
      %v1816 = vld [vmem:[%s1 + $0x6b8] sm:$0xf]
      %v1817 = vld [vmem:[%s1 + $0x6cc] sm:$0xf]
      %v1818 = vld [vmem:[%s1 + $0x6e0] sm:$0xf]
      %v1819 = vld [vmem:[%s1 + $0x6f4] sm:$0xf]
      %v1820 = vld [vmem:[%s1 + $0x708] sm:$0xf]
      %v1821 = vld [vmem:[%s1 + $0x71c] sm:$0xf]
      %v1822 = vld [vmem:[%s1 + $0x730] sm:$0xf]
      %v1823 = vld [vmem:[%s1 + $0x744] sm:$0xf]
      %v1824 = vld [vmem:[%s1 + $0x758] sm:$0xf]
      %v1825 = vld [vmem:[%s1 + $0x76c] sm:$0xf]
      %v1826 = vld [vmem:[%s1 + $0x780] sm:$0xf]
      %v1827 = vld [vmem:[%s1 + $0x794] sm:$0xf]
      %v1828 = vld [vmem:[%s1 + $0x7a8] sm:$0xf]
      %v1829 = vld [vmem:[%s1 + $0x7bc] sm:$0xf]
      %v1830 = vld [vmem:[%s1 + $0x7d0] sm:$0xf]
      %v1831 = vld [vmem:[%s1 + $0x7e4] sm:$0xf]
      %v1832 = vld [vmem:[%s1 + $0x7f8] sm:$0xf]
      %v1833 = vld [vmem:[%s1 + $0x80c] sm:$0xf]
      %v1834 = vpack.c.bf16 %v1799, %v1798
      %v1835 = vpack.c.bf16 %v1801, %v1800
      %v1838 = vunpack.c.h.b16 %v1834
      %v1839 = vunpack.c.h.b16 %v1835
      %v1840 = vpack.c.b16 %v1839, %v1838
      %1841 = vrot.lane.b32.xlu0 %v1840, 17
      %v1842 = vpop.permute.xlu0 %1841
      %v1843 = vunpack.c.l.b16 %v1834
      %v1844 = vunpack.c.l.b16 %v1835
      %v1845 = vpack.c.b16 %v1844, %v1843
      %1846 = vrot.lane.b32.xlu0 %v1845, 17
      %v1847 = vpop.permute.xlu0 %1846
      %v1848 = vsel %vm346, %v1847, %v1842
      %v1852 = vsel %vm349, %v1842, %v1847
      %v1854 = vsel %vm815, %v1852, 0
      %v1855 = vsel %vm822, %v1848, 0
      %1856 = vrot.lane.b32.xlu0 %v1840, 16
      %v1857 = vpop.permute.xlu0 %1856
      %1858 = vrot.lane.b32.xlu0 %v1845, 16
      %v1859 = vpop.permute.xlu0 %1858
      %v1860 = vsel %vm378, %v1859, %v1857
      %v1864 = vsel %vm381, %v1857, %v1859
      %v1866 = vsel %vm849, %v1864, 0
      %v1867 = vsel %vm856, %v1860, 0
      %1868 = vrot.lane.b32.xlu0 %v1840, 15
      %v1869 = vpop.permute.xlu0 %1868
      %1870 = vrot.lane.b32.xlu0 %v1845, 15
      %v1871 = vpop.permute.xlu0 %1870
      %v1872 = vsel %vm410, %v1871, %v1869
      %v1876 = vsel %vm413, %v1869, %v1871
      %v1878 = vsel %vm883, %v1876, 0
      %v1879 = vsel %vm890, %v1872, 0
      %1880 = vrot.lane.b32.xlu0 %v1840, 1
      %v1881 = vpop.permute.xlu0 %1880
      %1882 = vrot.lane.b32.xlu0 %v1845, 1
      %v1883 = vpop.permute.xlu0 %1882
      %v1884 = vsel %vm442, %v1883, %v1881
      %v1888 = vsel %vm445, %v1881, %v1883
      %v1890 = vsel %vm917, %v1888, 0
      %v1891 = vsel %vm924, %v1884, 0
      %v1892 = vsel %vm931, %v1834, 0
      %v1893 = vsel %vm931, %v1835, 0
      %1894 = vrot.lane.b32.xlu0 %v1845, 127
      %v1895 = vpop.permute.xlu0 %1894
      %1896 = vrot.lane.b32.xlu0 %v1840, 127
      %v1897 = vpop.permute.xlu0 %1896
      %v1898 = vsel %vm476, %v1895, %v1897
      %v1902 = vsel %vm479, %v1897, %v1895
      %v1904 = vsel %vm958, %v1898, 0
      %v1905 = vsel %vm965, %v1902, 0
      %1906 = vrot.lane.b32.xlu0 %v1845, 113
      %v1907 = vpop.permute.xlu0 %1906
      %1908 = vrot.lane.b32.xlu0 %v1840, 113
      %v1909 = vpop.permute.xlu0 %1908
      %v1910 = vsel %vm508, %v1907, %v1909
      %v1914 = vsel %vm511, %v1909, %v1907
      %v1916 = vsel %vm992, %v1910, 0
      %v1917 = vsel %vm999, %v1914, 0
      %1918 = vrot.lane.b32.xlu0 %v1845, 112
      %v1919 = vpop.permute.xlu0 %1918
      %1920 = vrot.lane.b32.xlu0 %v1840, 112
      %v1921 = vpop.permute.xlu0 %1920
      %v1922 = vsel %vm540, %v1919, %v1921
      %v1926 = vsel %vm543, %v1921, %v1919
      %v1928 = vsel %vm1026, %v1922, 0
      %v1929 = vsel %vm1033, %v1926, 0
      %1930 = vrot.lane.b32.xlu0 %v1845, 111
      %v1931 = vpop.permute.xlu0 %1930
      %1932 = vrot.lane.b32.xlu0 %v1840, 111
      %v1933 = vpop.permute.xlu0 %1932
      %v1934 = vsel %vm572, %v1931, %v1933
      %v1938 = vsel %vm575, %v1933, %v1931
      %v1940 = vsel %vm1060, %v1934, 0
      %v1941 = vsel %vm1067, %v1938, 0
      %v1944 = vunpack.c.l.b16 %v1892
      %v1945 = vunpack.c.h.b16 %v1892
      %v1946 = vunpack.c.l.b16 %v1893
      %v1947 = vunpack.c.h.b16 %v1893
      %v1948 = vpack.c.b16 %v1946, %v1944
      %v1949 = vpack.c.b16 %v1947, %v1945
      %v1952 = vld [vmem:[%s1 + $0xc8] sm:$0xff]
      %v1953 = vld [vmem:[%s1 + $0xdc] sm:$0xff]
      %v1954 = vld [vmem:[%s1 + $0xf0] sm:$0xff]
      %v1955 = vld [vmem:[%s1 + $0x104] sm:$0xff]
      %v1960 = vunpack.c.l.b16 %v1952
      %v1961 = vunpack.c.h.b16 %v1952
      %v1962 = vunpack.c.l.b16 %v1953
      %v1963 = vunpack.c.h.b16 %v1953
      %v1964 = vunpack.c.l.b16 %v1954
      %v1965 = vunpack.c.h.b16 %v1954
      %v1966 = vunpack.c.l.b16 %v1955
      %v1967 = vunpack.c.h.b16 %v1955
      %v1968 = vpack.c.b16 %v1962, %v1960
      %v1969 = vpack.c.b16 %v1963, %v1961
      %v1970 = vpack.c.b16 %v1966, %v1964
      %v1971 = vpack.c.b16 %v1967, %v1965
      %v1975 = vsel %vm381, %v1969, 0
      %v1978 = vsel %vm381, %v1971, 0
      %1980 = vmatpush.bf16.msra.mxu0 %v1928
      %1981 = vmatpush.bf16.msra.mxu0 %v1916
      %1982 = vmatpush.bf16.msra.mxu0 %v1904
      %1983 = vmatpush.bf16.msra.mxu0 %v1948
      %1984 = vmatpush.bf16.msra.mxu0 %v1890
      %1985 = vmatpush.bf16.msra.mxu0 %v1878
      %1986 = vmatpush.bf16.msra.mxu0 %v1866
      %1987 = vmatpush.bf16.msra.mxu0 %v1854
      %1988 = vmatmul.bf16.gmra.mxu0 %v1968
      %v1989 = vpop.f32.mrf.mxu0
      %v1990 = vadd.f32 0.0, %v1989
      %v1991 = vpop.f32.mrf.mxu0
      %v1992 = vadd.f32 0.0, %v1991
      %1993 = vmatmul.bf16.gmra.mxu0 %v1970
      %v1994 = vpop.f32.mrf.mxu0
      %v1995 = vadd.f32 0.0, %v1994
      %v1996 = vpop.f32.mrf.mxu0
      %v1997 = vadd.f32 0.0, %v1996
      %1998 = vdwg.mxu0
      %1999 = vmatpush.bf16.msra.mxu0 0
      %2000 = vmatpush.bf16.msra.mxu0 0
      %2001 = vmatpush.bf16.msra.mxu0 0
      %2002 = vmatpush.bf16.msra.mxu0 0
      %2003 = vmatpush.bf16.msra.mxu0 0
      %2004 = vmatpush.bf16.msra.mxu0 0
      %2005 = vmatpush.bf16.msra.mxu0 0
      %2006 = vmatpush.bf16.msra.mxu0 %v1940
      %2007 = vmatmul.bf16.gmra.mxu0 %v1975
      %v2008 = vpop.f32.mrf.mxu0
      %v2009 = vadd.f32 %v1990, %v2008
      %v2010 = vpop.f32.mrf.mxu0
      %v2011 = vadd.f32 %v1992, %v2010
      %2012 = vmatmul.bf16.gmra.mxu0 %v1978
      %v2013 = vpop.f32.mrf.mxu0
      %v2014 = vadd.f32 %v1995, %v2013
      %v2015 = vpop.f32.mrf.mxu0
      %v2016 = vadd.f32 %v1997, %v2015
      %2017 = vdwg.mxu0
      %2018 = vmatpush.bf16.msra.mxu0 %v1929
      %2019 = vmatpush.bf16.msra.mxu0 %v1917
      %2020 = vmatpush.bf16.msra.mxu0 %v1905
      %2021 = vmatpush.bf16.msra.mxu0 %v1949
      %2022 = vmatpush.bf16.msra.mxu0 %v1891
      %2023 = vmatpush.bf16.msra.mxu0 %v1879
      %2024 = vmatpush.bf16.msra.mxu0 %v1867
      %2025 = vmatpush.bf16.msra.mxu0 %v1855
      %2026 = vmatmul.bf16.gmra.mxu0 %v1968
      %v2027 = vpop.f32.mrf.mxu0
      %v2028 = vadd.f32 0.0, %v2027
      %v2029 = vpop.f32.mrf.mxu0
      %v2030 = vadd.f32 0.0, %v2029
      %2031 = vmatmul.bf16.gmra.mxu0 %v1970
      %v2032 = vpop.f32.mrf.mxu0
      %v2033 = vadd.f32 0.0, %v2032
      %v2034 = vpop.f32.mrf.mxu0
      %v2035 = vadd.f32 0.0, %v2034
      %2036 = vdwg.mxu0
      %2037 = vmatpush.bf16.msra.mxu0 0
      %2038 = vmatpush.bf16.msra.mxu0 0
      %2039 = vmatpush.bf16.msra.mxu0 0
      %2040 = vmatpush.bf16.msra.mxu0 0
      %2041 = vmatpush.bf16.msra.mxu0 0
      %2042 = vmatpush.bf16.msra.mxu0 0
      %2043 = vmatpush.bf16.msra.mxu0 0
      %2044 = vmatpush.bf16.msra.mxu0 %v1941
      %2045 = vmatmul.bf16.gmra.mxu0 %v1975
      %v2046 = vpop.f32.mrf.mxu0
      %v2047 = vadd.f32 %v2028, %v2046
      %v2048 = vpop.f32.mrf.mxu0
      %v2049 = vadd.f32 %v2030, %v2048
      %2050 = vmatmul.bf16.gmra.mxu0 %v1978
      %v2051 = vpop.f32.mrf.mxu0
      %v2052 = vadd.f32 %v2033, %v2051
      %v2053 = vpop.f32.mrf.mxu0
      %v2054 = vadd.f32 %v2035, %v2053
      %2055 = vdwg.mxu0
      %v2056 = vpack.c.bf16 %v2011, %v2009
      %v2057 = vpack.c.bf16 %v2049, %v2047
      %v2058 = vpack.c.bf16 %v2016, %v2014
      %v2059 = vpack.c.bf16 %v2054, %v2052
      %v2060 = vld [vmem:[%s2] sm:$0xff]
      %v2061 = vld [vmem:[%s2 + $0x8] sm:$0xff]
      %v2062 = vld [vmem:[%s2 + $0x10] sm:$0xff]
      %v2063 = vld [vmem:[%s2 + $0x18] sm:$0xff]
      %2065 = vset.pattern.permute.xlu0 5
      %2066 = vperm.xlu0 %2065, %v2060
      %v2067 = vpop.permute.xlu0 %2066
      %2070 = vset.pattern.permute.xlu0 5
      %2071 = vperm.xlu0 %2070, %v2061
      %v2072 = vpop.permute.xlu0 %2071
      %2075 = vset.pattern.permute.xlu0 5
      %2076 = vperm.xlu0 %2075, %v2062
      %v2077 = vpop.permute.xlu0 %2076
      %2080 = vset.pattern.permute.xlu0 5
      %2081 = vperm.xlu0 %2080, %v2063
      %v2082 = vpop.permute.xlu0 %2081
      %v2116 = vunpack.c.l.b16 %v1802
      %v2117 = vunpack.c.l.b16 %v1803
      %v2118 = vunpack.c.l.b16 %v1804
      %v2119 = vunpack.c.l.b16 %v1805
      %v2120 = vunpack.c.l.b16 %v1806
      %v2121 = vunpack.c.l.b16 %v1807
      %v2122 = vunpack.c.l.b16 %v1808
      %v2123 = vunpack.c.l.b16 %v1809
      %v2124 = vunpack.c.l.b16 %v1810
      %v2125 = vunpack.c.l.b16 %v1811
      %v2126 = vunpack.c.l.b16 %v1812
      %v2127 = vunpack.c.l.b16 %v1813
      %v2128 = vunpack.c.l.b16 %v1814
      %v2129 = vunpack.c.l.b16 %v1815
      %v2130 = vunpack.c.l.b16 %v1816
      %v2131 = vunpack.c.l.b16 %v1817
      %v2132 = vunpack.c.l.b16 %v1818
      %v2133 = vunpack.c.l.b16 %v1819
      %v2134 = vunpack.c.l.b16 %v1820
      %v2135 = vunpack.c.l.b16 %v1821
      %v2136 = vunpack.c.l.b16 %v1822
      %v2137 = vunpack.c.l.b16 %v1823
      %v2138 = vunpack.c.l.b16 %v1824
      %v2139 = vunpack.c.l.b16 %v1825
      %v2140 = vunpack.c.l.b16 %v1826
      %v2141 = vunpack.c.l.b16 %v1827
      %v2142 = vunpack.c.l.b16 %v1828
      %v2143 = vunpack.c.l.b16 %v1829
      %v2144 = vunpack.c.l.b16 %v1830
      %v2145 = vunpack.c.l.b16 %v1831
      %v2146 = vunpack.c.l.b16 %v1832
      %v2147 = vunpack.c.l.b16 %v1833
      %v2148 = vpack.c.b16 %v2117, %v2116
      %v2149 = vpack.c.b16 %v2119, %v2118
      %v2150 = vpack.c.b16 %v2121, %v2120
      %v2151 = vpack.c.b16 %v2123, %v2122
      %v2152 = vpack.c.b16 %v2125, %v2124
      %v2153 = vpack.c.b16 %v2127, %v2126
      %v2154 = vpack.c.b16 %v2129, %v2128
      %v2155 = vpack.c.b16 %v2131, %v2130
      %v2156 = vpack.c.b16 %v2133, %v2132
      %v2157 = vpack.c.b16 %v2135, %v2134
      %v2158 = vpack.c.b16 %v2137, %v2136
      %v2159 = vpack.c.b16 %v2139, %v2138
      %v2160 = vpack.c.b16 %v2141, %v2140
      %v2161 = vpack.c.b16 %v2143, %v2142
      %v2162 = vpack.c.b16 %v2145, %v2144
      %v2163 = vpack.c.b16 %v2147, %v2146
      %2180 = vmatpush.bf16.msra.mxu0 %v2155
      %2181 = vmatpush.bf16.msra.mxu0 %v2154
      %2182 = vmatpush.bf16.msra.mxu0 %v2153
      %2183 = vmatpush.bf16.msra.mxu0 %v2152
      %2184 = vmatpush.bf16.msra.mxu0 %v2151
      %2185 = vmatpush.bf16.msra.mxu0 %v2150
      %2186 = vmatpush.bf16.msra.mxu0 %v2149
      %2187 = vmatpush.bf16.msra.mxu0 %v2148
      %2188 = vmatmul.bf16.gmra.mxu0 %v2056
      %v2189 = vpop.f32.mrf.mxu0
      %v2190 = vadd.f32 %v2067, %v2189
      %v2191 = vpop.f32.mrf.mxu0
      %v2192 = vadd.f32 %v2072, %v2191
      %2193 = vmatmul.bf16.gmra.mxu0 %v2058
      %v2194 = vpop.f32.mrf.mxu0
      %v2195 = vadd.f32 %v2077, %v2194
      %v2196 = vpop.f32.mrf.mxu0
      %v2197 = vadd.f32 %v2082, %v2196
      %2198 = vdwg.mxu0
      %2199 = vmatpush.bf16.msra.mxu0 %v2163
      %2200 = vmatpush.bf16.msra.mxu0 %v2162
      %2201 = vmatpush.bf16.msra.mxu0 %v2161
      %2202 = vmatpush.bf16.msra.mxu0 %v2160
      %2203 = vmatpush.bf16.msra.mxu0 %v2159
      %2204 = vmatpush.bf16.msra.mxu0 %v2158
      %2205 = vmatpush.bf16.msra.mxu0 %v2157
      %2206 = vmatpush.bf16.msra.mxu0 %v2156
      %2207 = vmatmul.bf16.gmra.mxu0 %v2057
      %v2208 = vpop.f32.mrf.mxu0
      %v2209 = vadd.f32 %v2190, %v2208
      %v2210 = vpop.f32.mrf.mxu0
      %v2211 = vadd.f32 %v2192, %v2210
      %2212 = vmatmul.bf16.gmra.mxu0 %v2059
      %v2213 = vpop.f32.mrf.mxu0
      %v2214 = vadd.f32 %v2195, %v2213
      %v2215 = vpop.f32.mrf.mxu0
      %v2216 = vadd.f32 %v2197, %v2215
      %2217 = vdwg.mxu0
      %vm2218 = vcmp.gt.f32.partialorder %v2209, 0.0
      %vm2219 = vcmp.gt.f32.partialorder %v2211, 0.0
      %vm2220 = vcmp.gt.f32.partialorder %v2214, 0.0
      %vm2221 = vcmp.gt.f32.partialorder %v2216, 0.0
      %v2222 = vmul.f32 %v2209, 0.01
      %v2223 = vmul.f32 %v2211, 0.01
      %v2224 = vmul.f32 %v2214, 0.01
      %v2225 = vmul.f32 %v2216, 0.01
      %v2226 = vsel %vm2218, %v2209, %v2222
      %v2227 = vsel %vm2219, %v2211, %v2223
      %v2228 = vsel %vm2220, %v2214, %v2224
      %v2229 = vsel %vm2221, %v2216, %v2225
      %v2230 = vpack.c.bf16 %v2226, %v2226
      %v2231 = vpack.c.bf16 %v2227, %v2227
      %v2232 = vpack.c.bf16 %v2228, %v2228
      %v2233 = vpack.c.bf16 %v2229, %v2229
      %v2238 = vunpack.c.l.b16 %v2230
      %v2239 = vunpack.c.l.b16 %v2231
      %v2240 = vunpack.c.l.b16 %v2232
      %v2241 = vunpack.c.l.b16 %v2233
      %v2242 = vpack.c.b16 %v2239, %v2238
      %v2243 = vpack.c.b16 %v2241, %v2240
      %2244 = vrot.lane.b32.xlu0 %v2242, 73
      %v2245 = vpop.permute.xlu0 %2244
      %2246 = vrot.lane.b32.xlu0 %v2243, 73
      %v2247 = vpop.permute.xlu0 %2246
      %2248 = vrot.lane.b32.xlu0 %v2242, 9
      %v2249 = vpop.permute.xlu0 %2248
      %2250 = vrot.lane.b32.xlu0 %v2243, 9
      %v2251 = vpop.permute.xlu0 %2250
      %v2254 = vsel %vm730, %v2245, %v2249
      %v2258 = vsel %vm730, %v2247, %v2251
      %v2260 = vsel %vm262, 1, 0
      %vm2261 = vcmp.eq.s32.totalorder %v2260, 1
      %vm2262 = vmpackc.low %vm2261, %vm2261
      %v2263 = vsel %vm2262, 65537, 0
      %v2264 = vperm.slane %v2263, 0
      %v2265 = vunpack.c.l.b16 %v2264
      %v2266 = vunpack.c.h.b16 %v2264
      %v2267 = vunpack.c.l.b16 0
      %v2268 = vunpack.c.h.b16 0
      %vm2269 = vcmp.ne.s32.totalorder %v2265, %v2267
      %vm2270 = vcmp.ne.s32.totalorder %v2266, %v2268
      %vm2271 = vmpackc.low %vm2270, %vm2269
      %v2272 = vsel %vm2271, %v2254, 0
      %v2273 = vsel %vm2271, %v2258, 0
      %2274 = vrot.lane.b32.xlu0 %v2242, 72
      %v2275 = vpop.permute.xlu0 %2274
      %2276 = vrot.lane.b32.xlu0 %v2243, 72
      %v2277 = vpop.permute.xlu0 %2276
      %2278 = vrot.lane.b32.xlu0 %v2242, 8
      %v2279 = vpop.permute.xlu0 %2278
      %2280 = vrot.lane.b32.xlu0 %v2243, 8
      %v2281 = vpop.permute.xlu0 %2280
      %vm2282 = vcmask 64512
      %v2285 = vsel %vm2282, %v2275, %v2279
      %v2289 = vsel %vm2282, %v2277, %v2281
      %v2291 = vsel %vm266, 1, 0
      %vm2292 = vcmp.eq.s32.totalorder %v2291, 1
      %vm2293 = vmpackc.low %vm2292, %vm2292
      %v2294 = vsel %vm2293, 65537, 0
      %v2295 = vperm.slane %v2294, 0
      %v2296 = vunpack.c.l.b16 %v2295
      %v2297 = vunpack.c.h.b16 %v2295
      %v2298 = vunpack.c.l.b16 0
      %v2299 = vunpack.c.h.b16 0
      %vm2300 = vcmp.ne.s32.totalorder %v2296, %v2298
      %vm2301 = vcmp.ne.s32.totalorder %v2297, %v2299
      %vm2302 = vmpackc.low %vm2301, %vm2300
      %v2303 = vsel %vm2302, %v2285, 0
      %v2304 = vsel %vm2302, %v2289, 0
      %2305 = vrot.lane.b32.xlu0 %v2242, 71
      %v2306 = vpop.permute.xlu0 %2305
      %2307 = vrot.lane.b32.xlu0 %v2243, 71
      %v2308 = vpop.permute.xlu0 %2307
      %2309 = vrot.lane.b32.xlu0 %v2242, 7
      %v2310 = vpop.permute.xlu0 %2309
      %2311 = vrot.lane.b32.xlu0 %v2243, 7
      %v2312 = vpop.permute.xlu0 %2311
      %vm2313 = vcmask 56320
      %v2316 = vsel %vm2313, %v2306, %v2310
      %v2320 = vsel %vm2313, %v2308, %v2312
      %v2322 = vsel %vm271, 1, 0
      %vm2323 = vcmp.eq.s32.totalorder %v2322, 1
      %vm2324 = vmpackc.low %vm2323, %vm2323
      %v2325 = vsel %vm2324, 65537, 0
      %v2326 = vperm.slane %v2325, 0
      %v2327 = vunpack.c.l.b16 %v2326
      %v2328 = vunpack.c.h.b16 %v2326
      %v2329 = vunpack.c.l.b16 0
      %v2330 = vunpack.c.h.b16 0
      %vm2331 = vcmp.ne.s32.totalorder %v2327, %v2329
      %vm2332 = vcmp.ne.s32.totalorder %v2328, %v2330
      %vm2333 = vmpackc.low %vm2332, %vm2331
      %v2334 = vsel %vm2333, %v2316, 0
      %v2335 = vsel %vm2333, %v2320, 0
      %2336 = vrot.lane.b32.xlu0 %v2242, 65
      %v2337 = vpop.permute.xlu0 %2336
      %2338 = vrot.lane.b32.xlu0 %v2243, 65
      %v2339 = vpop.permute.xlu0 %2338
      %2340 = vrot.lane.b32.xlu0 %v2242, 1
      %v2341 = vpop.permute.xlu0 %2340
      %2342 = vrot.lane.b32.xlu0 %v2243, 1
      %v2343 = vpop.permute.xlu0 %2342
      %v2346 = vsel %vm445, %v2337, %v2341
      %v2350 = vsel %vm445, %v2339, %v2343
      %v2352 = vsel %vm276, 1, 0
      %vm2353 = vcmp.eq.s32.totalorder %v2352, 1
      %vm2354 = vmpackc.low %vm2353, %vm2353
      %v2355 = vsel %vm2354, 65537, 0
      %v2356 = vperm.slane %v2355, 0
      %v2357 = vunpack.c.l.b16 %v2356
      %v2358 = vunpack.c.h.b16 %v2356
      %v2359 = vunpack.c.l.b16 0
      %v2360 = vunpack.c.h.b16 0
      %vm2361 = vcmp.ne.s32.totalorder %v2357, %v2359
      %vm2362 = vcmp.ne.s32.totalorder %v2358, %v2360
      %vm2363 = vmpackc.low %vm2362, %vm2361
      %v2364 = vsel %vm2363, %v2346, 0
      %v2365 = vsel %vm2363, %v2350, 0
      %v2366 = vsel %vm278, 1, 0
      %vm2367 = vcmp.eq.s32.totalorder %v2366, 1
      %vm2368 = vmpackc.low %vm2367, %vm2367
      %v2369 = vsel %vm2368, %v2230, 0
      %v2370 = vsel %vm2368, %v2231, 0
      %v2371 = vsel %vm2368, %v2232, 0
      %v2372 = vsel %vm2368, %v2233, 0
      %2373 = vrot.lane.b32.xlu0 %v2242, 127
      %v2374 = vpop.permute.xlu0 %2373
      %2375 = vrot.lane.b32.xlu0 %v2243, 127
      %v2376 = vpop.permute.xlu0 %2375
      %2377 = vrot.lane.b32.xlu0 %v2242, 63
      %v2378 = vpop.permute.xlu0 %2377
      %2379 = vrot.lane.b32.xlu0 %v2243, 63
      %v2380 = vpop.permute.xlu0 %2379
      %vm2381 = vcmask 515072
      %v2384 = vsel %vm2381, %v2374, %v2378
      %v2388 = vsel %vm2381, %v2376, %v2380
      %v2390 = vsel %vm280, 1, 0
      %vm2391 = vcmp.eq.s32.totalorder %v2390, 1
      %vm2392 = vmpackc.low %vm2391, %vm2391
      %v2393 = vsel %vm2392, 65537, 0
      %v2394 = vperm.slane %v2393, 0
      %v2395 = vunpack.c.l.b16 %v2394
      %v2396 = vunpack.c.h.b16 %v2394
      %v2397 = vunpack.c.l.b16 0
      %v2398 = vunpack.c.h.b16 0
      %vm2399 = vcmp.ne.s32.totalorder %v2395, %v2397
      %vm2400 = vcmp.ne.s32.totalorder %v2396, %v2398
      %vm2401 = vmpackc.low %vm2400, %vm2399
      %v2402 = vsel %vm2401, %v2384, 0
      %v2403 = vsel %vm2401, %v2388, 0
      %2404 = vrot.lane.b32.xlu0 %v2242, 121
      %v2405 = vpop.permute.xlu0 %2404
      %2406 = vrot.lane.b32.xlu0 %v2243, 121
      %v2407 = vpop.permute.xlu0 %2406
      %2408 = vrot.lane.b32.xlu0 %v2242, 57
      %v2409 = vpop.permute.xlu0 %2408
      %2410 = vrot.lane.b32.xlu0 %v2243, 57
      %v2411 = vpop.permute.xlu0 %2410
      %vm2412 = vcmask 465920
      %v2415 = vsel %vm2412, %v2405, %v2409
      %v2419 = vsel %vm2412, %v2407, %v2411
      %v2421 = vsel %vm286, 1, 0
      %vm2422 = vcmp.eq.s32.totalorder %v2421, 1
      %vm2423 = vmpackc.low %vm2422, %vm2422
      %v2424 = vsel %vm2423, 65537, 0
      %v2425 = vperm.slane %v2424, 0
      %v2426 = vunpack.c.l.b16 %v2425
      %v2427 = vunpack.c.h.b16 %v2425
      %v2428 = vunpack.c.l.b16 0
      %v2429 = vunpack.c.h.b16 0
      %vm2430 = vcmp.ne.s32.totalorder %v2426, %v2428
      %vm2431 = vcmp.ne.s32.totalorder %v2427, %v2429
      %vm2432 = vmpackc.low %vm2431, %vm2430
      %v2433 = vsel %vm2432, %v2415, 0
      %v2434 = vsel %vm2432, %v2419, 0
      %2435 = vrot.lane.b32.xlu0 %v2242, 120
      %v2436 = vpop.permute.xlu0 %2435
      %2437 = vrot.lane.b32.xlu0 %v2243, 120
      %v2438 = vpop.permute.xlu0 %2437
      %2439 = vrot.lane.b32.xlu0 %v2242, 56
      %v2440 = vpop.permute.xlu0 %2439
      %2441 = vrot.lane.b32.xlu0 %v2243, 56
      %v2442 = vpop.permute.xlu0 %2441
      %vm2443 = vcmask 457728
      %v2446 = vsel %vm2443, %v2436, %v2440
      %v2450 = vsel %vm2443, %v2438, %v2442
      %v2452 = vsel %vm288, 1, 0
      %vm2453 = vcmp.eq.s32.totalorder %v2452, 1
      %vm2454 = vmpackc.low %vm2453, %vm2453
      %v2455 = vsel %vm2454, 65537, 0
      %v2456 = vperm.slane %v2455, 0
      %v2457 = vunpack.c.l.b16 %v2456
      %v2458 = vunpack.c.h.b16 %v2456
      %v2459 = vunpack.c.l.b16 0
      %v2460 = vunpack.c.h.b16 0
      %vm2461 = vcmp.ne.s32.totalorder %v2457, %v2459
      %vm2462 = vcmp.ne.s32.totalorder %v2458, %v2460
      %vm2463 = vmpackc.low %vm2462, %vm2461
      %v2464 = vsel %vm2463, %v2446, 0
      %v2465 = vsel %vm2463, %v2450, 0
      %2466 = vrot.lane.b32.xlu0 %v2242, 119
      %v2467 = vpop.permute.xlu0 %2466
      %2468 = vrot.lane.b32.xlu0 %v2243, 119
      %v2469 = vpop.permute.xlu0 %2468
      %2470 = vrot.lane.b32.xlu0 %v2242, 55
      %v2471 = vpop.permute.xlu0 %2470
      %2472 = vrot.lane.b32.xlu0 %v2243, 55
      %v2473 = vpop.permute.xlu0 %2472
      %vm2474 = vcmask 449536
      %v2477 = vsel %vm2474, %v2467, %v2471
      %v2481 = vsel %vm2474, %v2469, %v2473
      %v2483 = vsel %vm290, 1, 0
      %vm2484 = vcmp.eq.s32.totalorder %v2483, 1
      %vm2485 = vmpackc.low %vm2484, %vm2484
      %v2486 = vsel %vm2485, 65537, 0
      %v2487 = vperm.slane %v2486, 0
      %v2488 = vunpack.c.l.b16 %v2487
      %v2489 = vunpack.c.h.b16 %v2487
      %v2490 = vunpack.c.l.b16 0
      %v2491 = vunpack.c.h.b16 0
      %vm2492 = vcmp.ne.s32.totalorder %v2488, %v2490
      %vm2493 = vcmp.ne.s32.totalorder %v2489, %v2491
      %vm2494 = vmpackc.low %vm2493, %vm2492
      %v2495 = vsel %vm2494, %v2477, 0
      %v2496 = vsel %vm2494, %v2481, 0
      %v2501 = vunpack.c.l.b16 %v2369
      %v2502 = vunpack.c.l.b16 %v2370
      %v2503 = vunpack.c.l.b16 %v2371
      %v2504 = vunpack.c.l.b16 %v2372
      %v2505 = vpack.c.b16 %v2502, %v2501
      %v2506 = vpack.c.b16 %v2504, %v2503
      %v2509 = vld [vmem:[%s1 + $0x118] sm:$0xff]
      %v2510 = vld [vmem:[%s1 + $0x120] sm:$0xf]
      %v2511 = vld [vmem:[%s1 + $0x12c] sm:$0xff]
      %v2512 = vld [vmem:[%s1 + $0x134] sm:$0xf]
      %v2513 = vld [vmem:[%s1 + $0x140] sm:$0xff]
      %v2514 = vld [vmem:[%s1 + $0x148] sm:$0xf]
      %v2515 = vld [vmem:[%s1 + $0x154] sm:$0xff]
      %v2516 = vld [vmem:[%s1 + $0x15c] sm:$0xf]
      %2517 = vset.pattern.permute.xlu0 6
      %2518 = vperm.xlu0 %2517, %v2060
      %v2519 = vpop.permute.xlu0 %2518
      %2521 = vset.pattern.permute.xlu0 6
      %2522 = vperm.xlu0 %2521, %v2061
      %v2523 = vpop.permute.xlu0 %2522
      %2525 = vset.pattern.permute.xlu0 6
      %2526 = vperm.xlu0 %2525, %v2062
      %v2527 = vpop.permute.xlu0 %2526
      %2529 = vset.pattern.permute.xlu0 6
      %2530 = vperm.xlu0 %2529, %v2063
      %v2531 = vpop.permute.xlu0 %2530
      %v2541 = vunpack.c.l.b16 %v2509
      %v2542 = vunpack.c.h.b16 %v2509
      %v2543 = vunpack.c.l.b16 %v2510
      %v2544 = vunpack.c.l.b16 %v2511
      %v2545 = vunpack.c.h.b16 %v2511
      %v2546 = vunpack.c.l.b16 %v2512
      %v2547 = vunpack.c.l.b16 %v2513
      %v2548 = vunpack.c.h.b16 %v2513
      %v2549 = vunpack.c.l.b16 %v2514
      %v2550 = vunpack.c.l.b16 %v2515
      %v2551 = vunpack.c.h.b16 %v2515
      %v2552 = vunpack.c.l.b16 %v2516
      %v2553 = vpack.c.b16 %v2544, %v2541
      %v2554 = vpack.c.b16 %v2545, %v2542
      %v2555 = vpack.c.b16 %v2546, %v2543
      %v2556 = vpack.c.b16 %v2550, %v2547
      %v2557 = vpack.c.b16 %v2551, %v2548
      %v2558 = vpack.c.b16 %v2552, %v2549
      %vm2563 = vcmask 261120
      %v2565 = vsel %vm2563, %v2555, 0
      %v2568 = vsel %vm2563, %v2558, 0
      %2570 = vmatpush.bf16.msra.mxu0 %v2365
      %2571 = vmatpush.bf16.msra.mxu0 %v2364
      %2572 = vmatpush.bf16.msra.mxu0 %v2335
      %2573 = vmatpush.bf16.msra.mxu0 %v2334
      %2574 = vmatpush.bf16.msra.mxu0 %v2304
      %2575 = vmatpush.bf16.msra.mxu0 %v2303
      %2576 = vmatpush.bf16.msra.mxu0 %v2273
      %2577 = vmatpush.bf16.msra.mxu0 %v2272
      %2578 = vmatmul.bf16.gmra.mxu0 %v2553
      %v2579 = vpop.f32.mrf.mxu0
      %v2580 = vadd.f32 %v2519, %v2579
      %v2581 = vpop.f32.mrf.mxu0
      %v2582 = vadd.f32 %v2523, %v2581
      %2583 = vmatmul.bf16.gmra.mxu0 %v2556
      %v2584 = vpop.f32.mrf.mxu0
      %v2585 = vadd.f32 %v2527, %v2584
      %v2586 = vpop.f32.mrf.mxu0
      %v2587 = vadd.f32 %v2531, %v2586
      %2588 = vdwg.mxu0
      %2589 = vmatpush.bf16.msra.mxu0 %v2465
      %2590 = vmatpush.bf16.msra.mxu0 %v2464
      %2591 = vmatpush.bf16.msra.mxu0 %v2434
      %2592 = vmatpush.bf16.msra.mxu0 %v2433
      %2593 = vmatpush.bf16.msra.mxu0 %v2403
      %2594 = vmatpush.bf16.msra.mxu0 %v2402
      %2595 = vmatpush.bf16.msra.mxu0 %v2506
      %2596 = vmatpush.bf16.msra.mxu0 %v2505
      %2597 = vmatmul.bf16.gmra.mxu0 %v2554
      %v2598 = vpop.f32.mrf.mxu0
      %v2599 = vadd.f32 %v2580, %v2598
      %v2600 = vpop.f32.mrf.mxu0
      %v2601 = vadd.f32 %v2582, %v2600
      %2602 = vmatmul.bf16.gmra.mxu0 %v2557
      %v2603 = vpop.f32.mrf.mxu0
      %v2604 = vadd.f32 %v2585, %v2603
      %v2605 = vpop.f32.mrf.mxu0
      %v2606 = vadd.f32 %v2587, %v2605
      %2607 = vdwg.mxu0
      %2608 = vmatpush.bf16.msra.mxu0 0
      %2609 = vmatpush.bf16.msra.mxu0 0
      %2610 = vmatpush.bf16.msra.mxu0 0
      %2611 = vmatpush.bf16.msra.mxu0 0
      %2612 = vmatpush.bf16.msra.mxu0 0
      %2613 = vmatpush.bf16.msra.mxu0 0
      %2614 = vmatpush.bf16.msra.mxu0 %v2496
      %2615 = vmatpush.bf16.msra.mxu0 %v2495
      %2616 = vmatmul.bf16.gmra.mxu0 %v2565
      %v2617 = vpop.f32.mrf.mxu0
      %v2618 = vadd.f32 %v2599, %v2617
      %v2619 = vpop.f32.mrf.mxu0
      %v2620 = vadd.f32 %v2601, %v2619
      %2621 = vmatmul.bf16.gmra.mxu0 %v2568
      %v2622 = vpop.f32.mrf.mxu0
      %v2623 = vadd.f32 %v2604, %v2622
      %v2624 = vpop.f32.mrf.mxu0
      %v2625 = vadd.f32 %v2606, %v2624
      %2626 = vdwg.mxu0
      %2629 = vmatpush.bf16.msra.mxu0 %v2155
      %2630 = vmatpush.bf16.msra.mxu0 %v2154
      %2631 = vmatpush.bf16.msra.mxu0 %v2153
      %2632 = vmatpush.bf16.msra.mxu0 %v2152
      %2633 = vmatpush.bf16.msra.mxu0 %v2151
      %2634 = vmatpush.bf16.msra.mxu0 %v2150
      %2635 = vmatpush.bf16.msra.mxu0 %v2149
      %2636 = vmatpush.bf16.msra.mxu0 %v2148
      %2637 = vmatmul.bf16.gmra.mxu0 %v1845
      %v2638 = vpop.f32.mrf.mxu0
      %v2639 = vadd.f32 0.0, %v2638
      %v2640 = vpop.f32.mrf.mxu0
      %v2641 = vadd.f32 0.0, %v2640
      %2642 = vdwg.mxu0
      %2643 = vmatpush.bf16.msra.mxu0 %v2163
      %2644 = vmatpush.bf16.msra.mxu0 %v2162
      %2645 = vmatpush.bf16.msra.mxu0 %v2161
      %2646 = vmatpush.bf16.msra.mxu0 %v2160
      %2647 = vmatpush.bf16.msra.mxu0 %v2159
      %2648 = vmatpush.bf16.msra.mxu0 %v2158
      %2649 = vmatpush.bf16.msra.mxu0 %v2157
      %2650 = vmatpush.bf16.msra.mxu0 %v2156
      %2651 = vmatmul.bf16.gmra.mxu0 %v1840
      %v2652 = vpop.f32.mrf.mxu0
      %v2653 = vadd.f32 %v2639, %v2652
      %v2654 = vpop.f32.mrf.mxu0
      %v2655 = vadd.f32 %v2641, %v2654
      %2656 = vdwg.mxu0
      %v2657 = vld [vmem:[%s1 + $0x168] sm:$0xf]
      %v2658 = vld [vmem:[%s1 + $0x17c] sm:$0xf]
      %v2659 = vld [vmem:[%s1 + $0x190] sm:$0xf]
      %v2660 = vld [vmem:[%s1 + $0x1a4] sm:$0xf]
      %v2661 = vpack.c.bf16 %v2655, %v2653
      %2662 = vset.pattern.permute.xlu0 7
      %2663 = vperm.xlu0 %2662, %v2060
      %v2664 = vpop.permute.xlu0 %2663
      %2666 = vset.pattern.permute.xlu0 7
      %2667 = vperm.xlu0 %2666, %v2061
      %v2668 = vpop.permute.xlu0 %2667
      %2670 = vset.pattern.permute.xlu0 7
      %2671 = vperm.xlu0 %2670, %v2062
      %v2672 = vpop.permute.xlu0 %2671
      %2674 = vset.pattern.permute.xlu0 7
      %2675 = vperm.xlu0 %2674, %v2063
      %v2676 = vpop.permute.xlu0 %2675
      %v2682 = vunpack.c.l.b16 %v2657
      %v2683 = vunpack.c.l.b16 %v2658
      %v2684 = vunpack.c.l.b16 %v2659
      %v2685 = vunpack.c.l.b16 %v2660
      %v2686 = vpack.c.b16 %v2683, %v2682
      %v2687 = vpack.c.b16 %v2685, %v2684
      %v2689 = vsel %vm381, %v2686, 0
      %v2692 = vsel %vm381, %v2687, 0
      %2694 = vmatpush.bf16.msra.mxu0 0
      %2695 = vmatpush.bf16.msra.mxu0 0
      %2696 = vmatpush.bf16.msra.mxu0 0
      %2697 = vmatpush.bf16.msra.mxu0 0
      %2698 = vmatpush.bf16.msra.mxu0 0
      %2699 = vmatpush.bf16.msra.mxu0 0
      %2700 = vmatpush.bf16.msra.mxu0 0
      %2701 = vmatpush.bf16.msra.mxu0 %v2661
      %2702 = vmatmul.bf16.gmra.mxu0 %v2689
      %v2703 = vpop.f32.mrf.mxu0
      %v2704 = vadd.f32 %v2664, %v2703
      %v2705 = vpop.f32.mrf.mxu0
      %v2706 = vadd.f32 %v2668, %v2705
      %2707 = vmatmul.bf16.gmra.mxu0 %v2692
      %v2708 = vpop.f32.mrf.mxu0
      %v2709 = vadd.f32 %v2672, %v2708
      %v2710 = vpop.f32.mrf.mxu0
      %v2711 = vadd.f32 %v2676, %v2710
      %2712 = vdwg.mxu0
      %v2713 = vadd.f32 %v2618, %v2704
      %v2714 = vadd.f32 %v2620, %v2706
      %v2715 = vadd.f32 %v2623, %v2709
      %v2716 = vadd.f32 %v2625, %v2711
      %vm2717 = vcmp.gt.f32.partialorder %v2713, 0.0
      %vm2718 = vcmp.gt.f32.partialorder %v2714, 0.0
      %vm2719 = vcmp.gt.f32.partialorder %v2715, 0.0
      %vm2720 = vcmp.gt.f32.partialorder %v2716, 0.0
      %v2721 = vmul.f32 %v2713, 0.01
      %v2722 = vmul.f32 %v2714, 0.01
      %v2723 = vmul.f32 %v2715, 0.01
      %v2724 = vmul.f32 %v2716, 0.01
      %v2725 = vsel %vm2717, %v2713, %v2721
      %v2726 = vsel %vm2718, %v2714, %v2722
      %v2727 = vsel %vm2719, %v2715, %v2723
      %v2728 = vsel %vm2720, %v2716, %v2724
      %v2729 = vpack.c.bf16 %v2725, %v2725
      %v2730 = vpack.c.bf16 %v2726, %v2726
      %v2731 = vpack.c.bf16 %v2727, %v2727
      %v2732 = vpack.c.bf16 %v2728, %v2728
      %v2737 = vunpack.c.l.b16 %v2729
      %v2738 = vunpack.c.l.b16 %v2730
      %v2739 = vunpack.c.l.b16 %v2731
      %v2740 = vunpack.c.l.b16 %v2732
      %v2741 = vpack.c.b16 %v2738, %v2737
      %v2742 = vpack.c.b16 %v2740, %v2739
      %2743 = vrot.lane.b32.xlu0 %v2741, 73
      %v2744 = vpop.permute.xlu0 %2743
      %2745 = vrot.lane.b32.xlu0 %v2742, 73
      %v2746 = vpop.permute.xlu0 %2745
      %2747 = vrot.lane.b32.xlu0 %v2741, 9
      %v2748 = vpop.permute.xlu0 %2747
      %2749 = vrot.lane.b32.xlu0 %v2742, 9
      %v2750 = vpop.permute.xlu0 %2749
      %v2753 = vsel %vm730, %v2744, %v2748
      %v2757 = vsel %vm730, %v2746, %v2750
      %v2759 = vsel %vm2271, %v2753, 0
      %v2760 = vsel %vm2271, %v2757, 0
      %2761 = vrot.lane.b32.xlu0 %v2741, 72
      %v2762 = vpop.permute.xlu0 %2761
      %2763 = vrot.lane.b32.xlu0 %v2742, 72
      %v2764 = vpop.permute.xlu0 %2763
      %2765 = vrot.lane.b32.xlu0 %v2741, 8
      %v2766 = vpop.permute.xlu0 %2765
      %2767 = vrot.lane.b32.xlu0 %v2742, 8
      %v2768 = vpop.permute.xlu0 %2767
      %v2771 = vsel %vm2282, %v2762, %v2766
      %v2775 = vsel %vm2282, %v2764, %v2768
      %v2777 = vsel %vm2302, %v2771, 0
      %v2778 = vsel %vm2302, %v2775, 0
      %2779 = vrot.lane.b32.xlu0 %v2741, 71
      %v2780 = vpop.permute.xlu0 %2779
      %2781 = vrot.lane.b32.xlu0 %v2742, 71
      %v2782 = vpop.permute.xlu0 %2781
      %2783 = vrot.lane.b32.xlu0 %v2741, 7
      %v2784 = vpop.permute.xlu0 %2783
      %2785 = vrot.lane.b32.xlu0 %v2742, 7
      %v2786 = vpop.permute.xlu0 %2785
      %v2789 = vsel %vm2313, %v2780, %v2784
      %v2793 = vsel %vm2313, %v2782, %v2786
      %v2795 = vsel %vm2333, %v2789, 0
      %v2796 = vsel %vm2333, %v2793, 0
      %2797 = vrot.lane.b32.xlu0 %v2741, 65
      %v2798 = vpop.permute.xlu0 %2797
      %2799 = vrot.lane.b32.xlu0 %v2742, 65
      %v2800 = vpop.permute.xlu0 %2799
      %2801 = vrot.lane.b32.xlu0 %v2741, 1
      %v2802 = vpop.permute.xlu0 %2801
      %2803 = vrot.lane.b32.xlu0 %v2742, 1
      %v2804 = vpop.permute.xlu0 %2803
      %v2807 = vsel %vm445, %v2798, %v2802
      %v2811 = vsel %vm445, %v2800, %v2804
      %v2813 = vsel %vm2363, %v2807, 0
      %v2814 = vsel %vm2363, %v2811, 0
      %v2815 = vsel %vm2368, %v2729, 0
      %v2816 = vsel %vm2368, %v2730, 0
      %v2817 = vsel %vm2368, %v2731, 0
      %v2818 = vsel %vm2368, %v2732, 0
      %2819 = vrot.lane.b32.xlu0 %v2741, 127
      %v2820 = vpop.permute.xlu0 %2819
      %2821 = vrot.lane.b32.xlu0 %v2742, 127
      %v2822 = vpop.permute.xlu0 %2821
      %2823 = vrot.lane.b32.xlu0 %v2741, 63
      %v2824 = vpop.permute.xlu0 %2823
      %2825 = vrot.lane.b32.xlu0 %v2742, 63
      %v2826 = vpop.permute.xlu0 %2825
      %v2829 = vsel %vm2381, %v2820, %v2824
      %v2833 = vsel %vm2381, %v2822, %v2826
      %v2835 = vsel %vm2401, %v2829, 0
      %v2836 = vsel %vm2401, %v2833, 0
      %2837 = vrot.lane.b32.xlu0 %v2741, 121
      %v2838 = vpop.permute.xlu0 %2837
      %2839 = vrot.lane.b32.xlu0 %v2742, 121
      %v2840 = vpop.permute.xlu0 %2839
      %2841 = vrot.lane.b32.xlu0 %v2741, 57
      %v2842 = vpop.permute.xlu0 %2841
      %2843 = vrot.lane.b32.xlu0 %v2742, 57
      %v2844 = vpop.permute.xlu0 %2843
      %v2847 = vsel %vm2412, %v2838, %v2842
      %v2851 = vsel %vm2412, %v2840, %v2844
      %v2853 = vsel %vm2432, %v2847, 0
      %v2854 = vsel %vm2432, %v2851, 0
      %2855 = vrot.lane.b32.xlu0 %v2741, 120
      %v2856 = vpop.permute.xlu0 %2855
      %2857 = vrot.lane.b32.xlu0 %v2742, 120
      %v2858 = vpop.permute.xlu0 %2857
      %2859 = vrot.lane.b32.xlu0 %v2741, 56
      %v2860 = vpop.permute.xlu0 %2859
      %2861 = vrot.lane.b32.xlu0 %v2742, 56
      %v2862 = vpop.permute.xlu0 %2861
      %v2865 = vsel %vm2443, %v2856, %v2860
      %v2869 = vsel %vm2443, %v2858, %v2862
      %v2871 = vsel %vm2463, %v2865, 0
      %v2872 = vsel %vm2463, %v2869, 0
      %2873 = vrot.lane.b32.xlu0 %v2741, 119
      %v2874 = vpop.permute.xlu0 %2873
      %2875 = vrot.lane.b32.xlu0 %v2742, 119
      %v2876 = vpop.permute.xlu0 %2875
      %2877 = vrot.lane.b32.xlu0 %v2741, 55
      %v2878 = vpop.permute.xlu0 %2877
      %2879 = vrot.lane.b32.xlu0 %v2742, 55
      %v2880 = vpop.permute.xlu0 %2879
      %v2883 = vsel %vm2474, %v2874, %v2878
      %v2887 = vsel %vm2474, %v2876, %v2880
      %v2889 = vsel %vm2494, %v2883, 0
      %v2890 = vsel %vm2494, %v2887, 0
      %v2895 = vunpack.c.l.b16 %v2815
      %v2896 = vunpack.c.l.b16 %v2816
      %v2897 = vunpack.c.l.b16 %v2817
      %v2898 = vunpack.c.l.b16 %v2818
      %v2899 = vpack.c.b16 %v2896, %v2895
      %v2900 = vpack.c.b16 %v2898, %v2897
      %v2903 = vld [vmem:[%s1 + $0x1b8] sm:$0xff]
      %v2904 = vld [vmem:[%s1 + $0x1c0] sm:$0xf]
      %v2905 = vld [vmem:[%s1 + $0x1cc] sm:$0xff]
      %v2906 = vld [vmem:[%s1 + $0x1d4] sm:$0xf]
      %v2907 = vld [vmem:[%s1 + $0x1e0] sm:$0xff]
      %v2908 = vld [vmem:[%s1 + $0x1e8] sm:$0xf]
      %v2909 = vld [vmem:[%s1 + $0x1f4] sm:$0xff]
      %v2910 = vld [vmem:[%s1 + $0x1fc] sm:$0xf]
      %2911 = vset.pattern.permute.xlu0 8
      %2912 = vperm.xlu0 %2911, %v2060
      %v2913 = vpop.permute.xlu0 %2912
      %2915 = vset.pattern.permute.xlu0 8
      %2916 = vperm.xlu0 %2915, %v2061
      %v2917 = vpop.permute.xlu0 %2916
      %2919 = vset.pattern.permute.xlu0 8
      %2920 = vperm.xlu0 %2919, %v2062
      %v2921 = vpop.permute.xlu0 %2920
      %2923 = vset.pattern.permute.xlu0 8
      %2924 = vperm.xlu0 %2923, %v2063
      %v2925 = vpop.permute.xlu0 %2924
      %v2935 = vunpack.c.l.b16 %v2903
      %v2936 = vunpack.c.h.b16 %v2903
      %v2937 = vunpack.c.l.b16 %v2904
      %v2938 = vunpack.c.l.b16 %v2905
      %v2939 = vunpack.c.h.b16 %v2905
      %v2940 = vunpack.c.l.b16 %v2906
      %v2941 = vunpack.c.l.b16 %v2907
      %v2942 = vunpack.c.h.b16 %v2907
      %v2943 = vunpack.c.l.b16 %v2908
      %v2944 = vunpack.c.l.b16 %v2909
      %v2945 = vunpack.c.h.b16 %v2909
      %v2946 = vunpack.c.l.b16 %v2910
      %v2947 = vpack.c.b16 %v2938, %v2935
      %v2948 = vpack.c.b16 %v2939, %v2936
      %v2949 = vpack.c.b16 %v2940, %v2937
      %v2950 = vpack.c.b16 %v2944, %v2941
      %v2951 = vpack.c.b16 %v2945, %v2942
      %v2952 = vpack.c.b16 %v2946, %v2943
      %v2958 = vsel %vm2563, %v2949, 0
      %v2961 = vsel %vm2563, %v2952, 0
      %2963 = vmatpush.bf16.msra.mxu0 %v2814
      %2964 = vmatpush.bf16.msra.mxu0 %v2813
      %2965 = vmatpush.bf16.msra.mxu0 %v2796
      %2966 = vmatpush.bf16.msra.mxu0 %v2795
      %2967 = vmatpush.bf16.msra.mxu0 %v2778
      %2968 = vmatpush.bf16.msra.mxu0 %v2777
      %2969 = vmatpush.bf16.msra.mxu0 %v2760
      %2970 = vmatpush.bf16.msra.mxu0 %v2759
      %2971 = vmatmul.bf16.gmra.mxu0 %v2947
      %v2972 = vpop.f32.mrf.mxu0
      %v2973 = vadd.f32 %v2913, %v2972
      %v2974 = vpop.f32.mrf.mxu0
      %v2975 = vadd.f32 %v2917, %v2974
      %2976 = vmatmul.bf16.gmra.mxu0 %v2950
      %v2977 = vpop.f32.mrf.mxu0
      %v2978 = vadd.f32 %v2921, %v2977
      %v2979 = vpop.f32.mrf.mxu0
      %v2980 = vadd.f32 %v2925, %v2979
      %2981 = vdwg.mxu0
      %2982 = vmatpush.bf16.msra.mxu0 %v2872
      %2983 = vmatpush.bf16.msra.mxu0 %v2871
      %2984 = vmatpush.bf16.msra.mxu0 %v2854
      %2985 = vmatpush.bf16.msra.mxu0 %v2853
      %2986 = vmatpush.bf16.msra.mxu0 %v2836
      %2987 = vmatpush.bf16.msra.mxu0 %v2835
      %2988 = vmatpush.bf16.msra.mxu0 %v2900
      %2989 = vmatpush.bf16.msra.mxu0 %v2899
      %2990 = vmatmul.bf16.gmra.mxu0 %v2948
      %v2991 = vpop.f32.mrf.mxu0
      %v2992 = vadd.f32 %v2973, %v2991
      %v2993 = vpop.f32.mrf.mxu0
      %v2994 = vadd.f32 %v2975, %v2993
      %2995 = vmatmul.bf16.gmra.mxu0 %v2951
      %v2996 = vpop.f32.mrf.mxu0
      %v2997 = vadd.f32 %v2978, %v2996
      %v2998 = vpop.f32.mrf.mxu0
      %v2999 = vadd.f32 %v2980, %v2998
      %3000 = vdwg.mxu0
      %3001 = vmatpush.bf16.msra.mxu0 0
      %3002 = vmatpush.bf16.msra.mxu0 0
      %3003 = vmatpush.bf16.msra.mxu0 0
      %3004 = vmatpush.bf16.msra.mxu0 0
      %3005 = vmatpush.bf16.msra.mxu0 0
      %3006 = vmatpush.bf16.msra.mxu0 0
      %3007 = vmatpush.bf16.msra.mxu0 %v2890
      %3008 = vmatpush.bf16.msra.mxu0 %v2889
      %3009 = vmatmul.bf16.gmra.mxu0 %v2958
      %v3010 = vpop.f32.mrf.mxu0
      %v3011 = vadd.f32 %v2992, %v3010
      %v3012 = vpop.f32.mrf.mxu0
      %v3013 = vadd.f32 %v2994, %v3012
      %3014 = vmatmul.bf16.gmra.mxu0 %v2961
      %v3015 = vpop.f32.mrf.mxu0
      %v3016 = vadd.f32 %v2997, %v3015
      %v3017 = vpop.f32.mrf.mxu0
      %v3018 = vadd.f32 %v2999, %v3017
      %3019 = vdwg.mxu0
      %vm3020 = vcmp.gt.f32.partialorder %v3011, 0.0
      %vm3021 = vcmp.gt.f32.partialorder %v3013, 0.0
      %vm3022 = vcmp.gt.f32.partialorder %v3016, 0.0
      %vm3023 = vcmp.gt.f32.partialorder %v3018, 0.0
      %v3024 = vmul.f32 %v3011, 0.01
      %v3025 = vmul.f32 %v3013, 0.01
      %v3026 = vmul.f32 %v3016, 0.01
      %v3027 = vmul.f32 %v3018, 0.01
      %v3028 = vsel %vm3020, %v3011, %v3024
      %v3029 = vsel %vm3021, %v3013, %v3025
      %v3030 = vsel %vm3022, %v3016, %v3026
      %v3031 = vsel %vm3023, %v3018, %v3027
      %v3032 = vpack.c.bf16 %v3028, %v3028
      %v3033 = vpack.c.bf16 %v3029, %v3029
      %v3034 = vpack.c.bf16 %v3030, %v3030
      %v3035 = vpack.c.bf16 %v3031, %v3031
      %v3040 = vunpack.c.l.b16 %v3032
      %v3041 = vunpack.c.l.b16 %v3033
      %v3042 = vunpack.c.l.b16 %v3034
      %v3043 = vunpack.c.l.b16 %v3035
      %v3044 = vpack.c.b16 %v3041, %v3040
      %v3045 = vpack.c.b16 %v3043, %v3042
      %3046 = vrot.lane.b32.xlu0 %v3044, 73
      %v3047 = vpop.permute.xlu0 %3046
      %3048 = vrot.lane.b32.xlu0 %v3045, 73
      %v3049 = vpop.permute.xlu0 %3048
      %3050 = vrot.lane.b32.xlu0 %v3044, 9
      %v3051 = vpop.permute.xlu0 %3050
      %3052 = vrot.lane.b32.xlu0 %v3045, 9
      %v3053 = vpop.permute.xlu0 %3052
      %v3056 = vsel %vm730, %v3047, %v3051
      %v3060 = vsel %vm730, %v3049, %v3053
      %v3062 = vsel %vm2271, %v3056, 0
      %v3063 = vsel %vm2271, %v3060, 0
      %3064 = vrot.lane.b32.xlu0 %v3044, 72
      %v3065 = vpop.permute.xlu0 %3064
      %3066 = vrot.lane.b32.xlu0 %v3045, 72
      %v3067 = vpop.permute.xlu0 %3066
      %3068 = vrot.lane.b32.xlu0 %v3044, 8
      %v3069 = vpop.permute.xlu0 %3068
      %3070 = vrot.lane.b32.xlu0 %v3045, 8
      %v3071 = vpop.permute.xlu0 %3070
      %v3074 = vsel %vm2282, %v3065, %v3069
      %v3078 = vsel %vm2282, %v3067, %v3071
      %v3080 = vsel %vm2302, %v3074, 0
      %v3081 = vsel %vm2302, %v3078, 0
      %3082 = vrot.lane.b32.xlu0 %v3044, 71
      %v3083 = vpop.permute.xlu0 %3082
      %3084 = vrot.lane.b32.xlu0 %v3045, 71
      %v3085 = vpop.permute.xlu0 %3084
      %3086 = vrot.lane.b32.xlu0 %v3044, 7
      %v3087 = vpop.permute.xlu0 %3086
      %3088 = vrot.lane.b32.xlu0 %v3045, 7
      %v3089 = vpop.permute.xlu0 %3088
      %v3092 = vsel %vm2313, %v3083, %v3087
      %v3096 = vsel %vm2313, %v3085, %v3089
      %v3098 = vsel %vm2333, %v3092, 0
      %v3099 = vsel %vm2333, %v3096, 0
      %3100 = vrot.lane.b32.xlu0 %v3044, 65
      %v3101 = vpop.permute.xlu0 %3100
      %3102 = vrot.lane.b32.xlu0 %v3045, 65
      %v3103 = vpop.permute.xlu0 %3102
      %3104 = vrot.lane.b32.xlu0 %v3044, 1
      %v3105 = vpop.permute.xlu0 %3104
      %3106 = vrot.lane.b32.xlu0 %v3045, 1
      %v3107 = vpop.permute.xlu0 %3106
      %v3110 = vsel %vm445, %v3101, %v3105
      %v3114 = vsel %vm445, %v3103, %v3107
      %v3116 = vsel %vm2363, %v3110, 0
      %v3117 = vsel %vm2363, %v3114, 0
      %v3118 = vsel %vm2368, %v3032, 0
      %v3119 = vsel %vm2368, %v3033, 0
      %v3120 = vsel %vm2368, %v3034, 0
      %v3121 = vsel %vm2368, %v3035, 0
      %3122 = vrot.lane.b32.xlu0 %v3044, 127
      %v3123 = vpop.permute.xlu0 %3122
      %3124 = vrot.lane.b32.xlu0 %v3045, 127
      %v3125 = vpop.permute.xlu0 %3124
      %3126 = vrot.lane.b32.xlu0 %v3044, 63
      %v3127 = vpop.permute.xlu0 %3126
      %3128 = vrot.lane.b32.xlu0 %v3045, 63
      %v3129 = vpop.permute.xlu0 %3128
      %v3132 = vsel %vm2381, %v3123, %v3127
      %v3136 = vsel %vm2381, %v3125, %v3129
      %v3138 = vsel %vm2401, %v3132, 0
      %v3139 = vsel %vm2401, %v3136, 0
      %3140 = vrot.lane.b32.xlu0 %v3044, 121
      %v3141 = vpop.permute.xlu0 %3140
      %3142 = vrot.lane.b32.xlu0 %v3045, 121
      %v3143 = vpop.permute.xlu0 %3142
      %3144 = vrot.lane.b32.xlu0 %v3044, 57
      %v3145 = vpop.permute.xlu0 %3144
      %3146 = vrot.lane.b32.xlu0 %v3045, 57
      %v3147 = vpop.permute.xlu0 %3146
      %v3150 = vsel %vm2412, %v3141, %v3145
      %v3154 = vsel %vm2412, %v3143, %v3147
      %v3156 = vsel %vm2432, %v3150, 0
      %v3157 = vsel %vm2432, %v3154, 0
      %3158 = vrot.lane.b32.xlu0 %v3044, 120
      %v3159 = vpop.permute.xlu0 %3158
      %3160 = vrot.lane.b32.xlu0 %v3045, 120
      %v3161 = vpop.permute.xlu0 %3160
      %3162 = vrot.lane.b32.xlu0 %v3044, 56
      %v3163 = vpop.permute.xlu0 %3162
      %3164 = vrot.lane.b32.xlu0 %v3045, 56
      %v3165 = vpop.permute.xlu0 %3164
      %v3168 = vsel %vm2443, %v3159, %v3163
      %v3172 = vsel %vm2443, %v3161, %v3165
      %v3174 = vsel %vm2463, %v3168, 0
      %v3175 = vsel %vm2463, %v3172, 0
      %3176 = vrot.lane.b32.xlu0 %v3044, 119
      %v3177 = vpop.permute.xlu0 %3176
      %3178 = vrot.lane.b32.xlu0 %v3045, 119
      %v3179 = vpop.permute.xlu0 %3178
      %3180 = vrot.lane.b32.xlu0 %v3044, 55
      %v3181 = vpop.permute.xlu0 %3180
      %3182 = vrot.lane.b32.xlu0 %v3045, 55
      %v3183 = vpop.permute.xlu0 %3182
      %v3186 = vsel %vm2474, %v3177, %v3181
      %v3190 = vsel %vm2474, %v3179, %v3183
      %v3192 = vsel %vm2494, %v3186, 0
      %v3193 = vsel %vm2494, %v3190, 0
      %v3198 = vunpack.c.l.b16 %v3118
      %v3199 = vunpack.c.l.b16 %v3119
      %v3200 = vunpack.c.l.b16 %v3120
      %v3201 = vunpack.c.l.b16 %v3121
      %v3202 = vpack.c.b16 %v3199, %v3198
      %v3203 = vpack.c.b16 %v3201, %v3200
      %v3206 = vld [vmem:[%s1 + $0x208] sm:$0xff]
      %v3207 = vld [vmem:[%s1 + $0x210] sm:$0xf]
      %v3208 = vld [vmem:[%s1 + $0x21c] sm:$0xff]
      %v3209 = vld [vmem:[%s1 + $0x224] sm:$0xf]
      %v3210 = vld [vmem:[%s1 + $0x230] sm:$0xff]
      %v3211 = vld [vmem:[%s1 + $0x238] sm:$0xf]
      %v3212 = vld [vmem:[%s1 + $0x244] sm:$0xff]
      %v3213 = vld [vmem:[%s1 + $0x24c] sm:$0xf]
      %3214 = vset.pattern.permute.xlu0 9
      %3215 = vperm.xlu0 %3214, %v2060
      %v3216 = vpop.permute.xlu0 %3215
      %3218 = vset.pattern.permute.xlu0 9
      %3219 = vperm.xlu0 %3218, %v2061
      %v3220 = vpop.permute.xlu0 %3219
      %3222 = vset.pattern.permute.xlu0 9
      %3223 = vperm.xlu0 %3222, %v2062
      %v3224 = vpop.permute.xlu0 %3223
      %3226 = vset.pattern.permute.xlu0 9
      %3227 = vperm.xlu0 %3226, %v2063
      %v3228 = vpop.permute.xlu0 %3227
      %v3238 = vunpack.c.l.b16 %v3206
      %v3239 = vunpack.c.h.b16 %v3206
      %v3240 = vunpack.c.l.b16 %v3207
      %v3241 = vunpack.c.l.b16 %v3208
      %v3242 = vunpack.c.h.b16 %v3208
      %v3243 = vunpack.c.l.b16 %v3209
      %v3244 = vunpack.c.l.b16 %v3210
      %v3245 = vunpack.c.h.b16 %v3210
      %v3246 = vunpack.c.l.b16 %v3211
      %v3247 = vunpack.c.l.b16 %v3212
      %v3248 = vunpack.c.h.b16 %v3212
      %v3249 = vunpack.c.l.b16 %v3213
      %v3250 = vpack.c.b16 %v3241, %v3238
      %v3251 = vpack.c.b16 %v3242, %v3239
      %v3252 = vpack.c.b16 %v3243, %v3240
      %v3253 = vpack.c.b16 %v3247, %v3244
      %v3254 = vpack.c.b16 %v3248, %v3245
      %v3255 = vpack.c.b16 %v3249, %v3246
      %v3261 = vsel %vm2563, %v3252, 0
      %v3264 = vsel %vm2563, %v3255, 0
      %3266 = vmatpush.bf16.msra.mxu0 %v3117
      %3267 = vmatpush.bf16.msra.mxu0 %v3116
      %3268 = vmatpush.bf16.msra.mxu0 %v3099
      %3269 = vmatpush.bf16.msra.mxu0 %v3098
      %3270 = vmatpush.bf16.msra.mxu0 %v3081
      %3271 = vmatpush.bf16.msra.mxu0 %v3080
      %3272 = vmatpush.bf16.msra.mxu0 %v3063
      %3273 = vmatpush.bf16.msra.mxu0 %v3062
      %3274 = vmatmul.bf16.gmra.mxu0 %v3250
      %v3275 = vpop.f32.mrf.mxu0
      %v3276 = vadd.f32 %v3216, %v3275
      %v3277 = vpop.f32.mrf.mxu0
      %v3278 = vadd.f32 %v3220, %v3277
      %3279 = vmatmul.bf16.gmra.mxu0 %v3253
      %v3280 = vpop.f32.mrf.mxu0
      %v3281 = vadd.f32 %v3224, %v3280
      %v3282 = vpop.f32.mrf.mxu0
      %v3283 = vadd.f32 %v3228, %v3282
      %3284 = vdwg.mxu0
      %3285 = vmatpush.bf16.msra.mxu0 %v3175
      %3286 = vmatpush.bf16.msra.mxu0 %v3174
      %3287 = vmatpush.bf16.msra.mxu0 %v3157
      %3288 = vmatpush.bf16.msra.mxu0 %v3156
      %3289 = vmatpush.bf16.msra.mxu0 %v3139
      %3290 = vmatpush.bf16.msra.mxu0 %v3138
      %3291 = vmatpush.bf16.msra.mxu0 %v3203
      %3292 = vmatpush.bf16.msra.mxu0 %v3202
      %3293 = vmatmul.bf16.gmra.mxu0 %v3251
      %v3294 = vpop.f32.mrf.mxu0
      %v3295 = vadd.f32 %v3276, %v3294
      %v3296 = vpop.f32.mrf.mxu0
      %v3297 = vadd.f32 %v3278, %v3296
      %3298 = vmatmul.bf16.gmra.mxu0 %v3254
      %v3299 = vpop.f32.mrf.mxu0
      %v3300 = vadd.f32 %v3281, %v3299
      %v3301 = vpop.f32.mrf.mxu0
      %v3302 = vadd.f32 %v3283, %v3301
      %3303 = vdwg.mxu0
      %3304 = vmatpush.bf16.msra.mxu0 0
      %3305 = vmatpush.bf16.msra.mxu0 0
      %3306 = vmatpush.bf16.msra.mxu0 0
      %3307 = vmatpush.bf16.msra.mxu0 0
      %3308 = vmatpush.bf16.msra.mxu0 0
      %3309 = vmatpush.bf16.msra.mxu0 0
      %3310 = vmatpush.bf16.msra.mxu0 %v3193
      %3311 = vmatpush.bf16.msra.mxu0 %v3192
      %3312 = vmatmul.bf16.gmra.mxu0 %v3261
      %v3313 = vpop.f32.mrf.mxu0
      %v3314 = vadd.f32 %v3295, %v3313
      %v3315 = vpop.f32.mrf.mxu0
      %v3316 = vadd.f32 %v3297, %v3315
      %3317 = vmatmul.bf16.gmra.mxu0 %v3264
      %v3318 = vpop.f32.mrf.mxu0
      %v3319 = vadd.f32 %v3300, %v3318
      %v3320 = vpop.f32.mrf.mxu0
      %v3321 = vadd.f32 %v3302, %v3320
      %3322 = vdwg.mxu0
      %v3323 = vadd.f32 %v3314, %v2725
      %v3324 = vadd.f32 %v3316, %v2726
      %v3325 = vadd.f32 %v3319, %v2727
      %v3326 = vadd.f32 %v3321, %v2728
      %vm3327 = vcmp.gt.f32.partialorder %v3323, 0.0
      %vm3328 = vcmp.gt.f32.partialorder %v3324, 0.0
      %vm3329 = vcmp.gt.f32.partialorder %v3325, 0.0
      %vm3330 = vcmp.gt.f32.partialorder %v3326, 0.0
      %v3331 = vmul.f32 %v3323, 0.01
      %v3332 = vmul.f32 %v3324, 0.01
      %v3333 = vmul.f32 %v3325, 0.01
      %v3334 = vmul.f32 %v3326, 0.01
      %v3335 = vsel %vm3327, %v3323, %v3331
      %v3336 = vsel %vm3328, %v3324, %v3332
      %v3337 = vsel %vm3329, %v3325, %v3333
      %v3338 = vsel %vm3330, %v3326, %v3334
      %v3339 = vld [vmem:[%s1 + $0x820] sm:$0xf]
      %v3340 = vld [vmem:[%s1 + $0x834] sm:$0xf]
      %v3341 = vld [vmem:[%s1 + $0x848] sm:$0xf]
      %v3342 = vld [vmem:[%s1 + $0x85c] sm:$0xf]
      %v3343 = vld [vmem:[%s1 + $0x870] sm:$0xf]
      %v3344 = vld [vmem:[%s1 + $0x884] sm:$0xf]
      %v3345 = vld [vmem:[%s1 + $0x898] sm:$0xf]
      %v3346 = vld [vmem:[%s1 + $0x8ac] sm:$0xf]
      %v3347 = vpack.c.bf16 %v3335, %v3335
      %v3348 = vpack.c.bf16 %v3336, %v3336
      %v3349 = vpack.c.bf16 %v3337, %v3337
      %v3350 = vpack.c.bf16 %v3338, %v3338
      %v3355 = vunpack.c.l.b16 %v3347
      %v3356 = vunpack.c.l.b16 %v3348
      %v3357 = vunpack.c.l.b16 %v3349
      %v3358 = vunpack.c.l.b16 %v3350
      %v3359 = vpack.c.b16 %v3356, %v3355
      %v3360 = vpack.c.b16 %v3358, %v3357
      %3361 = vrot.lane.b32.xlu0 %v3359, 73
      %v3362 = vpop.permute.xlu0 %3361
      %3363 = vrot.lane.b32.xlu0 %v3360, 73
      %v3364 = vpop.permute.xlu0 %3363
      %3365 = vrot.lane.b32.xlu0 %v3359, 9
      %v3366 = vpop.permute.xlu0 %3365
      %3367 = vrot.lane.b32.xlu0 %v3360, 9
      %v3368 = vpop.permute.xlu0 %3367
      %v3371 = vsel %vm730, %v3362, %v3366
      %v3375 = vsel %vm730, %v3364, %v3368
      %v3377 = vsel %vm2271, %v3371, 0
      %v3378 = vsel %vm2271, %v3375, 0
      %3379 = vrot.lane.b32.xlu0 %v3359, 72
      %v3380 = vpop.permute.xlu0 %3379
      %3381 = vrot.lane.b32.xlu0 %v3360, 72
      %v3382 = vpop.permute.xlu0 %3381
      %3383 = vrot.lane.b32.xlu0 %v3359, 8
      %v3384 = vpop.permute.xlu0 %3383
      %3385 = vrot.lane.b32.xlu0 %v3360, 8
      %v3386 = vpop.permute.xlu0 %3385
      %v3389 = vsel %vm2282, %v3380, %v3384
      %v3393 = vsel %vm2282, %v3382, %v3386
      %v3395 = vsel %vm2302, %v3389, 0
      %v3396 = vsel %vm2302, %v3393, 0
      %3397 = vrot.lane.b32.xlu0 %v3359, 71
      %v3398 = vpop.permute.xlu0 %3397
      %3399 = vrot.lane.b32.xlu0 %v3360, 71
      %v3400 = vpop.permute.xlu0 %3399
      %3401 = vrot.lane.b32.xlu0 %v3359, 7
      %v3402 = vpop.permute.xlu0 %3401
      %3403 = vrot.lane.b32.xlu0 %v3360, 7
      %v3404 = vpop.permute.xlu0 %3403
      %v3407 = vsel %vm2313, %v3398, %v3402
      %v3411 = vsel %vm2313, %v3400, %v3404
      %v3413 = vsel %vm2333, %v3407, 0
      %v3414 = vsel %vm2333, %v3411, 0
      %3415 = vrot.lane.b32.xlu0 %v3359, 65
      %v3416 = vpop.permute.xlu0 %3415
      %3417 = vrot.lane.b32.xlu0 %v3360, 65
      %v3418 = vpop.permute.xlu0 %3417
      %3419 = vrot.lane.b32.xlu0 %v3359, 1
      %v3420 = vpop.permute.xlu0 %3419
      %3421 = vrot.lane.b32.xlu0 %v3360, 1
      %v3422 = vpop.permute.xlu0 %3421
      %v3425 = vsel %vm445, %v3416, %v3420
      %v3429 = vsel %vm445, %v3418, %v3422
      %v3431 = vsel %vm2363, %v3425, 0
      %v3432 = vsel %vm2363, %v3429, 0
      %v3433 = vsel %vm2368, %v3347, 0
      %v3434 = vsel %vm2368, %v3348, 0
      %v3435 = vsel %vm2368, %v3349, 0
      %v3436 = vsel %vm2368, %v3350, 0
      %3437 = vrot.lane.b32.xlu0 %v3359, 127
      %v3438 = vpop.permute.xlu0 %3437
      %3439 = vrot.lane.b32.xlu0 %v3360, 127
      %v3440 = vpop.permute.xlu0 %3439
      %3441 = vrot.lane.b32.xlu0 %v3359, 63
      %v3442 = vpop.permute.xlu0 %3441
      %3443 = vrot.lane.b32.xlu0 %v3360, 63
      %v3444 = vpop.permute.xlu0 %3443
      %v3447 = vsel %vm2381, %v3438, %v3442
      %v3451 = vsel %vm2381, %v3440, %v3444
      %v3453 = vsel %vm2401, %v3447, 0
      %v3454 = vsel %vm2401, %v3451, 0
      %3455 = vrot.lane.b32.xlu0 %v3359, 121
      %v3456 = vpop.permute.xlu0 %3455
      %3457 = vrot.lane.b32.xlu0 %v3360, 121
      %v3458 = vpop.permute.xlu0 %3457
      %3459 = vrot.lane.b32.xlu0 %v3359, 57
      %v3460 = vpop.permute.xlu0 %3459
      %3461 = vrot.lane.b32.xlu0 %v3360, 57
      %v3462 = vpop.permute.xlu0 %3461
      %v3465 = vsel %vm2412, %v3456, %v3460
      %v3469 = vsel %vm2412, %v3458, %v3462
      %v3471 = vsel %vm2432, %v3465, 0
      %v3472 = vsel %vm2432, %v3469, 0
      %3473 = vrot.lane.b32.xlu0 %v3359, 120
      %v3474 = vpop.permute.xlu0 %3473
      %3475 = vrot.lane.b32.xlu0 %v3360, 120
      %v3476 = vpop.permute.xlu0 %3475
      %3477 = vrot.lane.b32.xlu0 %v3359, 56
      %v3478 = vpop.permute.xlu0 %3477
      %3479 = vrot.lane.b32.xlu0 %v3360, 56
      %v3480 = vpop.permute.xlu0 %3479
      %v3483 = vsel %vm2443, %v3474, %v3478
      %v3487 = vsel %vm2443, %v3476, %v3480
      %v3489 = vsel %vm2463, %v3483, 0
      %v3490 = vsel %vm2463, %v3487, 0
      %3491 = vrot.lane.b32.xlu0 %v3359, 119
      %v3492 = vpop.permute.xlu0 %3491
      %3493 = vrot.lane.b32.xlu0 %v3360, 119
      %v3494 = vpop.permute.xlu0 %3493
      %3495 = vrot.lane.b32.xlu0 %v3359, 55
      %v3496 = vpop.permute.xlu0 %3495
      %3497 = vrot.lane.b32.xlu0 %v3360, 55
      %v3498 = vpop.permute.xlu0 %3497
      %v3501 = vsel %vm2474, %v3492, %v3496
      %v3505 = vsel %vm2474, %v3494, %v3498
      %v3507 = vsel %vm2494, %v3501, 0
      %v3508 = vsel %vm2494, %v3505, 0
      %v3513 = vunpack.c.l.b16 %v3433
      %v3514 = vunpack.c.l.b16 %v3434
      %v3515 = vunpack.c.l.b16 %v3435
      %v3516 = vunpack.c.l.b16 %v3436
      %v3517 = vpack.c.b16 %v3514, %v3513
      %v3518 = vpack.c.b16 %v3516, %v3515
      %v3521 = vld [vmem:[%s1 + $0x258] sm:$0xff]
      %v3522 = vld [vmem:[%s1 + $0x260] sm:$0xf]
      %v3523 = vld [vmem:[%s1 + $0x26c] sm:$0xff]
      %v3524 = vld [vmem:[%s1 + $0x274] sm:$0xf]
      %v3525 = vld [vmem:[%s1 + $0x280] sm:$0xff]
      %v3526 = vld [vmem:[%s1 + $0x288] sm:$0xf]
      %v3527 = vld [vmem:[%s1 + $0x294] sm:$0xff]
      %v3528 = vld [vmem:[%s1 + $0x29c] sm:$0xf]
      %v3529 = vld [vmem:[%s1 + $0x2a8] sm:$0xff]
      %v3530 = vld [vmem:[%s1 + $0x2b0] sm:$0xf]
      %v3531 = vld [vmem:[%s1 + $0x2bc] sm:$0xff]
      %v3532 = vld [vmem:[%s1 + $0x2c4] sm:$0xf]
      %v3533 = vld [vmem:[%s1 + $0x2d0] sm:$0xff]
      %v3534 = vld [vmem:[%s1 + $0x2d8] sm:$0xf]
      %v3535 = vld [vmem:[%s1 + $0x2e4] sm:$0xff]
      %v3536 = vld [vmem:[%s1 + $0x2ec] sm:$0xf]
      %v3553 = vunpack.c.l.b16 %v3521
      %v3554 = vunpack.c.h.b16 %v3521
      %v3555 = vunpack.c.l.b16 %v3522
      %v3556 = vunpack.c.l.b16 %v3523
      %v3557 = vunpack.c.h.b16 %v3523
      %v3558 = vunpack.c.l.b16 %v3524
      %v3559 = vunpack.c.l.b16 %v3525
      %v3560 = vunpack.c.h.b16 %v3525
      %v3561 = vunpack.c.l.b16 %v3526
      %v3562 = vunpack.c.l.b16 %v3527
      %v3563 = vunpack.c.h.b16 %v3527
      %v3564 = vunpack.c.l.b16 %v3528
      %v3565 = vunpack.c.l.b16 %v3529
      %v3566 = vunpack.c.h.b16 %v3529
      %v3567 = vunpack.c.l.b16 %v3530
      %v3568 = vunpack.c.l.b16 %v3531
      %v3569 = vunpack.c.h.b16 %v3531
      %v3570 = vunpack.c.l.b16 %v3532
      %v3571 = vunpack.c.l.b16 %v3533
      %v3572 = vunpack.c.h.b16 %v3533
      %v3573 = vunpack.c.l.b16 %v3534
      %v3574 = vunpack.c.l.b16 %v3535
      %v3575 = vunpack.c.h.b16 %v3535
      %v3576 = vunpack.c.l.b16 %v3536
      %v3577 = vpack.c.b16 %v3556, %v3553
      %v3578 = vpack.c.b16 %v3557, %v3554
      %v3579 = vpack.c.b16 %v3558, %v3555
      %v3580 = vpack.c.b16 %v3562, %v3559
      %v3581 = vpack.c.b16 %v3563, %v3560
      %v3582 = vpack.c.b16 %v3564, %v3561
      %v3583 = vpack.c.b16 %v3568, %v3565
      %v3584 = vpack.c.b16 %v3569, %v3566
      %v3585 = vpack.c.b16 %v3570, %v3567
      %v3586 = vpack.c.b16 %v3574, %v3571
      %v3587 = vpack.c.b16 %v3575, %v3572
      %v3588 = vpack.c.b16 %v3576, %v3573
      %v3598 = vsel %vm2563, %v3579, 0
      %v3601 = vsel %vm2563, %v3582, 0
      %v3604 = vsel %vm2563, %v3585, 0
      %v3607 = vsel %vm2563, %v3588, 0
      %3609 = vmatpush.bf16.msra.mxu0 %v3432
      %3610 = vmatpush.bf16.msra.mxu0 %v3431
      %3611 = vmatpush.bf16.msra.mxu0 %v3414
      %3612 = vmatpush.bf16.msra.mxu0 %v3413
      %3613 = vmatpush.bf16.msra.mxu0 %v3396
      %3614 = vmatpush.bf16.msra.mxu0 %v3395
      %3615 = vmatpush.bf16.msra.mxu0 %v3378
      %3616 = vmatpush.bf16.msra.mxu0 %v3377
      %3617 = vmatmul.bf16.gmra.mxu0 %v3577
      %v3618 = vpop.f32.mrf.mxu0
      %v3619 = vadd.f32 0.0, %v3618
      %v3620 = vpop.f32.mrf.mxu0
      %v3621 = vadd.f32 0.0, %v3620
      %3622 = vmatmul.bf16.gmra.mxu0 %v3580
      %v3623 = vpop.f32.mrf.mxu0
      %v3624 = vadd.f32 0.0, %v3623
      %v3625 = vpop.f32.mrf.mxu0
      %v3626 = vadd.f32 0.0, %v3625
      %3627 = vmatmul.bf16.gmra.mxu0 %v3583
      %v3628 = vpop.f32.mrf.mxu0
      %v3629 = vadd.f32 0.0, %v3628
      %v3630 = vpop.f32.mrf.mxu0
      %v3631 = vadd.f32 0.0, %v3630
      %3632 = vmatmul.bf16.gmra.mxu0 %v3586
      %v3633 = vpop.f32.mrf.mxu0
      %v3634 = vadd.f32 0.0, %v3633
      %v3635 = vpop.f32.mrf.mxu0
      %v3636 = vadd.f32 0.0, %v3635
      %3637 = vdwg.mxu0
      %3638 = vmatpush.bf16.msra.mxu0 %v3490
      %3639 = vmatpush.bf16.msra.mxu0 %v3489
      %3640 = vmatpush.bf16.msra.mxu0 %v3472
      %3641 = vmatpush.bf16.msra.mxu0 %v3471
      %3642 = vmatpush.bf16.msra.mxu0 %v3454
      %3643 = vmatpush.bf16.msra.mxu0 %v3453
      %3644 = vmatpush.bf16.msra.mxu0 %v3518
      %3645 = vmatpush.bf16.msra.mxu0 %v3517
      %3646 = vmatmul.bf16.gmra.mxu0 %v3578
      %v3647 = vpop.f32.mrf.mxu0
      %v3648 = vadd.f32 %v3619, %v3647
      %v3649 = vpop.f32.mrf.mxu0
      %v3650 = vadd.f32 %v3621, %v3649
      %3651 = vmatmul.bf16.gmra.mxu0 %v3581
      %v3652 = vpop.f32.mrf.mxu0
      %v3653 = vadd.f32 %v3624, %v3652
      %v3654 = vpop.f32.mrf.mxu0
      %v3655 = vadd.f32 %v3626, %v3654
      %3656 = vmatmul.bf16.gmra.mxu0 %v3584
      %v3657 = vpop.f32.mrf.mxu0
      %v3658 = vadd.f32 %v3629, %v3657
      %v3659 = vpop.f32.mrf.mxu0
      %v3660 = vadd.f32 %v3631, %v3659
      %3661 = vmatmul.bf16.gmra.mxu0 %v3587
      %v3662 = vpop.f32.mrf.mxu0
      %v3663 = vadd.f32 %v3634, %v3662
      %v3664 = vpop.f32.mrf.mxu0
      %v3665 = vadd.f32 %v3636, %v3664
      %3666 = vdwg.mxu0
      %3667 = vmatpush.bf16.msra.mxu0 0
      %3668 = vmatpush.bf16.msra.mxu0 0
      %3669 = vmatpush.bf16.msra.mxu0 0
      %3670 = vmatpush.bf16.msra.mxu0 0
      %3671 = vmatpush.bf16.msra.mxu0 0
      %3672 = vmatpush.bf16.msra.mxu0 0
      %3673 = vmatpush.bf16.msra.mxu0 %v3508
      %3674 = vmatpush.bf16.msra.mxu0 %v3507
      %3675 = vmatmul.bf16.gmra.mxu0 %v3598
      %v3676 = vpop.f32.mrf.mxu0
      %v3677 = vadd.f32 %v3648, %v3676
      %v3678 = vpop.f32.mrf.mxu0
      %v3679 = vadd.f32 %v3650, %v3678
      %3680 = vmatmul.bf16.gmra.mxu0 %v3601
      %v3681 = vpop.f32.mrf.mxu0
      %v3682 = vadd.f32 %v3653, %v3681
      %v3683 = vpop.f32.mrf.mxu0
      %v3684 = vadd.f32 %v3655, %v3683
      %3685 = vmatmul.bf16.gmra.mxu0 %v3604
      %v3686 = vpop.f32.mrf.mxu0
      %v3687 = vadd.f32 %v3658, %v3686
      %v3688 = vpop.f32.mrf.mxu0
      %v3689 = vadd.f32 %v3660, %v3688
      %3690 = vmatmul.bf16.gmra.mxu0 %v3607
      %v3691 = vpop.f32.mrf.mxu0
      %v3692 = vadd.f32 %v3663, %v3691
      %v3693 = vpop.f32.mrf.mxu0
      %v3694 = vadd.f32 %v3665, %v3693
      %3695 = vdwg.mxu0
      %v3696 = vpack.c.bf16 %v3679, %v3677
      %v3697 = vpack.c.bf16 %v3684, %v3682
      %v3698 = vpack.c.bf16 %v3689, %v3687
      %v3699 = vpack.c.bf16 %v3694, %v3692
      %v3700 = vld [vmem:[%s2] sm:$0xff]
      %v3701 = vld [vmem:[%s2 + $0x8] sm:$0xff]
      %v3702 = vld [vmem:[%s2 + $0x10] sm:$0xff]
      %v3703 = vld [vmem:[%s2 + $0x18] sm:$0xff]
      %v3704 = vld [vmem:[%s2 + $0x20] sm:$0xff]
      %v3705 = vld [vmem:[%s2 + $0x28] sm:$0xff]
      %v3706 = vld [vmem:[%s2 + $0x30] sm:$0xff]
      %v3707 = vld [vmem:[%s2 + $0x38] sm:$0xff]
      %3709 = vset.pattern.permute.xlu0 10
      %3710 = vperm.xlu0 %3709, %v3700
      %v3711 = vpop.permute.xlu0 %3710
      %3714 = vset.pattern.permute.xlu0 10
      %3715 = vperm.xlu0 %3714, %v3701
      %v3716 = vpop.permute.xlu0 %3715
      %3719 = vset.pattern.permute.xlu0 10
      %3720 = vperm.xlu0 %3719, %v3702
      %v3721 = vpop.permute.xlu0 %3720
      %3724 = vset.pattern.permute.xlu0 10
      %3725 = vperm.xlu0 %3724, %v3703
      %v3726 = vpop.permute.xlu0 %3725
      %3729 = vset.pattern.permute.xlu0 10
      %3730 = vperm.xlu0 %3729, %v3704
      %v3731 = vpop.permute.xlu0 %3730
      %3734 = vset.pattern.permute.xlu0 10
      %3735 = vperm.xlu0 %3734, %v3705
      %v3736 = vpop.permute.xlu0 %3735
      %3739 = vset.pattern.permute.xlu0 10
      %3740 = vperm.xlu0 %3739, %v3706
      %v3741 = vpop.permute.xlu0 %3740
      %3744 = vset.pattern.permute.xlu0 10
      %3745 = vperm.xlu0 %3744, %v3707
      %v3746 = vpop.permute.xlu0 %3745
      %v3756 = vunpack.c.l.b16 %v3339
      %v3757 = vunpack.c.l.b16 %v3340
      %v3758 = vunpack.c.l.b16 %v3341
      %v3759 = vunpack.c.l.b16 %v3342
      %v3760 = vunpack.c.l.b16 %v3343
      %v3761 = vunpack.c.l.b16 %v3344
      %v3762 = vunpack.c.l.b16 %v3345
      %v3763 = vunpack.c.l.b16 %v3346
      %v3764 = vpack.c.b16 %v3757, %v3756
      %v3765 = vpack.c.b16 %v3759, %v3758
      %v3766 = vpack.c.b16 %v3761, %v3760
      %v3767 = vpack.c.b16 %v3763, %v3762
      %vm3772 = vcmask 523264
      %v3774 = vsel %vm3772, %v3696, 0
      %v3777 = vsel %vm3772, %v3697, 0
      %v3780 = vsel %vm3772, %v3698, 0
      %v3783 = vsel %vm3772, %v3699, 0
      %3785 = vmatpush.bf16.msra.mxu0 0
      %3786 = vmatpush.bf16.msra.mxu0 0
      %3787 = vmatpush.bf16.msra.mxu0 0
      %3788 = vmatpush.bf16.msra.mxu0 0
      %3789 = vmatpush.bf16.msra.mxu0 %v3767
      %3790 = vmatpush.bf16.msra.mxu0 %v3766
      %3791 = vmatpush.bf16.msra.mxu0 %v3765
      %3792 = vmatpush.bf16.msra.mxu0 %v3764
      %3793 = vmatmul.bf16.gmra.mxu0 %v3774
      %v3794 = vpop.f32.mrf.mxu0
      %v3795 = vadd.f32 %v3711, %v3794
      %v3796 = vpop.f32.mrf.mxu0
      %v3797 = vadd.f32 %v3716, %v3796
      %3798 = vmatmul.bf16.gmra.mxu0 %v3777
      %v3799 = vpop.f32.mrf.mxu0
      %v3800 = vadd.f32 %v3721, %v3799
      %v3801 = vpop.f32.mrf.mxu0
      %v3802 = vadd.f32 %v3726, %v3801
      %3803 = vmatmul.bf16.gmra.mxu0 %v3780
      %v3804 = vpop.f32.mrf.mxu0
      %v3805 = vadd.f32 %v3731, %v3804
      %v3806 = vpop.f32.mrf.mxu0
      %v3807 = vadd.f32 %v3736, %v3806
      %3808 = vmatmul.bf16.gmra.mxu0 %v3783
      %v3809 = vpop.f32.mrf.mxu0
      %v3810 = vadd.f32 %v3741, %v3809
      %v3811 = vpop.f32.mrf.mxu0
      %v3812 = vadd.f32 %v3746, %v3811
      %3813 = vdwg.mxu0
      %vm3814 = vcmp.gt.f32.partialorder %v3795, 0.0
      %vm3815 = vcmp.gt.f32.partialorder %v3797, 0.0
      %vm3816 = vcmp.gt.f32.partialorder %v3800, 0.0
      %vm3817 = vcmp.gt.f32.partialorder %v3802, 0.0
      %vm3818 = vcmp.gt.f32.partialorder %v3805, 0.0
      %vm3819 = vcmp.gt.f32.partialorder %v3807, 0.0
      %vm3820 = vcmp.gt.f32.partialorder %v3810, 0.0
      %vm3821 = vcmp.gt.f32.partialorder %v3812, 0.0
      %v3822 = vmul.f32 %v3795, 0.01
      %v3823 = vmul.f32 %v3797, 0.01
      %v3824 = vmul.f32 %v3800, 0.01
      %v3825 = vmul.f32 %v3802, 0.01
      %v3826 = vmul.f32 %v3805, 0.01
      %v3827 = vmul.f32 %v3807, 0.01
      %v3828 = vmul.f32 %v3810, 0.01
      %v3829 = vmul.f32 %v3812, 0.01
      %v3830 = vsel %vm3814, %v3795, %v3822
      %v3831 = vsel %vm3815, %v3797, %v3823
      %v3832 = vsel %vm3816, %v3800, %v3824
      %v3833 = vsel %vm3817, %v3802, %v3825
      %v3834 = vsel %vm3818, %v3805, %v3826
      %v3835 = vsel %vm3819, %v3807, %v3827
      %v3836 = vsel %vm3820, %v3810, %v3828
      %v3837 = vsel %vm3821, %v3812, %v3829
      %v3838 = vpack.c.bf16 %v3830, %v3830
      %v3839 = vpack.c.bf16 %v3831, %v3831
      %v3840 = vpack.c.bf16 %v3832, %v3832
      %v3841 = vpack.c.bf16 %v3833, %v3833
      %v3842 = vpack.c.bf16 %v3834, %v3834
      %v3843 = vpack.c.bf16 %v3835, %v3835
      %v3844 = vpack.c.bf16 %v3836, %v3836
      %v3845 = vpack.c.bf16 %v3837, %v3837
      %v3854 = vunpack.c.l.b16 %v3838
      %v3855 = vunpack.c.l.b16 %v3839
      %v3856 = vunpack.c.l.b16 %v3840
      %v3857 = vunpack.c.l.b16 %v3841
      %v3858 = vunpack.c.l.b16 %v3842
      %v3859 = vunpack.c.l.b16 %v3843
      %v3860 = vunpack.c.l.b16 %v3844
      %v3861 = vunpack.c.l.b16 %v3845
      %v3862 = vpack.c.b16 %v3855, %v3854
      %v3863 = vpack.c.b16 %v3857, %v3856
      %v3864 = vpack.c.b16 %v3859, %v3858
      %v3865 = vpack.c.b16 %v3861, %v3860
      %3866 = vrot.lane.b32.xlu0 %v3862, 117
      %v3867 = vpop.permute.xlu0 %3866
      %3868 = vrot.lane.b32.xlu0 %v3863, 117
      %v3869 = vpop.permute.xlu0 %3868
      %3870 = vrot.lane.b32.xlu0 %v3864, 117
      %v3871 = vpop.permute.xlu0 %3870
      %3872 = vrot.lane.b32.xlu0 %v3865, 117
      %v3873 = vpop.permute.xlu0 %3872
      %3874 = vrot.lane.b32.xlu0 %v3862, 5
      %v3875 = vpop.permute.xlu0 %3874
      %3876 = vrot.lane.b32.xlu0 %v3863, 5
      %v3877 = vpop.permute.xlu0 %3876
      %3878 = vrot.lane.b32.xlu0 %v3864, 5
      %v3879 = vpop.permute.xlu0 %3878
      %3880 = vrot.lane.b32.xlu0 %v3865, 5
      %v3881 = vpop.permute.xlu0 %3880
      %vm3882 = vcmask 39936
      %v3885 = vsel %vm3882, %v3867, %v3875
      %v3889 = vsel %vm3882, %v3869, %v3877
      %v3893 = vsel %vm3882, %v3871, %v3879
      %v3897 = vsel %vm3882, %v3873, %v3881
      %v3899 = vsel %vm301, 1, 0
      %vm3900 = vcmp.eq.s32.totalorder %v3899, 1
      %vm3901 = vmpackc.low %vm3900, %vm3900
      %v3902 = vsel %vm3901, 65537, 0
      %v3903 = vperm.slane %v3902, 0
      %v3904 = vunpack.c.l.b16 %v3903
      %v3905 = vunpack.c.h.b16 %v3903
      %v3906 = vunpack.c.l.b16 0
      %v3907 = vunpack.c.h.b16 0
      %vm3908 = vcmp.ne.s32.totalorder %v3904, %v3906
      %vm3909 = vcmp.ne.s32.totalorder %v3905, %v3907
      %vm3910 = vmpackc.low %vm3909, %vm3908
      %v3911 = vsel %vm3910, %v3885, 0
      %v3912 = vsel %vm3910, %v3889, 0
      %v3913 = vsel %vm3910, %v3893, 0
      %v3914 = vsel %vm3910, %v3897, 0
      %3915 = vrot.lane.b32.xlu0 %v3862, 116
      %v3916 = vpop.permute.xlu0 %3915
      %3917 = vrot.lane.b32.xlu0 %v3863, 116
      %v3918 = vpop.permute.xlu0 %3917
      %3919 = vrot.lane.b32.xlu0 %v3864, 116
      %v3920 = vpop.permute.xlu0 %3919
      %3921 = vrot.lane.b32.xlu0 %v3865, 116
      %v3922 = vpop.permute.xlu0 %3921
      %3923 = vrot.lane.b32.xlu0 %v3862, 4
      %v3924 = vpop.permute.xlu0 %3923
      %3925 = vrot.lane.b32.xlu0 %v3863, 4
      %v3926 = vpop.permute.xlu0 %3925
      %3927 = vrot.lane.b32.xlu0 %v3864, 4
      %v3928 = vpop.permute.xlu0 %3927
      %3929 = vrot.lane.b32.xlu0 %v3865, 4
      %v3930 = vpop.permute.xlu0 %3929
      %vm3931 = vcmask 31744
      %v3934 = vsel %vm3931, %v3916, %v3924
      %v3938 = vsel %vm3931, %v3918, %v3926
      %v3942 = vsel %vm3931, %v3920, %v3928
      %v3946 = vsel %vm3931, %v3922, %v3930
      %v3948 = vsel %vm305, 1, 0
      %vm3949 = vcmp.eq.s32.totalorder %v3948, 1
      %vm3950 = vmpackc.low %vm3949, %vm3949
      %v3951 = vsel %vm3950, 65537, 0
      %v3952 = vperm.slane %v3951, 0
      %v3953 = vunpack.c.l.b16 %v3952
      %v3954 = vunpack.c.h.b16 %v3952
      %v3955 = vunpack.c.l.b16 0
      %v3956 = vunpack.c.h.b16 0
      %vm3957 = vcmp.ne.s32.totalorder %v3953, %v3955
      %vm3958 = vcmp.ne.s32.totalorder %v3954, %v3956
      %vm3959 = vmpackc.low %vm3958, %vm3957
      %v3960 = vsel %vm3959, %v3934, 0
      %v3961 = vsel %vm3959, %v3938, 0
      %v3962 = vsel %vm3959, %v3942, 0
      %v3963 = vsel %vm3959, %v3946, 0
      %3964 = vrot.lane.b32.xlu0 %v3862, 115
      %v3965 = vpop.permute.xlu0 %3964
      %3966 = vrot.lane.b32.xlu0 %v3863, 115
      %v3967 = vpop.permute.xlu0 %3966
      %3968 = vrot.lane.b32.xlu0 %v3864, 115
      %v3969 = vpop.permute.xlu0 %3968
      %3970 = vrot.lane.b32.xlu0 %v3865, 115
      %v3971 = vpop.permute.xlu0 %3970
      %3972 = vrot.lane.b32.xlu0 %v3862, 3
      %v3973 = vpop.permute.xlu0 %3972
      %3974 = vrot.lane.b32.xlu0 %v3863, 3
      %v3975 = vpop.permute.xlu0 %3974
      %3976 = vrot.lane.b32.xlu0 %v3864, 3
      %v3977 = vpop.permute.xlu0 %3976
      %3978 = vrot.lane.b32.xlu0 %v3865, 3
      %v3979 = vpop.permute.xlu0 %3978
      %vm3980 = vcmask 23552
      %v3983 = vsel %vm3980, %v3965, %v3973
      %v3987 = vsel %vm3980, %v3967, %v3975
      %v3991 = vsel %vm3980, %v3969, %v3977
      %v3995 = vsel %vm3980, %v3971, %v3979
      %v3997 = vsel %vm310, 1, 0
      %vm3998 = vcmp.eq.s32.totalorder %v3997, 1
      %vm3999 = vmpackc.low %vm3998, %vm3998
      %v4000 = vsel %vm3999, 65537, 0
      %v4001 = vperm.slane %v4000, 0
      %v4002 = vunpack.c.l.b16 %v4001
      %v4003 = vunpack.c.h.b16 %v4001
      %v4004 = vunpack.c.l.b16 0
      %v4005 = vunpack.c.h.b16 0
      %vm4006 = vcmp.ne.s32.totalorder %v4002, %v4004
      %vm4007 = vcmp.ne.s32.totalorder %v4003, %v4005
      %vm4008 = vmpackc.low %vm4007, %vm4006
      %v4009 = vsel %vm4008, %v3983, 0
      %v4010 = vsel %vm4008, %v3987, 0
      %v4011 = vsel %vm4008, %v3991, 0
      %v4012 = vsel %vm4008, %v3995, 0
      %4013 = vrot.lane.b32.xlu0 %v3862, 113
      %v4014 = vpop.permute.xlu0 %4013
      %4015 = vrot.lane.b32.xlu0 %v3863, 113
      %v4016 = vpop.permute.xlu0 %4015
      %4017 = vrot.lane.b32.xlu0 %v3864, 113
      %v4018 = vpop.permute.xlu0 %4017
      %4019 = vrot.lane.b32.xlu0 %v3865, 113
      %v4020 = vpop.permute.xlu0 %4019
      %4021 = vrot.lane.b32.xlu0 %v3862, 1
      %v4022 = vpop.permute.xlu0 %4021
      %4023 = vrot.lane.b32.xlu0 %v3863, 1
      %v4024 = vpop.permute.xlu0 %4023
      %4025 = vrot.lane.b32.xlu0 %v3864, 1
      %v4026 = vpop.permute.xlu0 %4025
      %4027 = vrot.lane.b32.xlu0 %v3865, 1
      %v4028 = vpop.permute.xlu0 %4027
      %v4031 = vsel %vm445, %v4014, %v4022
      %v4035 = vsel %vm445, %v4016, %v4024
      %v4039 = vsel %vm445, %v4018, %v4026
      %v4043 = vsel %vm445, %v4020, %v4028
      %v4045 = vsel %vm315, 1, 0
      %vm4046 = vcmp.eq.s32.totalorder %v4045, 1
      %vm4047 = vmpackc.low %vm4046, %vm4046
      %v4048 = vsel %vm4047, 65537, 0
      %v4049 = vperm.slane %v4048, 0
      %v4050 = vunpack.c.l.b16 %v4049
      %v4051 = vunpack.c.h.b16 %v4049
      %v4052 = vunpack.c.l.b16 0
      %v4053 = vunpack.c.h.b16 0
      %vm4054 = vcmp.ne.s32.totalorder %v4050, %v4052
      %vm4055 = vcmp.ne.s32.totalorder %v4051, %v4053
      %vm4056 = vmpackc.low %vm4055, %vm4054
      %v4057 = vsel %vm4056, %v4031, 0
      %v4058 = vsel %vm4056, %v4035, 0
      %v4059 = vsel %vm4056, %v4039, 0
      %v4060 = vsel %vm4056, %v4043, 0
      %v4061 = vsel %vm317, 1, 0
      %vm4062 = vcmp.eq.s32.totalorder %v4061, 1
      %vm4063 = vmpackc.low %vm4062, %vm4062
      %v4064 = vsel %vm4063, %v3838, 0
      %v4065 = vsel %vm4063, %v3839, 0
      %v4066 = vsel %vm4063, %v3840, 0
      %v4067 = vsel %vm4063, %v3841, 0
      %v4068 = vsel %vm4063, %v3842, 0
      %v4069 = vsel %vm4063, %v3843, 0
      %v4070 = vsel %vm4063, %v3844, 0
      %v4071 = vsel %vm4063, %v3845, 0
      %4072 = vrot.lane.b32.xlu0 %v3862, 127
      %v4073 = vpop.permute.xlu0 %4072
      %4074 = vrot.lane.b32.xlu0 %v3863, 127
      %v4075 = vpop.permute.xlu0 %4074
      %4076 = vrot.lane.b32.xlu0 %v3864, 127
      %v4077 = vpop.permute.xlu0 %4076
      %4078 = vrot.lane.b32.xlu0 %v3865, 127
      %v4079 = vpop.permute.xlu0 %4078
      %4080 = vrot.lane.b32.xlu0 %v3862, 15
      %v4081 = vpop.permute.xlu0 %4080
      %4082 = vrot.lane.b32.xlu0 %v3863, 15
      %v4083 = vpop.permute.xlu0 %4082
      %4084 = vrot.lane.b32.xlu0 %v3864, 15
      %v4085 = vpop.permute.xlu0 %4084
      %4086 = vrot.lane.b32.xlu0 %v3865, 15
      %v4087 = vpop.permute.xlu0 %4086
      %v4090 = vsel %vm413, %v4073, %v4081
      %v4094 = vsel %vm413, %v4075, %v4083
      %v4098 = vsel %vm413, %v4077, %v4085
      %v4102 = vsel %vm413, %v4079, %v4087
      %v4104 = vsel %vm319, 1, 0
      %vm4105 = vcmp.eq.s32.totalorder %v4104, 1
      %vm4106 = vmpackc.low %vm4105, %vm4105
      %v4107 = vsel %vm4106, 65537, 0
      %v4108 = vperm.slane %v4107, 0
      %v4109 = vunpack.c.l.b16 %v4108
      %v4110 = vunpack.c.h.b16 %v4108
      %v4111 = vunpack.c.l.b16 0
      %v4112 = vunpack.c.h.b16 0
      %vm4113 = vcmp.ne.s32.totalorder %v4109, %v4111
      %vm4114 = vcmp.ne.s32.totalorder %v4110, %v4112
      %vm4115 = vmpackc.low %vm4114, %vm4113
      %v4116 = vsel %vm4115, %v4090, 0
      %v4117 = vsel %vm4115, %v4094, 0
      %v4118 = vsel %vm4115, %v4098, 0
      %v4119 = vsel %vm4115, %v4102, 0
      %4120 = vrot.lane.b32.xlu0 %v3862, 125
      %v4121 = vpop.permute.xlu0 %4120
      %4122 = vrot.lane.b32.xlu0 %v3863, 125
      %v4123 = vpop.permute.xlu0 %4122
      %4124 = vrot.lane.b32.xlu0 %v3864, 125
      %v4125 = vpop.permute.xlu0 %4124
      %4126 = vrot.lane.b32.xlu0 %v3865, 125
      %v4127 = vpop.permute.xlu0 %4126
      %4128 = vrot.lane.b32.xlu0 %v3862, 13
      %v4129 = vpop.permute.xlu0 %4128
      %4130 = vrot.lane.b32.xlu0 %v3863, 13
      %v4131 = vpop.permute.xlu0 %4130
      %4132 = vrot.lane.b32.xlu0 %v3864, 13
      %v4133 = vpop.permute.xlu0 %4132
      %4134 = vrot.lane.b32.xlu0 %v3865, 13
      %v4135 = vpop.permute.xlu0 %4134
      %vm4136 = vcmask 105472
      %v4139 = vsel %vm4136, %v4121, %v4129
      %v4143 = vsel %vm4136, %v4123, %v4131
      %v4147 = vsel %vm4136, %v4125, %v4133
      %v4151 = vsel %vm4136, %v4127, %v4135
      %v4153 = vsel %vm325, 1, 0
      %vm4154 = vcmp.eq.s32.totalorder %v4153, 1
      %vm4155 = vmpackc.low %vm4154, %vm4154
      %v4156 = vsel %vm4155, 65537, 0
      %v4157 = vperm.slane %v4156, 0
      %v4158 = vunpack.c.l.b16 %v4157
      %v4159 = vunpack.c.h.b16 %v4157
      %v4160 = vunpack.c.l.b16 0
      %v4161 = vunpack.c.h.b16 0
      %vm4162 = vcmp.ne.s32.totalorder %v4158, %v4160
      %vm4163 = vcmp.ne.s32.totalorder %v4159, %v4161
      %vm4164 = vmpackc.low %vm4163, %vm4162
      %v4165 = vsel %vm4164, %v4139, 0
      %v4166 = vsel %vm4164, %v4143, 0
      %v4167 = vsel %vm4164, %v4147, 0
      %v4168 = vsel %vm4164, %v4151, 0
      %4169 = vrot.lane.b32.xlu0 %v3862, 124
      %v4170 = vpop.permute.xlu0 %4169
      %4171 = vrot.lane.b32.xlu0 %v3863, 124
      %v4172 = vpop.permute.xlu0 %4171
      %4173 = vrot.lane.b32.xlu0 %v3864, 124
      %v4174 = vpop.permute.xlu0 %4173
      %4175 = vrot.lane.b32.xlu0 %v3865, 124
      %v4176 = vpop.permute.xlu0 %4175
      %4177 = vrot.lane.b32.xlu0 %v3862, 12
      %v4178 = vpop.permute.xlu0 %4177
      %4179 = vrot.lane.b32.xlu0 %v3863, 12
      %v4180 = vpop.permute.xlu0 %4179
      %4181 = vrot.lane.b32.xlu0 %v3864, 12
      %v4182 = vpop.permute.xlu0 %4181
      %4183 = vrot.lane.b32.xlu0 %v3865, 12
      %v4184 = vpop.permute.xlu0 %4183
      %vm4185 = vcmask 97280
      %v4188 = vsel %vm4185, %v4170, %v4178
      %v4192 = vsel %vm4185, %v4172, %v4180
      %v4196 = vsel %vm4185, %v4174, %v4182
      %v4200 = vsel %vm4185, %v4176, %v4184
      %v4202 = vsel %vm327, 1, 0
      %vm4203 = vcmp.eq.s32.totalorder %v4202, 1
      %vm4204 = vmpackc.low %vm4203, %vm4203
      %v4205 = vsel %vm4204, 65537, 0
      %v4206 = vperm.slane %v4205, 0
      %v4207 = vunpack.c.l.b16 %v4206
      %v4208 = vunpack.c.h.b16 %v4206
      %v4209 = vunpack.c.l.b16 0
      %v4210 = vunpack.c.h.b16 0
      %vm4211 = vcmp.ne.s32.totalorder %v4207, %v4209
      %vm4212 = vcmp.ne.s32.totalorder %v4208, %v4210
      %vm4213 = vmpackc.low %vm4212, %vm4211
      %v4214 = vsel %vm4213, %v4188, 0
      %v4215 = vsel %vm4213, %v4192, 0
      %v4216 = vsel %vm4213, %v4196, 0
      %v4217 = vsel %vm4213, %v4200, 0
      %4218 = vrot.lane.b32.xlu0 %v3862, 123
      %v4219 = vpop.permute.xlu0 %4218
      %4220 = vrot.lane.b32.xlu0 %v3863, 123
      %v4221 = vpop.permute.xlu0 %4220
      %4222 = vrot.lane.b32.xlu0 %v3864, 123
      %v4223 = vpop.permute.xlu0 %4222
      %4224 = vrot.lane.b32.xlu0 %v3865, 123
      %v4225 = vpop.permute.xlu0 %4224
      %4226 = vrot.lane.b32.xlu0 %v3862, 11
      %v4227 = vpop.permute.xlu0 %4226
      %4228 = vrot.lane.b32.xlu0 %v3863, 11
      %v4229 = vpop.permute.xlu0 %4228
      %4230 = vrot.lane.b32.xlu0 %v3864, 11
      %v4231 = vpop.permute.xlu0 %4230
      %4232 = vrot.lane.b32.xlu0 %v3865, 11
      %v4233 = vpop.permute.xlu0 %4232
      %vm4234 = vcmask 89088
      %v4237 = vsel %vm4234, %v4219, %v4227
      %v4241 = vsel %vm4234, %v4221, %v4229
      %v4245 = vsel %vm4234, %v4223, %v4231
      %v4249 = vsel %vm4234, %v4225, %v4233
      %v4251 = vsel %vm329, 1, 0
      %vm4252 = vcmp.eq.s32.totalorder %v4251, 1
      %vm4253 = vmpackc.low %vm4252, %vm4252
      %v4254 = vsel %vm4253, 65537, 0
      %v4255 = vperm.slane %v4254, 0
      %v4256 = vunpack.c.l.b16 %v4255
      %v4257 = vunpack.c.h.b16 %v4255
      %v4258 = vunpack.c.l.b16 0
      %v4259 = vunpack.c.h.b16 0
      %vm4260 = vcmp.ne.s32.totalorder %v4256, %v4258
      %vm4261 = vcmp.ne.s32.totalorder %v4257, %v4259
      %vm4262 = vmpackc.low %vm4261, %vm4260
      %v4263 = vsel %vm4262, %v4237, 0
      %v4264 = vsel %vm4262, %v4241, 0
      %v4265 = vsel %vm4262, %v4245, 0
      %v4266 = vsel %vm4262, %v4249, 0
      %v4275 = vunpack.c.l.b16 %v4064
      %v4276 = vunpack.c.l.b16 %v4065
      %v4277 = vunpack.c.l.b16 %v4066
      %v4278 = vunpack.c.l.b16 %v4067
      %v4279 = vunpack.c.l.b16 %v4068
      %v4280 = vunpack.c.l.b16 %v4069
      %v4281 = vunpack.c.l.b16 %v4070
      %v4282 = vunpack.c.l.b16 %v4071
      %v4283 = vpack.c.b16 %v4276, %v4275
      %v4284 = vpack.c.b16 %v4278, %v4277
      %v4285 = vpack.c.b16 %v4280, %v4279
      %v4286 = vpack.c.b16 %v4282, %v4281
      %v4291 = vld [vmem:[%s1 + $0x2f8] sm:$0xff]
      %v4292 = vld [vmem:[%s1 + $0x300] sm:$0xff]
      %v4293 = vld [vmem:[%s1 + $0x308] sm:$0xf]
      %v4294 = vld [vmem:[%s1 + $0x30c] sm:$0xff]
      %v4295 = vld [vmem:[%s1 + $0x314] sm:$0xff]
      %v4296 = vld [vmem:[%s1 + $0x31c] sm:$0xf]
      %v4297 = vld [vmem:[%s1 + $0x320] sm:$0xff]
      %v4298 = vld [vmem:[%s1 + $0x328] sm:$0xff]
      %v4299 = vld [vmem:[%s1 + $0x330] sm:$0xf]
      %v4300 = vld [vmem:[%s1 + $0x334] sm:$0xff]
      %v4301 = vld [vmem:[%s1 + $0x33c] sm:$0xff]
      %v4302 = vld [vmem:[%s1 + $0x344] sm:$0xf]
      %v4303 = vld [vmem:[%s1 + $0x348] sm:$0xff]
      %v4304 = vld [vmem:[%s1 + $0x350] sm:$0xff]
      %v4305 = vld [vmem:[%s1 + $0x358] sm:$0xf]
      %v4306 = vld [vmem:[%s1 + $0x35c] sm:$0xff]
      %v4307 = vld [vmem:[%s1 + $0x364] sm:$0xff]
      %v4308 = vld [vmem:[%s1 + $0x36c] sm:$0xf]
      %v4309 = vld [vmem:[%s1 + $0x370] sm:$0xff]
      %v4310 = vld [vmem:[%s1 + $0x378] sm:$0xff]
      %v4311 = vld [vmem:[%s1 + $0x380] sm:$0xf]
      %v4312 = vld [vmem:[%s1 + $0x384] sm:$0xff]
      %v4313 = vld [vmem:[%s1 + $0x38c] sm:$0xff]
      %v4314 = vld [vmem:[%s1 + $0x394] sm:$0xf]
      %4315 = vset.pattern.permute.xlu0 11
      %4316 = vperm.xlu0 %4315, %v3700
      %v4317 = vpop.permute.xlu0 %4316
      %4319 = vset.pattern.permute.xlu0 11
      %4320 = vperm.xlu0 %4319, %v3701
      %v4321 = vpop.permute.xlu0 %4320
      %4323 = vset.pattern.permute.xlu0 11
      %4324 = vperm.xlu0 %4323, %v3702
      %v4325 = vpop.permute.xlu0 %4324
      %4327 = vset.pattern.permute.xlu0 11
      %4328 = vperm.xlu0 %4327, %v3703
      %v4329 = vpop.permute.xlu0 %4328
      %4331 = vset.pattern.permute.xlu0 11
      %4332 = vperm.xlu0 %4331, %v3704
      %v4333 = vpop.permute.xlu0 %4332
      %4335 = vset.pattern.permute.xlu0 11
      %4336 = vperm.xlu0 %4335, %v3705
      %v4337 = vpop.permute.xlu0 %4336
      %4339 = vset.pattern.permute.xlu0 11
      %4340 = vperm.xlu0 %4339, %v3706
      %v4341 = vpop.permute.xlu0 %4340
      %4343 = vset.pattern.permute.xlu0 11
      %4344 = vperm.xlu0 %4343, %v3707
      %v4345 = vpop.permute.xlu0 %4344
      %v4371 = vunpack.c.l.b16 %v4291
      %v4372 = vunpack.c.h.b16 %v4291
      %v4373 = vunpack.c.l.b16 %v4292
      %v4374 = vunpack.c.h.b16 %v4292
      %v4375 = vunpack.c.l.b16 %v4293
      %v4376 = vunpack.c.l.b16 %v4294
      %v4377 = vunpack.c.h.b16 %v4294
      %v4378 = vunpack.c.l.b16 %v4295
      %v4379 = vunpack.c.h.b16 %v4295
      %v4380 = vunpack.c.l.b16 %v4296
      %v4381 = vunpack.c.l.b16 %v4297
      %v4382 = vunpack.c.h.b16 %v4297
      %v4383 = vunpack.c.l.b16 %v4298
      %v4384 = vunpack.c.h.b16 %v4298
      %v4385 = vunpack.c.l.b16 %v4299
      %v4386 = vunpack.c.l.b16 %v4300
      %v4387 = vunpack.c.h.b16 %v4300
      %v4388 = vunpack.c.l.b16 %v4301
      %v4389 = vunpack.c.h.b16 %v4301
      %v4390 = vunpack.c.l.b16 %v4302
      %v4391 = vunpack.c.l.b16 %v4303
      %v4392 = vunpack.c.h.b16 %v4303
      %v4393 = vunpack.c.l.b16 %v4304
      %v4394 = vunpack.c.h.b16 %v4304
      %v4395 = vunpack.c.l.b16 %v4305
      %v4396 = vunpack.c.l.b16 %v4306
      %v4397 = vunpack.c.h.b16 %v4306
      %v4398 = vunpack.c.l.b16 %v4307
      %v4399 = vunpack.c.h.b16 %v4307
      %v4400 = vunpack.c.l.b16 %v4308
      %v4401 = vunpack.c.l.b16 %v4309
      %v4402 = vunpack.c.h.b16 %v4309
      %v4403 = vunpack.c.l.b16 %v4310
      %v4404 = vunpack.c.h.b16 %v4310
      %v4405 = vunpack.c.l.b16 %v4311
      %v4406 = vunpack.c.l.b16 %v4312
      %v4407 = vunpack.c.h.b16 %v4312
      %v4408 = vunpack.c.l.b16 %v4313
      %v4409 = vunpack.c.h.b16 %v4313
      %v4410 = vunpack.c.l.b16 %v4314
      %v4411 = vpack.c.b16 %v4376, %v4371
      %v4412 = vpack.c.b16 %v4377, %v4372
      %v4413 = vpack.c.b16 %v4378, %v4373
      %v4414 = vpack.c.b16 %v4379, %v4374
      %v4415 = vpack.c.b16 %v4380, %v4375
      %v4416 = vpack.c.b16 %v4386, %v4381
      %v4417 = vpack.c.b16 %v4387, %v4382
      %v4418 = vpack.c.b16 %v4388, %v4383
      %v4419 = vpack.c.b16 %v4389, %v4384
      %v4420 = vpack.c.b16 %v4390, %v4385
      %v4421 = vpack.c.b16 %v4396, %v4391
      %v4422 = vpack.c.b16 %v4397, %v4392
      %v4423 = vpack.c.b16 %v4398, %v4393
      %v4424 = vpack.c.b16 %v4399, %v4394
      %v4425 = vpack.c.b16 %v4400, %v4395
      %v4426 = vpack.c.b16 %v4406, %v4401
      %v4427 = vpack.c.b16 %v4407, %v4402
      %v4428 = vpack.c.b16 %v4408, %v4403
      %v4429 = vpack.c.b16 %v4409, %v4404
      %v4430 = vpack.c.b16 %v4410, %v4405
      %v4448 = vsel %vm3772, %v4415, 0
      %v4451 = vsel %vm3772, %v4420, 0
      %v4454 = vsel %vm3772, %v4425, 0
      %v4457 = vsel %vm3772, %v4430, 0
      %4459 = vmatpush.bf16.msra.mxu0 %v3963
      %4460 = vmatpush.bf16.msra.mxu0 %v3962
      %4461 = vmatpush.bf16.msra.mxu0 %v3961
      %4462 = vmatpush.bf16.msra.mxu0 %v3960
      %4463 = vmatpush.bf16.msra.mxu0 %v3914
      %4464 = vmatpush.bf16.msra.mxu0 %v3913
      %4465 = vmatpush.bf16.msra.mxu0 %v3912
      %4466 = vmatpush.bf16.msra.mxu0 %v3911
      %4467 = vmatmul.bf16.gmra.mxu0 %v4411
      %v4468 = vpop.f32.mrf.mxu0
      %v4469 = vadd.f32 %v4317, %v4468
      %v4470 = vpop.f32.mrf.mxu0
      %v4471 = vadd.f32 %v4321, %v4470
      %4472 = vmatmul.bf16.gmra.mxu0 %v4416
      %v4473 = vpop.f32.mrf.mxu0
      %v4474 = vadd.f32 %v4325, %v4473
      %v4475 = vpop.f32.mrf.mxu0
      %v4476 = vadd.f32 %v4329, %v4475
      %4477 = vmatmul.bf16.gmra.mxu0 %v4421
      %v4478 = vpop.f32.mrf.mxu0
      %v4479 = vadd.f32 %v4333, %v4478
      %v4480 = vpop.f32.mrf.mxu0
      %v4481 = vadd.f32 %v4337, %v4480
      %4482 = vmatmul.bf16.gmra.mxu0 %v4426
      %v4483 = vpop.f32.mrf.mxu0
      %v4484 = vadd.f32 %v4341, %v4483
      %v4485 = vpop.f32.mrf.mxu0
      %v4486 = vadd.f32 %v4345, %v4485
      %4487 = vdwg.mxu0
      %4488 = vmatpush.bf16.msra.mxu0 %v4060
      %4489 = vmatpush.bf16.msra.mxu0 %v4059
      %4490 = vmatpush.bf16.msra.mxu0 %v4058
      %4491 = vmatpush.bf16.msra.mxu0 %v4057
      %4492 = vmatpush.bf16.msra.mxu0 %v4012
      %4493 = vmatpush.bf16.msra.mxu0 %v4011
      %4494 = vmatpush.bf16.msra.mxu0 %v4010
      %4495 = vmatpush.bf16.msra.mxu0 %v4009
      %4496 = vmatmul.bf16.gmra.mxu0 %v4412
      %v4497 = vpop.f32.mrf.mxu0
      %v4498 = vadd.f32 %v4469, %v4497
      %v4499 = vpop.f32.mrf.mxu0
      %v4500 = vadd.f32 %v4471, %v4499
      %4501 = vmatmul.bf16.gmra.mxu0 %v4417
      %v4502 = vpop.f32.mrf.mxu0
      %v4503 = vadd.f32 %v4474, %v4502
      %v4504 = vpop.f32.mrf.mxu0
      %v4505 = vadd.f32 %v4476, %v4504
      %4506 = vmatmul.bf16.gmra.mxu0 %v4422
      %v4507 = vpop.f32.mrf.mxu0
      %v4508 = vadd.f32 %v4479, %v4507
      %v4509 = vpop.f32.mrf.mxu0
      %v4510 = vadd.f32 %v4481, %v4509
      %4511 = vmatmul.bf16.gmra.mxu0 %v4427
      %v4512 = vpop.f32.mrf.mxu0
      %v4513 = vadd.f32 %v4484, %v4512
      %v4514 = vpop.f32.mrf.mxu0
      %v4515 = vadd.f32 %v4486, %v4514
      %4516 = vdwg.mxu0
      %4517 = vmatpush.bf16.msra.mxu0 %v4119
      %4518 = vmatpush.bf16.msra.mxu0 %v4118
      %4519 = vmatpush.bf16.msra.mxu0 %v4117
      %4520 = vmatpush.bf16.msra.mxu0 %v4116
      %4521 = vmatpush.bf16.msra.mxu0 %v4286
      %4522 = vmatpush.bf16.msra.mxu0 %v4285
      %4523 = vmatpush.bf16.msra.mxu0 %v4284
      %4524 = vmatpush.bf16.msra.mxu0 %v4283
      %4525 = vmatmul.bf16.gmra.mxu0 %v4413
      %v4526 = vpop.f32.mrf.mxu0
      %v4527 = vadd.f32 %v4498, %v4526
      %v4528 = vpop.f32.mrf.mxu0
      %v4529 = vadd.f32 %v4500, %v4528
      %4530 = vmatmul.bf16.gmra.mxu0 %v4418
      %v4531 = vpop.f32.mrf.mxu0
      %v4532 = vadd.f32 %v4503, %v4531
      %v4533 = vpop.f32.mrf.mxu0
      %v4534 = vadd.f32 %v4505, %v4533
      %4535 = vmatmul.bf16.gmra.mxu0 %v4423
      %v4536 = vpop.f32.mrf.mxu0
      %v4537 = vadd.f32 %v4508, %v4536
      %v4538 = vpop.f32.mrf.mxu0
      %v4539 = vadd.f32 %v4510, %v4538
      %4540 = vmatmul.bf16.gmra.mxu0 %v4428
      %v4541 = vpop.f32.mrf.mxu0
      %v4542 = vadd.f32 %v4513, %v4541
      %v4543 = vpop.f32.mrf.mxu0
      %v4544 = vadd.f32 %v4515, %v4543
      %4545 = vdwg.mxu0
      %4546 = vmatpush.bf16.msra.mxu0 %v4217
      %4547 = vmatpush.bf16.msra.mxu0 %v4216
      %4548 = vmatpush.bf16.msra.mxu0 %v4215
      %4549 = vmatpush.bf16.msra.mxu0 %v4214
      %4550 = vmatpush.bf16.msra.mxu0 %v4168
      %4551 = vmatpush.bf16.msra.mxu0 %v4167
      %4552 = vmatpush.bf16.msra.mxu0 %v4166
      %4553 = vmatpush.bf16.msra.mxu0 %v4165
      %4554 = vmatmul.bf16.gmra.mxu0 %v4414
      %v4555 = vpop.f32.mrf.mxu0
      %v4556 = vadd.f32 %v4527, %v4555
      %v4557 = vpop.f32.mrf.mxu0
      %v4558 = vadd.f32 %v4529, %v4557
      %4559 = vmatmul.bf16.gmra.mxu0 %v4419
      %v4560 = vpop.f32.mrf.mxu0
      %v4561 = vadd.f32 %v4532, %v4560
      %v4562 = vpop.f32.mrf.mxu0
      %v4563 = vadd.f32 %v4534, %v4562
      %4564 = vmatmul.bf16.gmra.mxu0 %v4424
      %v4565 = vpop.f32.mrf.mxu0
      %v4566 = vadd.f32 %v4537, %v4565
      %v4567 = vpop.f32.mrf.mxu0
      %v4568 = vadd.f32 %v4539, %v4567
      %4569 = vmatmul.bf16.gmra.mxu0 %v4429
      %v4570 = vpop.f32.mrf.mxu0
      %v4571 = vadd.f32 %v4542, %v4570
      %v4572 = vpop.f32.mrf.mxu0
      %v4573 = vadd.f32 %v4544, %v4572
      %4574 = vdwg.mxu0
      %4575 = vmatpush.bf16.msra.mxu0 0
      %4576 = vmatpush.bf16.msra.mxu0 0
      %4577 = vmatpush.bf16.msra.mxu0 0
      %4578 = vmatpush.bf16.msra.mxu0 0
      %4579 = vmatpush.bf16.msra.mxu0 %v4266
      %4580 = vmatpush.bf16.msra.mxu0 %v4265
      %4581 = vmatpush.bf16.msra.mxu0 %v4264
      %4582 = vmatpush.bf16.msra.mxu0 %v4263
      %4583 = vmatmul.bf16.gmra.mxu0 %v4448
      %v4584 = vpop.f32.mrf.mxu0
      %v4585 = vadd.f32 %v4556, %v4584
      %v4586 = vpop.f32.mrf.mxu0
      %v4587 = vadd.f32 %v4558, %v4586
      %4588 = vmatmul.bf16.gmra.mxu0 %v4451
      %v4589 = vpop.f32.mrf.mxu0
      %v4590 = vadd.f32 %v4561, %v4589
      %v4591 = vpop.f32.mrf.mxu0
      %v4592 = vadd.f32 %v4563, %v4591
      %4593 = vmatmul.bf16.gmra.mxu0 %v4454
      %v4594 = vpop.f32.mrf.mxu0
      %v4595 = vadd.f32 %v4566, %v4594
      %v4596 = vpop.f32.mrf.mxu0
      %v4597 = vadd.f32 %v4568, %v4596
      %4598 = vmatmul.bf16.gmra.mxu0 %v4457
      %v4599 = vpop.f32.mrf.mxu0
      %v4600 = vadd.f32 %v4571, %v4599
      %v4601 = vpop.f32.mrf.mxu0
      %v4602 = vadd.f32 %v4573, %v4601
      %4603 = vdwg.mxu0
      %v4605 = vsel %vm3772, %v3359, 0
      %v4608 = vsel %vm3772, %v3360, 0
      %4610 = vmatpush.bf16.msra.mxu0 0
      %4611 = vmatpush.bf16.msra.mxu0 0
      %4612 = vmatpush.bf16.msra.mxu0 0
      %4613 = vmatpush.bf16.msra.mxu0 0
      %4614 = vmatpush.bf16.msra.mxu0 %v3767
      %4615 = vmatpush.bf16.msra.mxu0 %v3766
      %4616 = vmatpush.bf16.msra.mxu0 %v3765
      %4617 = vmatpush.bf16.msra.mxu0 %v3764
      %4618 = vmatmul.bf16.gmra.mxu0 %v4605
      %v4619 = vpop.f32.mrf.mxu0
      %v4620 = vadd.f32 0.0, %v4619
      %v4621 = vpop.f32.mrf.mxu0
      %v4622 = vadd.f32 0.0, %v4621
      %4623 = vmatmul.bf16.gmra.mxu0 %v4608
      %v4624 = vpop.f32.mrf.mxu0
      %v4625 = vadd.f32 0.0, %v4624
      %v4626 = vpop.f32.mrf.mxu0
      %v4627 = vadd.f32 0.0, %v4626
      %4628 = vdwg.mxu0
      %v4629 = vld [vmem:[%s1 + $0x398] sm:$0xf]
      %v4630 = vld [vmem:[%s1 + $0x3ac] sm:$0xf]
      %v4631 = vld [vmem:[%s1 + $0x3c0] sm:$0xf]
      %v4632 = vld [vmem:[%s1 + $0x3d4] sm:$0xf]
      %v4633 = vld [vmem:[%s1 + $0x3e8] sm:$0xf]
      %v4634 = vld [vmem:[%s1 + $0x3fc] sm:$0xf]
      %v4635 = vld [vmem:[%s1 + $0x410] sm:$0xf]
      %v4636 = vld [vmem:[%s1 + $0x424] sm:$0xf]
      %v4637 = vpack.c.bf16 %v4622, %v4620
      %v4638 = vpack.c.bf16 %v4627, %v4625
      %4639 = vset.pattern.permute.xlu0 12
      %4640 = vperm.xlu0 %4639, %v3700
      %v4641 = vpop.permute.xlu0 %4640
      %4643 = vset.pattern.permute.xlu0 12
      %4644 = vperm.xlu0 %4643, %v3701
      %v4645 = vpop.permute.xlu0 %4644
      %4647 = vset.pattern.permute.xlu0 12
      %4648 = vperm.xlu0 %4647, %v3702
      %v4649 = vpop.permute.xlu0 %4648
      %4651 = vset.pattern.permute.xlu0 12
      %4652 = vperm.xlu0 %4651, %v3703
      %v4653 = vpop.permute.xlu0 %4652
      %4655 = vset.pattern.permute.xlu0 12
      %4656 = vperm.xlu0 %4655, %v3704
      %v4657 = vpop.permute.xlu0 %4656
      %4659 = vset.pattern.permute.xlu0 12
      %4660 = vperm.xlu0 %4659, %v3705
      %v4661 = vpop.permute.xlu0 %4660
      %4663 = vset.pattern.permute.xlu0 12
      %4664 = vperm.xlu0 %4663, %v3706
      %v4665 = vpop.permute.xlu0 %4664
      %4667 = vset.pattern.permute.xlu0 12
      %4668 = vperm.xlu0 %4667, %v3707
      %v4669 = vpop.permute.xlu0 %4668
      %v4679 = vunpack.c.l.b16 %v4629
      %v4680 = vunpack.c.l.b16 %v4630
      %v4681 = vunpack.c.l.b16 %v4631
      %v4682 = vunpack.c.l.b16 %v4632
      %v4683 = vunpack.c.l.b16 %v4633
      %v4684 = vunpack.c.l.b16 %v4634
      %v4685 = vunpack.c.l.b16 %v4635
      %v4686 = vunpack.c.l.b16 %v4636
      %v4687 = vpack.c.b16 %v4680, %v4679
      %v4688 = vpack.c.b16 %v4682, %v4681
      %v4689 = vpack.c.b16 %v4684, %v4683
      %v4690 = vpack.c.b16 %v4686, %v4685
      %v4692 = vsel %vm2563, %v4687, 0
      %v4695 = vsel %vm2563, %v4688, 0
      %v4698 = vsel %vm2563, %v4689, 0
      %v4701 = vsel %vm2563, %v4690, 0
      %4703 = vmatpush.bf16.msra.mxu0 0
      %4704 = vmatpush.bf16.msra.mxu0 0
      %4705 = vmatpush.bf16.msra.mxu0 0
      %4706 = vmatpush.bf16.msra.mxu0 0
      %4707 = vmatpush.bf16.msra.mxu0 0
      %4708 = vmatpush.bf16.msra.mxu0 0
      %4709 = vmatpush.bf16.msra.mxu0 %v4638
      %4710 = vmatpush.bf16.msra.mxu0 %v4637
      %4711 = vmatmul.bf16.gmra.mxu0 %v4692
      %v4712 = vpop.f32.mrf.mxu0
      %v4713 = vadd.f32 %v4641, %v4712
      %v4714 = vpop.f32.mrf.mxu0
      %v4715 = vadd.f32 %v4645, %v4714
      %4716 = vmatmul.bf16.gmra.mxu0 %v4695
      %v4717 = vpop.f32.mrf.mxu0
      %v4718 = vadd.f32 %v4649, %v4717
      %v4719 = vpop.f32.mrf.mxu0
      %v4720 = vadd.f32 %v4653, %v4719
      %4721 = vmatmul.bf16.gmra.mxu0 %v4698
      %v4722 = vpop.f32.mrf.mxu0
      %v4723 = vadd.f32 %v4657, %v4722
      %v4724 = vpop.f32.mrf.mxu0
      %v4725 = vadd.f32 %v4661, %v4724
      %4726 = vmatmul.bf16.gmra.mxu0 %v4701
      %v4727 = vpop.f32.mrf.mxu0
      %v4728 = vadd.f32 %v4665, %v4727
      %v4729 = vpop.f32.mrf.mxu0
      %v4730 = vadd.f32 %v4669, %v4729
      %4731 = vdwg.mxu0
      %v4732 = vadd.f32 %v4585, %v4713
      %v4733 = vadd.f32 %v4587, %v4715
      %v4734 = vadd.f32 %v4590, %v4718
      %v4735 = vadd.f32 %v4592, %v4720
      %v4736 = vadd.f32 %v4595, %v4723
      %v4737 = vadd.f32 %v4597, %v4725
      %v4738 = vadd.f32 %v4600, %v4728
      %v4739 = vadd.f32 %v4602, %v4730
      %vm4740 = vcmp.gt.f32.partialorder %v4732, 0.0
      %vm4741 = vcmp.gt.f32.partialorder %v4733, 0.0
      %vm4742 = vcmp.gt.f32.partialorder %v4734, 0.0
      %vm4743 = vcmp.gt.f32.partialorder %v4735, 0.0
      %vm4744 = vcmp.gt.f32.partialorder %v4736, 0.0
      %vm4745 = vcmp.gt.f32.partialorder %v4737, 0.0
      %vm4746 = vcmp.gt.f32.partialorder %v4738, 0.0
      %vm4747 = vcmp.gt.f32.partialorder %v4739, 0.0
      %v4748 = vmul.f32 %v4732, 0.01
      %v4749 = vmul.f32 %v4733, 0.01
      %v4750 = vmul.f32 %v4734, 0.01
      %v4751 = vmul.f32 %v4735, 0.01
      %v4752 = vmul.f32 %v4736, 0.01
      %v4753 = vmul.f32 %v4737, 0.01
      %v4754 = vmul.f32 %v4738, 0.01
      %v4755 = vmul.f32 %v4739, 0.01
      %v4756 = vsel %vm4740, %v4732, %v4748
      %v4757 = vsel %vm4741, %v4733, %v4749
      %v4758 = vsel %vm4742, %v4734, %v4750
      %v4759 = vsel %vm4743, %v4735, %v4751
      %v4760 = vsel %vm4744, %v4736, %v4752
      %v4761 = vsel %vm4745, %v4737, %v4753
      %v4762 = vsel %vm4746, %v4738, %v4754
      %v4763 = vsel %vm4747, %v4739, %v4755
      %v4764 = vpack.c.bf16 %v4756, %v4756
      %v4765 = vpack.c.bf16 %v4757, %v4757
      %v4766 = vpack.c.bf16 %v4758, %v4758
      %v4767 = vpack.c.bf16 %v4759, %v4759
      %v4768 = vpack.c.bf16 %v4760, %v4760
      %v4769 = vpack.c.bf16 %v4761, %v4761
      %v4770 = vpack.c.bf16 %v4762, %v4762
      %v4771 = vpack.c.bf16 %v4763, %v4763
      %v4780 = vunpack.c.l.b16 %v4764
      %v4781 = vunpack.c.l.b16 %v4765
      %v4782 = vunpack.c.l.b16 %v4766
      %v4783 = vunpack.c.l.b16 %v4767
      %v4784 = vunpack.c.l.b16 %v4768
      %v4785 = vunpack.c.l.b16 %v4769
      %v4786 = vunpack.c.l.b16 %v4770
      %v4787 = vunpack.c.l.b16 %v4771
      %v4788 = vpack.c.b16 %v4781, %v4780
      %v4789 = vpack.c.b16 %v4783, %v4782
      %v4790 = vpack.c.b16 %v4785, %v4784
      %v4791 = vpack.c.b16 %v4787, %v4786
      %4792 = vrot.lane.b32.xlu0 %v4788, 117
      %v4793 = vpop.permute.xlu0 %4792
      %4794 = vrot.lane.b32.xlu0 %v4789, 117
      %v4795 = vpop.permute.xlu0 %4794
      %4796 = vrot.lane.b32.xlu0 %v4790, 117
      %v4797 = vpop.permute.xlu0 %4796
      %4798 = vrot.lane.b32.xlu0 %v4791, 117
      %v4799 = vpop.permute.xlu0 %4798
      %4800 = vrot.lane.b32.xlu0 %v4788, 5
      %v4801 = vpop.permute.xlu0 %4800
      %4802 = vrot.lane.b32.xlu0 %v4789, 5
      %v4803 = vpop.permute.xlu0 %4802
      %4804 = vrot.lane.b32.xlu0 %v4790, 5
      %v4805 = vpop.permute.xlu0 %4804
      %4806 = vrot.lane.b32.xlu0 %v4791, 5
      %v4807 = vpop.permute.xlu0 %4806
      %v4810 = vsel %vm3882, %v4793, %v4801
      %v4814 = vsel %vm3882, %v4795, %v4803
      %v4818 = vsel %vm3882, %v4797, %v4805
      %v4822 = vsel %vm3882, %v4799, %v4807
      %v4824 = vsel %vm3910, %v4810, 0
      %v4825 = vsel %vm3910, %v4814, 0
      %v4826 = vsel %vm3910, %v4818, 0
      %v4827 = vsel %vm3910, %v4822, 0
      %4828 = vrot.lane.b32.xlu0 %v4788, 116
      %v4829 = vpop.permute.xlu0 %4828
      %4830 = vrot.lane.b32.xlu0 %v4789, 116
      %v4831 = vpop.permute.xlu0 %4830
      %4832 = vrot.lane.b32.xlu0 %v4790, 116
      %v4833 = vpop.permute.xlu0 %4832
      %4834 = vrot.lane.b32.xlu0 %v4791, 116
      %v4835 = vpop.permute.xlu0 %4834
      %4836 = vrot.lane.b32.xlu0 %v4788, 4
      %v4837 = vpop.permute.xlu0 %4836
      %4838 = vrot.lane.b32.xlu0 %v4789, 4
      %v4839 = vpop.permute.xlu0 %4838
      %4840 = vrot.lane.b32.xlu0 %v4790, 4
      %v4841 = vpop.permute.xlu0 %4840
      %4842 = vrot.lane.b32.xlu0 %v4791, 4
      %v4843 = vpop.permute.xlu0 %4842
      %v4846 = vsel %vm3931, %v4829, %v4837
      %v4850 = vsel %vm3931, %v4831, %v4839
      %v4854 = vsel %vm3931, %v4833, %v4841
      %v4858 = vsel %vm3931, %v4835, %v4843
      %v4860 = vsel %vm3959, %v4846, 0
      %v4861 = vsel %vm3959, %v4850, 0
      %v4862 = vsel %vm3959, %v4854, 0
      %v4863 = vsel %vm3959, %v4858, 0
      %4864 = vrot.lane.b32.xlu0 %v4788, 115
      %v4865 = vpop.permute.xlu0 %4864
      %4866 = vrot.lane.b32.xlu0 %v4789, 115
      %v4867 = vpop.permute.xlu0 %4866
      %4868 = vrot.lane.b32.xlu0 %v4790, 115
      %v4869 = vpop.permute.xlu0 %4868
      %4870 = vrot.lane.b32.xlu0 %v4791, 115
      %v4871 = vpop.permute.xlu0 %4870
      %4872 = vrot.lane.b32.xlu0 %v4788, 3
      %v4873 = vpop.permute.xlu0 %4872
      %4874 = vrot.lane.b32.xlu0 %v4789, 3
      %v4875 = vpop.permute.xlu0 %4874
      %4876 = vrot.lane.b32.xlu0 %v4790, 3
      %v4877 = vpop.permute.xlu0 %4876
      %4878 = vrot.lane.b32.xlu0 %v4791, 3
      %v4879 = vpop.permute.xlu0 %4878
      %v4882 = vsel %vm3980, %v4865, %v4873
      %v4886 = vsel %vm3980, %v4867, %v4875
      %v4890 = vsel %vm3980, %v4869, %v4877
      %v4894 = vsel %vm3980, %v4871, %v4879
      %v4896 = vsel %vm4008, %v4882, 0
      %v4897 = vsel %vm4008, %v4886, 0
      %v4898 = vsel %vm4008, %v4890, 0
      %v4899 = vsel %vm4008, %v4894, 0
      %4900 = vrot.lane.b32.xlu0 %v4788, 113
      %v4901 = vpop.permute.xlu0 %4900
      %4902 = vrot.lane.b32.xlu0 %v4789, 113
      %v4903 = vpop.permute.xlu0 %4902
      %4904 = vrot.lane.b32.xlu0 %v4790, 113
      %v4905 = vpop.permute.xlu0 %4904
      %4906 = vrot.lane.b32.xlu0 %v4791, 113
      %v4907 = vpop.permute.xlu0 %4906
      %4908 = vrot.lane.b32.xlu0 %v4788, 1
      %v4909 = vpop.permute.xlu0 %4908
      %4910 = vrot.lane.b32.xlu0 %v4789, 1
      %v4911 = vpop.permute.xlu0 %4910
      %4912 = vrot.lane.b32.xlu0 %v4790, 1
      %v4913 = vpop.permute.xlu0 %4912
      %4914 = vrot.lane.b32.xlu0 %v4791, 1
      %v4915 = vpop.permute.xlu0 %4914
      %v4918 = vsel %vm445, %v4901, %v4909
      %v4922 = vsel %vm445, %v4903, %v4911
      %v4926 = vsel %vm445, %v4905, %v4913
      %v4930 = vsel %vm445, %v4907, %v4915
      %v4932 = vsel %vm4056, %v4918, 0
      %v4933 = vsel %vm4056, %v4922, 0
      %v4934 = vsel %vm4056, %v4926, 0
      %v4935 = vsel %vm4056, %v4930, 0
      %v4936 = vsel %vm4063, %v4764, 0
      %v4937 = vsel %vm4063, %v4765, 0
      %v4938 = vsel %vm4063, %v4766, 0
      %v4939 = vsel %vm4063, %v4767, 0
      %v4940 = vsel %vm4063, %v4768, 0
      %v4941 = vsel %vm4063, %v4769, 0
      %v4942 = vsel %vm4063, %v4770, 0
      %v4943 = vsel %vm4063, %v4771, 0
      %4944 = vrot.lane.b32.xlu0 %v4788, 127
      %v4945 = vpop.permute.xlu0 %4944
      %4946 = vrot.lane.b32.xlu0 %v4789, 127
      %v4947 = vpop.permute.xlu0 %4946
      %4948 = vrot.lane.b32.xlu0 %v4790, 127
      %v4949 = vpop.permute.xlu0 %4948
      %4950 = vrot.lane.b32.xlu0 %v4791, 127
      %v4951 = vpop.permute.xlu0 %4950
      %4952 = vrot.lane.b32.xlu0 %v4788, 15
      %v4953 = vpop.permute.xlu0 %4952
      %4954 = vrot.lane.b32.xlu0 %v4789, 15
      %v4955 = vpop.permute.xlu0 %4954
      %4956 = vrot.lane.b32.xlu0 %v4790, 15
      %v4957 = vpop.permute.xlu0 %4956
      %4958 = vrot.lane.b32.xlu0 %v4791, 15
      %v4959 = vpop.permute.xlu0 %4958
      %v4962 = vsel %vm413, %v4945, %v4953
      %v4966 = vsel %vm413, %v4947, %v4955
      %v4970 = vsel %vm413, %v4949, %v4957
      %v4974 = vsel %vm413, %v4951, %v4959
      %v4976 = vsel %vm4115, %v4962, 0
      %v4977 = vsel %vm4115, %v4966, 0
      %v4978 = vsel %vm4115, %v4970, 0
      %v4979 = vsel %vm4115, %v4974, 0
      %4980 = vrot.lane.b32.xlu0 %v4788, 125
      %v4981 = vpop.permute.xlu0 %4980
      %4982 = vrot.lane.b32.xlu0 %v4789, 125
      %v4983 = vpop.permute.xlu0 %4982
      %4984 = vrot.lane.b32.xlu0 %v4790, 125
      %v4985 = vpop.permute.xlu0 %4984
      %4986 = vrot.lane.b32.xlu0 %v4791, 125
      %v4987 = vpop.permute.xlu0 %4986
      %4988 = vrot.lane.b32.xlu0 %v4788, 13
      %v4989 = vpop.permute.xlu0 %4988
      %4990 = vrot.lane.b32.xlu0 %v4789, 13
      %v4991 = vpop.permute.xlu0 %4990
      %4992 = vrot.lane.b32.xlu0 %v4790, 13
      %v4993 = vpop.permute.xlu0 %4992
      %4994 = vrot.lane.b32.xlu0 %v4791, 13
      %v4995 = vpop.permute.xlu0 %4994
      %v4998 = vsel %vm4136, %v4981, %v4989
      %v5002 = vsel %vm4136, %v4983, %v4991
      %v5006 = vsel %vm4136, %v4985, %v4993
      %v5010 = vsel %vm4136, %v4987, %v4995
      %v5012 = vsel %vm4164, %v4998, 0
      %v5013 = vsel %vm4164, %v5002, 0
      %v5014 = vsel %vm4164, %v5006, 0
      %v5015 = vsel %vm4164, %v5010, 0
      %5016 = vrot.lane.b32.xlu0 %v4788, 124
      %v5017 = vpop.permute.xlu0 %5016
      %5018 = vrot.lane.b32.xlu0 %v4789, 124
      %v5019 = vpop.permute.xlu0 %5018
      %5020 = vrot.lane.b32.xlu0 %v4790, 124
      %v5021 = vpop.permute.xlu0 %5020
      %5022 = vrot.lane.b32.xlu0 %v4791, 124
      %v5023 = vpop.permute.xlu0 %5022
      %5024 = vrot.lane.b32.xlu0 %v4788, 12
      %v5025 = vpop.permute.xlu0 %5024
      %5026 = vrot.lane.b32.xlu0 %v4789, 12
      %v5027 = vpop.permute.xlu0 %5026
      %5028 = vrot.lane.b32.xlu0 %v4790, 12
      %v5029 = vpop.permute.xlu0 %5028
      %5030 = vrot.lane.b32.xlu0 %v4791, 12
      %v5031 = vpop.permute.xlu0 %5030
      %v5034 = vsel %vm4185, %v5017, %v5025
      %v5038 = vsel %vm4185, %v5019, %v5027
      %v5042 = vsel %vm4185, %v5021, %v5029
      %v5046 = vsel %vm4185, %v5023, %v5031
      %v5048 = vsel %vm4213, %v5034, 0
      %v5049 = vsel %vm4213, %v5038, 0
      %v5050 = vsel %vm4213, %v5042, 0
      %v5051 = vsel %vm4213, %v5046, 0
      %5052 = vrot.lane.b32.xlu0 %v4788, 123
      %v5053 = vpop.permute.xlu0 %5052
      %5054 = vrot.lane.b32.xlu0 %v4789, 123
      %v5055 = vpop.permute.xlu0 %5054
      %5056 = vrot.lane.b32.xlu0 %v4790, 123
      %v5057 = vpop.permute.xlu0 %5056
      %5058 = vrot.lane.b32.xlu0 %v4791, 123
      %v5059 = vpop.permute.xlu0 %5058
      %5060 = vrot.lane.b32.xlu0 %v4788, 11
      %v5061 = vpop.permute.xlu0 %5060
      %5062 = vrot.lane.b32.xlu0 %v4789, 11
      %v5063 = vpop.permute.xlu0 %5062
      %5064 = vrot.lane.b32.xlu0 %v4790, 11
      %v5065 = vpop.permute.xlu0 %5064
      %5066 = vrot.lane.b32.xlu0 %v4791, 11
      %v5067 = vpop.permute.xlu0 %5066
      %v5070 = vsel %vm4234, %v5053, %v5061
      %v5074 = vsel %vm4234, %v5055, %v5063
      %v5078 = vsel %vm4234, %v5057, %v5065
      %v5082 = vsel %vm4234, %v5059, %v5067
      %v5084 = vsel %vm4262, %v5070, 0
      %v5085 = vsel %vm4262, %v5074, 0
      %v5086 = vsel %vm4262, %v5078, 0
      %v5087 = vsel %vm4262, %v5082, 0
      %v5096 = vunpack.c.l.b16 %v4936
      %v5097 = vunpack.c.l.b16 %v4937
      %v5098 = vunpack.c.l.b16 %v4938
      %v5099 = vunpack.c.l.b16 %v4939
      %v5100 = vunpack.c.l.b16 %v4940
      %v5101 = vunpack.c.l.b16 %v4941
      %v5102 = vunpack.c.l.b16 %v4942
      %v5103 = vunpack.c.l.b16 %v4943
      %v5104 = vpack.c.b16 %v5097, %v5096
      %v5105 = vpack.c.b16 %v5099, %v5098
      %v5106 = vpack.c.b16 %v5101, %v5100
      %v5107 = vpack.c.b16 %v5103, %v5102
      %v5112 = vld [vmem:[%s1 + $0x438] sm:$0xff]
      %v5113 = vld [vmem:[%s1 + $0x440] sm:$0xff]
      %v5114 = vld [vmem:[%s1 + $0x448] sm:$0xf]
      %v5115 = vld [vmem:[%s1 + $0x44c] sm:$0xff]
      %v5116 = vld [vmem:[%s1 + $0x454] sm:$0xff]
      %v5117 = vld [vmem:[%s1 + $0x45c] sm:$0xf]
      %v5118 = vld [vmem:[%s1 + $0x460] sm:$0xff]
      %v5119 = vld [vmem:[%s1 + $0x468] sm:$0xff]
      %v5120 = vld [vmem:[%s1 + $0x470] sm:$0xf]
      %v5121 = vld [vmem:[%s1 + $0x474] sm:$0xff]
      %v5122 = vld [vmem:[%s1 + $0x47c] sm:$0xff]
      %v5123 = vld [vmem:[%s1 + $0x484] sm:$0xf]
      %v5124 = vld [vmem:[%s1 + $0x488] sm:$0xff]
      %v5125 = vld [vmem:[%s1 + $0x490] sm:$0xff]
      %v5126 = vld [vmem:[%s1 + $0x498] sm:$0xf]
      %v5127 = vld [vmem:[%s1 + $0x49c] sm:$0xff]
      %v5128 = vld [vmem:[%s1 + $0x4a4] sm:$0xff]
      %v5129 = vld [vmem:[%s1 + $0x4ac] sm:$0xf]
      %v5130 = vld [vmem:[%s1 + $0x4b0] sm:$0xff]
      %v5131 = vld [vmem:[%s1 + $0x4b8] sm:$0xff]
      %v5132 = vld [vmem:[%s1 + $0x4c0] sm:$0xf]
      %v5133 = vld [vmem:[%s1 + $0x4c4] sm:$0xff]
      %v5134 = vld [vmem:[%s1 + $0x4cc] sm:$0xff]
      %v5135 = vld [vmem:[%s1 + $0x4d4] sm:$0xf]
      %5136 = vset.pattern.permute.xlu0 13
      %5137 = vperm.xlu0 %5136, %v3700
      %v5138 = vpop.permute.xlu0 %5137
      %5140 = vset.pattern.permute.xlu0 13
      %5141 = vperm.xlu0 %5140, %v3701
      %v5142 = vpop.permute.xlu0 %5141
      %5144 = vset.pattern.permute.xlu0 13
      %5145 = vperm.xlu0 %5144, %v3702
      %v5146 = vpop.permute.xlu0 %5145
      %5148 = vset.pattern.permute.xlu0 13
      %5149 = vperm.xlu0 %5148, %v3703
      %v5150 = vpop.permute.xlu0 %5149
      %5152 = vset.pattern.permute.xlu0 13
      %5153 = vperm.xlu0 %5152, %v3704
      %v5154 = vpop.permute.xlu0 %5153
      %5156 = vset.pattern.permute.xlu0 13
      %5157 = vperm.xlu0 %5156, %v3705
      %v5158 = vpop.permute.xlu0 %5157
      %5160 = vset.pattern.permute.xlu0 13
      %5161 = vperm.xlu0 %5160, %v3706
      %v5162 = vpop.permute.xlu0 %5161
      %5164 = vset.pattern.permute.xlu0 13
      %5165 = vperm.xlu0 %5164, %v3707
      %v5166 = vpop.permute.xlu0 %5165
      %v5192 = vunpack.c.l.b16 %v5112
      %v5193 = vunpack.c.h.b16 %v5112
      %v5194 = vunpack.c.l.b16 %v5113
      %v5195 = vunpack.c.h.b16 %v5113
      %v5196 = vunpack.c.l.b16 %v5114
      %v5197 = vunpack.c.l.b16 %v5115
      %v5198 = vunpack.c.h.b16 %v5115
      %v5199 = vunpack.c.l.b16 %v5116
      %v5200 = vunpack.c.h.b16 %v5116
      %v5201 = vunpack.c.l.b16 %v5117
      %v5202 = vunpack.c.l.b16 %v5118
      %v5203 = vunpack.c.h.b16 %v5118
      %v5204 = vunpack.c.l.b16 %v5119
      %v5205 = vunpack.c.h.b16 %v5119
      %v5206 = vunpack.c.l.b16 %v5120
      %v5207 = vunpack.c.l.b16 %v5121
      %v5208 = vunpack.c.h.b16 %v5121
      %v5209 = vunpack.c.l.b16 %v5122
      %v5210 = vunpack.c.h.b16 %v5122
      %v5211 = vunpack.c.l.b16 %v5123
      %v5212 = vunpack.c.l.b16 %v5124
      %v5213 = vunpack.c.h.b16 %v5124
      %v5214 = vunpack.c.l.b16 %v5125
      %v5215 = vunpack.c.h.b16 %v5125
      %v5216 = vunpack.c.l.b16 %v5126
      %v5217 = vunpack.c.l.b16 %v5127
      %v5218 = vunpack.c.h.b16 %v5127
      %v5219 = vunpack.c.l.b16 %v5128
      %v5220 = vunpack.c.h.b16 %v5128
      %v5221 = vunpack.c.l.b16 %v5129
      %v5222 = vunpack.c.l.b16 %v5130
      %v5223 = vunpack.c.h.b16 %v5130
      %v5224 = vunpack.c.l.b16 %v5131
      %v5225 = vunpack.c.h.b16 %v5131
      %v5226 = vunpack.c.l.b16 %v5132
      %v5227 = vunpack.c.l.b16 %v5133
      %v5228 = vunpack.c.h.b16 %v5133
      %v5229 = vunpack.c.l.b16 %v5134
      %v5230 = vunpack.c.h.b16 %v5134
      %v5231 = vunpack.c.l.b16 %v5135
      %v5232 = vpack.c.b16 %v5197, %v5192
      %v5233 = vpack.c.b16 %v5198, %v5193
      %v5234 = vpack.c.b16 %v5199, %v5194
      %v5235 = vpack.c.b16 %v5200, %v5195
      %v5236 = vpack.c.b16 %v5201, %v5196
      %v5237 = vpack.c.b16 %v5207, %v5202
      %v5238 = vpack.c.b16 %v5208, %v5203
      %v5239 = vpack.c.b16 %v5209, %v5204
      %v5240 = vpack.c.b16 %v5210, %v5205
      %v5241 = vpack.c.b16 %v5211, %v5206
      %v5242 = vpack.c.b16 %v5217, %v5212
      %v5243 = vpack.c.b16 %v5218, %v5213
      %v5244 = vpack.c.b16 %v5219, %v5214
      %v5245 = vpack.c.b16 %v5220, %v5215
      %v5246 = vpack.c.b16 %v5221, %v5216
      %v5247 = vpack.c.b16 %v5227, %v5222
      %v5248 = vpack.c.b16 %v5228, %v5223
      %v5249 = vpack.c.b16 %v5229, %v5224
      %v5250 = vpack.c.b16 %v5230, %v5225
      %v5251 = vpack.c.b16 %v5231, %v5226
      %v5269 = vsel %vm3772, %v5236, 0
      %v5272 = vsel %vm3772, %v5241, 0
      %v5275 = vsel %vm3772, %v5246, 0
      %v5278 = vsel %vm3772, %v5251, 0
      %5280 = vmatpush.bf16.msra.mxu0 %v4863
      %5281 = vmatpush.bf16.msra.mxu0 %v4862
      %5282 = vmatpush.bf16.msra.mxu0 %v4861
      %5283 = vmatpush.bf16.msra.mxu0 %v4860
      %5284 = vmatpush.bf16.msra.mxu0 %v4827
      %5285 = vmatpush.bf16.msra.mxu0 %v4826
      %5286 = vmatpush.bf16.msra.mxu0 %v4825
      %5287 = vmatpush.bf16.msra.mxu0 %v4824
      %5288 = vmatmul.bf16.gmra.mxu0 %v5232
      %v5289 = vpop.f32.mrf.mxu0
      %v5290 = vadd.f32 %v5138, %v5289
      %v5291 = vpop.f32.mrf.mxu0
      %v5292 = vadd.f32 %v5142, %v5291
      %5293 = vmatmul.bf16.gmra.mxu0 %v5237
      %v5294 = vpop.f32.mrf.mxu0
      %v5295 = vadd.f32 %v5146, %v5294
      %v5296 = vpop.f32.mrf.mxu0
      %v5297 = vadd.f32 %v5150, %v5296
      %5298 = vmatmul.bf16.gmra.mxu0 %v5242
      %v5299 = vpop.f32.mrf.mxu0
      %v5300 = vadd.f32 %v5154, %v5299
      %v5301 = vpop.f32.mrf.mxu0
      %v5302 = vadd.f32 %v5158, %v5301
      %5303 = vmatmul.bf16.gmra.mxu0 %v5247
      %v5304 = vpop.f32.mrf.mxu0
      %v5305 = vadd.f32 %v5162, %v5304
      %v5306 = vpop.f32.mrf.mxu0
      %v5307 = vadd.f32 %v5166, %v5306
      %5308 = vdwg.mxu0
      %5309 = vmatpush.bf16.msra.mxu0 %v4935
      %5310 = vmatpush.bf16.msra.mxu0 %v4934
      %5311 = vmatpush.bf16.msra.mxu0 %v4933
      %5312 = vmatpush.bf16.msra.mxu0 %v4932
      %5313 = vmatpush.bf16.msra.mxu0 %v4899
      %5314 = vmatpush.bf16.msra.mxu0 %v4898
      %5315 = vmatpush.bf16.msra.mxu0 %v4897
      %5316 = vmatpush.bf16.msra.mxu0 %v4896
      %5317 = vmatmul.bf16.gmra.mxu0 %v5233
      %v5318 = vpop.f32.mrf.mxu0
      %v5319 = vadd.f32 %v5290, %v5318
      %v5320 = vpop.f32.mrf.mxu0
      %v5321 = vadd.f32 %v5292, %v5320
      %5322 = vmatmul.bf16.gmra.mxu0 %v5238
      %v5323 = vpop.f32.mrf.mxu0
      %v5324 = vadd.f32 %v5295, %v5323
      %v5325 = vpop.f32.mrf.mxu0
      %v5326 = vadd.f32 %v5297, %v5325
      %5327 = vmatmul.bf16.gmra.mxu0 %v5243
      %v5328 = vpop.f32.mrf.mxu0
      %v5329 = vadd.f32 %v5300, %v5328
      %v5330 = vpop.f32.mrf.mxu0
      %v5331 = vadd.f32 %v5302, %v5330
      %5332 = vmatmul.bf16.gmra.mxu0 %v5248
      %v5333 = vpop.f32.mrf.mxu0
      %v5334 = vadd.f32 %v5305, %v5333
      %v5335 = vpop.f32.mrf.mxu0
      %v5336 = vadd.f32 %v5307, %v5335
      %5337 = vdwg.mxu0
      %5338 = vmatpush.bf16.msra.mxu0 %v4979
      %5339 = vmatpush.bf16.msra.mxu0 %v4978
      %5340 = vmatpush.bf16.msra.mxu0 %v4977
      %5341 = vmatpush.bf16.msra.mxu0 %v4976
      %5342 = vmatpush.bf16.msra.mxu0 %v5107
      %5343 = vmatpush.bf16.msra.mxu0 %v5106
      %5344 = vmatpush.bf16.msra.mxu0 %v5105
      %5345 = vmatpush.bf16.msra.mxu0 %v5104
      %5346 = vmatmul.bf16.gmra.mxu0 %v5234
      %v5347 = vpop.f32.mrf.mxu0
      %v5348 = vadd.f32 %v5319, %v5347
      %v5349 = vpop.f32.mrf.mxu0
      %v5350 = vadd.f32 %v5321, %v5349
      %5351 = vmatmul.bf16.gmra.mxu0 %v5239
      %v5352 = vpop.f32.mrf.mxu0
      %v5353 = vadd.f32 %v5324, %v5352
      %v5354 = vpop.f32.mrf.mxu0
      %v5355 = vadd.f32 %v5326, %v5354
      %5356 = vmatmul.bf16.gmra.mxu0 %v5244
      %v5357 = vpop.f32.mrf.mxu0
      %v5358 = vadd.f32 %v5329, %v5357
      %v5359 = vpop.f32.mrf.mxu0
      %v5360 = vadd.f32 %v5331, %v5359
      %5361 = vmatmul.bf16.gmra.mxu0 %v5249
      %v5362 = vpop.f32.mrf.mxu0
      %v5363 = vadd.f32 %v5334, %v5362
      %v5364 = vpop.f32.mrf.mxu0
      %v5365 = vadd.f32 %v5336, %v5364
      %5366 = vdwg.mxu0
      %5367 = vmatpush.bf16.msra.mxu0 %v5051
      %5368 = vmatpush.bf16.msra.mxu0 %v5050
      %5369 = vmatpush.bf16.msra.mxu0 %v5049
      %5370 = vmatpush.bf16.msra.mxu0 %v5048
      %5371 = vmatpush.bf16.msra.mxu0 %v5015
      %5372 = vmatpush.bf16.msra.mxu0 %v5014
      %5373 = vmatpush.bf16.msra.mxu0 %v5013
      %5374 = vmatpush.bf16.msra.mxu0 %v5012
      %5375 = vmatmul.bf16.gmra.mxu0 %v5235
      %v5376 = vpop.f32.mrf.mxu0
      %v5377 = vadd.f32 %v5348, %v5376
      %v5378 = vpop.f32.mrf.mxu0
      %v5379 = vadd.f32 %v5350, %v5378
      %5380 = vmatmul.bf16.gmra.mxu0 %v5240
      %v5381 = vpop.f32.mrf.mxu0
      %v5382 = vadd.f32 %v5353, %v5381
      %v5383 = vpop.f32.mrf.mxu0
      %v5384 = vadd.f32 %v5355, %v5383
      %5385 = vmatmul.bf16.gmra.mxu0 %v5245
      %v5386 = vpop.f32.mrf.mxu0
      %v5387 = vadd.f32 %v5358, %v5386
      %v5388 = vpop.f32.mrf.mxu0
      %v5389 = vadd.f32 %v5360, %v5388
      %5390 = vmatmul.bf16.gmra.mxu0 %v5250
      %v5391 = vpop.f32.mrf.mxu0
      %v5392 = vadd.f32 %v5363, %v5391
      %v5393 = vpop.f32.mrf.mxu0
      %v5394 = vadd.f32 %v5365, %v5393
      %5395 = vdwg.mxu0
      %5396 = vmatpush.bf16.msra.mxu0 0
      %5397 = vmatpush.bf16.msra.mxu0 0
      %5398 = vmatpush.bf16.msra.mxu0 0
      %5399 = vmatpush.bf16.msra.mxu0 0
      %5400 = vmatpush.bf16.msra.mxu0 %v5087
      %5401 = vmatpush.bf16.msra.mxu0 %v5086
      %5402 = vmatpush.bf16.msra.mxu0 %v5085
      %5403 = vmatpush.bf16.msra.mxu0 %v5084
      %5404 = vmatmul.bf16.gmra.mxu0 %v5269
      %v5405 = vpop.f32.mrf.mxu0
      %v5406 = vadd.f32 %v5377, %v5405
      %v5407 = vpop.f32.mrf.mxu0
      %v5408 = vadd.f32 %v5379, %v5407
      %5409 = vmatmul.bf16.gmra.mxu0 %v5272
      %v5410 = vpop.f32.mrf.mxu0
      %v5411 = vadd.f32 %v5382, %v5410
      %v5412 = vpop.f32.mrf.mxu0
      %v5413 = vadd.f32 %v5384, %v5412
      %5414 = vmatmul.bf16.gmra.mxu0 %v5275
      %v5415 = vpop.f32.mrf.mxu0
      %v5416 = vadd.f32 %v5387, %v5415
      %v5417 = vpop.f32.mrf.mxu0
      %v5418 = vadd.f32 %v5389, %v5417
      %5419 = vmatmul.bf16.gmra.mxu0 %v5278
      %v5420 = vpop.f32.mrf.mxu0
      %v5421 = vadd.f32 %v5392, %v5420
      %v5422 = vpop.f32.mrf.mxu0
      %v5423 = vadd.f32 %v5394, %v5422
      %5424 = vdwg.mxu0
      %vm5425 = vcmp.gt.f32.partialorder %v5406, 0.0
      %vm5426 = vcmp.gt.f32.partialorder %v5408, 0.0
      %vm5427 = vcmp.gt.f32.partialorder %v5411, 0.0
      %vm5428 = vcmp.gt.f32.partialorder %v5413, 0.0
      %vm5429 = vcmp.gt.f32.partialorder %v5416, 0.0
      %vm5430 = vcmp.gt.f32.partialorder %v5418, 0.0
      %vm5431 = vcmp.gt.f32.partialorder %v5421, 0.0
      %vm5432 = vcmp.gt.f32.partialorder %v5423, 0.0
      %v5433 = vmul.f32 %v5406, 0.01
      %v5434 = vmul.f32 %v5408, 0.01
      %v5435 = vmul.f32 %v5411, 0.01
      %v5436 = vmul.f32 %v5413, 0.01
      %v5437 = vmul.f32 %v5416, 0.01
      %v5438 = vmul.f32 %v5418, 0.01
      %v5439 = vmul.f32 %v5421, 0.01
      %v5440 = vmul.f32 %v5423, 0.01
      %v5441 = vsel %vm5425, %v5406, %v5433
      %v5442 = vsel %vm5426, %v5408, %v5434
      %v5443 = vsel %vm5427, %v5411, %v5435
      %v5444 = vsel %vm5428, %v5413, %v5436
      %v5445 = vsel %vm5429, %v5416, %v5437
      %v5446 = vsel %vm5430, %v5418, %v5438
      %v5447 = vsel %vm5431, %v5421, %v5439
      %v5448 = vsel %vm5432, %v5423, %v5440
      %v5449 = vpack.c.bf16 %v5441, %v5441
      %v5450 = vpack.c.bf16 %v5442, %v5442
      %v5451 = vpack.c.bf16 %v5443, %v5443
      %v5452 = vpack.c.bf16 %v5444, %v5444
      %v5453 = vpack.c.bf16 %v5445, %v5445
      %v5454 = vpack.c.bf16 %v5446, %v5446
      %v5455 = vpack.c.bf16 %v5447, %v5447
      %v5456 = vpack.c.bf16 %v5448, %v5448
      %v5465 = vunpack.c.l.b16 %v5449
      %v5466 = vunpack.c.l.b16 %v5450
      %v5467 = vunpack.c.l.b16 %v5451
      %v5468 = vunpack.c.l.b16 %v5452
      %v5469 = vunpack.c.l.b16 %v5453
      %v5470 = vunpack.c.l.b16 %v5454
      %v5471 = vunpack.c.l.b16 %v5455
      %v5472 = vunpack.c.l.b16 %v5456
      %v5473 = vpack.c.b16 %v5466, %v5465
      %v5474 = vpack.c.b16 %v5468, %v5467
      %v5475 = vpack.c.b16 %v5470, %v5469
      %v5476 = vpack.c.b16 %v5472, %v5471
      %5477 = vrot.lane.b32.xlu0 %v5473, 117
      %v5478 = vpop.permute.xlu0 %5477
      %5479 = vrot.lane.b32.xlu0 %v5474, 117
      %v5480 = vpop.permute.xlu0 %5479
      %5481 = vrot.lane.b32.xlu0 %v5475, 117
      %v5482 = vpop.permute.xlu0 %5481
      %5483 = vrot.lane.b32.xlu0 %v5476, 117
      %v5484 = vpop.permute.xlu0 %5483
      %5485 = vrot.lane.b32.xlu0 %v5473, 5
      %v5486 = vpop.permute.xlu0 %5485
      %5487 = vrot.lane.b32.xlu0 %v5474, 5
      %v5488 = vpop.permute.xlu0 %5487
      %5489 = vrot.lane.b32.xlu0 %v5475, 5
      %v5490 = vpop.permute.xlu0 %5489
      %5491 = vrot.lane.b32.xlu0 %v5476, 5
      %v5492 = vpop.permute.xlu0 %5491
      %v5495 = vsel %vm3882, %v5478, %v5486
      %v5499 = vsel %vm3882, %v5480, %v5488
      %v5503 = vsel %vm3882, %v5482, %v5490
      %v5507 = vsel %vm3882, %v5484, %v5492
      %v5509 = vsel %vm3910, %v5495, 0
      %v5510 = vsel %vm3910, %v5499, 0
      %v5511 = vsel %vm3910, %v5503, 0
      %v5512 = vsel %vm3910, %v5507, 0
      %5513 = vrot.lane.b32.xlu0 %v5473, 116
      %v5514 = vpop.permute.xlu0 %5513
      %5515 = vrot.lane.b32.xlu0 %v5474, 116
      %v5516 = vpop.permute.xlu0 %5515
      %5517 = vrot.lane.b32.xlu0 %v5475, 116
      %v5518 = vpop.permute.xlu0 %5517
      %5519 = vrot.lane.b32.xlu0 %v5476, 116
      %v5520 = vpop.permute.xlu0 %5519
      %5521 = vrot.lane.b32.xlu0 %v5473, 4
      %v5522 = vpop.permute.xlu0 %5521
      %5523 = vrot.lane.b32.xlu0 %v5474, 4
      %v5524 = vpop.permute.xlu0 %5523
      %5525 = vrot.lane.b32.xlu0 %v5475, 4
      %v5526 = vpop.permute.xlu0 %5525
      %5527 = vrot.lane.b32.xlu0 %v5476, 4
      %v5528 = vpop.permute.xlu0 %5527
      %v5531 = vsel %vm3931, %v5514, %v5522
      %v5535 = vsel %vm3931, %v5516, %v5524
      %v5539 = vsel %vm3931, %v5518, %v5526
      %v5543 = vsel %vm3931, %v5520, %v5528
      %v5545 = vsel %vm3959, %v5531, 0
      %v5546 = vsel %vm3959, %v5535, 0
      %v5547 = vsel %vm3959, %v5539, 0
      %v5548 = vsel %vm3959, %v5543, 0
      %5549 = vrot.lane.b32.xlu0 %v5473, 115
      %v5550 = vpop.permute.xlu0 %5549
      %5551 = vrot.lane.b32.xlu0 %v5474, 115
      %v5552 = vpop.permute.xlu0 %5551
      %5553 = vrot.lane.b32.xlu0 %v5475, 115
      %v5554 = vpop.permute.xlu0 %5553
      %5555 = vrot.lane.b32.xlu0 %v5476, 115
      %v5556 = vpop.permute.xlu0 %5555
      %5557 = vrot.lane.b32.xlu0 %v5473, 3
      %v5558 = vpop.permute.xlu0 %5557
      %5559 = vrot.lane.b32.xlu0 %v5474, 3
      %v5560 = vpop.permute.xlu0 %5559
      %5561 = vrot.lane.b32.xlu0 %v5475, 3
      %v5562 = vpop.permute.xlu0 %5561
      %5563 = vrot.lane.b32.xlu0 %v5476, 3
      %v5564 = vpop.permute.xlu0 %5563
      %v5567 = vsel %vm3980, %v5550, %v5558
      %v5571 = vsel %vm3980, %v5552, %v5560
      %v5575 = vsel %vm3980, %v5554, %v5562
      %v5579 = vsel %vm3980, %v5556, %v5564
      %v5581 = vsel %vm4008, %v5567, 0
      %v5582 = vsel %vm4008, %v5571, 0
      %v5583 = vsel %vm4008, %v5575, 0
      %v5584 = vsel %vm4008, %v5579, 0
      %5585 = vrot.lane.b32.xlu0 %v5473, 113
      %v5586 = vpop.permute.xlu0 %5585
      %5587 = vrot.lane.b32.xlu0 %v5474, 113
      %v5588 = vpop.permute.xlu0 %5587
      %5589 = vrot.lane.b32.xlu0 %v5475, 113
      %v5590 = vpop.permute.xlu0 %5589
      %5591 = vrot.lane.b32.xlu0 %v5476, 113
      %v5592 = vpop.permute.xlu0 %5591
      %5593 = vrot.lane.b32.xlu0 %v5473, 1
      %v5594 = vpop.permute.xlu0 %5593
      %5595 = vrot.lane.b32.xlu0 %v5474, 1
      %v5596 = vpop.permute.xlu0 %5595
      %5597 = vrot.lane.b32.xlu0 %v5475, 1
      %v5598 = vpop.permute.xlu0 %5597
      %5599 = vrot.lane.b32.xlu0 %v5476, 1
      %v5600 = vpop.permute.xlu0 %5599
      %v5603 = vsel %vm445, %v5586, %v5594
      %v5607 = vsel %vm445, %v5588, %v5596
      %v5611 = vsel %vm445, %v5590, %v5598
      %v5615 = vsel %vm445, %v5592, %v5600
      %v5617 = vsel %vm4056, %v5603, 0
      %v5618 = vsel %vm4056, %v5607, 0
      %v5619 = vsel %vm4056, %v5611, 0
      %v5620 = vsel %vm4056, %v5615, 0
      %v5621 = vsel %vm4063, %v5449, 0
      %v5622 = vsel %vm4063, %v5450, 0
      %v5623 = vsel %vm4063, %v5451, 0
      %v5624 = vsel %vm4063, %v5452, 0
      %v5625 = vsel %vm4063, %v5453, 0
      %v5626 = vsel %vm4063, %v5454, 0
      %v5627 = vsel %vm4063, %v5455, 0
      %v5628 = vsel %vm4063, %v5456, 0
      %5629 = vrot.lane.b32.xlu0 %v5473, 127
      %v5630 = vpop.permute.xlu0 %5629
      %5631 = vrot.lane.b32.xlu0 %v5474, 127
      %v5632 = vpop.permute.xlu0 %5631
      %5633 = vrot.lane.b32.xlu0 %v5475, 127
      %v5634 = vpop.permute.xlu0 %5633
      %5635 = vrot.lane.b32.xlu0 %v5476, 127
      %v5636 = vpop.permute.xlu0 %5635
      %5637 = vrot.lane.b32.xlu0 %v5473, 15
      %v5638 = vpop.permute.xlu0 %5637
      %5639 = vrot.lane.b32.xlu0 %v5474, 15
      %v5640 = vpop.permute.xlu0 %5639
      %5641 = vrot.lane.b32.xlu0 %v5475, 15
      %v5642 = vpop.permute.xlu0 %5641
      %5643 = vrot.lane.b32.xlu0 %v5476, 15
      %v5644 = vpop.permute.xlu0 %5643
      %v5647 = vsel %vm413, %v5630, %v5638
      %v5651 = vsel %vm413, %v5632, %v5640
      %v5655 = vsel %vm413, %v5634, %v5642
      %v5659 = vsel %vm413, %v5636, %v5644
      %v5661 = vsel %vm4115, %v5647, 0
      %v5662 = vsel %vm4115, %v5651, 0
      %v5663 = vsel %vm4115, %v5655, 0
      %v5664 = vsel %vm4115, %v5659, 0
      %5665 = vrot.lane.b32.xlu0 %v5473, 125
      %v5666 = vpop.permute.xlu0 %5665
      %5667 = vrot.lane.b32.xlu0 %v5474, 125
      %v5668 = vpop.permute.xlu0 %5667
      %5669 = vrot.lane.b32.xlu0 %v5475, 125
      %v5670 = vpop.permute.xlu0 %5669
      %5671 = vrot.lane.b32.xlu0 %v5476, 125
      %v5672 = vpop.permute.xlu0 %5671
      %5673 = vrot.lane.b32.xlu0 %v5473, 13
      %v5674 = vpop.permute.xlu0 %5673
      %5675 = vrot.lane.b32.xlu0 %v5474, 13
      %v5676 = vpop.permute.xlu0 %5675
      %5677 = vrot.lane.b32.xlu0 %v5475, 13
      %v5678 = vpop.permute.xlu0 %5677
      %5679 = vrot.lane.b32.xlu0 %v5476, 13
      %v5680 = vpop.permute.xlu0 %5679
      %v5683 = vsel %vm4136, %v5666, %v5674
      %v5687 = vsel %vm4136, %v5668, %v5676
      %v5691 = vsel %vm4136, %v5670, %v5678
      %v5695 = vsel %vm4136, %v5672, %v5680
      %v5697 = vsel %vm4164, %v5683, 0
      %v5698 = vsel %vm4164, %v5687, 0
      %v5699 = vsel %vm4164, %v5691, 0
      %v5700 = vsel %vm4164, %v5695, 0
      %5701 = vrot.lane.b32.xlu0 %v5473, 124
      %v5702 = vpop.permute.xlu0 %5701
      %5703 = vrot.lane.b32.xlu0 %v5474, 124
      %v5704 = vpop.permute.xlu0 %5703
      %5705 = vrot.lane.b32.xlu0 %v5475, 124
      %v5706 = vpop.permute.xlu0 %5705
      %5707 = vrot.lane.b32.xlu0 %v5476, 124
      %v5708 = vpop.permute.xlu0 %5707
      %5709 = vrot.lane.b32.xlu0 %v5473, 12
      %v5710 = vpop.permute.xlu0 %5709
      %5711 = vrot.lane.b32.xlu0 %v5474, 12
      %v5712 = vpop.permute.xlu0 %5711
      %5713 = vrot.lane.b32.xlu0 %v5475, 12
      %v5714 = vpop.permute.xlu0 %5713
      %5715 = vrot.lane.b32.xlu0 %v5476, 12
      %v5716 = vpop.permute.xlu0 %5715
      %v5719 = vsel %vm4185, %v5702, %v5710
      %v5723 = vsel %vm4185, %v5704, %v5712
      %v5727 = vsel %vm4185, %v5706, %v5714
      %v5731 = vsel %vm4185, %v5708, %v5716
      %v5733 = vsel %vm4213, %v5719, 0
      %v5734 = vsel %vm4213, %v5723, 0
      %v5735 = vsel %vm4213, %v5727, 0
      %v5736 = vsel %vm4213, %v5731, 0
      %5737 = vrot.lane.b32.xlu0 %v5473, 123
      %v5738 = vpop.permute.xlu0 %5737
      %5739 = vrot.lane.b32.xlu0 %v5474, 123
      %v5740 = vpop.permute.xlu0 %5739
      %5741 = vrot.lane.b32.xlu0 %v5475, 123
      %v5742 = vpop.permute.xlu0 %5741
      %5743 = vrot.lane.b32.xlu0 %v5476, 123
      %v5744 = vpop.permute.xlu0 %5743
      %5745 = vrot.lane.b32.xlu0 %v5473, 11
      %v5746 = vpop.permute.xlu0 %5745
      %5747 = vrot.lane.b32.xlu0 %v5474, 11
      %v5748 = vpop.permute.xlu0 %5747
      %5749 = vrot.lane.b32.xlu0 %v5475, 11
      %v5750 = vpop.permute.xlu0 %5749
      %5751 = vrot.lane.b32.xlu0 %v5476, 11
      %v5752 = vpop.permute.xlu0 %5751
      %v5755 = vsel %vm4234, %v5738, %v5746
      %v5759 = vsel %vm4234, %v5740, %v5748
      %v5763 = vsel %vm4234, %v5742, %v5750
      %v5767 = vsel %vm4234, %v5744, %v5752
      %v5769 = vsel %vm4262, %v5755, 0
      %v5770 = vsel %vm4262, %v5759, 0
      %v5771 = vsel %vm4262, %v5763, 0
      %v5772 = vsel %vm4262, %v5767, 0
      %v5781 = vunpack.c.l.b16 %v5621
      %v5782 = vunpack.c.l.b16 %v5622
      %v5783 = vunpack.c.l.b16 %v5623
      %v5784 = vunpack.c.l.b16 %v5624
      %v5785 = vunpack.c.l.b16 %v5625
      %v5786 = vunpack.c.l.b16 %v5626
      %v5787 = vunpack.c.l.b16 %v5627
      %v5788 = vunpack.c.l.b16 %v5628
      %v5789 = vpack.c.b16 %v5782, %v5781
      %v5790 = vpack.c.b16 %v5784, %v5783
      %v5791 = vpack.c.b16 %v5786, %v5785
      %v5792 = vpack.c.b16 %v5788, %v5787
      %v5797 = vld [vmem:[%s1 + $0x4d8] sm:$0xff]
      %v5798 = vld [vmem:[%s1 + $0x4e0] sm:$0xff]
      %v5799 = vld [vmem:[%s1 + $0x4e8] sm:$0xf]
      %v5800 = vld [vmem:[%s1 + $0x4ec] sm:$0xff]
      %v5801 = vld [vmem:[%s1 + $0x4f4] sm:$0xff]
      %v5802 = vld [vmem:[%s1 + $0x4fc] sm:$0xf]
      %v5803 = vld [vmem:[%s1 + $0x500] sm:$0xff]
      %v5804 = vld [vmem:[%s1 + $0x508] sm:$0xff]
      %v5805 = vld [vmem:[%s1 + $0x510] sm:$0xf]
      %v5806 = vld [vmem:[%s1 + $0x514] sm:$0xff]
      %v5807 = vld [vmem:[%s1 + $0x51c] sm:$0xff]
      %v5808 = vld [vmem:[%s1 + $0x524] sm:$0xf]
      %v5809 = vld [vmem:[%s1 + $0x528] sm:$0xff]
      %v5810 = vld [vmem:[%s1 + $0x530] sm:$0xff]
      %v5811 = vld [vmem:[%s1 + $0x538] sm:$0xf]
      %v5812 = vld [vmem:[%s1 + $0x53c] sm:$0xff]
      %v5813 = vld [vmem:[%s1 + $0x544] sm:$0xff]
      %v5814 = vld [vmem:[%s1 + $0x54c] sm:$0xf]
      %v5815 = vld [vmem:[%s1 + $0x550] sm:$0xff]
      %v5816 = vld [vmem:[%s1 + $0x558] sm:$0xff]
      %v5817 = vld [vmem:[%s1 + $0x560] sm:$0xf]
      %v5818 = vld [vmem:[%s1 + $0x564] sm:$0xff]
      %v5819 = vld [vmem:[%s1 + $0x56c] sm:$0xff]
      %v5820 = vld [vmem:[%s1 + $0x574] sm:$0xf]
      %5821 = vset.pattern.permute.xlu0 14
      %5822 = vperm.xlu0 %5821, %v3700
      %v5823 = vpop.permute.xlu0 %5822
      %5825 = vset.pattern.permute.xlu0 14
      %5826 = vperm.xlu0 %5825, %v3701
      %v5827 = vpop.permute.xlu0 %5826
      %5829 = vset.pattern.permute.xlu0 14
      %5830 = vperm.xlu0 %5829, %v3702
      %v5831 = vpop.permute.xlu0 %5830
      %5833 = vset.pattern.permute.xlu0 14
      %5834 = vperm.xlu0 %5833, %v3703
      %v5835 = vpop.permute.xlu0 %5834
      %5837 = vset.pattern.permute.xlu0 14
      %5838 = vperm.xlu0 %5837, %v3704
      %v5839 = vpop.permute.xlu0 %5838
      %5841 = vset.pattern.permute.xlu0 14
      %5842 = vperm.xlu0 %5841, %v3705
      %v5843 = vpop.permute.xlu0 %5842
      %5845 = vset.pattern.permute.xlu0 14
      %5846 = vperm.xlu0 %5845, %v3706
      %v5847 = vpop.permute.xlu0 %5846
      %5849 = vset.pattern.permute.xlu0 14
      %5850 = vperm.xlu0 %5849, %v3707
      %v5851 = vpop.permute.xlu0 %5850
      %v5877 = vunpack.c.l.b16 %v5797
      %v5878 = vunpack.c.h.b16 %v5797
      %v5879 = vunpack.c.l.b16 %v5798
      %v5880 = vunpack.c.h.b16 %v5798
      %v5881 = vunpack.c.l.b16 %v5799
      %v5882 = vunpack.c.l.b16 %v5800
      %v5883 = vunpack.c.h.b16 %v5800
      %v5884 = vunpack.c.l.b16 %v5801
      %v5885 = vunpack.c.h.b16 %v5801
      %v5886 = vunpack.c.l.b16 %v5802
      %v5887 = vunpack.c.l.b16 %v5803
      %v5888 = vunpack.c.h.b16 %v5803
      %v5889 = vunpack.c.l.b16 %v5804
      %v5890 = vunpack.c.h.b16 %v5804
      %v5891 = vunpack.c.l.b16 %v5805
      %v5892 = vunpack.c.l.b16 %v5806
      %v5893 = vunpack.c.h.b16 %v5806
      %v5894 = vunpack.c.l.b16 %v5807
      %v5895 = vunpack.c.h.b16 %v5807
      %v5896 = vunpack.c.l.b16 %v5808
      %v5897 = vunpack.c.l.b16 %v5809
      %v5898 = vunpack.c.h.b16 %v5809
      %v5899 = vunpack.c.l.b16 %v5810
      %v5900 = vunpack.c.h.b16 %v5810
      %v5901 = vunpack.c.l.b16 %v5811
      %v5902 = vunpack.c.l.b16 %v5812
      %v5903 = vunpack.c.h.b16 %v5812
      %v5904 = vunpack.c.l.b16 %v5813
      %v5905 = vunpack.c.h.b16 %v5813
      %v5906 = vunpack.c.l.b16 %v5814
      %v5907 = vunpack.c.l.b16 %v5815
      %v5908 = vunpack.c.h.b16 %v5815
      %v5909 = vunpack.c.l.b16 %v5816
      %v5910 = vunpack.c.h.b16 %v5816
      %v5911 = vunpack.c.l.b16 %v5817
      %v5912 = vunpack.c.l.b16 %v5818
      %v5913 = vunpack.c.h.b16 %v5818
      %v5914 = vunpack.c.l.b16 %v5819
      %v5915 = vunpack.c.h.b16 %v5819
      %v5916 = vunpack.c.l.b16 %v5820
      %v5917 = vpack.c.b16 %v5882, %v5877
      %v5918 = vpack.c.b16 %v5883, %v5878
      %v5919 = vpack.c.b16 %v5884, %v5879
      %v5920 = vpack.c.b16 %v5885, %v5880
      %v5921 = vpack.c.b16 %v5886, %v5881
      %v5922 = vpack.c.b16 %v5892, %v5887
      %v5923 = vpack.c.b16 %v5893, %v5888
      %v5924 = vpack.c.b16 %v5894, %v5889
      %v5925 = vpack.c.b16 %v5895, %v5890
      %v5926 = vpack.c.b16 %v5896, %v5891
      %v5927 = vpack.c.b16 %v5902, %v5897
      %v5928 = vpack.c.b16 %v5903, %v5898
      %v5929 = vpack.c.b16 %v5904, %v5899
      %v5930 = vpack.c.b16 %v5905, %v5900
      %v5931 = vpack.c.b16 %v5906, %v5901
      %v5932 = vpack.c.b16 %v5912, %v5907
      %v5933 = vpack.c.b16 %v5913, %v5908
      %v5934 = vpack.c.b16 %v5914, %v5909
      %v5935 = vpack.c.b16 %v5915, %v5910
      %v5936 = vpack.c.b16 %v5916, %v5911
      %v5954 = vsel %vm3772, %v5921, 0
      %v5957 = vsel %vm3772, %v5926, 0
      %v5960 = vsel %vm3772, %v5931, 0
      %v5963 = vsel %vm3772, %v5936, 0
      %5965 = vmatpush.bf16.msra.mxu0 %v5548
      %5966 = vmatpush.bf16.msra.mxu0 %v5547
      %5967 = vmatpush.bf16.msra.mxu0 %v5546
      %5968 = vmatpush.bf16.msra.mxu0 %v5545
      %5969 = vmatpush.bf16.msra.mxu0 %v5512
      %5970 = vmatpush.bf16.msra.mxu0 %v5511
      %5971 = vmatpush.bf16.msra.mxu0 %v5510
      %5972 = vmatpush.bf16.msra.mxu0 %v5509
      %5973 = vmatmul.bf16.gmra.mxu0 %v5917
      %v5974 = vpop.f32.mrf.mxu0
      %v5975 = vadd.f32 %v5823, %v5974
      %v5976 = vpop.f32.mrf.mxu0
      %v5977 = vadd.f32 %v5827, %v5976
      %5978 = vmatmul.bf16.gmra.mxu0 %v5922
      %v5979 = vpop.f32.mrf.mxu0
      %v5980 = vadd.f32 %v5831, %v5979
      %v5981 = vpop.f32.mrf.mxu0
      %v5982 = vadd.f32 %v5835, %v5981
      %5983 = vmatmul.bf16.gmra.mxu0 %v5927
      %v5984 = vpop.f32.mrf.mxu0
      %v5985 = vadd.f32 %v5839, %v5984
      %v5986 = vpop.f32.mrf.mxu0
      %v5987 = vadd.f32 %v5843, %v5986
      %5988 = vmatmul.bf16.gmra.mxu0 %v5932
      %v5989 = vpop.f32.mrf.mxu0
      %v5990 = vadd.f32 %v5847, %v5989
      %v5991 = vpop.f32.mrf.mxu0
      %v5992 = vadd.f32 %v5851, %v5991
      %5993 = vdwg.mxu0
      %5994 = vmatpush.bf16.msra.mxu0 %v5620
      %5995 = vmatpush.bf16.msra.mxu0 %v5619
      %5996 = vmatpush.bf16.msra.mxu0 %v5618
      %5997 = vmatpush.bf16.msra.mxu0 %v5617
      %5998 = vmatpush.bf16.msra.mxu0 %v5584
      %5999 = vmatpush.bf16.msra.mxu0 %v5583
      %6000 = vmatpush.bf16.msra.mxu0 %v5582
      %6001 = vmatpush.bf16.msra.mxu0 %v5581
      %6002 = vmatmul.bf16.gmra.mxu0 %v5918
      %v6003 = vpop.f32.mrf.mxu0
      %v6004 = vadd.f32 %v5975, %v6003
      %v6005 = vpop.f32.mrf.mxu0
      %v6006 = vadd.f32 %v5977, %v6005
      %6007 = vmatmul.bf16.gmra.mxu0 %v5923
      %v6008 = vpop.f32.mrf.mxu0
      %v6009 = vadd.f32 %v5980, %v6008
      %v6010 = vpop.f32.mrf.mxu0
      %v6011 = vadd.f32 %v5982, %v6010
      %6012 = vmatmul.bf16.gmra.mxu0 %v5928
      %v6013 = vpop.f32.mrf.mxu0
      %v6014 = vadd.f32 %v5985, %v6013
      %v6015 = vpop.f32.mrf.mxu0
      %v6016 = vadd.f32 %v5987, %v6015
      %6017 = vmatmul.bf16.gmra.mxu0 %v5933
      %v6018 = vpop.f32.mrf.mxu0
      %v6019 = vadd.f32 %v5990, %v6018
      %v6020 = vpop.f32.mrf.mxu0
      %v6021 = vadd.f32 %v5992, %v6020
      %6022 = vdwg.mxu0
      %6023 = vmatpush.bf16.msra.mxu0 %v5664
      %6024 = vmatpush.bf16.msra.mxu0 %v5663
      %6025 = vmatpush.bf16.msra.mxu0 %v5662
      %6026 = vmatpush.bf16.msra.mxu0 %v5661
      %6027 = vmatpush.bf16.msra.mxu0 %v5792
      %6028 = vmatpush.bf16.msra.mxu0 %v5791
      %6029 = vmatpush.bf16.msra.mxu0 %v5790
      %6030 = vmatpush.bf16.msra.mxu0 %v5789
      %6031 = vmatmul.bf16.gmra.mxu0 %v5919
      %v6032 = vpop.f32.mrf.mxu0
      %v6033 = vadd.f32 %v6004, %v6032
      %v6034 = vpop.f32.mrf.mxu0
      %v6035 = vadd.f32 %v6006, %v6034
      %6036 = vmatmul.bf16.gmra.mxu0 %v5924
      %v6037 = vpop.f32.mrf.mxu0
      %v6038 = vadd.f32 %v6009, %v6037
      %v6039 = vpop.f32.mrf.mxu0
      %v6040 = vadd.f32 %v6011, %v6039
      %6041 = vmatmul.bf16.gmra.mxu0 %v5929
      %v6042 = vpop.f32.mrf.mxu0
      %v6043 = vadd.f32 %v6014, %v6042
      %v6044 = vpop.f32.mrf.mxu0
      %v6045 = vadd.f32 %v6016, %v6044
      %6046 = vmatmul.bf16.gmra.mxu0 %v5934
      %v6047 = vpop.f32.mrf.mxu0
      %v6048 = vadd.f32 %v6019, %v6047
      %v6049 = vpop.f32.mrf.mxu0
      %v6050 = vadd.f32 %v6021, %v6049
      %6051 = vdwg.mxu0
      %6052 = vmatpush.bf16.msra.mxu0 %v5736
      %6053 = vmatpush.bf16.msra.mxu0 %v5735
      %6054 = vmatpush.bf16.msra.mxu0 %v5734
      %6055 = vmatpush.bf16.msra.mxu0 %v5733
      %6056 = vmatpush.bf16.msra.mxu0 %v5700
      %6057 = vmatpush.bf16.msra.mxu0 %v5699
      %6058 = vmatpush.bf16.msra.mxu0 %v5698
      %6059 = vmatpush.bf16.msra.mxu0 %v5697
      %6060 = vmatmul.bf16.gmra.mxu0 %v5920
      %v6061 = vpop.f32.mrf.mxu0
      %v6062 = vadd.f32 %v6033, %v6061
      %v6063 = vpop.f32.mrf.mxu0
      %v6064 = vadd.f32 %v6035, %v6063
      %6065 = vmatmul.bf16.gmra.mxu0 %v5925
      %v6066 = vpop.f32.mrf.mxu0
      %v6067 = vadd.f32 %v6038, %v6066
      %v6068 = vpop.f32.mrf.mxu0
      %v6069 = vadd.f32 %v6040, %v6068
      %6070 = vmatmul.bf16.gmra.mxu0 %v5930
      %v6071 = vpop.f32.mrf.mxu0
      %v6072 = vadd.f32 %v6043, %v6071
      %v6073 = vpop.f32.mrf.mxu0
      %v6074 = vadd.f32 %v6045, %v6073
      %6075 = vmatmul.bf16.gmra.mxu0 %v5935
      %v6076 = vpop.f32.mrf.mxu0
      %v6077 = vadd.f32 %v6048, %v6076
      %v6078 = vpop.f32.mrf.mxu0
      %v6079 = vadd.f32 %v6050, %v6078
      %6080 = vdwg.mxu0
      %6081 = vmatpush.bf16.msra.mxu0 0
      %6082 = vmatpush.bf16.msra.mxu0 0
      %6083 = vmatpush.bf16.msra.mxu0 0
      %6084 = vmatpush.bf16.msra.mxu0 0
      %6085 = vmatpush.bf16.msra.mxu0 %v5772
      %6086 = vmatpush.bf16.msra.mxu0 %v5771
      %6087 = vmatpush.bf16.msra.mxu0 %v5770
      %6088 = vmatpush.bf16.msra.mxu0 %v5769
      %6089 = vmatmul.bf16.gmra.mxu0 %v5954
      %v6090 = vpop.f32.mrf.mxu0
      %v6091 = vadd.f32 %v6062, %v6090
      %v6092 = vpop.f32.mrf.mxu0
      %v6093 = vadd.f32 %v6064, %v6092
      %6094 = vmatmul.bf16.gmra.mxu0 %v5957
      %v6095 = vpop.f32.mrf.mxu0
      %v6096 = vadd.f32 %v6067, %v6095
      %v6097 = vpop.f32.mrf.mxu0
      %v6098 = vadd.f32 %v6069, %v6097
      %6099 = vmatmul.bf16.gmra.mxu0 %v5960
      %v6100 = vpop.f32.mrf.mxu0
      %v6101 = vadd.f32 %v6072, %v6100
      %v6102 = vpop.f32.mrf.mxu0
      %v6103 = vadd.f32 %v6074, %v6102
      %6104 = vmatmul.bf16.gmra.mxu0 %v5963
      %v6105 = vpop.f32.mrf.mxu0
      %v6106 = vadd.f32 %v6077, %v6105
      %v6107 = vpop.f32.mrf.mxu0
      %v6108 = vadd.f32 %v6079, %v6107
      %6109 = vdwg.mxu0
      %v6110 = vadd.f32 %v6091, %v4756
      %v6111 = vadd.f32 %v6093, %v4757
      %v6112 = vadd.f32 %v6096, %v4758
      %v6113 = vadd.f32 %v6098, %v4759
      %v6114 = vadd.f32 %v6101, %v4760
      %v6115 = vadd.f32 %v6103, %v4761
      %v6116 = vadd.f32 %v6106, %v4762
      %v6117 = vadd.f32 %v6108, %v4763
      %vm6118 = vcmp.gt.f32.partialorder %v6110, 0.0
      %vm6119 = vcmp.gt.f32.partialorder %v6111, 0.0
      %vm6120 = vcmp.gt.f32.partialorder %v6112, 0.0
      %vm6121 = vcmp.gt.f32.partialorder %v6113, 0.0
      %vm6122 = vcmp.gt.f32.partialorder %v6114, 0.0
      %vm6123 = vcmp.gt.f32.partialorder %v6115, 0.0
      %vm6124 = vcmp.gt.f32.partialorder %v6116, 0.0
      %vm6125 = vcmp.gt.f32.partialorder %v6117, 0.0
      %v6126 = vmul.f32 %v6110, 0.01
      %v6127 = vmul.f32 %v6111, 0.01
      %v6128 = vmul.f32 %v6112, 0.01
      %v6129 = vmul.f32 %v6113, 0.01
      %v6130 = vmul.f32 %v6114, 0.01
      %v6131 = vmul.f32 %v6115, 0.01
      %v6132 = vmul.f32 %v6116, 0.01
      %v6133 = vmul.f32 %v6117, 0.01
      %v6134 = vsel %vm6118, %v6110, %v6126
      %v6135 = vsel %vm6119, %v6111, %v6127
      %v6136 = vsel %vm6120, %v6112, %v6128
      %v6137 = vsel %vm6121, %v6113, %v6129
      %v6138 = vsel %vm6122, %v6114, %v6130
      %v6139 = vsel %vm6123, %v6115, %v6131
      %v6140 = vsel %vm6124, %v6116, %v6132
      %v6141 = vsel %vm6125, %v6117, %v6133
      %v6142 = vsel %vm381, %v6134, 0.0
      %6143 = vadd.xlane.f32.xlu0 %v6142
      %v6144 = vpop.xlane.xlu0 %6143
      %v6145 = vsel %vm381, %v6135, 0.0
      %6146 = vadd.xlane.f32.xlu0 %v6145
      %v6147 = vpop.xlane.xlu0 %6146
      %v6148 = vsel %vm381, %v6136, 0.0
      %6149 = vadd.xlane.f32.xlu0 %v6148
      %v6150 = vpop.xlane.xlu0 %6149
      %v6151 = vsel %vm381, %v6137, 0.0
      %6152 = vadd.xlane.f32.xlu0 %v6151
      %v6153 = vpop.xlane.xlu0 %6152
      %v6154 = vsel %vm381, %v6138, 0.0
      %6155 = vadd.xlane.f32.xlu0 %v6154
      %v6156 = vpop.xlane.xlu0 %6155
      %v6157 = vsel %vm381, %v6139, 0.0
      %6158 = vadd.xlane.f32.xlu0 %v6157
      %v6159 = vpop.xlane.xlu0 %6158
      %v6160 = vsel %vm381, %v6140, 0.0
      %6161 = vadd.xlane.f32.xlu0 %v6160
      %v6162 = vpop.xlane.xlu0 %6161
      %v6163 = vsel %vm381, %v6141, 0.0
      %6164 = vadd.xlane.f32.xlu0 %v6163
      %v6165 = vpop.xlane.xlu0 %6164
      %v6166 = vmul.f32 %v6144, 0.0625
      %v6167 = vmul.f32 %v6147, 0.0625
      %v6168 = vmul.f32 %v6150, 0.0625
      %v6169 = vmul.f32 %v6153, 0.0625
      %v6170 = vmul.f32 %v6156, 0.0625
      %v6171 = vmul.f32 %v6159, 0.0625
      %v6172 = vmul.f32 %v6162, 0.0625
      %v6173 = vmul.f32 %v6165, 0.0625
      %v6174 = vld [vmem:[%s1 + $0x578] sm:$0xf]
      %v6175 = vld [vmem:[%s1 + $0x58c] sm:$0xf]
      %v6176 = vpack.c.bf16 %v6167, %v6166
      %v6177 = vpack.c.bf16 %v6169, %v6168
      %v6178 = vpack.c.bf16 %v6171, %v6170
      %v6179 = vpack.c.bf16 %v6173, %v6172
      %v6180 = vld [vmem:[%s2] sm:$0xff]
      %v6181 = vld [vmem:[%s2 + $0x8] sm:$0x7f]
      %v6184 = vunpack.c.l.b16 %v6174
      %v6185 = vunpack.c.l.b16 %v6175
      %v6186 = vpack.c.b16 %v6185, %v6184
      %6189 = vrot.lane.b32.xlu0 %v6180, 113
      %v6190 = vpop.permute.xlu0 %6189
      %6191 = vrot.lane.b32.xlu0 %v6181, 113
      %v6192 = vpop.permute.xlu0 %6191
      %v6196 = vsel %vm3772, %v6186, 0
      %6198 = vmatpush.bf16.msra.mxu0 0
      %6199 = vmatpush.bf16.msra.mxu0 0
      %6200 = vmatpush.bf16.msra.mxu0 0
      %6201 = vmatpush.bf16.msra.mxu0 0
      %6202 = vmatpush.bf16.msra.mxu0 %v6179
      %6203 = vmatpush.bf16.msra.mxu0 %v6178
      %6204 = vmatpush.bf16.msra.mxu0 %v6177
      %6205 = vmatpush.bf16.msra.mxu0 %v6176
      %6206 = vmatmul.bf16.gmra.mxu0 %v6196
      %v6207 = vpop.f32.mrf.mxu0
      %v6208 = vadd.f32 %v6190, %v6207
      %v6209 = vpop.f32.mrf.mxu0
      %v6210 = vadd.f32 %v6192, %v6209
      %6211 = vdwg.mxu0
      %6212 = vst.msk [vmem:[%s167] sm:$0xff] %vm445, %v6208
      %vm6213 = vcmask 6144
      %6214 = vst.msk [vmem:[%s167 + $0x8] sm:$0x7f] %vm6213, %v6210
      %p6215 = scmp.lt.s32.totalorder %s14, 1
      %s6216 = scalar_select %p6215, %s14, 1
      %s6217 = smul.addr %s6216, 2
      %s6218 = smul.addr %s6217, 8
      %s6219 = scalar_lea.vmem %s3, %s6218
      // Predicated region
      $region33: #{forward.1} parent=31 // pred_check
        %p6220 = pneg %p100
      $region34: #{forward.1} parent=31 // pred_check_branch
        %6222 = sbr.rel (%p6220) target = $region36
      $region35: #{forward.1} parent=31 // pred_region
        _
      $region36: #{forward.1} parent=31 // pred_fallthru
        _
    $region32: #{forward.1} parent=5 // pred_fallthru
      _
    %p6223 = scmp.le.s32.totalorder 2, %s9
    // Predicated region
    $region37: #{forward.1} parent=5 // pred_check
      %p6224 = pneg %p6223
    $region38: #{forward.1} parent=5 // pred_check_branch
      %6226 = sbr.rel (%p6224) target = $region40
    $region39: #{forward.1} parent=5 // pred_region
      %s6227 = ssub.s32 %s9, 2
      // Predicated region
      $region41: #{forward.1} parent=39 // pred_check
        %p6228 = pneg %p106
      $region42: #{forward.1} parent=39 // pred_check_branch
        %6230 = sbr.rel (%p6228) target = $region44
      $region43: #{forward.1} parent=39 // pred_region
        %p6231 = scmp.lt.s32.totalorder %s15, 1
        %s6232 = scalar_select %p6231, %s15, 1
        %s6233 = smul.addr %s6232, 2
        %s6234 = smul.addr %s6233, 8
        %s6235 = scalar_lea.vmem %s3, %s6234
      $region44: #{forward.1} parent=39 // pred_fallthru
        _
    $region40: #{forward.1} parent=5 // pred_fallthru
      _
  $region6: #{forward.1} parent=0 // loop_footer
    %s13 = sadd.s32 1, %s9
  $region7: #{forward.1} parent=0 // loop_footer_branch
    %8 = sbr.rel target = $region3
  $region8: #{forward.1} parent=0 // loop_exit
    _

</llo_original>
